<compile_context>
chip_gen: v7x
topology: tpu7x:2x2x1
jax: 0.10.0
libtpu: 0.0.40
codegen_flags: <defaults>
</compile_context>

<pallas_src>
import math

import jax
import jax.numpy as jnp
from jax.experimental import pallas as pl
from jax.experimental.pallas import tpu as pltpu


# ----------------------------------------------------------------------------
# Network geometry (PyTorch module with a 96x96 single-channel input)
# ----------------------------------------------------------------------------
H_IN = W_IN = 96
K1, S1, C1 = 8, 4, 32            # conv1: 1  -> 32, k8, s4   -> 23x23
K2, S2, C2 = 4, 2, 64            # conv2: 32 -> 64, k4, s2   -> 10x10
K3, S3, C3 = 3, 1, 64            # conv3: 64 -> 64, k3, s1   ->  8x8
OH1 = (H_IN - K1) // S1 + 1      # 23
OH2 = (OH1 - K2) // S2 + 1       # 10
OH3 = (OH2 - K3) // S3 + 1       # 8

# conv1's 23x23 output is kept as 4 stride-2 phases on a padded 12x12 grid so
# that conv2 (stride 2) becomes a stride-1 conv reading contiguous slices.
PG = (OH1 + 1) // 2              # 12  : phase-grid side (23 padded to 24)
M1 = PG * PG                     # 144 : rows per conv1 phase
M2 = 128                         # rows of flattened conv2 output (pitch PG)
M3 = OH3 * PG                    # 96  : rows of flattened conv3 output (pitch PG)

# Bounds checks (static):
#   conv2 tap (i,j) reads phase row q2 + (i//2)*PG + (j//2); max i//2 = (K2-1)//2.
#     -> max h1 row read = (M2-1) + PG + 1 = 140 <= M1-1 = 143.
assert (M2 - 1) + ((K2 - 1) // 2) * PG + ((K2 - 1) // 2) <= M1 - 1
#   conv3 tap (i,j) reads h2 row q3 + i*PG + j.
#     -> max h2 row read = (M3-1) + 2*PG + 2 = 121 <= M2-1 = 127.
assert (M3 - 1) + (K3 - 1) * PG + (K3 - 1) <= M2 - 1
#   every valid conv2 output row (oy*PG+ox, oy,ox < 10) is computed.
assert (OH2 - 1) * PG + (OH2 - 1) <= M2 - 1


# ----------------------------------------------------------------------------
# Fused kernel: conv1 + relu -> conv2 + relu -> conv3 + relu (one batch elem)
# ----------------------------------------------------------------------------
def fused_net_kernel(cols1_ref, w1_ref, b1_ref, w2_ref, b2_ref, w3_ref, b3_ref,
                     o_ref, h1_ref, h2_ref):
    # ---- conv1 (+ReLU): single (4*M1, 64) x (64, 32) GEMM -------------------
    acc1 = jnp.dot(cols1_ref[0], w1_ref[...],
                   preferred_element_type=jnp.float32)          # (576, 32)
    h1_ref[...] = jnp.maximum(acc1 + b1_ref[...], 0.0)          # 4 phases, pitch M1

    # ---- conv2 (+ReLU): 16 taps, each a contiguous-slice (128,32)x(32,64) ---
    acc2 = jnp.zeros((M2, C2), jnp.float32)
    for i in range(K2):
        for j in range(K2):
            ph = (i % 2) * 2 + (j % 2)                 # stride-2 phase of h1
            off = (i // 2) * PG + (j // 2)             # shift inside the phase
            lhs = h1_ref[pl.ds(ph * M1 + off, M2), :]  # (M2, 32)
            acc2 = acc2 + jnp.dot(lhs, w2_ref[i * K2 + j],
                                  preferred_element_type=jnp.float32)
    h2_ref[...] = jnp.maximum(acc2 + b2_ref[...], 0.0)  # (M2, 64), pitch PG

    # ---- conv3 (+ReLU): 9 taps, each a contiguous-slice (96,64)x(64,64) -----
    acc3 = jnp.zeros((M3, C3), jnp.float32)
    for i in range(K3):
        for j in range(K3):
            off = i * PG + j
            lhs = h2_ref[pl.ds(off, M3), :]            # (M3, 64)
            acc3 = acc3 + jnp.dot(lhs, w3_ref[i * K3 + j],
                                  preferred_element_type=jnp.float32)
    o_ref[0] = jnp.maximum(acc3 + b3_ref[...], 0.0)    # (M3, 64), pitch PG


# ----------------------------------------------------------------------------
# Wrapper
# ----------------------------------------------------------------------------
def _build_phase_cols1(x):
    """x: (N, 96, 96) -> (N, 4*144, 64) conv1 im2col grouped by the 4
    stride-2 phases of conv1's 23x23 output (each padded to a 12x12 grid)."""
    n = x.shape[0]
    taps = []
    for ky in range(K1):
        for kx in range(K1):
            taps.append(x[:, ky:ky + S1 * OH1:S1, kx:kx + S1 * OH1:S1])
    pat = jnp.stack(taps, axis=-1)                                # (N,23,23,64)
    pad = 2 * PG - OH1                                            # 1
    pat = jnp.pad(pat, ((0, 0), (0, pad), (0, pad), (0, 0)))      # (N,24,24,64)
    pat = pat.reshape(n, PG, 2, PG, 2, K1 * K1)                   # [n,Y,dy,X,dx,k]
    pat = pat.transpose(0, 2, 4, 1, 3, 5)                         # [n,dy,dx,Y,X,k]
    return pat.reshape(n, 4 * M1, K1 * K1)


@jax.jit
def network_forward(x, params):
    """x: (N, 96, 96) float32 -> (N, 64, 8, 8) float32 (NCHW, like PyTorch)."""
    n = x.shape[0]
    w1, b1 = params["conv1"]            # (8,8,1,32), (32,)
    w2, b2 = params["conv2"]            # (4,4,32,64), (64,)
    w3, b3 = params["conv3"]            # (3,3,64,64), (64,)

    cols1 = _build_phase_cols1(x)                       # (N, 576, 64)
    w1f = w1.reshape(K1 * K1, C1)                       # (64, 32)  (ky,kx,cin)
    w2t = w2.reshape(K2 * K2, C1, C2)                   # (16, 32, 64)
    w3t = w3.reshape(K3 * K3, C2, C3)                   # (9, 64, 64)

    out_full = pl.pallas_call(
        fused_net_kernel,
        out_shape=jax.ShapeDtypeStruct((n, M3, C3), jnp.float32),
        grid=(n,),
        in_specs=[
            pl.BlockSpec((1, 4 * M1, K1 * K1), lambda b: (b, 0, 0)),
            pl.BlockSpec((K1 * K1, C1), lambda b: (0, 0)),       # resident
            pl.BlockSpec((1, C1), lambda b: (0, 0)),
            pl.BlockSpec((K2 * K2, C1, C2), lambda b: (0, 0, 0)),
            pl.BlockSpec((1, C2), lambda b: (0, 0)),
            pl.BlockSpec((K3 * K3, C2, C3), lambda b: (0, 0, 0)),
            pl.BlockSpec((1, C3), lambda b: (0, 0)),
        ],
        out_specs=pl.BlockSpec((1, M3, C3), lambda b: (b, 0, 0)),
        scratch_shapes=[
            pltpu.VMEM((4 * M1, C1), jnp.float32),  # conv1 output (4 phases)
            pltpu.VMEM((M2, C2), jnp.float32),      # conv2 output (flattened)
        ],
        compiler_params=pltpu.CompilerParams(
            dimension_semantics=("parallel",)),     # v7x: one batch elem / TC
    )(cols1, w1f, b1.reshape(1, C1), w2t, b2.reshape(1, C2), w3t,
      b3.reshape(1, C3))

    # Valid conv3 rows sit at q = oy*PG + ox -> (N, 8, 8, 64) -> NCHW
    out = out_full.reshape(n, OH3, PG, C3)[:, :, :OH3, :]
    return jnp.transpose(out, (0, 3, 1, 2))


# ----------------------------------------------------------------------------
# Parameter init (mimics PyTorch default uniform(-1/sqrt(fan_in), ...))
# ----------------------------------------------------------------------------
def init_conv(key, cin, cout, k):
    fan_in = cin * k * k
    bound = 1.0 / math.sqrt(fan_in)
    kw_key, kb_key = jax.random.split(key)
    w = jax.random.uniform(kw_key, (k, k, cin, cout), jnp.float32, -bound, bound)
    b = jax.random.uniform(kb_key, (cout,), jnp.float32, -bound, bound)
    return w, b


def init_network(key):
    k1, k2, k3 = jax.random.split(key, 3)
    return {"conv1": init_conv(k1, 1, C1, K1),
            "conv2": init_conv(k2, C1, C2, K2),
            "conv3": init_conv(k3, C2, C3, K3)}


def reference_forward(x, params):
    """Pure-JAX/XLA reference (same math as the PyTorch module)."""
    h = x[:, :, :, None]
    for name, stride in (("conv1", S1), ("conv2", S2), ("conv3", S3)):
        w, b = params[name]
        h = jax.lax.conv_general_dilated(
            h, w, window_strides=(stride, stride), padding="VALID",
            dimension_numbers=("NHWC", "HWIO", "NHWC"))
        h = jnp.maximum(h + b, 0.0)
    return jnp.transpose(h, (0, 3, 1, 2))


if __name__ == "__main__":
    key = jax.random.PRNGKey(0)
    k_x, k_p = jax.random.split(key)

    # Input consistent with the reference script (96x96 screen), batch=2.
    x = jax.random.normal(k_x, (2, H_IN, W_IN), dtype=jnp.float32)
    params = init_network(k_p)

    out = jax.block_until_ready(network_forward(x, params))

    assert out.shape == (2, C3, OH3, OH3), out.shape
    assert out.dtype == jnp.float32
    assert bool(jnp.all(out >= 0.0))          # ReLU output

    ref = jax.block_until_ready(reference_forward(x, params))
    max_err = float(jnp.max(jnp.abs(out - ref)))
    assert bool(jnp.allclose(out, ref, atol=1e-4, rtol=1e-4)), max_err

    print("KERNEL_OK")
</pallas_src>

<mosaic_0001>
module attributes {stable_mosaic.version = 11 : i64} {
  func.func @fused_net_kernel(%arg0: i32, %arg1: memref<1x576x64xf32, #tpu.memory_space<vmem>>, %arg2: memref<64x32xf32, #tpu.memory_space<vmem>>, %arg3: memref<1x32xf32, #tpu.memory_space<vmem>>, %arg4: memref<16x32x64xf32, #tpu.memory_space<vmem>>, %arg5: memref<1x64xf32, #tpu.memory_space<vmem>>, %arg6: memref<9x64x64xf32, #tpu.memory_space<vmem>>, %arg7: memref<1x64xf32, #tpu.memory_space<vmem>>, %arg8: memref<1x96x64xf32, #tpu.memory_space<vmem>>, %arg9: memref<576x32xf32, #tpu.memory_space<vmem>>, %arg10: memref<128x64xf32, #tpu.memory_space<vmem>>) attributes {dimension_semantics = [#tpu.dimension_semantics<parallel>], iteration_bounds = array<i64: 2>, scalar_prefetch = 0 : i64, scratch_operands = 2 : i64, tpu.core_type = #tpu.core_type<tc>, window_params = [{transform_indices = @transform_0, window_bounds = array<i64: 1, 576, 64>}, {pipeline_mode = #tpu.pipeline_mode<synchronous>, transform_indices = @transform_1, window_bounds = array<i64: 64, 32>}, {pipeline_mode = #tpu.pipeline_mode<synchronous>, transform_indices = @transform_2, window_bounds = array<i64: 1, 32>}, {pipeline_mode = #tpu.pipeline_mode<synchronous>, transform_indices = @transform_3, window_bounds = array<i64: 16, 32, 64>}, {pipeline_mode = #tpu.pipeline_mode<synchronous>, transform_indices = @transform_4, window_bounds = array<i64: 1, 64>}, {pipeline_mode = #tpu.pipeline_mode<synchronous>, transform_indices = @transform_5, window_bounds = array<i64: 9, 64, 64>}, {pipeline_mode = #tpu.pipeline_mode<synchronous>, transform_indices = @transform_6, window_bounds = array<i64: 1, 64>}, {transform_indices = @transform_7, window_bounds = array<i64: 1, 96, 64>}]} {
    %c0 = arith.constant 0 : index
    %c0_0 = arith.constant 0 : index
    %c0_1 = arith.constant 0 : index
    %0 = vector.load %arg1[%c0, %c0_0, %c0_1] : memref<1x576x64xf32, #tpu.memory_space<vmem>>, vector<1x576x64xf32>
    %1 = vector.shape_cast %0 : vector<1x576x64xf32> to vector<576x64xf32>
    %c0_2 = arith.constant 0 : index
    %c0_3 = arith.constant 0 : index
    %2 = vector.load %arg2[%c0_2, %c0_3] : memref<64x32xf32, #tpu.memory_space<vmem>>, vector<64x32xf32>
    %cst = arith.constant dense<0.000000e+00> : vector<576x32xf32>
    %3 = tpu.matmul %1, %2, %cst {dimension_numbers = #tpu.dot_dimension_numbers<[1], [0], [0], [1], [0, 0, 1, 1], [], []>} : vector<576x64xf32>, vector<64x32xf32>, vector<576x32xf32> -> vector<576x32xf32>
    %c0_4 = arith.constant 0 : index
    %c0_5 = arith.constant 0 : index
    %4 = vector.load %arg3[%c0_4, %c0_5] : memref<1x32xf32, #tpu.memory_space<vmem>>, vector<1x32xf32>
    %5 = vector.broadcast %4 : vector<1x32xf32> to vector<576x32xf32>
    %6 = arith.addf %3, %5 : vector<576x32xf32>
    %cst_6 = arith.constant 0.000000e+00 : f32
    %7 = vector.broadcast %cst_6 : f32 to vector<576x32xf32>
    %8 = arith.maximumf %6, %7 : vector<576x32xf32>
    %c0_7 = arith.constant 0 : index
    %c0_8 = arith.constant 0 : index
    %9 = vector.load %arg9[%c0_7, %c0_8] : memref<576x32xf32, #tpu.memory_space<vmem>>, vector<576x32xf32>
    tpu.vector_store %arg9[%c0_7, %c0_8], %8 {strides = array<i32>} : memref<576x32xf32, #tpu.memory_space<vmem>>, vector<576x32xf32>,
    %cst_9 = arith.constant 0.000000e+00 : f32
    %10 = vector.broadcast %cst_9 : f32 to vector<128x64xf32>
    %c0_10 = arith.constant 0 : index
    %c0_11 = arith.constant 0 : index
    %11 = vector.load %arg9[%c0_10, %c0_11] : memref<576x32xf32, #tpu.memory_space<vmem>>, vector<128x32xf32>
    %c0_12 = arith.constant 0 : index
    %c0_13 = arith.constant 0 : index
    %c0_14 = arith.constant 0 : index
    %12 = vector.load %arg4[%c0_12, %c0_13, %c0_14] : memref<16x32x64xf32, #tpu.memory_space<vmem>>, vector<1x32x64xf32>
    %13 = vector.shape_cast %12 : vector<1x32x64xf32> to vector<32x64xf32>
    %cst_15 = arith.constant dense<0.000000e+00> : vector<128x64xf32>
    %14 = tpu.matmul %11, %13, %cst_15 {dimension_numbers = #tpu.dot_dimension_numbers<[1], [0], [0], [1], [0, 0, 1, 1], [], []>} : vector<128x32xf32>, vector<32x64xf32>, vector<128x64xf32> -> vector<128x64xf32>
    %15 = arith.addf %10, %14 : vector<128x64xf32>
    %c144 = arith.constant 144 : index
    %c0_16 = arith.constant 0 : index
    %16 = vector.load %arg9[%c144, %c0_16] : memref<576x32xf32, #tpu.memory_space<vmem>>, vector<128x32xf32>
    %c1 = arith.constant 1 : index
    %c0_17 = arith.constant 0 : index
    %c0_18 = arith.constant 0 : index
    %17 = vector.load %arg4[%c1, %c0_17, %c0_18] : memref<16x32x64xf32, #tpu.memory_space<vmem>>, vector<1x32x64xf32>
    %18 = vector.shape_cast %17 : vector<1x32x64xf32> to vector<32x64xf32>
    %cst_19 = arith.constant dense<0.000000e+00> : vector<128x64xf32>
    %19 = tpu.matmul %16, %18, %cst_19 {dimension_numbers = #tpu.dot_dimension_numbers<[1], [0], [0], [1], [0, 0, 1, 1], [], []>} : vector<128x32xf32>, vector<32x64xf32>, vector<128x64xf32> -> vector<128x64xf32>
    %20 = arith.addf %15, %19 : vector<128x64xf32>
    %c1_20 = arith.constant 1 : index
    %c0_21 = arith.constant 0 : index
    %21 = vector.load %arg9[%c1_20, %c0_21] : memref<576x32xf32, #tpu.memory_space<vmem>>, vector<128x32xf32>
    %c2 = arith.constant 2 : index
    %c0_22 = arith.constant 0 : index
    %c0_23 = arith.constant 0 : index
    %22 = vector.load %arg4[%c2, %c0_22, %c0_23] : memref<16x32x64xf32, #tpu.memory_space<vmem>>, vector<1x32x64xf32>
    %23 = vector.shape_cast %22 : vector<1x32x64xf32> to vector<32x64xf32>
    %cst_24 = arith.constant dense<0.000000e+00> : vector<128x64xf32>
    %24 = tpu.matmul %21, %23, %cst_24 {dimension_numbers = #tpu.dot_dimension_numbers<[1], [0], [0], [1], [0, 0, 1, 1], [], []>} : vector<128x32xf32>, vector<32x64xf32>, vector<128x64xf32> -> vector<128x64xf32>
    %25 = arith.addf %20, %24 : vector<128x64xf32>
    %c145 = arith.constant 145 : index
    %c0_25 = arith.constant 0 : index
    %26 = vector.load %arg9[%c145, %c0_25] : memref<576x32xf32, #tpu.memory_space<vmem>>, vector<128x32xf32>
    %c3 = arith.constant 3 : index
    %c0_26 = arith.constant 0 : index
    %c0_27 = arith.constant 0 : index
    %27 = vector.load %arg4[%c3, %c0_26, %c0_27] : memref<16x32x64xf32, #tpu.memory_space<vmem>>, vector<1x32x64xf32>
    %28 = vector.shape_cast %27 : vector<1x32x64xf32> to vector<32x64xf32>
    %cst_28 = arith.constant dense<0.000000e+00> : vector<128x64xf32>
    %29 = tpu.matmul %26, %28, %cst_28 {dimension_numbers = #tpu.dot_dimension_numbers<[1], [0], [0], [1], [0, 0, 1, 1], [], []>} : vector<128x32xf32>, vector<32x64xf32>, vector<128x64xf32> -> vector<128x64xf32>
    %30 = arith.addf %25, %29 : vector<128x64xf32>
    %c288 = arith.constant 288 : index
    %c0_29 = arith.constant 0 : index
    %31 = vector.load %arg9[%c288, %c0_29] : memref<576x32xf32, #tpu.memory_space<vmem>>, vector<128x32xf32>
    %c4 = arith.constant 4 : index
    %c0_30 = arith.constant 0 : index
    %c0_31 = arith.constant 0 : index
    %32 = vector.load %arg4[%c4, %c0_30, %c0_31] : memref<16x32x64xf32, #tpu.memory_space<vmem>>, vector<1x32x64xf32>
    %33 = vector.shape_cast %32 : vector<1x32x64xf32> to vector<32x64xf32>
    %cst_32 = arith.constant dense<0.000000e+00> : vector<128x64xf32>
    %34 = tpu.matmul %31, %33, %cst_32 {dimension_numbers = #tpu.dot_dimension_numbers<[1], [0], [0], [1], [0, 0, 1, 1], [], []>} : vector<128x32xf32>, vector<32x64xf32>, vector<128x64xf32> -> vector<128x64xf32>
    %35 = arith.addf %30, %34 : vector<128x64xf32>
    %c432 = arith.constant 432 : index
    %c0_33 = arith.constant 0 : index
    %36 = vector.load %arg9[%c432, %c0_33] : memref<576x32xf32, #tpu.memory_space<vmem>>, vector<128x32xf32>
    %c5 = arith.constant 5 : index
    %c0_34 = arith.constant 0 : index
    %c0_35 = arith.constant 0 : index
    %37 = vector.load %arg4[%c5, %c0_34, %c0_35] : memref<16x32x64xf32, #tpu.memory_space<vmem>>, vector<1x32x64xf32>
    %38 = vector.shape_cast %37 : vector<1x32x64xf32> to vector<32x64xf32>
    %cst_36 = arith.constant dense<0.000000e+00> : vector<128x64xf32>
    %39 = tpu.matmul %36, %38, %cst_36 {dimension_numbers = #tpu.dot_dimension_numbers<[1], [0], [0], [1], [0, 0, 1, 1], [], []>} : vector<128x32xf32>, vector<32x64xf32>, vector<128x64xf32> -> vector<128x64xf32>
    %40 = arith.addf %35, %39 : vector<128x64xf32>
    %c289 = arith.constant 289 : index
    %c0_37 = arith.constant 0 : index
    %41 = vector.load %arg9[%c289, %c0_37] : memref<576x32xf32, #tpu.memory_space<vmem>>, vector<128x32xf32>
    %c6 = arith.constant 6 : index
    %c0_38 = arith.constant 0 : index
    %c0_39 = arith.constant 0 : index
    %42 = vector.load %arg4[%c6, %c0_38, %c0_39] : memref<16x32x64xf32, #tpu.memory_space<vmem>>, vector<1x32x64xf32>
    %43 = vector.shape_cast %42 : vector<1x32x64xf32> to vector<32x64xf32>
    %cst_40 = arith.constant dense<0.000000e+00> : vector<128x64xf32>
    %44 = tpu.matmul %41, %43, %cst_40 {dimension_numbers = #tpu.dot_dimension_numbers<[1], [0], [0], [1], [0, 0, 1, 1], [], []>} : vector<128x32xf32>, vector<32x64xf32>, vector<128x64xf32> -> vector<128x64xf32>
    %45 = arith.addf %40, %44 : vector<128x64xf32>
    %c433 = arith.constant 433 : index
    %c0_41 = arith.constant 0 : index
    %46 = vector.load %arg9[%c433, %c0_41] : memref<576x32xf32, #tpu.memory_space<vmem>>, vector<128x32xf32>
    %c7 = arith.constant 7 : index
    %c0_42 = arith.constant 0 : index
    %c0_43 = arith.constant 0 : index
    %47 = vector.load %arg4[%c7, %c0_42, %c0_43] : memref<16x32x64xf32, #tpu.memory_space<vmem>>, vector<1x32x64xf32>
    %48 = vector.shape_cast %47 : vector<1x32x64xf32> to vector<32x64xf32>
    %cst_44 = arith.constant dense<0.000000e+00> : vector<128x64xf32>
    %49 = tpu.matmul %46, %48, %cst_44 {dimension_numbers = #tpu.dot_dimension_numbers<[1], [0], [0], [1], [0, 0, 1, 1], [], []>} : vector<128x32xf32>, vector<32x64xf32>, vector<128x64xf32> -> vector<128x64xf32>
    %50 = arith.addf %45, %49 : vector<128x64xf32>
    %c12 = arith.constant 12 : index
    %c0_45 = arith.constant 0 : index
    %51 = vector.load %arg9[%c12, %c0_45] : memref<576x32xf32, #tpu.memory_space<vmem>>, vector<128x32xf32>
    %c8 = arith.constant 8 : index
    %c0_46 = arith.constant 0 : index
    %c0_47 = arith.constant 0 : index
    %52 = vector.load %arg4[%c8, %c0_46, %c0_47] : memref<16x32x64xf32, #tpu.memory_space<vmem>>, vector<1x32x64xf32>
    %53 = vector.shape_cast %52 : vector<1x32x64xf32> to vector<32x64xf32>
    %cst_48 = arith.constant dense<0.000000e+00> : vector<128x64xf32>
    %54 = tpu.matmul %51, %53, %cst_48 {dimension_numbers = #tpu.dot_dimension_numbers<[1], [0], [0], [1], [0, 0, 1, 1], [], []>} : vector<128x32xf32>, vector<32x64xf32>, vector<128x64xf32> -> vector<128x64xf32>
    %55 = arith.addf %50, %54 : vector<128x64xf32>
    %c156 = arith.constant 156 : index
    %c0_49 = arith.constant 0 : index
    %56 = vector.load %arg9[%c156, %c0_49] : memref<576x32xf32, #tpu.memory_space<vmem>>, vector<128x32xf32>
    %c9 = arith.constant 9 : index
    %c0_50 = arith.constant 0 : index
    %c0_51 = arith.constant 0 : index
    %57 = vector.load %arg4[%c9, %c0_50, %c0_51] : memref<16x32x64xf32, #tpu.memory_space<vmem>>, vector<1x32x64xf32>
    %58 = vector.shape_cast %57 : vector<1x32x64xf32> to vector<32x64xf32>
    %cst_52 = arith.constant dense<0.000000e+00> : vector<128x64xf32>
    %59 = tpu.matmul %56, %58, %cst_52 {dimension_numbers = #tpu.dot_dimension_numbers<[1], [0], [0], [1], [0, 0, 1, 1], [], []>} : vector<128x32xf32>, vector<32x64xf32>, vector<128x64xf32> -> vector<128x64xf32>
    %60 = arith.addf %55, %59 : vector<128x64xf32>
    %c13 = arith.constant 13 : index
    %c0_53 = arith.constant 0 : index
    %61 = vector.load %arg9[%c13, %c0_53] : memref<576x32xf32, #tpu.memory_space<vmem>>, vector<128x32xf32>
    %c10 = arith.constant 10 : index
    %c0_54 = arith.constant 0 : index
    %c0_55 = arith.constant 0 : index
    %62 = vector.load %arg4[%c10, %c0_54, %c0_55] : memref<16x32x64xf32, #tpu.memory_space<vmem>>, vector<1x32x64xf32>
    %63 = vector.shape_cast %62 : vector<1x32x64xf32> to vector<32x64xf32>
    %cst_56 = arith.constant dense<0.000000e+00> : vector<128x64xf32>
    %64 = tpu.matmul %61, %63, %cst_56 {dimension_numbers = #tpu.dot_dimension_numbers<[1], [0], [0], [1], [0, 0, 1, 1], [], []>} : vector<128x32xf32>, vector<32x64xf32>, vector<128x64xf32> -> vector<128x64xf32>
    %65 = arith.addf %60, %64 : vector<128x64xf32>
    %c157 = arith.constant 157 : index
    %c0_57 = arith.constant 0 : index
    %66 = vector.load %arg9[%c157, %c0_57] : memref<576x32xf32, #tpu.memory_space<vmem>>, vector<128x32xf32>
    %c11 = arith.constant 11 : index
    %c0_58 = arith.constant 0 : index
    %c0_59 = arith.constant 0 : index
    %67 = vector.load %arg4[%c11, %c0_58, %c0_59] : memref<16x32x64xf32, #tpu.memory_space<vmem>>, vector<1x32x64xf32>
    %68 = vector.shape_cast %67 : vector<1x32x64xf32> to vector<32x64xf32>
    %cst_60 = arith.constant dense<0.000000e+00> : vector<128x64xf32>
    %69 = tpu.matmul %66, %68, %cst_60 {dimension_numbers = #tpu.dot_dimension_numbers<[1], [0], [0], [1], [0, 0, 1, 1], [], []>} : vector<128x32xf32>, vector<32x64xf32>, vector<128x64xf32> -> vector<128x64xf32>
    %70 = arith.addf %65, %69 : vector<128x64xf32>
    %c300 = arith.constant 300 : index
    %c0_61 = arith.constant 0 : index
    %71 = vector.load %arg9[%c300, %c0_61] : memref<576x32xf32, #tpu.memory_space<vmem>>, vector<128x32xf32>
    %c12_62 = arith.constant 12 : index
    %c0_63 = arith.constant 0 : index
    %c0_64 = arith.constant 0 : index
    %72 = vector.load %arg4[%c12_62, %c0_63, %c0_64] : memref<16x32x64xf32, #tpu.memory_space<vmem>>, vector<1x32x64xf32>
    %73 = vector.shape_cast %72 : vector<1x32x64xf32> to vector<32x64xf32>
    %cst_65 = arith.constant dense<0.000000e+00> : vector<128x64xf32>
    %74 = tpu.matmul %71, %73, %cst_65 {dimension_numbers = #tpu.dot_dimension_numbers<[1], [0], [0], [1], [0, 0, 1, 1], [], []>} : vector<128x32xf32>, vector<32x64xf32>, vector<128x64xf32> -> vector<128x64xf32>
    %75 = arith.addf %70, %74 : vector<128x64xf32>
    %c444 = arith.constant 444 : index
    %c0_66 = arith.constant 0 : index
    %76 = vector.load %arg9[%c444, %c0_66] : memref<576x32xf32, #tpu.memory_space<vmem>>, vector<128x32xf32>
    %c13_67 = arith.constant 13 : index
    %c0_68 = arith.constant 0 : index
    %c0_69 = arith.constant 0 : index
    %77 = vector.load %arg4[%c13_67, %c0_68, %c0_69] : memref<16x32x64xf32, #tpu.memory_space<vmem>>, vector<1x32x64xf32>
    %78 = vector.shape_cast %77 : vector<1x32x64xf32> to vector<32x64xf32>
    %cst_70 = arith.constant dense<0.000000e+00> : vector<128x64xf32>
    %79 = tpu.matmul %76, %78, %cst_70 {dimension_numbers = #tpu.dot_dimension_numbers<[1], [0], [0], [1], [0, 0, 1, 1], [], []>} : vector<128x32xf32>, vector<32x64xf32>, vector<128x64xf32> -> vector<128x64xf32>
    %80 = arith.addf %75, %79 : vector<128x64xf32>
    %c301 = arith.constant 301 : index
    %c0_71 = arith.constant 0 : index
    %81 = vector.load %arg9[%c301, %c0_71] : memref<576x32xf32, #tpu.memory_space<vmem>>, vector<128x32xf32>
    %c14 = arith.constant 14 : index
    %c0_72 = arith.constant 0 : index
    %c0_73 = arith.constant 0 : index
    %82 = vector.load %arg4[%c14, %c0_72, %c0_73] : memref<16x32x64xf32, #tpu.memory_space<vmem>>, vector<1x32x64xf32>
    %83 = vector.shape_cast %82 : vector<1x32x64xf32> to vector<32x64xf32>
    %cst_74 = arith.constant dense<0.000000e+00> : vector<128x64xf32>
    %84 = tpu.matmul %81, %83, %cst_74 {dimension_numbers = #tpu.dot_dimension_numbers<[1], [0], [0], [1], [0, 0, 1, 1], [], []>} : vector<128x32xf32>, vector<32x64xf32>, vector<128x64xf32> -> vector<128x64xf32>
    %85 = arith.addf %80, %84 : vector<128x64xf32>
    %c445 = arith.constant 445 : index
    %c0_75 = arith.constant 0 : index
    %86 = vector.load %arg9[%c445, %c0_75] : memref<576x32xf32, #tpu.memory_space<vmem>>, vector<128x32xf32>
    %c15 = arith.constant 15 : index
    %c0_76 = arith.constant 0 : index
    %c0_77 = arith.constant 0 : index
    %87 = vector.load %arg4[%c15, %c0_76, %c0_77] : memref<16x32x64xf32, #tpu.memory_space<vmem>>, vector<1x32x64xf32>
    %88 = vector.shape_cast %87 : vector<1x32x64xf32> to vector<32x64xf32>
    %cst_78 = arith.constant dense<0.000000e+00> : vector<128x64xf32>
    %89 = tpu.matmul %86, %88, %cst_78 {dimension_numbers = #tpu.dot_dimension_numbers<[1], [0], [0], [1], [0, 0, 1, 1], [], []>} : vector<128x32xf32>, vector<32x64xf32>, vector<128x64xf32> -> vector<128x64xf32>
    %90 = arith.addf %85, %89 : vector<128x64xf32>
    %c0_79 = arith.constant 0 : index
    %c0_80 = arith.constant 0 : index
    %91 = vector.load %arg5[%c0_79, %c0_80] : memref<1x64xf32, #tpu.memory_space<vmem>>, vector<1x64xf32>
    %92 = vector.broadcast %91 : vector<1x64xf32> to vector<128x64xf32>
    %93 = arith.addf %90, %92 : vector<128x64xf32>
    %cst_81 = arith.constant 0.000000e+00 : f32
    %94 = vector.broadcast %cst_81 : f32 to vector<128x64xf32>
    %95 = arith.maximumf %93, %94 : vector<128x64xf32>
    %c0_82 = arith.constant 0 : index
    %c0_83 = arith.constant 0 : index
    %96 = vector.load %arg10[%c0_82, %c0_83] : memref<128x64xf32, #tpu.memory_space<vmem>>, vector<128x64xf32>
    tpu.vector_store %arg10[%c0_82, %c0_83], %95 {strides = array<i32>} : memref<128x64xf32, #tpu.memory_space<vmem>>, vector<128x64xf32>,
    %cst_84 = arith.constant 0.000000e+00 : f32
    %97 = vector.broadcast %cst_84 : f32 to vector<96x64xf32>
    %c0_85 = arith.constant 0 : index
    %c0_86 = arith.constant 0 : index
    %98 = vector.load %arg10[%c0_85, %c0_86] : memref<128x64xf32, #tpu.memory_space<vmem>>, vector<96x64xf32>
    %c0_87 = arith.constant 0 : index
    %c0_88 = arith.constant 0 : index
    %c0_89 = arith.constant 0 : index
    %99 = vector.load %arg6[%c0_87, %c0_88, %c0_89] : memref<9x64x64xf32, #tpu.memory_space<vmem>>, vector<1x64x64xf32>
    %100 = vector.shape_cast %99 : vector<1x64x64xf32> to vector<64x64xf32>
    %cst_90 = arith.constant dense<0.000000e+00> : vector<96x64xf32>
    %101 = tpu.matmul %98, %100, %cst_90 {dimension_numbers = #tpu.dot_dimension_numbers<[1], [0], [0], [1], [0, 0, 1, 1], [], []>} : vector<96x64xf32>, vector<64x64xf32>, vector<96x64xf32> -> vector<96x64xf32>
    %102 = arith.addf %97, %101 : vector<96x64xf32>
    %c1_91 = arith.constant 1 : index
    %c0_92 = arith.constant 0 : index
    %103 = vector.load %arg10[%c1_91, %c0_92] : memref<128x64xf32, #tpu.memory_space<vmem>>, vector<96x64xf32>
    %c1_93 = arith.constant 1 : index
    %c0_94 = arith.constant 0 : index
    %c0_95 = arith.constant 0 : index
    %104 = vector.load %arg6[%c1_93, %c0_94, %c0_95] : memref<9x64x64xf32, #tpu.memory_space<vmem>>, vector<1x64x64xf32>
    %105 = vector.shape_cast %104 : vector<1x64x64xf32> to vector<64x64xf32>
    %cst_96 = arith.constant dense<0.000000e+00> : vector<96x64xf32>
    %106 = tpu.matmul %103, %105, %cst_96 {dimension_numbers = #tpu.dot_dimension_numbers<[1], [0], [0], [1], [0, 0, 1, 1], [], []>} : vector<96x64xf32>, vector<64x64xf32>, vector<96x64xf32> -> vector<96x64xf32>
    %107 = arith.addf %102, %106 : vector<96x64xf32>
    %c2_97 = arith.constant 2 : index
    %c0_98 = arith.constant 0 : index
    %108 = vector.load %arg10[%c2_97, %c0_98] : memref<128x64xf32, #tpu.memory_space<vmem>>, vector<96x64xf32>
    %c2_99 = arith.constant 2 : index
    %c0_100 = arith.constant 0 : index
    %c0_101 = arith.constant 0 : index
    %109 = vector.load %arg6[%c2_99, %c0_100, %c0_101] : memref<9x64x64xf32, #tpu.memory_space<vmem>>, vector<1x64x64xf32>
    %110 = vector.shape_cast %109 : vector<1x64x64xf32> to vector<64x64xf32>
    %cst_102 = arith.constant dense<0.000000e+00> : vector<96x64xf32>
    %111 = tpu.matmul %108, %110, %cst_102 {dimension_numbers = #tpu.dot_dimension_numbers<[1], [0], [0], [1], [0, 0, 1, 1], [], []>} : vector<96x64xf32>, vector<64x64xf32>, vector<96x64xf32> -> vector<96x64xf32>
    %112 = arith.addf %107, %111 : vector<96x64xf32>
    %c12_103 = arith.constant 12 : index
    %c0_104 = arith.constant 0 : index
    %113 = vector.load %arg10[%c12_103, %c0_104] : memref<128x64xf32, #tpu.memory_space<vmem>>, vector<96x64xf32>
    %c3_105 = arith.constant 3 : index
    %c0_106 = arith.constant 0 : index
    %c0_107 = arith.constant 0 : index
    %114 = vector.load %arg6[%c3_105, %c0_106, %c0_107] : memref<9x64x64xf32, #tpu.memory_space<vmem>>, vector<1x64x64xf32>
    %115 = vector.shape_cast %114 : vector<1x64x64xf32> to vector<64x64xf32>
    %cst_108 = arith.constant dense<0.000000e+00> : vector<96x64xf32>
    %116 = tpu.matmul %113, %115, %cst_108 {dimension_numbers = #tpu.dot_dimension_numbers<[1], [0], [0], [1], [0, 0, 1, 1], [], []>} : vector<96x64xf32>, vector<64x64xf32>, vector<96x64xf32> -> vector<96x64xf32>
    %117 = arith.addf %112, %116 : vector<96x64xf32>
    %c13_109 = arith.constant 13 : index
    %c0_110 = arith.constant 0 : index
    %118 = vector.load %arg10[%c13_109, %c0_110] : memref<128x64xf32, #tpu.memory_space<vmem>>, vector<96x64xf32>
    %c4_111 = arith.constant 4 : index
    %c0_112 = arith.constant 0 : index
    %c0_113 = arith.constant 0 : index
    %119 = vector.load %arg6[%c4_111, %c0_112, %c0_113] : memref<9x64x64xf32, #tpu.memory_space<vmem>>, vector<1x64x64xf32>
    %120 = vector.shape_cast %119 : vector<1x64x64xf32> to vector<64x64xf32>
    %cst_114 = arith.constant dense<0.000000e+00> : vector<96x64xf32>
    %121 = tpu.matmul %118, %120, %cst_114 {dimension_numbers = #tpu.dot_dimension_numbers<[1], [0], [0], [1], [0, 0, 1, 1], [], []>} : vector<96x64xf32>, vector<64x64xf32>, vector<96x64xf32> -> vector<96x64xf32>
    %122 = arith.addf %117, %121 : vector<96x64xf32>
    %c14_115 = arith.constant 14 : index
    %c0_116 = arith.constant 0 : index
    %123 = vector.load %arg10[%c14_115, %c0_116] : memref<128x64xf32, #tpu.memory_space<vmem>>, vector<96x64xf32>
    %c5_117 = arith.constant 5 : index
    %c0_118 = arith.constant 0 : index
    %c0_119 = arith.constant 0 : index
    %124 = vector.load %arg6[%c5_117, %c0_118, %c0_119] : memref<9x64x64xf32, #tpu.memory_space<vmem>>, vector<1x64x64xf32>
    %125 = vector.shape_cast %124 : vector<1x64x64xf32> to vector<64x64xf32>
    %cst_120 = arith.constant dense<0.000000e+00> : vector<96x64xf32>
    %126 = tpu.matmul %123, %125, %cst_120 {dimension_numbers = #tpu.dot_dimension_numbers<[1], [0], [0], [1], [0, 0, 1, 1], [], []>} : vector<96x64xf32>, vector<64x64xf32>, vector<96x64xf32> -> vector<96x64xf32>
    %127 = arith.addf %122, %126 : vector<96x64xf32>
    %c24 = arith.constant 24 : index
    %c0_121 = arith.constant 0 : index
    %128 = vector.load %arg10[%c24, %c0_121] : memref<128x64xf32, #tpu.memory_space<vmem>>, vector<96x64xf32>
    %c6_122 = arith.constant 6 : index
    %c0_123 = arith.constant 0 : index
    %c0_124 = arith.constant 0 : index
    %129 = vector.load %arg6[%c6_122, %c0_123, %c0_124] : memref<9x64x64xf32, #tpu.memory_space<vmem>>, vector<1x64x64xf32>
    %130 = vector.shape_cast %129 : vector<1x64x64xf32> to vector<64x64xf32>
    %cst_125 = arith.constant dense<0.000000e+00> : vector<96x64xf32>
    %131 = tpu.matmul %128, %130, %cst_125 {dimension_numbers = #tpu.dot_dimension_numbers<[1], [0], [0], [1], [0, 0, 1, 1], [], []>} : vector<96x64xf32>, vector<64x64xf32>, vector<96x64xf32> -> vector<96x64xf32>
    %132 = arith.addf %127, %131 : vector<96x64xf32>
    %c25 = arith.constant 25 : index
    %c0_126 = arith.constant 0 : index
    %133 = vector.load %arg10[%c25, %c0_126] : memref<128x64xf32, #tpu.memory_space<vmem>>, vector<96x64xf32>
    %c7_127 = arith.constant 7 : index
    %c0_128 = arith.constant 0 : index
    %c0_129 = arith.constant 0 : index
    %134 = vector.load %arg6[%c7_127, %c0_128, %c0_129] : memref<9x64x64xf32, #tpu.memory_space<vmem>>, vector<1x64x64xf32>
    %135 = vector.shape_cast %134 : vector<1x64x64xf32> to vector<64x64xf32>
    %cst_130 = arith.constant dense<0.000000e+00> : vector<96x64xf32>
    %136 = tpu.matmul %133, %135, %cst_130 {dimension_numbers = #tpu.dot_dimension_numbers<[1], [0], [0], [1], [0, 0, 1, 1], [], []>} : vector<96x64xf32>, vector<64x64xf32>, vector<96x64xf32> -> vector<96x64xf32>
    %137 = arith.addf %132, %136 : vector<96x64xf32>
    %c26 = arith.constant 26 : index
    %c0_131 = arith.constant 0 : index
    %138 = vector.load %arg10[%c26, %c0_131] : memref<128x64xf32, #tpu.memory_space<vmem>>, vector<96x64xf32>
    %c8_132 = arith.constant 8 : index
    %c0_133 = arith.constant 0 : index
    %c0_134 = arith.constant 0 : index
    %139 = vector.load %arg6[%c8_132, %c0_133, %c0_134] : memref<9x64x64xf32, #tpu.memory_space<vmem>>, vector<1x64x64xf32>
    %140 = vector.shape_cast %139 : vector<1x64x64xf32> to vector<64x64xf32>
    %cst_135 = arith.constant dense<0.000000e+00> : vector<96x64xf32>
    %141 = tpu.matmul %138, %140, %cst_135 {dimension_numbers = #tpu.dot_dimension_numbers<[1], [0], [0], [1], [0, 0, 1, 1], [], []>} : vector<96x64xf32>, vector<64x64xf32>, vector<96x64xf32> -> vector<96x64xf32>
    %142 = arith.addf %137, %141 : vector<96x64xf32>
    %c0_136 = arith.constant 0 : index
    %c0_137 = arith.constant 0 : index
    %143 = vector.load %arg7[%c0_136, %c0_137] : memref<1x64xf32, #tpu.memory_space<vmem>>, vector<1x64xf32>
    %144 = vector.broadcast %143 : vector<1x64xf32> to vector<96x64xf32>
    %145 = arith.addf %142, %144 : vector<96x64xf32>
    %cst_138 = arith.constant 0.000000e+00 : f32
    %146 = vector.broadcast %cst_138 : f32 to vector<96x64xf32>
    %147 = arith.maximumf %145, %146 : vector<96x64xf32>
    %c0_139 = arith.constant 0 : index
    %c0_140 = arith.constant 0 : index
    %c0_141 = arith.constant 0 : index
    %148 = vector.load %arg8[%c0_139, %c0_140, %c0_141] : memref<1x96x64xf32, #tpu.memory_space<vmem>>, vector<1x96x64xf32>
    %149 = vector.shape_cast %148 : vector<1x96x64xf32> to vector<96x64xf32>
    %150 = vector.shape_cast %147 : vector<96x64xf32> to vector<1x96x64xf32>
    tpu.vector_store %arg8[%c0_139, %c0_140, %c0_141], %150 {strides = array<i32>} : memref<1x96x64xf32, #tpu.memory_space<vmem>>, vector<1x96x64xf32>,
    return
  }
  func.func @transform_0(%arg0: i32) -> (i32, i32, i32) {
    %c0_i32 = arith.constant 0 : i32
    %c0_i32_0 = arith.constant 0 : i32
    %c0_i32_1 = arith.constant 0 : i32
    return %arg0, %c0_i32, %c0_i32_0 : i32, i32, i32
  }
  func.func @transform_1(%arg0: i32) -> (i32, i32) {
    %c0_i32 = arith.constant 0 : i32
    %c0_i32_0 = arith.constant 0 : i32
    %c0_i32_1 = arith.constant 0 : i32
    return %c0_i32, %c0_i32_0 : i32, i32
  }
  func.func @transform_2(%arg0: i32) -> (i32, i32) {
    %c0_i32 = arith.constant 0 : i32
    %c0_i32_0 = arith.constant 0 : i32
    %c0_i32_1 = arith.constant 0 : i32
    return %c0_i32, %c0_i32_0 : i32, i32
  }
  func.func @transform_3(%arg0: i32) -> (i32, i32, i32) {
    %c0_i32 = arith.constant 0 : i32
    %c0_i32_0 = arith.constant 0 : i32
    %c0_i32_1 = arith.constant 0 : i32
    %c0_i32_2 = arith.constant 0 : i32
    return %c0_i32, %c0_i32_0, %c0_i32_1 : i32, i32, i32
  }
  func.func @transform_4(%arg0: i32) -> (i32, i32) {
    %c0_i32 = arith.constant 0 : i32
    %c0_i32_0 = arith.constant 0 : i32
    %c0_i32_1 = arith.constant 0 : i32
    return %c0_i32, %c0_i32_0 : i32, i32
  }
  func.func @transform_5(%arg0: i32) -> (i32, i32, i32) {
    %c0_i32 = arith.constant 0 : i32
    %c0_i32_0 = arith.constant 0 : i32
    %c0_i32_1 = arith.constant 0 : i32
    %c0_i32_2 = arith.constant 0 : i32
    return %c0_i32, %c0_i32_0, %c0_i32_1 : i32, i32, i32
  }
  func.func @transform_6(%arg0: i32) -> (i32, i32) {
    %c0_i32 = arith.constant 0 : i32
    %c0_i32_0 = arith.constant 0 : i32
    %c0_i32_1 = arith.constant 0 : i32
    return %c0_i32, %c0_i32_0 : i32, i32
  }
  func.func @transform_7(%arg0: i32) -> (i32, i32, i32) {
    %c0_i32 = arith.constant 0 : i32
    %c0_i32_0 = arith.constant 0 : i32
    %c0_i32_1 = arith.constant 0 : i32
    return %arg0, %c0_i32, %c0_i32_0 : i32, i32, i32
  }
}

</mosaic_0001>

<llo_original>
// kernel: network_forward.1
$region0: #{network_forward.1}
  #allocation0 [shape = 'u32[]', space=smem, size = 0x4, offset = 0x4, fixed_abs, tag = 'smem constant byte address 0x4 - core index']
  #allocation1 [shape = 'u32[144,128]{1,0:T(1,128)}', space=vmem, size = 0x12000, scoped, tag = 'internal scratch']
  #allocation2 [shape = 'f32[576,32]{1,0:T(8,128)}', space=vmem, size = 0x48000, scoped, tag = 'scratch operand']
  #allocation3 [shape = 'f32[128,64]{1,0:T(8,128)}', space=vmem, size = 0x10000, scoped, tag = 'scratch operand']
  %s0 = inlined_call_operand.vmem [shape: f32[2,576,64], index: 0, kind: input, shape index: {}]
  %s1 = inlined_call_operand.vmem [shape: f32[64,32], index: 1, kind: input, shape index: {}]
  %s2 = inlined_call_operand.vmem [shape: f32[1,32], index: 2, kind: input, shape index: {}]
  %s3 = inlined_call_operand.vmem [shape: f32[16,32,64], index: 3, kind: input, shape index: {}]
  %s4 = inlined_call_operand.vmem [shape: f32[1,64], index: 4, kind: input, shape index: {}]
  %s5 = inlined_call_operand.vmem [shape: f32[9,64,64], index: 5, kind: input, shape index: {}]
  %s6 = inlined_call_operand.vmem [shape: f32[1,64], index: 6, kind: input, shape index: {}]
  %s7 = inlined_call_operand.vmem [shape: f32[2,96,64], index: 7, kind: output, shape index: {}]
  %s8 = sld [smem:[#allocation0]]
  $region61: #{network_forward.1} parent=0
    _
  %s10 = ssub.s32 1, %s8
  %s11 = scalar_select 0, %s10, %s8
  loop: start=0, step=1, limit=4
  $region2: #{network_forward.1} parent=0 // loop_pre_header
    _
  $region3: #{network_forward.1} parent=0 // loop_header
    %s13 = sphi 0, %s17
    %p14 = scmp.ge.s32.totalorder %s13, 4
    %s23 = sphi 0, %s25
    %s26 = sphi 0, %s23
    %s27 = sphi 0, %s26
    %s43 = sphi 0, %s27
    %s47 = sphi 0, %s47
    %s49 = sphi 0, %s47
    %s50 = sphi 0, %s49
    %s64 = sphi 0, %s50
    %s68 = sphi 0, %s68
    %s70 = sphi 0, %s68
    %s71 = sphi 0, %s70
    %s85 = sphi 0, %s71
    %s89 = sphi 0, %s89
    %s91 = sphi 0, %s89
    %s92 = sphi 0, %s91
    %s106 = sphi 0, %s92
    %s110 = sphi 0, %s110
    %s112 = sphi 0, %s110
    %s113 = sphi 0, %s112
    %s127 = sphi 0, %s113
    %s131 = sphi 0, %s131
    %s133 = sphi 0, %s131
    %s134 = sphi 0, %s133
    %s148 = sphi 0, %s134
    %s152 = sphi 0, %s152
    %s154 = sphi 0, %s152
    %s155 = sphi 0, %s154
    %s169 = sphi 0, %s155
    %s175 = sphi 0, %s177
    %s178 = sphi 0, %s175
    %s179 = sphi 0, %s178
    %s195 = sphi 0, %s179
  $region4: #{network_forward.1} parent=0 // loop_header_branch
    %16 = sbr.rel (%p14) target = $region8
  $region5: #{network_forward.1} parent=0 // loop_body
    %s18 = ssub.s32 %s13, 1
    %s19 = ssub.s32 %s13, 2
    %s20 = sadd.s32 %s13, 1
    %s21 = ssub.s32 %s13, %s20
    %p22 = scmp.eq.s32.totalorder %s21, 0
    %s24 = sadd.s32 %s23, 1
    %s25 = scalar_select %p22, %s23, %s24
    %p28 = pneg %p22
    %p29 = scmp.eq.s32.totalorder %s13, 1
    %p30 = por %p28, %p29
    %p31 = scmp.ne.s32.totalorder %s23, %s26
    %p32 = scmp.eq.s32.totalorder %s13, 0
    %p33 = por %p31, %p32
    %p34 = scmp.ne.s32.totalorder %s23, %s26
    %p35 = scmp.eq.s32.totalorder %s18, 1
    %p36 = por %p34, %p35
    %p37 = scmp.ne.s32.totalorder %s26, %s27
    %p38 = scmp.eq.s32.totalorder %s18, 0
    %p39 = por %p37, %p38
    %p40 = scmp.ne.s32.totalorder %s26, %s27
    %p41 = scmp.eq.s32.totalorder %s19, 1
    %p42 = por %p40, %p41
    %p44 = scmp.ne.s32.totalorder %s27, %s43
    %p45 = scmp.eq.s32.totalorder %s19, 0
    %p46 = por %p44, %p45
    %s48 = sadd.s32 %s47, 1
    %p51 = scmp.eq.s32.totalorder %s13, 1
    %p52 = scmp.ne.s32.totalorder %s47, %s49
    %p53 = scmp.eq.s32.totalorder %s13, 0
    %p54 = por %p52, %p53
    %p55 = scmp.ne.s32.totalorder %s47, %s49
    %p56 = scmp.eq.s32.totalorder %s18, 1
    %p57 = por %p55, %p56
    %p58 = scmp.ne.s32.totalorder %s49, %s50
    %p59 = scmp.eq.s32.totalorder %s18, 0
    %p60 = por %p58, %p59
    %p61 = scmp.ne.s32.totalorder %s49, %s50
    %p62 = scmp.eq.s32.totalorder %s19, 1
    %p63 = por %p61, %p62
    %p65 = scmp.ne.s32.totalorder %s50, %s64
    %p66 = scmp.eq.s32.totalorder %s19, 0
    %p67 = por %p65, %p66
    %s69 = sadd.s32 %s68, 1
    %p72 = scmp.eq.s32.totalorder %s13, 1
    %p73 = scmp.ne.s32.totalorder %s68, %s70
    %p74 = scmp.eq.s32.totalorder %s13, 0
    %p75 = por %p73, %p74
    %p76 = scmp.ne.s32.totalorder %s68, %s70
    %p77 = scmp.eq.s32.totalorder %s18, 1
    %p78 = por %p76, %p77
    %p79 = scmp.ne.s32.totalorder %s70, %s71
    %p80 = scmp.eq.s32.totalorder %s18, 0
    %p81 = por %p79, %p80
    %p82 = scmp.ne.s32.totalorder %s70, %s71
    %p83 = scmp.eq.s32.totalorder %s19, 1
    %p84 = por %p82, %p83
    %p86 = scmp.ne.s32.totalorder %s71, %s85
    %p87 = scmp.eq.s32.totalorder %s19, 0
    %p88 = por %p86, %p87
    %s90 = sadd.s32 %s89, 1
    %p93 = scmp.eq.s32.totalorder %s13, 1
    %p94 = scmp.ne.s32.totalorder %s89, %s91
    %p95 = scmp.eq.s32.totalorder %s13, 0
    %p96 = por %p94, %p95
    %p97 = scmp.ne.s32.totalorder %s89, %s91
    %p98 = scmp.eq.s32.totalorder %s18, 1
    %p99 = por %p97, %p98
    %p100 = scmp.ne.s32.totalorder %s91, %s92
    %p101 = scmp.eq.s32.totalorder %s18, 0
    %p102 = por %p100, %p101
    %p103 = scmp.ne.s32.totalorder %s91, %s92
    %p104 = scmp.eq.s32.totalorder %s19, 1
    %p105 = por %p103, %p104
    %p107 = scmp.ne.s32.totalorder %s92, %s106
    %p108 = scmp.eq.s32.totalorder %s19, 0
    %p109 = por %p107, %p108
    %s111 = sadd.s32 %s110, 1
    %p114 = scmp.eq.s32.totalorder %s13, 1
    %p115 = scmp.ne.s32.totalorder %s110, %s112
    %p116 = scmp.eq.s32.totalorder %s13, 0
    %p117 = por %p115, %p116
    %p118 = scmp.ne.s32.totalorder %s110, %s112
    %p119 = scmp.eq.s32.totalorder %s18, 1
    %p120 = por %p118, %p119
    %p121 = scmp.ne.s32.totalorder %s112, %s113
    %p122 = scmp.eq.s32.totalorder %s18, 0
    %p123 = por %p121, %p122
    %p124 = scmp.ne.s32.totalorder %s112, %s113
    %p125 = scmp.eq.s32.totalorder %s19, 1
    %p126 = por %p124, %p125
    %p128 = scmp.ne.s32.totalorder %s113, %s127
    %p129 = scmp.eq.s32.totalorder %s19, 0
    %p130 = por %p128, %p129
    %s132 = sadd.s32 %s131, 1
    %p135 = scmp.eq.s32.totalorder %s13, 1
    %p136 = scmp.ne.s32.totalorder %s131, %s133
    %p137 = scmp.eq.s32.totalorder %s13, 0
    %p138 = por %p136, %p137
    %p139 = scmp.ne.s32.totalorder %s131, %s133
    %p140 = scmp.eq.s32.totalorder %s18, 1
    %p141 = por %p139, %p140
    %p142 = scmp.ne.s32.totalorder %s133, %s134
    %p143 = scmp.eq.s32.totalorder %s18, 0
    %p144 = por %p142, %p143
    %p145 = scmp.ne.s32.totalorder %s133, %s134
    %p146 = scmp.eq.s32.totalorder %s19, 1
    %p147 = por %p145, %p146
    %p149 = scmp.ne.s32.totalorder %s134, %s148
    %p150 = scmp.eq.s32.totalorder %s19, 0
    %p151 = por %p149, %p150
    %s153 = sadd.s32 %s152, 1
    %p156 = scmp.eq.s32.totalorder %s13, 1
    %p157 = scmp.ne.s32.totalorder %s152, %s154
    %p158 = scmp.eq.s32.totalorder %s13, 0
    %p159 = por %p157, %p158
    %p160 = scmp.ne.s32.totalorder %s152, %s154
    %p161 = scmp.eq.s32.totalorder %s18, 1
    %p162 = por %p160, %p161
    %p163 = scmp.ne.s32.totalorder %s154, %s155
    %p164 = scmp.eq.s32.totalorder %s18, 0
    %p165 = por %p163, %p164
    %p166 = scmp.ne.s32.totalorder %s154, %s155
    %p167 = scmp.eq.s32.totalorder %s19, 1
    %p168 = por %p166, %p167
    %p170 = scmp.ne.s32.totalorder %s155, %s169
    %p171 = scmp.eq.s32.totalorder %s19, 0
    %p172 = por %p170, %p171
    %s173 = ssub.s32 %s13, %s20
    %p174 = scmp.eq.s32.totalorder %s173, 0
    %s176 = sadd.s32 %s175, 1
    %s177 = scalar_select %p174, %s175, %s176
    %p180 = pneg %p174
    %p181 = scmp.eq.s32.totalorder %s13, 1
    %p182 = por %p180, %p181
    %p183 = scmp.ne.s32.totalorder %s175, %s178
    %p184 = scmp.eq.s32.totalorder %s13, 0
    %p185 = por %p183, %p184
    %p186 = scmp.ne.s32.totalorder %s175, %s178
    %p187 = scmp.eq.s32.totalorder %s18, 1
    %p188 = por %p186, %p187
    %p189 = scmp.ne.s32.totalorder %s178, %s179
    %p190 = scmp.eq.s32.totalorder %s18, 0
    %p191 = por %p189, %p190
    %p192 = scmp.ne.s32.totalorder %s178, %s179
    %p193 = scmp.eq.s32.totalorder %s19, 1
    %p194 = por %p192, %p193
    %p196 = scmp.ne.s32.totalorder %s179, %s195
    %p197 = scmp.eq.s32.totalorder %s19, 0
    %p198 = por %p196, %p197
    %p199 = scmp.le.s32.totalorder 1, %s13
    %p200 = scmp.lt.s32.totalorder %s13, 3
    %p201 = pnand %p199, %p200
    %p202 = pneg %p201
    // Predicated region
    $region9: #{network_forward.1} parent=5 // pred_check
      _
    $region10: #{network_forward.1} parent=5 // pred_check_branch
      %204 = sbr.rel (%p201) target = $region12
    $region11: #{network_forward.1} parent=5 // pred_region
      %s205 = ssub.s32 %s13, 1
      // Predicated region
      $region13: #{network_forward.1} parent=11 // pred_check
        %p206 = pneg %p60
      $region14: #{network_forward.1} parent=11 // pred_check_branch
        %208 = sbr.rel (%p206) target = $region16
      $region15: #{network_forward.1} parent=11 // pred_region
        _
      $region16: #{network_forward.1} parent=11 // pred_fallthru
        _
      // Predicated region
      $region17: #{network_forward.1} parent=11 // pred_check
        %p209 = pneg %p81
      $region18: #{network_forward.1} parent=11 // pred_check_branch
        %211 = sbr.rel (%p209) target = $region20
      $region19: #{network_forward.1} parent=11 // pred_region
        _
      $region20: #{network_forward.1} parent=11 // pred_fallthru
        _
      // Predicated region
      $region21: #{network_forward.1} parent=11 // pred_check
        %p212 = pneg %p102
      $region22: #{network_forward.1} parent=11 // pred_check_branch
        %214 = sbr.rel (%p212) target = $region24
      $region23: #{network_forward.1} parent=11 // pred_region
        _
      $region24: #{network_forward.1} parent=11 // pred_fallthru
        _
      // Predicated region
      $region25: #{network_forward.1} parent=11 // pred_check
        %p215 = pneg %p123
      $region26: #{network_forward.1} parent=11 // pred_check_branch
        %217 = sbr.rel (%p215) target = $region28
      $region27: #{network_forward.1} parent=11 // pred_region
        _
      $region28: #{network_forward.1} parent=11 // pred_fallthru
        _
      // Predicated region
      $region29: #{network_forward.1} parent=11 // pred_check
        %p218 = pneg %p144
      $region30: #{network_forward.1} parent=11 // pred_check_branch
        %220 = sbr.rel (%p218) target = $region32
      $region31: #{network_forward.1} parent=11 // pred_region
        _
      $region32: #{network_forward.1} parent=11 // pred_fallthru
        _
      // Predicated region
      $region33: #{network_forward.1} parent=11 // pred_check
        %p221 = pneg %p165
      $region34: #{network_forward.1} parent=11 // pred_check_branch
        %223 = sbr.rel (%p221) target = $region36
      $region35: #{network_forward.1} parent=11 // pred_region
        _
      $region36: #{network_forward.1} parent=11 // pred_fallthru
        _
    $region12: #{network_forward.1} parent=5 // pred_fallthru
      _
    %p224 = scmp.lt.s32.totalorder %s13, 2
    // Predicated region
    $region37: #{network_forward.1} parent=5 // pred_check
      %p225 = pneg %p224
    $region38: #{network_forward.1} parent=5 // pred_check_branch
      %227 = sbr.rel (%p225) target = $region40
    $region39: #{network_forward.1} parent=5 // pred_region
      // Predicated region
      $region41: #{network_forward.1} parent=39 // pred_check
        %p228 = pneg %p33
      $region42: #{network_forward.1} parent=39 // pred_check_branch
        %230 = sbr.rel (%p228) target = $region44
      $region43: #{network_forward.1} parent=39 // pred_region
        %p231 = scmp.lt.s32.totalorder %s13, 1
        %s232 = scalar_select %p231, %s13, 1
        %s233 = smul.addr %s232, 72
        %s234 = smul.addr %s233, 8
        %s235 = scalar_lea.vmem %s0, %s234
      $region44: #{network_forward.1} parent=39 // pred_fallthru
        _
    $region40: #{network_forward.1} parent=5 // pred_fallthru
      _
    %p236 = scmp.le.s32.totalorder 1, %s13
    %p237 = scmp.lt.s32.totalorder %s13, 3
    %p238 = pnand %p236, %p237
    %p239 = pneg %p238
    // Predicated region
    $region45: #{network_forward.1} parent=5 // pred_check
      _
    $region46: #{network_forward.1} parent=5 // pred_check_branch
      %241 = sbr.rel (%p238) target = $region48
    $region47: #{network_forward.1} parent=5 // pred_region
      %s242 = ssub.s32 %s13, 1
      %p243 = scmp.lt.s32.totalorder %s18, 1
      %s244 = scalar_select %p243, %s18, 1
      %s245 = smul.addr %s244, 72
      %s246 = smul.addr %s245, 8
      %s247 = scalar_lea.vmem %s0, %s246
      %p248 = pneg %p39
      %p249 = pneg %p36
      %p250 = pneg %p60
      %p251 = pneg %p57
      %p252 = pneg %p81
      %p253 = pneg %p78
      %p254 = pneg %p102
      %p255 = pneg %p99
      %p256 = pneg %p123
      %p257 = pneg %p120
      %p258 = pneg %p144
      %p259 = pneg %p141
      %p260 = pneg %p165
      %p261 = pneg %p162
      %p262 = pneg %p191
      %p263 = pneg %p188
      %p264 = scmp.lt.s32.totalorder %s18, 1
      %s265 = scalar_select %p264, %s18, 1
      %s266 = smul.addr %s265, 12
      %s267 = smul.addr %s266, 8
      %s268 = scalar_lea.vmem %s7, %s267
      %p269 = scmp.lt.s32.totalorder %s18, 1
      %s270 = scalar_select %p269, %s18, 1
      %s271 = smul.addr %s270, 72
      %s272 = smul.addr %s271, 8
      %s273 = scalar_lea.vmem %s0, %s272
      %p274 = scmp.lt.s32.totalorder %s18, 1
      %s275 = scalar_select %p274, %s18, 1
      %s276 = smul.addr %s275, 12
      %s277 = smul.addr %s276, 8
      %s278 = scalar_lea.vmem %s7, %s277
      %v279 = vld [vmem:[%s273] sm:$0xff]
      %v280 = vld [vmem:[%s273 + $0x8] sm:$0xff]
      %v281 = vld [vmem:[%s273 + $0x10] sm:$0xff]
      %v282 = vld [vmem:[%s273 + $0x18] sm:$0xff]
      %v283 = vld [vmem:[%s273 + $0x20] sm:$0xff]
      %v284 = vld [vmem:[%s273 + $0x28] sm:$0xff]
      %v285 = vld [vmem:[%s273 + $0x30] sm:$0xff]
      %v286 = vld [vmem:[%s273 + $0x38] sm:$0xff]
      %v287 = vld [vmem:[%s273 + $0x40] sm:$0xff]
      %v288 = vld [vmem:[%s273 + $0x48] sm:$0xff]
      %v289 = vld [vmem:[%s273 + $0x50] sm:$0xff]
      %v290 = vld [vmem:[%s273 + $0x58] sm:$0xff]
      %v291 = vld [vmem:[%s273 + $0x60] sm:$0xff]
      %v292 = vld [vmem:[%s273 + $0x68] sm:$0xff]
      %v293 = vld [vmem:[%s273 + $0x70] sm:$0xff]
      %v294 = vld [vmem:[%s273 + $0x78] sm:$0xff]
      %v295 = vld [vmem:[%s273 + $0x80] sm:$0xff]
      %v296 = vld [vmem:[%s273 + $0x88] sm:$0xff]
      %v297 = vld [vmem:[%s273 + $0x90] sm:$0xff]
      %v298 = vld [vmem:[%s273 + $0x98] sm:$0xff]
      %v299 = vld [vmem:[%s273 + $0xa0] sm:$0xff]
      %v300 = vld [vmem:[%s273 + $0xa8] sm:$0xff]
      %v301 = vld [vmem:[%s273 + $0xb0] sm:$0xff]
      %v302 = vld [vmem:[%s273 + $0xb8] sm:$0xff]
      %v303 = vld [vmem:[%s273 + $0xc0] sm:$0xff]
      %v304 = vld [vmem:[%s273 + $0xc8] sm:$0xff]
      %v305 = vld [vmem:[%s273 + $0xd0] sm:$0xff]
      %v306 = vld [vmem:[%s273 + $0xd8] sm:$0xff]
      %v307 = vld [vmem:[%s273 + $0xe0] sm:$0xff]
      %v308 = vld [vmem:[%s273 + $0xe8] sm:$0xff]
      %v309 = vld [vmem:[%s273 + $0xf0] sm:$0xff]
      %v310 = vld [vmem:[%s273 + $0xf8] sm:$0xff]
      %v311 = vld [vmem:[%s273 + $0x100] sm:$0xff]
      %v312 = vld [vmem:[%s273 + $0x108] sm:$0xff]
      %v313 = vld [vmem:[%s273 + $0x110] sm:$0xff]
      %v314 = vld [vmem:[%s273 + $0x118] sm:$0xff]
      %v315 = vld [vmem:[%s273 + $0x120] sm:$0xff]
      %v316 = vld [vmem:[%s273 + $0x128] sm:$0xff]
      %v317 = vld [vmem:[%s273 + $0x130] sm:$0xff]
      %v318 = vld [vmem:[%s273 + $0x138] sm:$0xff]
      %v319 = vld [vmem:[%s273 + $0x140] sm:$0xff]
      %v320 = vld [vmem:[%s273 + $0x148] sm:$0xff]
      %v321 = vld [vmem:[%s273 + $0x150] sm:$0xff]
      %v322 = vld [vmem:[%s273 + $0x158] sm:$0xff]
      %v323 = vld [vmem:[%s273 + $0x160] sm:$0xff]
      %v324 = vld [vmem:[%s273 + $0x168] sm:$0xff]
      %v325 = vld [vmem:[%s273 + $0x170] sm:$0xff]
      %v326 = vld [vmem:[%s273 + $0x178] sm:$0xff]
      %v327 = vld [vmem:[%s273 + $0x180] sm:$0xff]
      %v328 = vld [vmem:[%s273 + $0x188] sm:$0xff]
      %v329 = vld [vmem:[%s273 + $0x190] sm:$0xff]
      %v330 = vld [vmem:[%s273 + $0x198] sm:$0xff]
      %v331 = vld [vmem:[%s273 + $0x1a0] sm:$0xff]
      %v332 = vld [vmem:[%s273 + $0x1a8] sm:$0xff]
      %v333 = vld [vmem:[%s273 + $0x1b0] sm:$0xff]
      %v334 = vld [vmem:[%s273 + $0x1b8] sm:$0xff]
      %v335 = vld [vmem:[%s273 + $0x1c0] sm:$0xff]
      %v336 = vld [vmem:[%s273 + $0x1c8] sm:$0xff]
      %v337 = vld [vmem:[%s273 + $0x1d0] sm:$0xff]
      %v338 = vld [vmem:[%s273 + $0x1d8] sm:$0xff]
      %v339 = vld [vmem:[%s273 + $0x1e0] sm:$0xff]
      %v340 = vld [vmem:[%s273 + $0x1e8] sm:$0xff]
      %v341 = vld [vmem:[%s273 + $0x1f0] sm:$0xff]
      %v342 = vld [vmem:[%s273 + $0x1f8] sm:$0xff]
      %v343 = vld [vmem:[%s273 + $0x200] sm:$0xff]
      %v344 = vld [vmem:[%s273 + $0x208] sm:$0xff]
      %v345 = vld [vmem:[%s273 + $0x210] sm:$0xff]
      %v346 = vld [vmem:[%s273 + $0x218] sm:$0xff]
      %v347 = vld [vmem:[%s273 + $0x220] sm:$0xff]
      %v348 = vld [vmem:[%s273 + $0x228] sm:$0xff]
      %v349 = vld [vmem:[%s273 + $0x230] sm:$0xff]
      %v350 = vld [vmem:[%s273 + $0x238] sm:$0xff]
      %v351 = vld [vmem:[%s1] sm:$0xff]
      %v352 = vld [vmem:[%s1 + $0x8] sm:$0xff]
      %v353 = vld [vmem:[%s1 + $0x10] sm:$0xff]
      %v354 = vld [vmem:[%s1 + $0x18] sm:$0xff]
      %v355 = vld [vmem:[%s1 + $0x20] sm:$0xff]
      %v356 = vld [vmem:[%s1 + $0x28] sm:$0xff]
      %v357 = vld [vmem:[%s1 + $0x30] sm:$0xff]
      %v358 = vld [vmem:[%s1 + $0x38] sm:$0xff]
      %v359 = vld [vmem:[%s2] sm:$0x1]
      %v361 = vlaneseq
      %v362 = vshrl.u32 %v361, 7
      %v363 = vsub.s32 0, %v362
      %v364 = vrot.slane %v359, %v363
      %vm366 = vcmask 523264
      %v368 = vsel %vm366, %v279, 0
      %v371 = vsel %vm366, %v280, 0
      %v374 = vsel %vm366, %v281, 0
      %v377 = vsel %vm366, %v282, 0
      %v380 = vsel %vm366, %v283, 0
      %v383 = vsel %vm366, %v284, 0
      %v386 = vsel %vm366, %v285, 0
      %v389 = vsel %vm366, %v286, 0
      %v392 = vsel %vm366, %v287, 0
      %v395 = vsel %vm366, %v288, 0
      %v398 = vsel %vm366, %v289, 0
      %v401 = vsel %vm366, %v290, 0
      %v404 = vsel %vm366, %v291, 0
      %v407 = vsel %vm366, %v292, 0
      %v410 = vsel %vm366, %v293, 0
      %v413 = vsel %vm366, %v294, 0
      %v416 = vsel %vm366, %v295, 0
      %v419 = vsel %vm366, %v296, 0
      %v422 = vsel %vm366, %v297, 0
      %v425 = vsel %vm366, %v298, 0
      %v428 = vsel %vm366, %v299, 0
      %v431 = vsel %vm366, %v300, 0
      %v434 = vsel %vm366, %v301, 0
      %v437 = vsel %vm366, %v302, 0
      %v440 = vsel %vm366, %v303, 0
      %v443 = vsel %vm366, %v304, 0
      %v446 = vsel %vm366, %v305, 0
      %v449 = vsel %vm366, %v306, 0
      %v452 = vsel %vm366, %v307, 0
      %v455 = vsel %vm366, %v308, 0
      %v458 = vsel %vm366, %v309, 0
      %v461 = vsel %vm366, %v310, 0
      %v464 = vsel %vm366, %v311, 0
      %v467 = vsel %vm366, %v312, 0
      %v470 = vsel %vm366, %v313, 0
      %v473 = vsel %vm366, %v314, 0
      %v476 = vsel %vm366, %v315, 0
      %v479 = vsel %vm366, %v316, 0
      %v482 = vsel %vm366, %v317, 0
      %v485 = vsel %vm366, %v318, 0
      %v488 = vsel %vm366, %v319, 0
      %v491 = vsel %vm366, %v320, 0
      %v494 = vsel %vm366, %v321, 0
      %v497 = vsel %vm366, %v322, 0
      %v500 = vsel %vm366, %v323, 0
      %v503 = vsel %vm366, %v324, 0
      %v506 = vsel %vm366, %v325, 0
      %v509 = vsel %vm366, %v326, 0
      %v512 = vsel %vm366, %v327, 0
      %v515 = vsel %vm366, %v328, 0
      %v518 = vsel %vm366, %v329, 0
      %v521 = vsel %vm366, %v330, 0
      %v524 = vsel %vm366, %v331, 0
      %v527 = vsel %vm366, %v332, 0
      %v530 = vsel %vm366, %v333, 0
      %v533 = vsel %vm366, %v334, 0
      %v536 = vsel %vm366, %v335, 0
      %v539 = vsel %vm366, %v336, 0
      %v542 = vsel %vm366, %v337, 0
      %v545 = vsel %vm366, %v338, 0
      %v548 = vsel %vm366, %v339, 0
      %v551 = vsel %vm366, %v340, 0
      %v554 = vsel %vm366, %v341, 0
      %v557 = vsel %vm366, %v342, 0
      %v560 = vsel %vm366, %v343, 0
      %v563 = vsel %vm366, %v344, 0
      %v566 = vsel %vm366, %v345, 0
      %v569 = vsel %vm366, %v346, 0
      %v572 = vsel %vm366, %v347, 0
      %v575 = vsel %vm366, %v348, 0
      %v578 = vsel %vm366, %v349, 0
      %v581 = vsel %vm366, %v350, 0
      %583 = vmatprep.subr.mxu0 0.0
      %584 = vmatpush1.msra.mxu0 %v351
      %585 = vmatprep.subr.mxu0 0.0
      %586 = vmatpush1.msra.mxu0 %v352
      %587 = vmatprep.subr.mxu0 0.0
      %588 = vmatpush1.msra.mxu0 %v353
      %589 = vmatprep.subr.mxu0 0.0
      %590 = vmatpush1.msra.mxu0 %v354
      %591 = vmatprep.subr.mxu0 0.0
      %592 = vmatpush1.msra.mxu0 %v355
      %593 = vmatprep.subr.mxu0 0.0
      %594 = vmatpush1.msra.mxu0 %v356
      %595 = vmatprep.subr.mxu0 0.0
      %596 = vmatpush1.msra.mxu0 %v357
      %597 = vmatprep.subr.mxu0 0.0
      %598 = vmatpush1.msra.mxu0 %v358
      %599 = vmatprep.subr.mxu0 0.0
      %600 = vmatpush1.msra.mxu0 0.0
      %601 = vmatprep.subr.mxu0 0.0
      %602 = vmatpush1.msra.mxu0 0.0
      %603 = vmatprep.subr.mxu0 0.0
      %604 = vmatpush1.msra.mxu0 0.0
      %605 = vmatprep.subr.mxu0 0.0
      %606 = vmatpush1.msra.mxu0 0.0
      %607 = vmatprep.subr.mxu0 0.0
      %608 = vmatpush1.msra.mxu0 0.0
      %609 = vmatprep.subr.mxu0 0.0
      %610 = vmatpush1.msra.mxu0 0.0
      %611 = vmatprep.subr.mxu0 0.0
      %612 = vmatpush1.msra.mxu0 0.0
      %613 = vmatprep.subr.mxu0 0.0
      %614 = vmatpush1.msra.mxu0 0.0
      %615 = vmatprep.subr.mxu0 0.0
      %616 = vmatpush1.msra.mxu0 0.0
      %617 = vmatprep.subr.mxu0 0.0
      %618 = vmatpush1.msra.mxu0 0.0
      %619 = vmatprep.subr.mxu0 0.0
      %620 = vmatpush1.msra.mxu0 0.0
      %621 = vmatprep.subr.mxu0 0.0
      %622 = vmatpush1.msra.mxu0 0.0
      %623 = vmatprep.subr.mxu0 0.0
      %624 = vmatpush1.msra.mxu0 0.0
      %625 = vmatprep.subr.mxu0 0.0
      %626 = vmatpush1.msra.mxu0 0.0
      %627 = vmatprep.subr.mxu0 0.0
      %628 = vmatpush1.msra.mxu0 0.0
      %629 = vmatprep.subr.mxu0 0.0
      %630 = vmatpush1.msra.mxu0 0.0
      %631 = vmatprep.subr.mxu0 0.0
      %632 = vmatpush1.msra.mxu0 0.0
      %633 = vmatprep.subr.mxu0 0.0
      %634 = vmatpush1.msra.mxu0 0.0
      %635 = vmatprep.subr.mxu0 0.0
      %636 = vmatpush1.msra.mxu0 0.0
      %637 = vmatprep.subr.mxu0 0.0
      %638 = vmatpush1.msra.mxu0 0.0
      %639 = vmatprep.subr.mxu0 0.0
      %640 = vmatpush1.msra.mxu0 0.0
      %641 = vmatprep.subr.mxu0 0.0
      %642 = vmatpush1.msra.mxu0 0.0
      %643 = vmatprep.subr.mxu0 0.0
      %644 = vmatpush1.msra.mxu0 0.0
      %645 = vmatprep.subr.mxu0 0.0
      %646 = vmatpush1.msra.mxu0 0.0
      %647 = vmatprep.mubr.f32.mxu0 0.0
      %648 = vmatmul.mubr.f32.gmra.mrb[0].mxu0 %v368
      %v649 = vpop.f32.mrb[0].mxu0
      %v650 = vadd.f32 %v364, %v649
      %v651 = vpop.f32.mrb[0].mxu0
      %652 = vmatprep.mubr.f32.mxu0 0.0
      %653 = vmatmul.mubr.f32.gmra.mrb[0].mxu0 %v371
      %v654 = vpop.f32.mrb[0].mxu0
      %v655 = vadd.f32 %v364, %v654
      %v656 = vpop.f32.mrb[0].mxu0
      %657 = vmatprep.mubr.f32.mxu0 0.0
      %658 = vmatmul.mubr.f32.gmra.mrb[0].mxu0 %v374
      %v659 = vpop.f32.mrb[0].mxu0
      %v660 = vadd.f32 %v364, %v659
      %v661 = vpop.f32.mrb[0].mxu0
      %662 = vmatprep.mubr.f32.mxu0 0.0
      %663 = vmatmul.mubr.f32.gmra.mrb[0].mxu0 %v377
      %v664 = vpop.f32.mrb[0].mxu0
      %v665 = vadd.f32 %v364, %v664
      %v666 = vpop.f32.mrb[0].mxu0
      %667 = vmatprep.mubr.f32.mxu0 0.0
      %668 = vmatmul.mubr.f32.gmra.mrb[0].mxu0 %v380
      %v669 = vpop.f32.mrb[0].mxu0
      %v670 = vadd.f32 %v364, %v669
      %v671 = vpop.f32.mrb[0].mxu0
      %672 = vmatprep.mubr.f32.mxu0 0.0
      %673 = vmatmul.mubr.f32.gmra.mrb[0].mxu0 %v383
      %v674 = vpop.f32.mrb[0].mxu0
      %v675 = vadd.f32 %v364, %v674
      %v676 = vpop.f32.mrb[0].mxu0
      %677 = vmatprep.mubr.f32.mxu0 0.0
      %678 = vmatmul.mubr.f32.gmra.mrb[0].mxu0 %v386
      %v679 = vpop.f32.mrb[0].mxu0
      %v680 = vadd.f32 %v364, %v679
      %v681 = vpop.f32.mrb[0].mxu0
      %682 = vmatprep.mubr.f32.mxu0 0.0
      %683 = vmatmul.mubr.f32.gmra.mrb[0].mxu0 %v389
      %v684 = vpop.f32.mrb[0].mxu0
      %v685 = vadd.f32 %v364, %v684
      %v686 = vpop.f32.mrb[0].mxu0
      %687 = vmatprep.mubr.f32.mxu0 0.0
      %688 = vmatmul.mubr.f32.gmra.mrb[0].mxu0 %v392
      %v689 = vpop.f32.mrb[0].mxu0
      %v690 = vadd.f32 %v364, %v689
      %v691 = vpop.f32.mrb[0].mxu0
      %692 = vmatprep.mubr.f32.mxu0 0.0
      %693 = vmatmul.mubr.f32.gmra.mrb[0].mxu0 %v395
      %v694 = vpop.f32.mrb[0].mxu0
      %v695 = vadd.f32 %v364, %v694
      %v696 = vpop.f32.mrb[0].mxu0
      %697 = vmatprep.mubr.f32.mxu0 0.0
      %698 = vmatmul.mubr.f32.gmra.mrb[0].mxu0 %v398
      %v699 = vpop.f32.mrb[0].mxu0
      %v700 = vadd.f32 %v364, %v699
      %v701 = vpop.f32.mrb[0].mxu0
      %702 = vmatprep.mubr.f32.mxu0 0.0
      %703 = vmatmul.mubr.f32.gmra.mrb[0].mxu0 %v401
      %v704 = vpop.f32.mrb[0].mxu0
      %v705 = vadd.f32 %v364, %v704
      %v706 = vpop.f32.mrb[0].mxu0
      %707 = vmatprep.mubr.f32.mxu0 0.0
      %708 = vmatmul.mubr.f32.gmra.mrb[0].mxu0 %v404
      %v709 = vpop.f32.mrb[0].mxu0
      %v710 = vadd.f32 %v364, %v709
      %v711 = vpop.f32.mrb[0].mxu0
      %712 = vmatprep.mubr.f32.mxu0 0.0
      %713 = vmatmul.mubr.f32.gmra.mrb[0].mxu0 %v407
      %v714 = vpop.f32.mrb[0].mxu0
      %v715 = vadd.f32 %v364, %v714
      %v716 = vpop.f32.mrb[0].mxu0
      %717 = vmatprep.mubr.f32.mxu0 0.0
      %718 = vmatmul.mubr.f32.gmra.mrb[0].mxu0 %v410
      %v719 = vpop.f32.mrb[0].mxu0
      %v720 = vadd.f32 %v364, %v719
      %v721 = vpop.f32.mrb[0].mxu0
      %722 = vmatprep.mubr.f32.mxu0 0.0
      %723 = vmatmul.mubr.f32.gmra.mrb[0].mxu0 %v413
      %v724 = vpop.f32.mrb[0].mxu0
      %v725 = vadd.f32 %v364, %v724
      %v726 = vpop.f32.mrb[0].mxu0
      %727 = vmatprep.mubr.f32.mxu0 0.0
      %728 = vmatmul.mubr.f32.gmra.mrb[0].mxu0 %v416
      %v729 = vpop.f32.mrb[0].mxu0
      %v730 = vadd.f32 %v364, %v729
      %v731 = vpop.f32.mrb[0].mxu0
      %732 = vmatprep.mubr.f32.mxu0 0.0
      %733 = vmatmul.mubr.f32.gmra.mrb[0].mxu0 %v419
      %v734 = vpop.f32.mrb[0].mxu0
      %v735 = vadd.f32 %v364, %v734
      %v736 = vpop.f32.mrb[0].mxu0
      %737 = vmatprep.mubr.f32.mxu0 0.0
      %738 = vmatmul.mubr.f32.gmra.mrb[0].mxu0 %v422
      %v739 = vpop.f32.mrb[0].mxu0
      %v740 = vadd.f32 %v364, %v739
      %v741 = vpop.f32.mrb[0].mxu0
      %742 = vmatprep.mubr.f32.mxu0 0.0
      %743 = vmatmul.mubr.f32.gmra.mrb[0].mxu0 %v425
      %v744 = vpop.f32.mrb[0].mxu0
      %v745 = vadd.f32 %v364, %v744
      %v746 = vpop.f32.mrb[0].mxu0
      %747 = vmatprep.mubr.f32.mxu0 0.0
      %748 = vmatmul.mubr.f32.gmra.mrb[0].mxu0 %v428
      %v749 = vpop.f32.mrb[0].mxu0
      %v750 = vadd.f32 %v364, %v749
      %v751 = vpop.f32.mrb[0].mxu0
      %752 = vmatprep.mubr.f32.mxu0 0.0
      %753 = vmatmul.mubr.f32.gmra.mrb[0].mxu0 %v431
      %v754 = vpop.f32.mrb[0].mxu0
      %v755 = vadd.f32 %v364, %v754
      %v756 = vpop.f32.mrb[0].mxu0
      %757 = vmatprep.mubr.f32.mxu0 0.0
      %758 = vmatmul.mubr.f32.gmra.mrb[0].mxu0 %v434
      %v759 = vpop.f32.mrb[0].mxu0
      %v760 = vadd.f32 %v364, %v759
      %v761 = vpop.f32.mrb[0].mxu0
      %762 = vmatprep.mubr.f32.mxu0 0.0
      %763 = vmatmul.mubr.f32.gmra.mrb[0].mxu0 %v437
      %v764 = vpop.f32.mrb[0].mxu0
      %v765 = vadd.f32 %v364, %v764
      %v766 = vpop.f32.mrb[0].mxu0
      %767 = vmatprep.mubr.f32.mxu0 0.0
      %768 = vmatmul.mubr.f32.gmra.mrb[0].mxu0 %v440
      %v769 = vpop.f32.mrb[0].mxu0
      %v770 = vadd.f32 %v364, %v769
      %v771 = vpop.f32.mrb[0].mxu0
      %772 = vmatprep.mubr.f32.mxu0 0.0
      %773 = vmatmul.mubr.f32.gmra.mrb[0].mxu0 %v443
      %v774 = vpop.f32.mrb[0].mxu0
      %v775 = vadd.f32 %v364, %v774
      %v776 = vpop.f32.mrb[0].mxu0
      %777 = vmatprep.mubr.f32.mxu0 0.0
      %778 = vmatmul.mubr.f32.gmra.mrb[0].mxu0 %v446
      %v779 = vpop.f32.mrb[0].mxu0
      %v780 = vadd.f32 %v364, %v779
      %v781 = vpop.f32.mrb[0].mxu0
      %782 = vmatprep.mubr.f32.mxu0 0.0
      %783 = vmatmul.mubr.f32.gmra.mrb[0].mxu0 %v449
      %v784 = vpop.f32.mrb[0].mxu0
      %v785 = vadd.f32 %v364, %v784
      %v786 = vpop.f32.mrb[0].mxu0
      %787 = vmatprep.mubr.f32.mxu0 0.0
      %788 = vmatmul.mubr.f32.gmra.mrb[0].mxu0 %v452
      %v789 = vpop.f32.mrb[0].mxu0
      %v790 = vadd.f32 %v364, %v789
      %v791 = vpop.f32.mrb[0].mxu0
      %792 = vmatprep.mubr.f32.mxu0 0.0
      %793 = vmatmul.mubr.f32.gmra.mrb[0].mxu0 %v455
      %v794 = vpop.f32.mrb[0].mxu0
      %v795 = vadd.f32 %v364, %v794
      %v796 = vpop.f32.mrb[0].mxu0
      %797 = vmatprep.mubr.f32.mxu0 0.0
      %798 = vmatmul.mubr.f32.gmra.mrb[0].mxu0 %v458
      %v799 = vpop.f32.mrb[0].mxu0
      %v800 = vadd.f32 %v364, %v799
      %v801 = vpop.f32.mrb[0].mxu0
      %802 = vmatprep.mubr.f32.mxu0 0.0
      %803 = vmatmul.mubr.f32.gmra.mrb[0].mxu0 %v461
      %v804 = vpop.f32.mrb[0].mxu0
      %v805 = vadd.f32 %v364, %v804
      %v806 = vpop.f32.mrb[0].mxu0
      %807 = vmatprep.mubr.f32.mxu0 0.0
      %808 = vmatmul.mubr.f32.gmra.mrb[0].mxu0 %v464
      %v809 = vpop.f32.mrb[0].mxu0
      %v810 = vadd.f32 %v364, %v809
      %v811 = vpop.f32.mrb[0].mxu0
      %812 = vmatprep.mubr.f32.mxu0 0.0
      %813 = vmatmul.mubr.f32.gmra.mrb[0].mxu0 %v467
      %v814 = vpop.f32.mrb[0].mxu0
      %v815 = vadd.f32 %v364, %v814
      %v816 = vpop.f32.mrb[0].mxu0
      %817 = vmatprep.mubr.f32.mxu0 0.0
      %818 = vmatmul.mubr.f32.gmra.mrb[0].mxu0 %v470
      %v819 = vpop.f32.mrb[0].mxu0
      %v820 = vadd.f32 %v364, %v819
      %v821 = vpop.f32.mrb[0].mxu0
      %822 = vmatprep.mubr.f32.mxu0 0.0
      %823 = vmatmul.mubr.f32.gmra.mrb[0].mxu0 %v473
      %v824 = vpop.f32.mrb[0].mxu0
      %v825 = vadd.f32 %v364, %v824
      %v826 = vpop.f32.mrb[0].mxu0
      %827 = vmatprep.mubr.f32.mxu0 0.0
      %828 = vmatmul.mubr.f32.gmra.mrb[0].mxu0 %v476
      %v829 = vpop.f32.mrb[0].mxu0
      %v830 = vadd.f32 %v364, %v829
      %v831 = vpop.f32.mrb[0].mxu0
      %832 = vmatprep.mubr.f32.mxu0 0.0
      %833 = vmatmul.mubr.f32.gmra.mrb[0].mxu0 %v479
      %v834 = vpop.f32.mrb[0].mxu0
      %v835 = vadd.f32 %v364, %v834
      %v836 = vpop.f32.mrb[0].mxu0
      %837 = vmatprep.mubr.f32.mxu0 0.0
      %838 = vmatmul.mubr.f32.gmra.mrb[0].mxu0 %v482
      %v839 = vpop.f32.mrb[0].mxu0
      %v840 = vadd.f32 %v364, %v839
      %v841 = vpop.f32.mrb[0].mxu0
      %842 = vmatprep.mubr.f32.mxu0 0.0
      %843 = vmatmul.mubr.f32.gmra.mrb[0].mxu0 %v485
      %v844 = vpop.f32.mrb[0].mxu0
      %v845 = vadd.f32 %v364, %v844
      %v846 = vpop.f32.mrb[0].mxu0
      %847 = vmatprep.mubr.f32.mxu0 0.0
      %848 = vmatmul.mubr.f32.gmra.mrb[0].mxu0 %v488
      %v849 = vpop.f32.mrb[0].mxu0
      %v850 = vadd.f32 %v364, %v849
      %v851 = vpop.f32.mrb[0].mxu0
      %852 = vmatprep.mubr.f32.mxu0 0.0
      %853 = vmatmul.mubr.f32.gmra.mrb[0].mxu0 %v491
      %v854 = vpop.f32.mrb[0].mxu0
      %v855 = vadd.f32 %v364, %v854
      %v856 = vpop.f32.mrb[0].mxu0
      %857 = vmatprep.mubr.f32.mxu0 0.0
      %858 = vmatmul.mubr.f32.gmra.mrb[0].mxu0 %v494
      %v859 = vpop.f32.mrb[0].mxu0
      %v860 = vadd.f32 %v364, %v859
      %v861 = vpop.f32.mrb[0].mxu0
      %862 = vmatprep.mubr.f32.mxu0 0.0
      %863 = vmatmul.mubr.f32.gmra.mrb[0].mxu0 %v497
      %v864 = vpop.f32.mrb[0].mxu0
      %v865 = vadd.f32 %v364, %v864
      %v866 = vpop.f32.mrb[0].mxu0
      %867 = vmatprep.mubr.f32.mxu0 0.0
      %868 = vmatmul.mubr.f32.gmra.mrb[0].mxu0 %v500
      %v869 = vpop.f32.mrb[0].mxu0
      %v870 = vadd.f32 %v364, %v869
      %v871 = vpop.f32.mrb[0].mxu0
      %872 = vmatprep.mubr.f32.mxu0 0.0
      %873 = vmatmul.mubr.f32.gmra.mrb[0].mxu0 %v503
      %v874 = vpop.f32.mrb[0].mxu0
      %v875 = vadd.f32 %v364, %v874
      %v876 = vpop.f32.mrb[0].mxu0
      %877 = vmatprep.mubr.f32.mxu0 0.0
      %878 = vmatmul.mubr.f32.gmra.mrb[0].mxu0 %v506
      %v879 = vpop.f32.mrb[0].mxu0
      %v880 = vadd.f32 %v364, %v879
      %v881 = vpop.f32.mrb[0].mxu0
      %882 = vmatprep.mubr.f32.mxu0 0.0
      %883 = vmatmul.mubr.f32.gmra.mrb[0].mxu0 %v509
      %v884 = vpop.f32.mrb[0].mxu0
      %v885 = vadd.f32 %v364, %v884
      %v886 = vpop.f32.mrb[0].mxu0
      %887 = vmatprep.mubr.f32.mxu0 0.0
      %888 = vmatmul.mubr.f32.gmra.mrb[0].mxu0 %v512
      %v889 = vpop.f32.mrb[0].mxu0
      %v890 = vadd.f32 %v364, %v889
      %v891 = vpop.f32.mrb[0].mxu0
      %892 = vmatprep.mubr.f32.mxu0 0.0
      %893 = vmatmul.mubr.f32.gmra.mrb[0].mxu0 %v515
      %v894 = vpop.f32.mrb[0].mxu0
      %v895 = vadd.f32 %v364, %v894
      %v896 = vpop.f32.mrb[0].mxu0
      %897 = vmatprep.mubr.f32.mxu0 0.0
      %898 = vmatmul.mubr.f32.gmra.mrb[0].mxu0 %v518
      %v899 = vpop.f32.mrb[0].mxu0
      %v900 = vadd.f32 %v364, %v899
      %v901 = vpop.f32.mrb[0].mxu0
      %902 = vmatprep.mubr.f32.mxu0 0.0
      %903 = vmatmul.mubr.f32.gmra.mrb[0].mxu0 %v521
      %v904 = vpop.f32.mrb[0].mxu0
      %v905 = vadd.f32 %v364, %v904
      %v906 = vpop.f32.mrb[0].mxu0
      %907 = vmatprep.mubr.f32.mxu0 0.0
      %908 = vmatmul.mubr.f32.gmra.mrb[0].mxu0 %v524
      %v909 = vpop.f32.mrb[0].mxu0
      %v910 = vadd.f32 %v364, %v909
      %v911 = vpop.f32.mrb[0].mxu0
      %912 = vmatprep.mubr.f32.mxu0 0.0
      %913 = vmatmul.mubr.f32.gmra.mrb[0].mxu0 %v527
      %v914 = vpop.f32.mrb[0].mxu0
      %v915 = vadd.f32 %v364, %v914
      %v916 = vpop.f32.mrb[0].mxu0
      %917 = vmatprep.mubr.f32.mxu0 0.0
      %918 = vmatmul.mubr.f32.gmra.mrb[0].mxu0 %v530
      %v919 = vpop.f32.mrb[0].mxu0
      %v920 = vadd.f32 %v364, %v919
      %v921 = vpop.f32.mrb[0].mxu0
      %922 = vmatprep.mubr.f32.mxu0 0.0
      %923 = vmatmul.mubr.f32.gmra.mrb[0].mxu0 %v533
      %v924 = vpop.f32.mrb[0].mxu0
      %v925 = vadd.f32 %v364, %v924
      %v926 = vpop.f32.mrb[0].mxu0
      %927 = vmatprep.mubr.f32.mxu0 0.0
      %928 = vmatmul.mubr.f32.gmra.mrb[0].mxu0 %v536
      %v929 = vpop.f32.mrb[0].mxu0
      %v930 = vadd.f32 %v364, %v929
      %v931 = vpop.f32.mrb[0].mxu0
      %932 = vmatprep.mubr.f32.mxu0 0.0
      %933 = vmatmul.mubr.f32.gmra.mrb[0].mxu0 %v539
      %v934 = vpop.f32.mrb[0].mxu0
      %v935 = vadd.f32 %v364, %v934
      %v936 = vpop.f32.mrb[0].mxu0
      %937 = vmatprep.mubr.f32.mxu0 0.0
      %938 = vmatmul.mubr.f32.gmra.mrb[0].mxu0 %v542
      %v939 = vpop.f32.mrb[0].mxu0
      %v940 = vadd.f32 %v364, %v939
      %v941 = vpop.f32.mrb[0].mxu0
      %942 = vmatprep.mubr.f32.mxu0 0.0
      %943 = vmatmul.mubr.f32.gmra.mrb[0].mxu0 %v545
      %v944 = vpop.f32.mrb[0].mxu0
      %v945 = vadd.f32 %v364, %v944
      %v946 = vpop.f32.mrb[0].mxu0
      %947 = vmatprep.mubr.f32.mxu0 0.0
      %948 = vmatmul.mubr.f32.gmra.mrb[0].mxu0 %v548
      %v949 = vpop.f32.mrb[0].mxu0
      %v950 = vadd.f32 %v364, %v949
      %v951 = vpop.f32.mrb[0].mxu0
      %952 = vmatprep.mubr.f32.mxu0 0.0
      %953 = vmatmul.mubr.f32.gmra.mrb[0].mxu0 %v551
      %v954 = vpop.f32.mrb[0].mxu0
      %v955 = vadd.f32 %v364, %v954
      %v956 = vpop.f32.mrb[0].mxu0
      %957 = vmatprep.mubr.f32.mxu0 0.0
      %958 = vmatmul.mubr.f32.gmra.mrb[0].mxu0 %v554
      %v959 = vpop.f32.mrb[0].mxu0
      %v960 = vadd.f32 %v364, %v959
      %v961 = vpop.f32.mrb[0].mxu0
      %962 = vmatprep.mubr.f32.mxu0 0.0
      %963 = vmatmul.mubr.f32.gmra.mrb[0].mxu0 %v557
      %v964 = vpop.f32.mrb[0].mxu0
      %v965 = vadd.f32 %v364, %v964
      %v966 = vpop.f32.mrb[0].mxu0
      %967 = vmatprep.mubr.f32.mxu0 0.0
      %968 = vmatmul.mubr.f32.gmra.mrb[0].mxu0 %v560
      %v969 = vpop.f32.mrb[0].mxu0
      %v970 = vadd.f32 %v364, %v969
      %v971 = vpop.f32.mrb[0].mxu0
      %972 = vmatprep.mubr.f32.mxu0 0.0
      %973 = vmatmul.mubr.f32.gmra.mrb[0].mxu0 %v563
      %v974 = vpop.f32.mrb[0].mxu0
      %v975 = vadd.f32 %v364, %v974
      %v976 = vpop.f32.mrb[0].mxu0
      %977 = vmatprep.mubr.f32.mxu0 0.0
      %978 = vmatmul.mubr.f32.gmra.mrb[0].mxu0 %v566
      %v979 = vpop.f32.mrb[0].mxu0
      %v980 = vadd.f32 %v364, %v979
      %v981 = vpop.f32.mrb[0].mxu0
      %982 = vmatprep.mubr.f32.mxu0 0.0
      %983 = vmatmul.mubr.f32.gmra.mrb[0].mxu0 %v569
      %v984 = vpop.f32.mrb[0].mxu0
      %v985 = vadd.f32 %v364, %v984
      %v986 = vpop.f32.mrb[0].mxu0
      %987 = vmatprep.mubr.f32.mxu0 0.0
      %988 = vmatmul.mubr.f32.gmra.mrb[0].mxu0 %v572
      %v989 = vpop.f32.mrb[0].mxu0
      %v990 = vadd.f32 %v364, %v989
      %v991 = vpop.f32.mrb[0].mxu0
      %992 = vmatprep.mubr.f32.mxu0 0.0
      %993 = vmatmul.mubr.f32.gmra.mrb[0].mxu0 %v575
      %v994 = vpop.f32.mrb[0].mxu0
      %v995 = vadd.f32 %v364, %v994
      %v996 = vpop.f32.mrb[0].mxu0
      %997 = vmatprep.mubr.f32.mxu0 0.0
      %998 = vmatmul.mubr.f32.gmra.mrb[0].mxu0 %v578
      %v999 = vpop.f32.mrb[0].mxu0
      %v1000 = vadd.f32 %v364, %v999
      %v1001 = vpop.f32.mrb[0].mxu0
      %1002 = vmatprep.mubr.f32.mxu0 0.0
      %1003 = vmatmul.mubr.f32.gmra.mrb[0].mxu0 %v581
      %v1004 = vpop.f32.mrb[0].mxu0
      %v1005 = vadd.f32 %v364, %v1004
      %v1006 = vpop.f32.mrb[0].mxu0
      %1007 = vdwg.mxu0
      %v1008 = vmax.f32 %v650, 0.0
      %v1009 = vmax.f32 %v655, 0.0
      %v1010 = vmax.f32 %v660, 0.0
      %v1011 = vmax.f32 %v665, 0.0
      %v1012 = vmax.f32 %v670, 0.0
      %v1013 = vmax.f32 %v675, 0.0
      %v1014 = vmax.f32 %v680, 0.0
      %v1015 = vmax.f32 %v685, 0.0
      %v1016 = vmax.f32 %v690, 0.0
      %v1017 = vmax.f32 %v695, 0.0
      %v1018 = vmax.f32 %v700, 0.0
      %v1019 = vmax.f32 %v705, 0.0
      %v1020 = vmax.f32 %v710, 0.0
      %v1021 = vmax.f32 %v715, 0.0
      %v1022 = vmax.f32 %v720, 0.0
      %v1023 = vmax.f32 %v725, 0.0
      %v1024 = vmax.f32 %v730, 0.0
      %v1025 = vmax.f32 %v735, 0.0
      %v1026 = vmax.f32 %v740, 0.0
      %v1027 = vmax.f32 %v745, 0.0
      %v1028 = vmax.f32 %v750, 0.0
      %v1029 = vmax.f32 %v755, 0.0
      %v1030 = vmax.f32 %v760, 0.0
      %v1031 = vmax.f32 %v765, 0.0
      %v1032 = vmax.f32 %v770, 0.0
      %v1033 = vmax.f32 %v775, 0.0
      %v1034 = vmax.f32 %v780, 0.0
      %v1035 = vmax.f32 %v785, 0.0
      %v1036 = vmax.f32 %v790, 0.0
      %v1037 = vmax.f32 %v795, 0.0
      %v1038 = vmax.f32 %v800, 0.0
      %v1039 = vmax.f32 %v805, 0.0
      %v1040 = vmax.f32 %v810, 0.0
      %v1041 = vmax.f32 %v815, 0.0
      %v1042 = vmax.f32 %v820, 0.0
      %v1043 = vmax.f32 %v825, 0.0
      %v1044 = vmax.f32 %v830, 0.0
      %v1045 = vmax.f32 %v835, 0.0
      %v1046 = vmax.f32 %v840, 0.0
      %v1047 = vmax.f32 %v845, 0.0
      %v1048 = vmax.f32 %v850, 0.0
      %v1049 = vmax.f32 %v855, 0.0
      %v1050 = vmax.f32 %v860, 0.0
      %v1051 = vmax.f32 %v865, 0.0
      %v1052 = vmax.f32 %v870, 0.0
      %v1053 = vmax.f32 %v875, 0.0
      %v1054 = vmax.f32 %v880, 0.0
      %v1055 = vmax.f32 %v885, 0.0
      %v1056 = vmax.f32 %v890, 0.0
      %v1057 = vmax.f32 %v895, 0.0
      %v1058 = vmax.f32 %v900, 0.0
      %v1059 = vmax.f32 %v905, 0.0
      %v1060 = vmax.f32 %v910, 0.0
      %v1061 = vmax.f32 %v915, 0.0
      %v1062 = vmax.f32 %v920, 0.0
      %v1063 = vmax.f32 %v925, 0.0
      %v1064 = vmax.f32 %v930, 0.0
      %v1065 = vmax.f32 %v935, 0.0
      %v1066 = vmax.f32 %v940, 0.0
      %v1067 = vmax.f32 %v945, 0.0
      %v1068 = vmax.f32 %v950, 0.0
      %v1069 = vmax.f32 %v955, 0.0
      %v1070 = vmax.f32 %v960, 0.0
      %v1071 = vmax.f32 %v965, 0.0
      %v1072 = vmax.f32 %v970, 0.0
      %v1073 = vmax.f32 %v975, 0.0
      %v1074 = vmax.f32 %v980, 0.0
      %v1075 = vmax.f32 %v985, 0.0
      %v1076 = vmax.f32 %v990, 0.0
      %v1077 = vmax.f32 %v995, 0.0
      %v1078 = vmax.f32 %v1000, 0.0
      %v1079 = vmax.f32 %v1005, 0.0
      %vm1080 = vcmask 261120
      %1081 = vst.msk [vmem:[#allocation2] sm:$0xff] %vm1080, %v1008
      %1082 = vst.msk [vmem:[#allocation2 + $0x8] sm:$0xff] %vm1080, %v1009
      %1083 = vst.msk [vmem:[#allocation2 + $0x10] sm:$0xff] %vm1080, %v1010
      %1084 = vst.msk [vmem:[#allocation2 + $0x18] sm:$0xff] %vm1080, %v1011
      %1085 = vst.msk [vmem:[#allocation2 + $0x20] sm:$0xff] %vm1080, %v1012
      %1086 = vst.msk [vmem:[#allocation2 + $0x28] sm:$0xff] %vm1080, %v1013
      %1087 = vst.msk [vmem:[#allocation2 + $0x30] sm:$0xff] %vm1080, %v1014
      %1088 = vst.msk [vmem:[#allocation2 + $0x38] sm:$0xff] %vm1080, %v1015
      %1089 = vst.msk [vmem:[#allocation2 + $0x40] sm:$0xff] %vm1080, %v1016
      %1090 = vst.msk [vmem:[#allocation2 + $0x48] sm:$0xff] %vm1080, %v1017
      %1091 = vst.msk [vmem:[#allocation2 + $0x50] sm:$0xff] %vm1080, %v1018
      %1092 = vst.msk [vmem:[#allocation2 + $0x58] sm:$0xff] %vm1080, %v1019
      %1093 = vst.msk [vmem:[#allocation2 + $0x60] sm:$0xff] %vm1080, %v1020
      %1094 = vst.msk [vmem:[#allocation2 + $0x68] sm:$0xff] %vm1080, %v1021
      %1095 = vst.msk [vmem:[#allocation2 + $0x70] sm:$0xff] %vm1080, %v1022
      %1096 = vst.msk [vmem:[#allocation2 + $0x78] sm:$0xff] %vm1080, %v1023
      %1097 = vst.msk [vmem:[#allocation2 + $0x80] sm:$0xff] %vm1080, %v1024
      %1098 = vst.msk [vmem:[#allocation2 + $0x88] sm:$0xff] %vm1080, %v1025
      %1099 = vst.msk [vmem:[#allocation2 + $0x90] sm:$0xff] %vm1080, %v1026
      %1100 = vst.msk [vmem:[#allocation2 + $0x98] sm:$0xff] %vm1080, %v1027
      %1101 = vst.msk [vmem:[#allocation2 + $0xa0] sm:$0xff] %vm1080, %v1028
      %1102 = vst.msk [vmem:[#allocation2 + $0xa8] sm:$0xff] %vm1080, %v1029
      %1103 = vst.msk [vmem:[#allocation2 + $0xb0] sm:$0xff] %vm1080, %v1030
      %1104 = vst.msk [vmem:[#allocation2 + $0xb8] sm:$0xff] %vm1080, %v1031
      %1105 = vst.msk [vmem:[#allocation2 + $0xc0] sm:$0xff] %vm1080, %v1032
      %1106 = vst.msk [vmem:[#allocation2 + $0xc8] sm:$0xff] %vm1080, %v1033
      %1107 = vst.msk [vmem:[#allocation2 + $0xd0] sm:$0xff] %vm1080, %v1034
      %1108 = vst.msk [vmem:[#allocation2 + $0xd8] sm:$0xff] %vm1080, %v1035
      %1109 = vst.msk [vmem:[#allocation2 + $0xe0] sm:$0xff] %vm1080, %v1036
      %1110 = vst.msk [vmem:[#allocation2 + $0xe8] sm:$0xff] %vm1080, %v1037
      %1111 = vst.msk [vmem:[#allocation2 + $0xf0] sm:$0xff] %vm1080, %v1038
      %1112 = vst.msk [vmem:[#allocation2 + $0xf8] sm:$0xff] %vm1080, %v1039
      %1113 = vst.msk [vmem:[#allocation2 + $0x100] sm:$0xff] %vm1080, %v1040
      %1114 = vst.msk [vmem:[#allocation2 + $0x108] sm:$0xff] %vm1080, %v1041
      %1115 = vst.msk [vmem:[#allocation2 + $0x110] sm:$0xff] %vm1080, %v1042
      %1116 = vst.msk [vmem:[#allocation2 + $0x118] sm:$0xff] %vm1080, %v1043
      %1117 = vst.msk [vmem:[#allocation2 + $0x120] sm:$0xff] %vm1080, %v1044
      %1118 = vst.msk [vmem:[#allocation2 + $0x128] sm:$0xff] %vm1080, %v1045
      %1119 = vst.msk [vmem:[#allocation2 + $0x130] sm:$0xff] %vm1080, %v1046
      %1120 = vst.msk [vmem:[#allocation2 + $0x138] sm:$0xff] %vm1080, %v1047
      %1121 = vst.msk [vmem:[#allocation2 + $0x140] sm:$0xff] %vm1080, %v1048
      %1122 = vst.msk [vmem:[#allocation2 + $0x148] sm:$0xff] %vm1080, %v1049
      %1123 = vst.msk [vmem:[#allocation2 + $0x150] sm:$0xff] %vm1080, %v1050
      %1124 = vst.msk [vmem:[#allocation2 + $0x158] sm:$0xff] %vm1080, %v1051
      %1125 = vst.msk [vmem:[#allocation2 + $0x160] sm:$0xff] %vm1080, %v1052
      %1126 = vst.msk [vmem:[#allocation2 + $0x168] sm:$0xff] %vm1080, %v1053
      %1127 = vst.msk [vmem:[#allocation2 + $0x170] sm:$0xff] %vm1080, %v1054
      %1128 = vst.msk [vmem:[#allocation2 + $0x178] sm:$0xff] %vm1080, %v1055
      %1129 = vst.msk [vmem:[#allocation2 + $0x180] sm:$0xff] %vm1080, %v1056
      %1130 = vst.msk [vmem:[#allocation2 + $0x188] sm:$0xff] %vm1080, %v1057
      %1131 = vst.msk [vmem:[#allocation2 + $0x190] sm:$0xff] %vm1080, %v1058
      %1132 = vst.msk [vmem:[#allocation2 + $0x198] sm:$0xff] %vm1080, %v1059
      %1133 = vst.msk [vmem:[#allocation2 + $0x1a0] sm:$0xff] %vm1080, %v1060
      %1134 = vst.msk [vmem:[#allocation2 + $0x1a8] sm:$0xff] %vm1080, %v1061
      %1135 = vst.msk [vmem:[#allocation2 + $0x1b0] sm:$0xff] %vm1080, %v1062
      %1136 = vst.msk [vmem:[#allocation2 + $0x1b8] sm:$0xff] %vm1080, %v1063
      %1137 = vst.msk [vmem:[#allocation2 + $0x1c0] sm:$0xff] %vm1080, %v1064
      %1138 = vst.msk [vmem:[#allocation2 + $0x1c8] sm:$0xff] %vm1080, %v1065
      %1139 = vst.msk [vmem:[#allocation2 + $0x1d0] sm:$0xff] %vm1080, %v1066
      %1140 = vst.msk [vmem:[#allocation2 + $0x1d8] sm:$0xff] %vm1080, %v1067
      %1141 = vst.msk [vmem:[#allocation2 + $0x1e0] sm:$0xff] %vm1080, %v1068
      %1142 = vst.msk [vmem:[#allocation2 + $0x1e8] sm:$0xff] %vm1080, %v1069
      %1143 = vst.msk [vmem:[#allocation2 + $0x1f0] sm:$0xff] %vm1080, %v1070
      %1144 = vst.msk [vmem:[#allocation2 + $0x1f8] sm:$0xff] %vm1080, %v1071
      %1145 = vst.msk [vmem:[#allocation2 + $0x200] sm:$0xff] %vm1080, %v1072
      %1146 = vst.msk [vmem:[#allocation2 + $0x208] sm:$0xff] %vm1080, %v1073
      %1147 = vst.msk [vmem:[#allocation2 + $0x210] sm:$0xff] %vm1080, %v1074
      %1148 = vst.msk [vmem:[#allocation2 + $0x218] sm:$0xff] %vm1080, %v1075
      %1149 = vst.msk [vmem:[#allocation2 + $0x220] sm:$0xff] %vm1080, %v1076
      %1150 = vst.msk [vmem:[#allocation2 + $0x228] sm:$0xff] %vm1080, %v1077
      %1151 = vst.msk [vmem:[#allocation2 + $0x230] sm:$0xff] %vm1080, %v1078
      %1152 = vst.msk [vmem:[#allocation2 + $0x238] sm:$0xff] %vm1080, %v1079
      %v1153 = vld [vmem:[#allocation2] sm:$0xff]
      %v1154 = vld [vmem:[#allocation2 + $0x8] sm:$0xff]
      %v1155 = vld [vmem:[#allocation2 + $0x10] sm:$0xff]
      %v1156 = vld [vmem:[#allocation2 + $0x18] sm:$0xff]
      %v1157 = vld [vmem:[#allocation2 + $0x20] sm:$0xff]
      %v1158 = vld [vmem:[#allocation2 + $0x28] sm:$0xff]
      %v1159 = vld [vmem:[#allocation2 + $0x30] sm:$0xff]
      %v1160 = vld [vmem:[#allocation2 + $0x38] sm:$0xff]
      %v1161 = vld [vmem:[#allocation2 + $0x40] sm:$0xff]
      %v1162 = vld [vmem:[#allocation2 + $0x48] sm:$0xff]
      %v1163 = vld [vmem:[#allocation2 + $0x50] sm:$0xff]
      %v1164 = vld [vmem:[#allocation2 + $0x58] sm:$0xff]
      %v1165 = vld [vmem:[#allocation2 + $0x60] sm:$0xff]
      %v1166 = vld [vmem:[#allocation2 + $0x68] sm:$0xff]
      %v1167 = vld [vmem:[#allocation2 + $0x70] sm:$0xff]
      %v1168 = vld [vmem:[#allocation2 + $0x78] sm:$0xff]
      %v1169 = vld [vmem:[%s3] sm:$0xff]
      %v1170 = vld [vmem:[%s3 + $0x8] sm:$0xff]
      %v1171 = vld [vmem:[%s3 + $0x10] sm:$0xff]
      %v1172 = vld [vmem:[%s3 + $0x18] sm:$0xff]
      %v1173 = vld [vmem:[#allocation2 + $0x90] sm:$0xff]
      %v1174 = vld [vmem:[#allocation2 + $0x98] sm:$0xff]
      %v1175 = vld [vmem:[#allocation2 + $0xa0] sm:$0xff]
      %v1176 = vld [vmem:[#allocation2 + $0xa8] sm:$0xff]
      %v1177 = vld [vmem:[#allocation2 + $0xb0] sm:$0xff]
      %v1178 = vld [vmem:[#allocation2 + $0xb8] sm:$0xff]
      %v1179 = vld [vmem:[#allocation2 + $0xc0] sm:$0xff]
      %v1180 = vld [vmem:[#allocation2 + $0xc8] sm:$0xff]
      %v1181 = vld [vmem:[#allocation2 + $0xd0] sm:$0xff]
      %v1182 = vld [vmem:[#allocation2 + $0xd8] sm:$0xff]
      %v1183 = vld [vmem:[#allocation2 + $0xe0] sm:$0xff]
      %v1184 = vld [vmem:[#allocation2 + $0xe8] sm:$0xff]
      %v1185 = vld [vmem:[#allocation2 + $0xf0] sm:$0xff]
      %v1186 = vld [vmem:[#allocation2 + $0xf8] sm:$0xff]
      %v1187 = vld [vmem:[#allocation2 + $0x100] sm:$0xff]
      %v1188 = vld [vmem:[#allocation2 + $0x108] sm:$0xff]
      %s1189 = scalar_lea.vmem %s3, 32
      %v1190 = vld [vmem:[%s1189] sm:$0xff]
      %v1191 = vld [vmem:[%s1189 + $0x8] sm:$0xff]
      %v1192 = vld [vmem:[%s1189 + $0x10] sm:$0xff]
      %v1193 = vld [vmem:[%s1189 + $0x18] sm:$0xff]
      %v1195 = vsel %vm1080, %v1173, 0
      %v1198 = vsel %vm1080, %v1174, 0
      %v1201 = vsel %vm1080, %v1175, 0
      %v1204 = vsel %vm1080, %v1176, 0
      %v1207 = vsel %vm1080, %v1177, 0
      %v1210 = vsel %vm1080, %v1178, 0
      %v1213 = vsel %vm1080, %v1179, 0
      %v1216 = vsel %vm1080, %v1180, 0
      %v1219 = vsel %vm1080, %v1181, 0
      %v1222 = vsel %vm1080, %v1182, 0
      %v1225 = vsel %vm1080, %v1183, 0
      %v1228 = vsel %vm1080, %v1184, 0
      %v1231 = vsel %vm1080, %v1185, 0
      %v1234 = vsel %vm1080, %v1186, 0
      %v1237 = vsel %vm1080, %v1187, 0
      %v1240 = vsel %vm1080, %v1188, 0
      %1242 = vmatprep.subr.mxu0 0.0
      %1243 = vmatpush1.msra.mxu0 %v1190
      %1244 = vmatprep.subr.mxu0 0.0
      %1245 = vmatpush1.msra.mxu0 %v1191
      %1246 = vmatprep.subr.mxu0 0.0
      %1247 = vmatpush1.msra.mxu0 %v1192
      %1248 = vmatprep.subr.mxu0 0.0
      %1249 = vmatpush1.msra.mxu0 %v1193
      %1250 = vmatprep.subr.mxu0 0.0
      %1251 = vmatpush1.msra.mxu0 0.0
      %1252 = vmatprep.subr.mxu0 0.0
      %1253 = vmatpush1.msra.mxu0 0.0
      %1254 = vmatprep.subr.mxu0 0.0
      %1255 = vmatpush1.msra.mxu0 0.0
      %1256 = vmatprep.subr.mxu0 0.0
      %1257 = vmatpush1.msra.mxu0 0.0
      %1258 = vmatprep.subr.mxu0 0.0
      %1259 = vmatpush1.msra.mxu0 0.0
      %1260 = vmatprep.subr.mxu0 0.0
      %1261 = vmatpush1.msra.mxu0 0.0
      %1262 = vmatprep.subr.mxu0 0.0
      %1263 = vmatpush1.msra.mxu0 0.0
      %1264 = vmatprep.subr.mxu0 0.0
      %1265 = vmatpush1.msra.mxu0 0.0
      %1266 = vmatprep.subr.mxu0 0.0
      %1267 = vmatpush1.msra.mxu0 0.0
      %1268 = vmatprep.subr.mxu0 0.0
      %1269 = vmatpush1.msra.mxu0 0.0
      %1270 = vmatprep.subr.mxu0 0.0
      %1271 = vmatpush1.msra.mxu0 0.0
      %1272 = vmatprep.subr.mxu0 0.0
      %1273 = vmatpush1.msra.mxu0 0.0
      %1274 = vmatprep.subr.mxu0 0.0
      %1275 = vmatpush1.msra.mxu0 0.0
      %1276 = vmatprep.subr.mxu0 0.0
      %1277 = vmatpush1.msra.mxu0 0.0
      %1278 = vmatprep.subr.mxu0 0.0
      %1279 = vmatpush1.msra.mxu0 0.0
      %1280 = vmatprep.subr.mxu0 0.0
      %1281 = vmatpush1.msra.mxu0 0.0
      %1282 = vmatprep.subr.mxu0 0.0
      %1283 = vmatpush1.msra.mxu0 0.0
      %1284 = vmatprep.subr.mxu0 0.0
      %1285 = vmatpush1.msra.mxu0 0.0
      %1286 = vmatprep.subr.mxu0 0.0
      %1287 = vmatpush1.msra.mxu0 0.0
      %1288 = vmatprep.subr.mxu0 0.0
      %1289 = vmatpush1.msra.mxu0 0.0
      %1290 = vmatprep.subr.mxu0 0.0
      %1291 = vmatpush1.msra.mxu0 0.0
      %1292 = vmatprep.subr.mxu0 0.0
      %1293 = vmatpush1.msra.mxu0 0.0
      %1294 = vmatprep.subr.mxu0 0.0
      %1295 = vmatpush1.msra.mxu0 0.0
      %1296 = vmatprep.subr.mxu0 0.0
      %1297 = vmatpush1.msra.mxu0 0.0
      %1298 = vmatprep.subr.mxu0 0.0
      %1299 = vmatpush1.msra.mxu0 0.0
      %1300 = vmatprep.subr.mxu0 0.0
      %1301 = vmatpush1.msra.mxu0 0.0
      %1302 = vmatprep.subr.mxu0 0.0
      %1303 = vmatpush1.msra.mxu0 0.0
      %1304 = vmatprep.subr.mxu0 0.0
      %1305 = vmatpush1.msra.mxu0 0.0
      %1306 = vmatprep.mubr.f32.mxu0 0.0
      %1307 = vmatmul.mubr.f32.gmra.mrb[0].mxu0 %v1195
      %v1308 = vpop.f32.mrb[0].mxu0
      %v1309 = vadd.f32 0.0, %v1308
      %v1310 = vpop.f32.mrb[0].mxu0
      %1311 = vmatprep.mubr.f32.mxu0 0.0
      %1312 = vmatmul.mubr.f32.gmra.mrb[0].mxu0 %v1198
      %v1313 = vpop.f32.mrb[0].mxu0
      %v1314 = vadd.f32 0.0, %v1313
      %v1315 = vpop.f32.mrb[0].mxu0
      %1316 = vmatprep.mubr.f32.mxu0 0.0
      %1317 = vmatmul.mubr.f32.gmra.mrb[0].mxu0 %v1201
      %v1318 = vpop.f32.mrb[0].mxu0
      %v1319 = vadd.f32 0.0, %v1318
      %v1320 = vpop.f32.mrb[0].mxu0
      %1321 = vmatprep.mubr.f32.mxu0 0.0
      %1322 = vmatmul.mubr.f32.gmra.mrb[0].mxu0 %v1204
      %v1323 = vpop.f32.mrb[0].mxu0
      %v1324 = vadd.f32 0.0, %v1323
      %v1325 = vpop.f32.mrb[0].mxu0
      %1326 = vmatprep.mubr.f32.mxu0 0.0
      %1327 = vmatmul.mubr.f32.gmra.mrb[0].mxu0 %v1207
      %v1328 = vpop.f32.mrb[0].mxu0
      %v1329 = vadd.f32 0.0, %v1328
      %v1330 = vpop.f32.mrb[0].mxu0
      %1331 = vmatprep.mubr.f32.mxu0 0.0
      %1332 = vmatmul.mubr.f32.gmra.mrb[0].mxu0 %v1210
      %v1333 = vpop.f32.mrb[0].mxu0
      %v1334 = vadd.f32 0.0, %v1333
      %v1335 = vpop.f32.mrb[0].mxu0
      %1336 = vmatprep.mubr.f32.mxu0 0.0
      %1337 = vmatmul.mubr.f32.gmra.mrb[0].mxu0 %v1213
      %v1338 = vpop.f32.mrb[0].mxu0
      %v1339 = vadd.f32 0.0, %v1338
      %v1340 = vpop.f32.mrb[0].mxu0
      %1341 = vmatprep.mubr.f32.mxu0 0.0
      %1342 = vmatmul.mubr.f32.gmra.mrb[0].mxu0 %v1216
      %v1343 = vpop.f32.mrb[0].mxu0
      %v1344 = vadd.f32 0.0, %v1343
      %v1345 = vpop.f32.mrb[0].mxu0
      %1346 = vmatprep.mubr.f32.mxu0 0.0
      %1347 = vmatmul.mubr.f32.gmra.mrb[0].mxu0 %v1219
      %v1348 = vpop.f32.mrb[0].mxu0
      %v1349 = vadd.f32 0.0, %v1348
      %v1350 = vpop.f32.mrb[0].mxu0
      %1351 = vmatprep.mubr.f32.mxu0 0.0
      %1352 = vmatmul.mubr.f32.gmra.mrb[0].mxu0 %v1222
      %v1353 = vpop.f32.mrb[0].mxu0
      %v1354 = vadd.f32 0.0, %v1353
      %v1355 = vpop.f32.mrb[0].mxu0
      %1356 = vmatprep.mubr.f32.mxu0 0.0
      %1357 = vmatmul.mubr.f32.gmra.mrb[0].mxu0 %v1225
      %v1358 = vpop.f32.mrb[0].mxu0
      %v1359 = vadd.f32 0.0, %v1358
      %v1360 = vpop.f32.mrb[0].mxu0
      %1361 = vmatprep.mubr.f32.mxu0 0.0
      %1362 = vmatmul.mubr.f32.gmra.mrb[0].mxu0 %v1228
      %v1363 = vpop.f32.mrb[0].mxu0
      %v1364 = vadd.f32 0.0, %v1363
      %v1365 = vpop.f32.mrb[0].mxu0
      %1366 = vmatprep.mubr.f32.mxu0 0.0
      %1367 = vmatmul.mubr.f32.gmra.mrb[0].mxu0 %v1231
      %v1368 = vpop.f32.mrb[0].mxu0
      %v1369 = vadd.f32 0.0, %v1368
      %v1370 = vpop.f32.mrb[0].mxu0
      %1371 = vmatprep.mubr.f32.mxu0 0.0
      %1372 = vmatmul.mubr.f32.gmra.mrb[0].mxu0 %v1234
      %v1373 = vpop.f32.mrb[0].mxu0
      %v1374 = vadd.f32 0.0, %v1373
      %v1375 = vpop.f32.mrb[0].mxu0
      %1376 = vmatprep.mubr.f32.mxu0 0.0
      %1377 = vmatmul.mubr.f32.gmra.mrb[0].mxu0 %v1237
      %v1378 = vpop.f32.mrb[0].mxu0
      %v1379 = vadd.f32 0.0, %v1378
      %v1380 = vpop.f32.mrb[0].mxu0
      %1381 = vmatprep.mubr.f32.mxu0 0.0
      %1382 = vmatmul.mubr.f32.gmra.mrb[0].mxu0 %v1240
      %v1383 = vpop.f32.mrb[0].mxu0
      %v1384 = vadd.f32 0.0, %v1383
      %v1385 = vpop.f32.mrb[0].mxu0
      %1386 = vdwg.mxu0
      %v1388 = vsel %vm1080, %v1153, 0
      %v1391 = vsel %vm1080, %v1154, 0
      %v1394 = vsel %vm1080, %v1155, 0
      %v1397 = vsel %vm1080, %v1156, 0
      %v1400 = vsel %vm1080, %v1157, 0
      %v1403 = vsel %vm1080, %v1158, 0
      %v1406 = vsel %vm1080, %v1159, 0
      %v1409 = vsel %vm1080, %v1160, 0
      %v1412 = vsel %vm1080, %v1161, 0
      %v1415 = vsel %vm1080, %v1162, 0
      %v1418 = vsel %vm1080, %v1163, 0
      %v1421 = vsel %vm1080, %v1164, 0
      %v1424 = vsel %vm1080, %v1165, 0
      %v1427 = vsel %vm1080, %v1166, 0
      %v1430 = vsel %vm1080, %v1167, 0
      %v1433 = vsel %vm1080, %v1168, 0
      %1435 = vmatprep.subr.mxu0 0.0
      %1436 = vmatpush1.msra.mxu0 %v1169
      %1437 = vmatprep.subr.mxu0 0.0
      %1438 = vmatpush1.msra.mxu0 %v1170
      %1439 = vmatprep.subr.mxu0 0.0
      %1440 = vmatpush1.msra.mxu0 %v1171
      %1441 = vmatprep.subr.mxu0 0.0
      %1442 = vmatpush1.msra.mxu0 %v1172
      %1443 = vmatprep.subr.mxu0 0.0
      %1444 = vmatpush1.msra.mxu0 0.0
      %1445 = vmatprep.subr.mxu0 0.0
      %1446 = vmatpush1.msra.mxu0 0.0
      %1447 = vmatprep.subr.mxu0 0.0
      %1448 = vmatpush1.msra.mxu0 0.0
      %1449 = vmatprep.subr.mxu0 0.0
      %1450 = vmatpush1.msra.mxu0 0.0
      %1451 = vmatprep.subr.mxu0 0.0
      %1452 = vmatpush1.msra.mxu0 0.0
      %1453 = vmatprep.subr.mxu0 0.0
      %1454 = vmatpush1.msra.mxu0 0.0
      %1455 = vmatprep.subr.mxu0 0.0
      %1456 = vmatpush1.msra.mxu0 0.0
      %1457 = vmatprep.subr.mxu0 0.0
      %1458 = vmatpush1.msra.mxu0 0.0
      %1459 = vmatprep.subr.mxu0 0.0
      %1460 = vmatpush1.msra.mxu0 0.0
      %1461 = vmatprep.subr.mxu0 0.0
      %1462 = vmatpush1.msra.mxu0 0.0
      %1463 = vmatprep.subr.mxu0 0.0
      %1464 = vmatpush1.msra.mxu0 0.0
      %1465 = vmatprep.subr.mxu0 0.0
      %1466 = vmatpush1.msra.mxu0 0.0
      %1467 = vmatprep.subr.mxu0 0.0
      %1468 = vmatpush1.msra.mxu0 0.0
      %1469 = vmatprep.subr.mxu0 0.0
      %1470 = vmatpush1.msra.mxu0 0.0
      %1471 = vmatprep.subr.mxu0 0.0
      %1472 = vmatpush1.msra.mxu0 0.0
      %1473 = vmatprep.subr.mxu0 0.0
      %1474 = vmatpush1.msra.mxu0 0.0
      %1475 = vmatprep.subr.mxu0 0.0
      %1476 = vmatpush1.msra.mxu0 0.0
      %1477 = vmatprep.subr.mxu0 0.0
      %1478 = vmatpush1.msra.mxu0 0.0
      %1479 = vmatprep.subr.mxu0 0.0
      %1480 = vmatpush1.msra.mxu0 0.0
      %1481 = vmatprep.subr.mxu0 0.0
      %1482 = vmatpush1.msra.mxu0 0.0
      %1483 = vmatprep.subr.mxu0 0.0
      %1484 = vmatpush1.msra.mxu0 0.0
      %1485 = vmatprep.subr.mxu0 0.0
      %1486 = vmatpush1.msra.mxu0 0.0
      %1487 = vmatprep.subr.mxu0 0.0
      %1488 = vmatpush1.msra.mxu0 0.0
      %1489 = vmatprep.subr.mxu0 0.0
      %1490 = vmatpush1.msra.mxu0 0.0
      %1491 = vmatprep.subr.mxu0 0.0
      %1492 = vmatpush1.msra.mxu0 0.0
      %1493 = vmatprep.subr.mxu0 0.0
      %1494 = vmatpush1.msra.mxu0 0.0
      %1495 = vmatprep.subr.mxu0 0.0
      %1496 = vmatpush1.msra.mxu0 0.0
      %1497 = vmatprep.subr.mxu0 0.0
      %1498 = vmatpush1.msra.mxu0 0.0
      %1499 = vmatprep.mubr.f32.mxu0 0.0
      %1500 = vmatmul.mubr.f32.gmra.mrb[0].mxu0 %v1388
      %v1501 = vpop.f32.mrb[0].mxu0
      %v1502 = vadd.f32 %v1309, %v1501
      %v1503 = vpop.f32.mrb[0].mxu0
      %1504 = vmatprep.mubr.f32.mxu0 0.0
      %1505 = vmatmul.mubr.f32.gmra.mrb[0].mxu0 %v1391
      %v1506 = vpop.f32.mrb[0].mxu0
      %v1507 = vadd.f32 %v1314, %v1506
      %v1508 = vpop.f32.mrb[0].mxu0
      %1509 = vmatprep.mubr.f32.mxu0 0.0
      %1510 = vmatmul.mubr.f32.gmra.mrb[0].mxu0 %v1394
      %v1511 = vpop.f32.mrb[0].mxu0
      %v1512 = vadd.f32 %v1319, %v1511
      %v1513 = vpop.f32.mrb[0].mxu0
      %1514 = vmatprep.mubr.f32.mxu0 0.0
      %1515 = vmatmul.mubr.f32.gmra.mrb[0].mxu0 %v1397
      %v1516 = vpop.f32.mrb[0].mxu0
      %v1517 = vadd.f32 %v1324, %v1516
      %v1518 = vpop.f32.mrb[0].mxu0
      %1519 = vmatprep.mubr.f32.mxu0 0.0
      %1520 = vmatmul.mubr.f32.gmra.mrb[0].mxu0 %v1400
      %v1521 = vpop.f32.mrb[0].mxu0
      %v1522 = vadd.f32 %v1329, %v1521
      %v1523 = vpop.f32.mrb[0].mxu0
      %1524 = vmatprep.mubr.f32.mxu0 0.0
      %1525 = vmatmul.mubr.f32.gmra.mrb[0].mxu0 %v1403
      %v1526 = vpop.f32.mrb[0].mxu0
      %v1527 = vadd.f32 %v1334, %v1526
      %v1528 = vpop.f32.mrb[0].mxu0
      %1529 = vmatprep.mubr.f32.mxu0 0.0
      %1530 = vmatmul.mubr.f32.gmra.mrb[0].mxu0 %v1406
      %v1531 = vpop.f32.mrb[0].mxu0
      %v1532 = vadd.f32 %v1339, %v1531
      %v1533 = vpop.f32.mrb[0].mxu0
      %1534 = vmatprep.mubr.f32.mxu0 0.0
      %1535 = vmatmul.mubr.f32.gmra.mrb[0].mxu0 %v1409
      %v1536 = vpop.f32.mrb[0].mxu0
      %v1537 = vadd.f32 %v1344, %v1536
      %v1538 = vpop.f32.mrb[0].mxu0
      %1539 = vmatprep.mubr.f32.mxu0 0.0
      %1540 = vmatmul.mubr.f32.gmra.mrb[0].mxu0 %v1412
      %v1541 = vpop.f32.mrb[0].mxu0
      %v1542 = vadd.f32 %v1349, %v1541
      %v1543 = vpop.f32.mrb[0].mxu0
      %1544 = vmatprep.mubr.f32.mxu0 0.0
      %1545 = vmatmul.mubr.f32.gmra.mrb[0].mxu0 %v1415
      %v1546 = vpop.f32.mrb[0].mxu0
      %v1547 = vadd.f32 %v1354, %v1546
      %v1548 = vpop.f32.mrb[0].mxu0
      %1549 = vmatprep.mubr.f32.mxu0 0.0
      %1550 = vmatmul.mubr.f32.gmra.mrb[0].mxu0 %v1418
      %v1551 = vpop.f32.mrb[0].mxu0
      %v1552 = vadd.f32 %v1359, %v1551
      %v1553 = vpop.f32.mrb[0].mxu0
      %1554 = vmatprep.mubr.f32.mxu0 0.0
      %1555 = vmatmul.mubr.f32.gmra.mrb[0].mxu0 %v1421
      %v1556 = vpop.f32.mrb[0].mxu0
      %v1557 = vadd.f32 %v1364, %v1556
      %v1558 = vpop.f32.mrb[0].mxu0
      %1559 = vmatprep.mubr.f32.mxu0 0.0
      %1560 = vmatmul.mubr.f32.gmra.mrb[0].mxu0 %v1424
      %v1561 = vpop.f32.mrb[0].mxu0
      %v1562 = vadd.f32 %v1369, %v1561
      %v1563 = vpop.f32.mrb[0].mxu0
      %1564 = vmatprep.mubr.f32.mxu0 0.0
      %1565 = vmatmul.mubr.f32.gmra.mrb[0].mxu0 %v1427
      %v1566 = vpop.f32.mrb[0].mxu0
      %v1567 = vadd.f32 %v1374, %v1566
      %v1568 = vpop.f32.mrb[0].mxu0
      %1569 = vmatprep.mubr.f32.mxu0 0.0
      %1570 = vmatmul.mubr.f32.gmra.mrb[0].mxu0 %v1430
      %v1571 = vpop.f32.mrb[0].mxu0
      %v1572 = vadd.f32 %v1379, %v1571
      %v1573 = vpop.f32.mrb[0].mxu0
      %1574 = vmatprep.mubr.f32.mxu0 0.0
      %1575 = vmatmul.mubr.f32.gmra.mrb[0].mxu0 %v1433
      %v1576 = vpop.f32.mrb[0].mxu0
      %v1577 = vadd.f32 %v1384, %v1576
      %v1578 = vpop.f32.mrb[0].mxu0
      %1579 = vdwg.mxu0
      %v1580 = vld [vmem:[#allocation2 + $0x1] sm:$0xff]
      %v1581 = vld [vmem:[#allocation2 + $0x9] sm:$0xff]
      %v1582 = vld [vmem:[#allocation2 + $0x11] sm:$0xff]
      %v1583 = vld [vmem:[#allocation2 + $0x19] sm:$0xff]
      %v1584 = vld [vmem:[#allocation2 + $0x21] sm:$0xff]
      %v1585 = vld [vmem:[#allocation2 + $0x29] sm:$0xff]
      %v1586 = vld [vmem:[#allocation2 + $0x31] sm:$0xff]
      %v1587 = vld [vmem:[#allocation2 + $0x39] sm:$0xff]
      %v1588 = vld [vmem:[#allocation2 + $0x41] sm:$0xff]
      %v1589 = vld [vmem:[#allocation2 + $0x49] sm:$0xff]
      %v1590 = vld [vmem:[#allocation2 + $0x51] sm:$0xff]
      %v1591 = vld [vmem:[#allocation2 + $0x59] sm:$0xff]
      %v1592 = vld [vmem:[#allocation2 + $0x61] sm:$0xff]
      %v1593 = vld [vmem:[#allocation2 + $0x69] sm:$0xff]
      %v1594 = vld [vmem:[#allocation2 + $0x71] sm:$0xff]
      %v1595 = vld [vmem:[#allocation2 + $0x79] sm:$0xff]
      %s1596 = scalar_lea.vmem %s3, 64
      %v1597 = vld [vmem:[%s1596] sm:$0xff]
      %v1598 = vld [vmem:[%s1596 + $0x8] sm:$0xff]
      %v1599 = vld [vmem:[%s1596 + $0x10] sm:$0xff]
      %v1600 = vld [vmem:[%s1596 + $0x18] sm:$0xff]
      %v1602 = vsel %vm1080, %v1580, 0
      %v1605 = vsel %vm1080, %v1581, 0
      %v1608 = vsel %vm1080, %v1582, 0
      %v1611 = vsel %vm1080, %v1583, 0
      %v1614 = vsel %vm1080, %v1584, 0
      %v1617 = vsel %vm1080, %v1585, 0
      %v1620 = vsel %vm1080, %v1586, 0
      %v1623 = vsel %vm1080, %v1587, 0
      %v1626 = vsel %vm1080, %v1588, 0
      %v1629 = vsel %vm1080, %v1589, 0
      %v1632 = vsel %vm1080, %v1590, 0
      %v1635 = vsel %vm1080, %v1591, 0
      %v1638 = vsel %vm1080, %v1592, 0
      %v1641 = vsel %vm1080, %v1593, 0
      %v1644 = vsel %vm1080, %v1594, 0
      %v1647 = vsel %vm1080, %v1595, 0
      %1649 = vmatprep.subr.mxu0 0.0
      %1650 = vmatpush1.msra.mxu0 %v1597
      %1651 = vmatprep.subr.mxu0 0.0
      %1652 = vmatpush1.msra.mxu0 %v1598
      %1653 = vmatprep.subr.mxu0 0.0
      %1654 = vmatpush1.msra.mxu0 %v1599
      %1655 = vmatprep.subr.mxu0 0.0
      %1656 = vmatpush1.msra.mxu0 %v1600
      %1657 = vmatprep.subr.mxu0 0.0
      %1658 = vmatpush1.msra.mxu0 0.0
      %1659 = vmatprep.subr.mxu0 0.0
      %1660 = vmatpush1.msra.mxu0 0.0
      %1661 = vmatprep.subr.mxu0 0.0
      %1662 = vmatpush1.msra.mxu0 0.0
      %1663 = vmatprep.subr.mxu0 0.0
      %1664 = vmatpush1.msra.mxu0 0.0
      %1665 = vmatprep.subr.mxu0 0.0
      %1666 = vmatpush1.msra.mxu0 0.0
      %1667 = vmatprep.subr.mxu0 0.0
      %1668 = vmatpush1.msra.mxu0 0.0
      %1669 = vmatprep.subr.mxu0 0.0
      %1670 = vmatpush1.msra.mxu0 0.0
      %1671 = vmatprep.subr.mxu0 0.0
      %1672 = vmatpush1.msra.mxu0 0.0
      %1673 = vmatprep.subr.mxu0 0.0
      %1674 = vmatpush1.msra.mxu0 0.0
      %1675 = vmatprep.subr.mxu0 0.0
      %1676 = vmatpush1.msra.mxu0 0.0
      %1677 = vmatprep.subr.mxu0 0.0
      %1678 = vmatpush1.msra.mxu0 0.0
      %1679 = vmatprep.subr.mxu0 0.0
      %1680 = vmatpush1.msra.mxu0 0.0
      %1681 = vmatprep.subr.mxu0 0.0
      %1682 = vmatpush1.msra.mxu0 0.0
      %1683 = vmatprep.subr.mxu0 0.0
      %1684 = vmatpush1.msra.mxu0 0.0
      %1685 = vmatprep.subr.mxu0 0.0
      %1686 = vmatpush1.msra.mxu0 0.0
      %1687 = vmatprep.subr.mxu0 0.0
      %1688 = vmatpush1.msra.mxu0 0.0
      %1689 = vmatprep.subr.mxu0 0.0
      %1690 = vmatpush1.msra.mxu0 0.0
      %1691 = vmatprep.subr.mxu0 0.0
      %1692 = vmatpush1.msra.mxu0 0.0
      %1693 = vmatprep.subr.mxu0 0.0
      %1694 = vmatpush1.msra.mxu0 0.0
      %1695 = vmatprep.subr.mxu0 0.0
      %1696 = vmatpush1.msra.mxu0 0.0
      %1697 = vmatprep.subr.mxu0 0.0
      %1698 = vmatpush1.msra.mxu0 0.0
      %1699 = vmatprep.subr.mxu0 0.0
      %1700 = vmatpush1.msra.mxu0 0.0
      %1701 = vmatprep.subr.mxu0 0.0
      %1702 = vmatpush1.msra.mxu0 0.0
      %1703 = vmatprep.subr.mxu0 0.0
      %1704 = vmatpush1.msra.mxu0 0.0
      %1705 = vmatprep.subr.mxu0 0.0
      %1706 = vmatpush1.msra.mxu0 0.0
      %1707 = vmatprep.subr.mxu0 0.0
      %1708 = vmatpush1.msra.mxu0 0.0
      %1709 = vmatprep.subr.mxu0 0.0
      %1710 = vmatpush1.msra.mxu0 0.0
      %1711 = vmatprep.subr.mxu0 0.0
      %1712 = vmatpush1.msra.mxu0 0.0
      %1713 = vmatprep.mubr.f32.mxu0 0.0
      %1714 = vmatmul.mubr.f32.gmra.mrb[0].mxu0 %v1602
      %v1715 = vpop.f32.mrb[0].mxu0
      %v1716 = vadd.f32 0.0, %v1715
      %v1717 = vpop.f32.mrb[0].mxu0
      %1718 = vmatprep.mubr.f32.mxu0 0.0
      %1719 = vmatmul.mubr.f32.gmra.mrb[0].mxu0 %v1605
      %v1720 = vpop.f32.mrb[0].mxu0
      %v1721 = vadd.f32 0.0, %v1720
      %v1722 = vpop.f32.mrb[0].mxu0
      %1723 = vmatprep.mubr.f32.mxu0 0.0
      %1724 = vmatmul.mubr.f32.gmra.mrb[0].mxu0 %v1608
      %v1725 = vpop.f32.mrb[0].mxu0
      %v1726 = vadd.f32 0.0, %v1725
      %v1727 = vpop.f32.mrb[0].mxu0
      %1728 = vmatprep.mubr.f32.mxu0 0.0
      %1729 = vmatmul.mubr.f32.gmra.mrb[0].mxu0 %v1611
      %v1730 = vpop.f32.mrb[0].mxu0
      %v1731 = vadd.f32 0.0, %v1730
      %v1732 = vpop.f32.mrb[0].mxu0
      %1733 = vmatprep.mubr.f32.mxu0 0.0
      %1734 = vmatmul.mubr.f32.gmra.mrb[0].mxu0 %v1614
      %v1735 = vpop.f32.mrb[0].mxu0
      %v1736 = vadd.f32 0.0, %v1735
      %v1737 = vpop.f32.mrb[0].mxu0
      %1738 = vmatprep.mubr.f32.mxu0 0.0
      %1739 = vmatmul.mubr.f32.gmra.mrb[0].mxu0 %v1617
      %v1740 = vpop.f32.mrb[0].mxu0
      %v1741 = vadd.f32 0.0, %v1740
      %v1742 = vpop.f32.mrb[0].mxu0
      %1743 = vmatprep.mubr.f32.mxu0 0.0
      %1744 = vmatmul.mubr.f32.gmra.mrb[0].mxu0 %v1620
      %v1745 = vpop.f32.mrb[0].mxu0
      %v1746 = vadd.f32 0.0, %v1745
      %v1747 = vpop.f32.mrb[0].mxu0
      %1748 = vmatprep.mubr.f32.mxu0 0.0
      %1749 = vmatmul.mubr.f32.gmra.mrb[0].mxu0 %v1623
      %v1750 = vpop.f32.mrb[0].mxu0
      %v1751 = vadd.f32 0.0, %v1750
      %v1752 = vpop.f32.mrb[0].mxu0
      %1753 = vmatprep.mubr.f32.mxu0 0.0
      %1754 = vmatmul.mubr.f32.gmra.mrb[0].mxu0 %v1626
      %v1755 = vpop.f32.mrb[0].mxu0
      %v1756 = vadd.f32 0.0, %v1755
      %v1757 = vpop.f32.mrb[0].mxu0
      %1758 = vmatprep.mubr.f32.mxu0 0.0
      %1759 = vmatmul.mubr.f32.gmra.mrb[0].mxu0 %v1629
      %v1760 = vpop.f32.mrb[0].mxu0
      %v1761 = vadd.f32 0.0, %v1760
      %v1762 = vpop.f32.mrb[0].mxu0
      %1763 = vmatprep.mubr.f32.mxu0 0.0
      %1764 = vmatmul.mubr.f32.gmra.mrb[0].mxu0 %v1632
      %v1765 = vpop.f32.mrb[0].mxu0
      %v1766 = vadd.f32 0.0, %v1765
      %v1767 = vpop.f32.mrb[0].mxu0
      %1768 = vmatprep.mubr.f32.mxu0 0.0
      %1769 = vmatmul.mubr.f32.gmra.mrb[0].mxu0 %v1635
      %v1770 = vpop.f32.mrb[0].mxu0
      %v1771 = vadd.f32 0.0, %v1770
      %v1772 = vpop.f32.mrb[0].mxu0
      %1773 = vmatprep.mubr.f32.mxu0 0.0
      %1774 = vmatmul.mubr.f32.gmra.mrb[0].mxu0 %v1638
      %v1775 = vpop.f32.mrb[0].mxu0
      %v1776 = vadd.f32 0.0, %v1775
      %v1777 = vpop.f32.mrb[0].mxu0
      %1778 = vmatprep.mubr.f32.mxu0 0.0
      %1779 = vmatmul.mubr.f32.gmra.mrb[0].mxu0 %v1641
      %v1780 = vpop.f32.mrb[0].mxu0
      %v1781 = vadd.f32 0.0, %v1780
      %v1782 = vpop.f32.mrb[0].mxu0
      %1783 = vmatprep.mubr.f32.mxu0 0.0
      %1784 = vmatmul.mubr.f32.gmra.mrb[0].mxu0 %v1644
      %v1785 = vpop.f32.mrb[0].mxu0
      %v1786 = vadd.f32 0.0, %v1785
      %v1787 = vpop.f32.mrb[0].mxu0
      %1788 = vmatprep.mubr.f32.mxu0 0.0
      %1789 = vmatmul.mubr.f32.gmra.mrb[0].mxu0 %v1647
      %v1790 = vpop.f32.mrb[0].mxu0
      %v1791 = vadd.f32 0.0, %v1790
      %v1792 = vpop.f32.mrb[0].mxu0
      %1793 = vdwg.mxu0
      %v1794 = vadd.f32 %v1502, %v1716
      %v1795 = vadd.f32 %v1507, %v1721
      %v1796 = vadd.f32 %v1512, %v1726
      %v1797 = vadd.f32 %v1517, %v1731
      %v1798 = vadd.f32 %v1522, %v1736
      %v1799 = vadd.f32 %v1527, %v1741
      %v1800 = vadd.f32 %v1532, %v1746
      %v1801 = vadd.f32 %v1537, %v1751
      %v1802 = vadd.f32 %v1542, %v1756
      %v1803 = vadd.f32 %v1547, %v1761
      %v1804 = vadd.f32 %v1552, %v1766
      %v1805 = vadd.f32 %v1557, %v1771
      %v1806 = vadd.f32 %v1562, %v1776
      %v1807 = vadd.f32 %v1567, %v1781
      %v1808 = vadd.f32 %v1572, %v1786
      %v1809 = vadd.f32 %v1577, %v1791
      %v1810 = vld [vmem:[#allocation2 + $0x91] sm:$0xff]
      %v1811 = vld [vmem:[#allocation2 + $0x99] sm:$0xff]
      %v1812 = vld [vmem:[#allocation2 + $0xa1] sm:$0xff]
      %v1813 = vld [vmem:[#allocation2 + $0xa9] sm:$0xff]
      %v1814 = vld [vmem:[#allocation2 + $0xb1] sm:$0xff]
      %v1815 = vld [vmem:[#allocation2 + $0xb9] sm:$0xff]
      %v1816 = vld [vmem:[#allocation2 + $0xc1] sm:$0xff]
      %v1817 = vld [vmem:[#allocation2 + $0xc9] sm:$0xff]
      %v1818 = vld [vmem:[#allocation2 + $0xd1] sm:$0xff]
      %v1819 = vld [vmem:[#allocation2 + $0xd9] sm:$0xff]
      %v1820 = vld [vmem:[#allocation2 + $0xe1] sm:$0xff]
      %v1821 = vld [vmem:[#allocation2 + $0xe9] sm:$0xff]
      %v1822 = vld [vmem:[#allocation2 + $0xf1] sm:$0xff]
      %v1823 = vld [vmem:[#allocation2 + $0xf9] sm:$0xff]
      %v1824 = vld [vmem:[#allocation2 + $0x101] sm:$0xff]
      %v1825 = vld [vmem:[#allocation2 + $0x109] sm:$0xff]
      %s1826 = scalar_lea.vmem %s3, 96
      %v1827 = vld [vmem:[%s1826] sm:$0xff]
      %v1828 = vld [vmem:[%s1826 + $0x8] sm:$0xff]
      %v1829 = vld [vmem:[%s1826 + $0x10] sm:$0xff]
      %v1830 = vld [vmem:[%s1826 + $0x18] sm:$0xff]
      %v1832 = vsel %vm1080, %v1810, 0
      %v1835 = vsel %vm1080, %v1811, 0
      %v1838 = vsel %vm1080, %v1812, 0
      %v1841 = vsel %vm1080, %v1813, 0
      %v1844 = vsel %vm1080, %v1814, 0
      %v1847 = vsel %vm1080, %v1815, 0
      %v1850 = vsel %vm1080, %v1816, 0
      %v1853 = vsel %vm1080, %v1817, 0
      %v1856 = vsel %vm1080, %v1818, 0
      %v1859 = vsel %vm1080, %v1819, 0
      %v1862 = vsel %vm1080, %v1820, 0
      %v1865 = vsel %vm1080, %v1821, 0
      %v1868 = vsel %vm1080, %v1822, 0
      %v1871 = vsel %vm1080, %v1823, 0
      %v1874 = vsel %vm1080, %v1824, 0
      %v1877 = vsel %vm1080, %v1825, 0
      %1879 = vmatprep.subr.mxu0 0.0
      %1880 = vmatpush1.msra.mxu0 %v1827
      %1881 = vmatprep.subr.mxu0 0.0
      %1882 = vmatpush1.msra.mxu0 %v1828
      %1883 = vmatprep.subr.mxu0 0.0
      %1884 = vmatpush1.msra.mxu0 %v1829
      %1885 = vmatprep.subr.mxu0 0.0
      %1886 = vmatpush1.msra.mxu0 %v1830
      %1887 = vmatprep.subr.mxu0 0.0
      %1888 = vmatpush1.msra.mxu0 0.0
      %1889 = vmatprep.subr.mxu0 0.0
      %1890 = vmatpush1.msra.mxu0 0.0
      %1891 = vmatprep.subr.mxu0 0.0
      %1892 = vmatpush1.msra.mxu0 0.0
      %1893 = vmatprep.subr.mxu0 0.0
      %1894 = vmatpush1.msra.mxu0 0.0
      %1895 = vmatprep.subr.mxu0 0.0
      %1896 = vmatpush1.msra.mxu0 0.0
      %1897 = vmatprep.subr.mxu0 0.0
      %1898 = vmatpush1.msra.mxu0 0.0
      %1899 = vmatprep.subr.mxu0 0.0
      %1900 = vmatpush1.msra.mxu0 0.0
      %1901 = vmatprep.subr.mxu0 0.0
      %1902 = vmatpush1.msra.mxu0 0.0
      %1903 = vmatprep.subr.mxu0 0.0
      %1904 = vmatpush1.msra.mxu0 0.0
      %1905 = vmatprep.subr.mxu0 0.0
      %1906 = vmatpush1.msra.mxu0 0.0
      %1907 = vmatprep.subr.mxu0 0.0
      %1908 = vmatpush1.msra.mxu0 0.0
      %1909 = vmatprep.subr.mxu0 0.0
      %1910 = vmatpush1.msra.mxu0 0.0
      %1911 = vmatprep.subr.mxu0 0.0
      %1912 = vmatpush1.msra.mxu0 0.0
      %1913 = vmatprep.subr.mxu0 0.0
      %1914 = vmatpush1.msra.mxu0 0.0
      %1915 = vmatprep.subr.mxu0 0.0
      %1916 = vmatpush1.msra.mxu0 0.0
      %1917 = vmatprep.subr.mxu0 0.0
      %1918 = vmatpush1.msra.mxu0 0.0
      %1919 = vmatprep.subr.mxu0 0.0
      %1920 = vmatpush1.msra.mxu0 0.0
      %1921 = vmatprep.subr.mxu0 0.0
      %1922 = vmatpush1.msra.mxu0 0.0
      %1923 = vmatprep.subr.mxu0 0.0
      %1924 = vmatpush1.msra.mxu0 0.0
      %1925 = vmatprep.subr.mxu0 0.0
      %1926 = vmatpush1.msra.mxu0 0.0
      %1927 = vmatprep.subr.mxu0 0.0
      %1928 = vmatpush1.msra.mxu0 0.0
      %1929 = vmatprep.subr.mxu0 0.0
      %1930 = vmatpush1.msra.mxu0 0.0
      %1931 = vmatprep.subr.mxu0 0.0
      %1932 = vmatpush1.msra.mxu0 0.0
      %1933 = vmatprep.subr.mxu0 0.0
      %1934 = vmatpush1.msra.mxu0 0.0
      %1935 = vmatprep.subr.mxu0 0.0
      %1936 = vmatpush1.msra.mxu0 0.0
      %1937 = vmatprep.subr.mxu0 0.0
      %1938 = vmatpush1.msra.mxu0 0.0
      %1939 = vmatprep.subr.mxu0 0.0
      %1940 = vmatpush1.msra.mxu0 0.0
      %1941 = vmatprep.subr.mxu0 0.0
      %1942 = vmatpush1.msra.mxu0 0.0
      %1943 = vmatprep.mubr.f32.mxu0 0.0
      %1944 = vmatmul.mubr.f32.gmra.mrb[0].mxu0 %v1832
      %v1945 = vpop.f32.mrb[0].mxu0
      %v1946 = vadd.f32 0.0, %v1945
      %v1947 = vpop.f32.mrb[0].mxu0
      %1948 = vmatprep.mubr.f32.mxu0 0.0
      %1949 = vmatmul.mubr.f32.gmra.mrb[0].mxu0 %v1835
      %v1950 = vpop.f32.mrb[0].mxu0
      %v1951 = vadd.f32 0.0, %v1950
      %v1952 = vpop.f32.mrb[0].mxu0
      %1953 = vmatprep.mubr.f32.mxu0 0.0
      %1954 = vmatmul.mubr.f32.gmra.mrb[0].mxu0 %v1838
      %v1955 = vpop.f32.mrb[0].mxu0
      %v1956 = vadd.f32 0.0, %v1955
      %v1957 = vpop.f32.mrb[0].mxu0
      %1958 = vmatprep.mubr.f32.mxu0 0.0
      %1959 = vmatmul.mubr.f32.gmra.mrb[0].mxu0 %v1841
      %v1960 = vpop.f32.mrb[0].mxu0
      %v1961 = vadd.f32 0.0, %v1960
      %v1962 = vpop.f32.mrb[0].mxu0
      %1963 = vmatprep.mubr.f32.mxu0 0.0
      %1964 = vmatmul.mubr.f32.gmra.mrb[0].mxu0 %v1844
      %v1965 = vpop.f32.mrb[0].mxu0
      %v1966 = vadd.f32 0.0, %v1965
      %v1967 = vpop.f32.mrb[0].mxu0
      %1968 = vmatprep.mubr.f32.mxu0 0.0
      %1969 = vmatmul.mubr.f32.gmra.mrb[0].mxu0 %v1847
      %v1970 = vpop.f32.mrb[0].mxu0
      %v1971 = vadd.f32 0.0, %v1970
      %v1972 = vpop.f32.mrb[0].mxu0
      %1973 = vmatprep.mubr.f32.mxu0 0.0
      %1974 = vmatmul.mubr.f32.gmra.mrb[0].mxu0 %v1850
      %v1975 = vpop.f32.mrb[0].mxu0
      %v1976 = vadd.f32 0.0, %v1975
      %v1977 = vpop.f32.mrb[0].mxu0
      %1978 = vmatprep.mubr.f32.mxu0 0.0
      %1979 = vmatmul.mubr.f32.gmra.mrb[0].mxu0 %v1853
      %v1980 = vpop.f32.mrb[0].mxu0
      %v1981 = vadd.f32 0.0, %v1980
      %v1982 = vpop.f32.mrb[0].mxu0
      %1983 = vmatprep.mubr.f32.mxu0 0.0
      %1984 = vmatmul.mubr.f32.gmra.mrb[0].mxu0 %v1856
      %v1985 = vpop.f32.mrb[0].mxu0
      %v1986 = vadd.f32 0.0, %v1985
      %v1987 = vpop.f32.mrb[0].mxu0
      %1988 = vmatprep.mubr.f32.mxu0 0.0
      %1989 = vmatmul.mubr.f32.gmra.mrb[0].mxu0 %v1859
      %v1990 = vpop.f32.mrb[0].mxu0
      %v1991 = vadd.f32 0.0, %v1990
      %v1992 = vpop.f32.mrb[0].mxu0
      %1993 = vmatprep.mubr.f32.mxu0 0.0
      %1994 = vmatmul.mubr.f32.gmra.mrb[0].mxu0 %v1862
      %v1995 = vpop.f32.mrb[0].mxu0
      %v1996 = vadd.f32 0.0, %v1995
      %v1997 = vpop.f32.mrb[0].mxu0
      %1998 = vmatprep.mubr.f32.mxu0 0.0
      %1999 = vmatmul.mubr.f32.gmra.mrb[0].mxu0 %v1865
      %v2000 = vpop.f32.mrb[0].mxu0
      %v2001 = vadd.f32 0.0, %v2000
      %v2002 = vpop.f32.mrb[0].mxu0
      %2003 = vmatprep.mubr.f32.mxu0 0.0
      %2004 = vmatmul.mubr.f32.gmra.mrb[0].mxu0 %v1868
      %v2005 = vpop.f32.mrb[0].mxu0
      %v2006 = vadd.f32 0.0, %v2005
      %v2007 = vpop.f32.mrb[0].mxu0
      %2008 = vmatprep.mubr.f32.mxu0 0.0
      %2009 = vmatmul.mubr.f32.gmra.mrb[0].mxu0 %v1871
      %v2010 = vpop.f32.mrb[0].mxu0
      %v2011 = vadd.f32 0.0, %v2010
      %v2012 = vpop.f32.mrb[0].mxu0
      %2013 = vmatprep.mubr.f32.mxu0 0.0
      %2014 = vmatmul.mubr.f32.gmra.mrb[0].mxu0 %v1874
      %v2015 = vpop.f32.mrb[0].mxu0
      %v2016 = vadd.f32 0.0, %v2015
      %v2017 = vpop.f32.mrb[0].mxu0
      %2018 = vmatprep.mubr.f32.mxu0 0.0
      %2019 = vmatmul.mubr.f32.gmra.mrb[0].mxu0 %v1877
      %v2020 = vpop.f32.mrb[0].mxu0
      %v2021 = vadd.f32 0.0, %v2020
      %v2022 = vpop.f32.mrb[0].mxu0
      %2023 = vdwg.mxu0
      %v2024 = vadd.f32 %v1794, %v1946
      %v2025 = vadd.f32 %v1795, %v1951
      %v2026 = vadd.f32 %v1796, %v1956
      %v2027 = vadd.f32 %v1797, %v1961
      %v2028 = vadd.f32 %v1798, %v1966
      %v2029 = vadd.f32 %v1799, %v1971
      %v2030 = vadd.f32 %v1800, %v1976
      %v2031 = vadd.f32 %v1801, %v1981
      %v2032 = vadd.f32 %v1802, %v1986
      %v2033 = vadd.f32 %v1803, %v1991
      %v2034 = vadd.f32 %v1804, %v1996
      %v2035 = vadd.f32 %v1805, %v2001
      %v2036 = vadd.f32 %v1806, %v2006
      %v2037 = vadd.f32 %v1807, %v2011
      %v2038 = vadd.f32 %v1808, %v2016
      %v2039 = vadd.f32 %v1809, %v2021
      %v2040 = vld [vmem:[#allocation2 + $0x120] sm:$0xff]
      %v2041 = vld [vmem:[#allocation2 + $0x128] sm:$0xff]
      %v2042 = vld [vmem:[#allocation2 + $0x130] sm:$0xff]
      %v2043 = vld [vmem:[#allocation2 + $0x138] sm:$0xff]
      %v2044 = vld [vmem:[#allocation2 + $0x140] sm:$0xff]
      %v2045 = vld [vmem:[#allocation2 + $0x148] sm:$0xff]
      %v2046 = vld [vmem:[#allocation2 + $0x150] sm:$0xff]
      %v2047 = vld [vmem:[#allocation2 + $0x158] sm:$0xff]
      %v2048 = vld [vmem:[#allocation2 + $0x160] sm:$0xff]
      %v2049 = vld [vmem:[#allocation2 + $0x168] sm:$0xff]
      %v2050 = vld [vmem:[#allocation2 + $0x170] sm:$0xff]
      %v2051 = vld [vmem:[#allocation2 + $0x178] sm:$0xff]
      %v2052 = vld [vmem:[#allocation2 + $0x180] sm:$0xff]
      %v2053 = vld [vmem:[#allocation2 + $0x188] sm:$0xff]
      %v2054 = vld [vmem:[#allocation2 + $0x190] sm:$0xff]
      %v2055 = vld [vmem:[#allocation2 + $0x198] sm:$0xff]
      %s2056 = scalar_lea.vmem %s3, 128
      %v2057 = vld [vmem:[%s2056] sm:$0xff]
      %v2058 = vld [vmem:[%s2056 + $0x8] sm:$0xff]
      %v2059 = vld [vmem:[%s2056 + $0x10] sm:$0xff]
      %v2060 = vld [vmem:[%s2056 + $0x18] sm:$0xff]
      %v2062 = vsel %vm1080, %v2040, 0
      %v2065 = vsel %vm1080, %v2041, 0
      %v2068 = vsel %vm1080, %v2042, 0
      %v2071 = vsel %vm1080, %v2043, 0
      %v2074 = vsel %vm1080, %v2044, 0
      %v2077 = vsel %vm1080, %v2045, 0
      %v2080 = vsel %vm1080, %v2046, 0
      %v2083 = vsel %vm1080, %v2047, 0
      %v2086 = vsel %vm1080, %v2048, 0
      %v2089 = vsel %vm1080, %v2049, 0
      %v2092 = vsel %vm1080, %v2050, 0
      %v2095 = vsel %vm1080, %v2051, 0
      %v2098 = vsel %vm1080, %v2052, 0
      %v2101 = vsel %vm1080, %v2053, 0
      %v2104 = vsel %vm1080, %v2054, 0
      %v2107 = vsel %vm1080, %v2055, 0
      %2109 = vmatprep.subr.mxu0 0.0
      %2110 = vmatpush1.msra.mxu0 %v2057
      %2111 = vmatprep.subr.mxu0 0.0
      %2112 = vmatpush1.msra.mxu0 %v2058
      %2113 = vmatprep.subr.mxu0 0.0
      %2114 = vmatpush1.msra.mxu0 %v2059
      %2115 = vmatprep.subr.mxu0 0.0
      %2116 = vmatpush1.msra.mxu0 %v2060
      %2117 = vmatprep.subr.mxu0 0.0
      %2118 = vmatpush1.msra.mxu0 0.0
      %2119 = vmatprep.subr.mxu0 0.0
      %2120 = vmatpush1.msra.mxu0 0.0
      %2121 = vmatprep.subr.mxu0 0.0
      %2122 = vmatpush1.msra.mxu0 0.0
      %2123 = vmatprep.subr.mxu0 0.0
      %2124 = vmatpush1.msra.mxu0 0.0
      %2125 = vmatprep.subr.mxu0 0.0
      %2126 = vmatpush1.msra.mxu0 0.0
      %2127 = vmatprep.subr.mxu0 0.0
      %2128 = vmatpush1.msra.mxu0 0.0
      %2129 = vmatprep.subr.mxu0 0.0
      %2130 = vmatpush1.msra.mxu0 0.0
      %2131 = vmatprep.subr.mxu0 0.0
      %2132 = vmatpush1.msra.mxu0 0.0
      %2133 = vmatprep.subr.mxu0 0.0
      %2134 = vmatpush1.msra.mxu0 0.0
      %2135 = vmatprep.subr.mxu0 0.0
      %2136 = vmatpush1.msra.mxu0 0.0
      %2137 = vmatprep.subr.mxu0 0.0
      %2138 = vmatpush1.msra.mxu0 0.0
      %2139 = vmatprep.subr.mxu0 0.0
      %2140 = vmatpush1.msra.mxu0 0.0
      %2141 = vmatprep.subr.mxu0 0.0
      %2142 = vmatpush1.msra.mxu0 0.0
      %2143 = vmatprep.subr.mxu0 0.0
      %2144 = vmatpush1.msra.mxu0 0.0
      %2145 = vmatprep.subr.mxu0 0.0
      %2146 = vmatpush1.msra.mxu0 0.0
      %2147 = vmatprep.subr.mxu0 0.0
      %2148 = vmatpush1.msra.mxu0 0.0
      %2149 = vmatprep.subr.mxu0 0.0
      %2150 = vmatpush1.msra.mxu0 0.0
      %2151 = vmatprep.subr.mxu0 0.0
      %2152 = vmatpush1.msra.mxu0 0.0
      %2153 = vmatprep.subr.mxu0 0.0
      %2154 = vmatpush1.msra.mxu0 0.0
      %2155 = vmatprep.subr.mxu0 0.0
      %2156 = vmatpush1.msra.mxu0 0.0
      %2157 = vmatprep.subr.mxu0 0.0
      %2158 = vmatpush1.msra.mxu0 0.0
      %2159 = vmatprep.subr.mxu0 0.0
      %2160 = vmatpush1.msra.mxu0 0.0
      %2161 = vmatprep.subr.mxu0 0.0
      %2162 = vmatpush1.msra.mxu0 0.0
      %2163 = vmatprep.subr.mxu0 0.0
      %2164 = vmatpush1.msra.mxu0 0.0
      %2165 = vmatprep.subr.mxu0 0.0
      %2166 = vmatpush1.msra.mxu0 0.0
      %2167 = vmatprep.subr.mxu0 0.0
      %2168 = vmatpush1.msra.mxu0 0.0
      %2169 = vmatprep.subr.mxu0 0.0
      %2170 = vmatpush1.msra.mxu0 0.0
      %2171 = vmatprep.subr.mxu0 0.0
      %2172 = vmatpush1.msra.mxu0 0.0
      %2173 = vmatprep.mubr.f32.mxu0 0.0
      %2174 = vmatmul.mubr.f32.gmra.mrb[0].mxu0 %v2062
      %v2175 = vpop.f32.mrb[0].mxu0
      %v2176 = vadd.f32 0.0, %v2175
      %v2177 = vpop.f32.mrb[0].mxu0
      %2178 = vmatprep.mubr.f32.mxu0 0.0
      %2179 = vmatmul.mubr.f32.gmra.mrb[0].mxu0 %v2065
      %v2180 = vpop.f32.mrb[0].mxu0
      %v2181 = vadd.f32 0.0, %v2180
      %v2182 = vpop.f32.mrb[0].mxu0
      %2183 = vmatprep.mubr.f32.mxu0 0.0
      %2184 = vmatmul.mubr.f32.gmra.mrb[0].mxu0 %v2068
      %v2185 = vpop.f32.mrb[0].mxu0
      %v2186 = vadd.f32 0.0, %v2185
      %v2187 = vpop.f32.mrb[0].mxu0
      %2188 = vmatprep.mubr.f32.mxu0 0.0
      %2189 = vmatmul.mubr.f32.gmra.mrb[0].mxu0 %v2071
      %v2190 = vpop.f32.mrb[0].mxu0
      %v2191 = vadd.f32 0.0, %v2190
      %v2192 = vpop.f32.mrb[0].mxu0
      %2193 = vmatprep.mubr.f32.mxu0 0.0
      %2194 = vmatmul.mubr.f32.gmra.mrb[0].mxu0 %v2074
      %v2195 = vpop.f32.mrb[0].mxu0
      %v2196 = vadd.f32 0.0, %v2195
      %v2197 = vpop.f32.mrb[0].mxu0
      %2198 = vmatprep.mubr.f32.mxu0 0.0
      %2199 = vmatmul.mubr.f32.gmra.mrb[0].mxu0 %v2077
      %v2200 = vpop.f32.mrb[0].mxu0
      %v2201 = vadd.f32 0.0, %v2200
      %v2202 = vpop.f32.mrb[0].mxu0
      %2203 = vmatprep.mubr.f32.mxu0 0.0
      %2204 = vmatmul.mubr.f32.gmra.mrb[0].mxu0 %v2080
      %v2205 = vpop.f32.mrb[0].mxu0
      %v2206 = vadd.f32 0.0, %v2205
      %v2207 = vpop.f32.mrb[0].mxu0
      %2208 = vmatprep.mubr.f32.mxu0 0.0
      %2209 = vmatmul.mubr.f32.gmra.mrb[0].mxu0 %v2083
      %v2210 = vpop.f32.mrb[0].mxu0
      %v2211 = vadd.f32 0.0, %v2210
      %v2212 = vpop.f32.mrb[0].mxu0
      %2213 = vmatprep.mubr.f32.mxu0 0.0
      %2214 = vmatmul.mubr.f32.gmra.mrb[0].mxu0 %v2086
      %v2215 = vpop.f32.mrb[0].mxu0
      %v2216 = vadd.f32 0.0, %v2215
      %v2217 = vpop.f32.mrb[0].mxu0
      %2218 = vmatprep.mubr.f32.mxu0 0.0
      %2219 = vmatmul.mubr.f32.gmra.mrb[0].mxu0 %v2089
      %v2220 = vpop.f32.mrb[0].mxu0
      %v2221 = vadd.f32 0.0, %v2220
      %v2222 = vpop.f32.mrb[0].mxu0
      %2223 = vmatprep.mubr.f32.mxu0 0.0
      %2224 = vmatmul.mubr.f32.gmra.mrb[0].mxu0 %v2092
      %v2225 = vpop.f32.mrb[0].mxu0
      %v2226 = vadd.f32 0.0, %v2225
      %v2227 = vpop.f32.mrb[0].mxu0
      %2228 = vmatprep.mubr.f32.mxu0 0.0
      %2229 = vmatmul.mubr.f32.gmra.mrb[0].mxu0 %v2095
      %v2230 = vpop.f32.mrb[0].mxu0
      %v2231 = vadd.f32 0.0, %v2230
      %v2232 = vpop.f32.mrb[0].mxu0
      %2233 = vmatprep.mubr.f32.mxu0 0.0
      %2234 = vmatmul.mubr.f32.gmra.mrb[0].mxu0 %v2098
      %v2235 = vpop.f32.mrb[0].mxu0
      %v2236 = vadd.f32 0.0, %v2235
      %v2237 = vpop.f32.mrb[0].mxu0
      %2238 = vmatprep.mubr.f32.mxu0 0.0
      %2239 = vmatmul.mubr.f32.gmra.mrb[0].mxu0 %v2101
      %v2240 = vpop.f32.mrb[0].mxu0
      %v2241 = vadd.f32 0.0, %v2240
      %v2242 = vpop.f32.mrb[0].mxu0
      %2243 = vmatprep.mubr.f32.mxu0 0.0
      %2244 = vmatmul.mubr.f32.gmra.mrb[0].mxu0 %v2104
      %v2245 = vpop.f32.mrb[0].mxu0
      %v2246 = vadd.f32 0.0, %v2245
      %v2247 = vpop.f32.mrb[0].mxu0
      %2248 = vmatprep.mubr.f32.mxu0 0.0
      %2249 = vmatmul.mubr.f32.gmra.mrb[0].mxu0 %v2107
      %v2250 = vpop.f32.mrb[0].mxu0
      %v2251 = vadd.f32 0.0, %v2250
      %v2252 = vpop.f32.mrb[0].mxu0
      %2253 = vdwg.mxu0
      %v2254 = vadd.f32 %v2024, %v2176
      %v2255 = vadd.f32 %v2025, %v2181
      %v2256 = vadd.f32 %v2026, %v2186
      %v2257 = vadd.f32 %v2027, %v2191
      %v2258 = vadd.f32 %v2028, %v2196
      %v2259 = vadd.f32 %v2029, %v2201
      %v2260 = vadd.f32 %v2030, %v2206
      %v2261 = vadd.f32 %v2031, %v2211
      %v2262 = vadd.f32 %v2032, %v2216
      %v2263 = vadd.f32 %v2033, %v2221
      %v2264 = vadd.f32 %v2034, %v2226
      %v2265 = vadd.f32 %v2035, %v2231
      %v2266 = vadd.f32 %v2036, %v2236
      %v2267 = vadd.f32 %v2037, %v2241
      %v2268 = vadd.f32 %v2038, %v2246
      %v2269 = vadd.f32 %v2039, %v2251
      %v2270 = vld [vmem:[#allocation2 + $0x1b0] sm:$0xff]
      %v2271 = vld [vmem:[#allocation2 + $0x1b8] sm:$0xff]
      %v2272 = vld [vmem:[#allocation2 + $0x1c0] sm:$0xff]
      %v2273 = vld [vmem:[#allocation2 + $0x1c8] sm:$0xff]
      %v2274 = vld [vmem:[#allocation2 + $0x1d0] sm:$0xff]
      %v2275 = vld [vmem:[#allocation2 + $0x1d8] sm:$0xff]
      %v2276 = vld [vmem:[#allocation2 + $0x1e0] sm:$0xff]
      %v2277 = vld [vmem:[#allocation2 + $0x1e8] sm:$0xff]
      %v2278 = vld [vmem:[#allocation2 + $0x1f0] sm:$0xff]
      %v2279 = vld [vmem:[#allocation2 + $0x1f8] sm:$0xff]
      %v2280 = vld [vmem:[#allocation2 + $0x200] sm:$0xff]
      %v2281 = vld [vmem:[#allocation2 + $0x208] sm:$0xff]
      %v2282 = vld [vmem:[#allocation2 + $0x210] sm:$0xff]
      %v2283 = vld [vmem:[#allocation2 + $0x218] sm:$0xff]
      %v2284 = vld [vmem:[#allocation2 + $0x220] sm:$0xff]
      %v2285 = vld [vmem:[#allocation2 + $0x228] sm:$0xff]
      %s2286 = scalar_lea.vmem %s3, 160
      %v2287 = vld [vmem:[%s2286] sm:$0xff]
      %v2288 = vld [vmem:[%s2286 + $0x8] sm:$0xff]
      %v2289 = vld [vmem:[%s2286 + $0x10] sm:$0xff]
      %v2290 = vld [vmem:[%s2286 + $0x18] sm:$0xff]
      %v2292 = vsel %vm1080, %v2270, 0
      %v2295 = vsel %vm1080, %v2271, 0
      %v2298 = vsel %vm1080, %v2272, 0
      %v2301 = vsel %vm1080, %v2273, 0
      %v2304 = vsel %vm1080, %v2274, 0
      %v2307 = vsel %vm1080, %v2275, 0
      %v2310 = vsel %vm1080, %v2276, 0
      %v2313 = vsel %vm1080, %v2277, 0
      %v2316 = vsel %vm1080, %v2278, 0
      %v2319 = vsel %vm1080, %v2279, 0
      %v2322 = vsel %vm1080, %v2280, 0
      %v2325 = vsel %vm1080, %v2281, 0
      %v2328 = vsel %vm1080, %v2282, 0
      %v2331 = vsel %vm1080, %v2283, 0
      %v2334 = vsel %vm1080, %v2284, 0
      %v2337 = vsel %vm1080, %v2285, 0
      %2339 = vmatprep.subr.mxu0 0.0
      %2340 = vmatpush1.msra.mxu0 %v2287
      %2341 = vmatprep.subr.mxu0 0.0
      %2342 = vmatpush1.msra.mxu0 %v2288
      %2343 = vmatprep.subr.mxu0 0.0
      %2344 = vmatpush1.msra.mxu0 %v2289
      %2345 = vmatprep.subr.mxu0 0.0
      %2346 = vmatpush1.msra.mxu0 %v2290
      %2347 = vmatprep.subr.mxu0 0.0
      %2348 = vmatpush1.msra.mxu0 0.0
      %2349 = vmatprep.subr.mxu0 0.0
      %2350 = vmatpush1.msra.mxu0 0.0
      %2351 = vmatprep.subr.mxu0 0.0
      %2352 = vmatpush1.msra.mxu0 0.0
      %2353 = vmatprep.subr.mxu0 0.0
      %2354 = vmatpush1.msra.mxu0 0.0
      %2355 = vmatprep.subr.mxu0 0.0
      %2356 = vmatpush1.msra.mxu0 0.0
      %2357 = vmatprep.subr.mxu0 0.0
      %2358 = vmatpush1.msra.mxu0 0.0
      %2359 = vmatprep.subr.mxu0 0.0
      %2360 = vmatpush1.msra.mxu0 0.0
      %2361 = vmatprep.subr.mxu0 0.0
      %2362 = vmatpush1.msra.mxu0 0.0
      %2363 = vmatprep.subr.mxu0 0.0
      %2364 = vmatpush1.msra.mxu0 0.0
      %2365 = vmatprep.subr.mxu0 0.0
      %2366 = vmatpush1.msra.mxu0 0.0
      %2367 = vmatprep.subr.mxu0 0.0
      %2368 = vmatpush1.msra.mxu0 0.0
      %2369 = vmatprep.subr.mxu0 0.0
      %2370 = vmatpush1.msra.mxu0 0.0
      %2371 = vmatprep.subr.mxu0 0.0
      %2372 = vmatpush1.msra.mxu0 0.0
      %2373 = vmatprep.subr.mxu0 0.0
      %2374 = vmatpush1.msra.mxu0 0.0
      %2375 = vmatprep.subr.mxu0 0.0
      %2376 = vmatpush1.msra.mxu0 0.0
      %2377 = vmatprep.subr.mxu0 0.0
      %2378 = vmatpush1.msra.mxu0 0.0
      %2379 = vmatprep.subr.mxu0 0.0
      %2380 = vmatpush1.msra.mxu0 0.0
      %2381 = vmatprep.subr.mxu0 0.0
      %2382 = vmatpush1.msra.mxu0 0.0
      %2383 = vmatprep.subr.mxu0 0.0
      %2384 = vmatpush1.msra.mxu0 0.0
      %2385 = vmatprep.subr.mxu0 0.0
      %2386 = vmatpush1.msra.mxu0 0.0
      %2387 = vmatprep.subr.mxu0 0.0
      %2388 = vmatpush1.msra.mxu0 0.0
      %2389 = vmatprep.subr.mxu0 0.0
      %2390 = vmatpush1.msra.mxu0 0.0
      %2391 = vmatprep.subr.mxu0 0.0
      %2392 = vmatpush1.msra.mxu0 0.0
      %2393 = vmatprep.subr.mxu0 0.0
      %2394 = vmatpush1.msra.mxu0 0.0
      %2395 = vmatprep.subr.mxu0 0.0
      %2396 = vmatpush1.msra.mxu0 0.0
      %2397 = vmatprep.subr.mxu0 0.0
      %2398 = vmatpush1.msra.mxu0 0.0
      %2399 = vmatprep.subr.mxu0 0.0
      %2400 = vmatpush1.msra.mxu0 0.0
      %2401 = vmatprep.subr.mxu0 0.0
      %2402 = vmatpush1.msra.mxu0 0.0
      %2403 = vmatprep.mubr.f32.mxu0 0.0
      %2404 = vmatmul.mubr.f32.gmra.mrb[0].mxu0 %v2292
      %v2405 = vpop.f32.mrb[0].mxu0
      %v2406 = vadd.f32 0.0, %v2405
      %v2407 = vpop.f32.mrb[0].mxu0
      %2408 = vmatprep.mubr.f32.mxu0 0.0
      %2409 = vmatmul.mubr.f32.gmra.mrb[0].mxu0 %v2295
      %v2410 = vpop.f32.mrb[0].mxu0
      %v2411 = vadd.f32 0.0, %v2410
      %v2412 = vpop.f32.mrb[0].mxu0
      %2413 = vmatprep.mubr.f32.mxu0 0.0
      %2414 = vmatmul.mubr.f32.gmra.mrb[0].mxu0 %v2298
      %v2415 = vpop.f32.mrb[0].mxu0
      %v2416 = vadd.f32 0.0, %v2415
      %v2417 = vpop.f32.mrb[0].mxu0
      %2418 = vmatprep.mubr.f32.mxu0 0.0
      %2419 = vmatmul.mubr.f32.gmra.mrb[0].mxu0 %v2301
      %v2420 = vpop.f32.mrb[0].mxu0
      %v2421 = vadd.f32 0.0, %v2420
      %v2422 = vpop.f32.mrb[0].mxu0
      %2423 = vmatprep.mubr.f32.mxu0 0.0
      %2424 = vmatmul.mubr.f32.gmra.mrb[0].mxu0 %v2304
      %v2425 = vpop.f32.mrb[0].mxu0
      %v2426 = vadd.f32 0.0, %v2425
      %v2427 = vpop.f32.mrb[0].mxu0
      %2428 = vmatprep.mubr.f32.mxu0 0.0
      %2429 = vmatmul.mubr.f32.gmra.mrb[0].mxu0 %v2307
      %v2430 = vpop.f32.mrb[0].mxu0
      %v2431 = vadd.f32 0.0, %v2430
      %v2432 = vpop.f32.mrb[0].mxu0
      %2433 = vmatprep.mubr.f32.mxu0 0.0
      %2434 = vmatmul.mubr.f32.gmra.mrb[0].mxu0 %v2310
      %v2435 = vpop.f32.mrb[0].mxu0
      %v2436 = vadd.f32 0.0, %v2435
      %v2437 = vpop.f32.mrb[0].mxu0
      %2438 = vmatprep.mubr.f32.mxu0 0.0
      %2439 = vmatmul.mubr.f32.gmra.mrb[0].mxu0 %v2313
      %v2440 = vpop.f32.mrb[0].mxu0
      %v2441 = vadd.f32 0.0, %v2440
      %v2442 = vpop.f32.mrb[0].mxu0
      %2443 = vmatprep.mubr.f32.mxu0 0.0
      %2444 = vmatmul.mubr.f32.gmra.mrb[0].mxu0 %v2316
      %v2445 = vpop.f32.mrb[0].mxu0
      %v2446 = vadd.f32 0.0, %v2445
      %v2447 = vpop.f32.mrb[0].mxu0
      %2448 = vmatprep.mubr.f32.mxu0 0.0
      %2449 = vmatmul.mubr.f32.gmra.mrb[0].mxu0 %v2319
      %v2450 = vpop.f32.mrb[0].mxu0
      %v2451 = vadd.f32 0.0, %v2450
      %v2452 = vpop.f32.mrb[0].mxu0
      %2453 = vmatprep.mubr.f32.mxu0 0.0
      %2454 = vmatmul.mubr.f32.gmra.mrb[0].mxu0 %v2322
      %v2455 = vpop.f32.mrb[0].mxu0
      %v2456 = vadd.f32 0.0, %v2455
      %v2457 = vpop.f32.mrb[0].mxu0
      %2458 = vmatprep.mubr.f32.mxu0 0.0
      %2459 = vmatmul.mubr.f32.gmra.mrb[0].mxu0 %v2325
      %v2460 = vpop.f32.mrb[0].mxu0
      %v2461 = vadd.f32 0.0, %v2460
      %v2462 = vpop.f32.mrb[0].mxu0
      %2463 = vmatprep.mubr.f32.mxu0 0.0
      %2464 = vmatmul.mubr.f32.gmra.mrb[0].mxu0 %v2328
      %v2465 = vpop.f32.mrb[0].mxu0
      %v2466 = vadd.f32 0.0, %v2465
      %v2467 = vpop.f32.mrb[0].mxu0
      %2468 = vmatprep.mubr.f32.mxu0 0.0
      %2469 = vmatmul.mubr.f32.gmra.mrb[0].mxu0 %v2331
      %v2470 = vpop.f32.mrb[0].mxu0
      %v2471 = vadd.f32 0.0, %v2470
      %v2472 = vpop.f32.mrb[0].mxu0
      %2473 = vmatprep.mubr.f32.mxu0 0.0
      %2474 = vmatmul.mubr.f32.gmra.mrb[0].mxu0 %v2334
      %v2475 = vpop.f32.mrb[0].mxu0
      %v2476 = vadd.f32 0.0, %v2475
      %v2477 = vpop.f32.mrb[0].mxu0
      %2478 = vmatprep.mubr.f32.mxu0 0.0
      %2479 = vmatmul.mubr.f32.gmra.mrb[0].mxu0 %v2337
      %v2480 = vpop.f32.mrb[0].mxu0
      %v2481 = vadd.f32 0.0, %v2480
      %v2482 = vpop.f32.mrb[0].mxu0
      %2483 = vdwg.mxu0
      %v2484 = vadd.f32 %v2254, %v2406
      %v2485 = vadd.f32 %v2255, %v2411
      %v2486 = vadd.f32 %v2256, %v2416
      %v2487 = vadd.f32 %v2257, %v2421
      %v2488 = vadd.f32 %v2258, %v2426
      %v2489 = vadd.f32 %v2259, %v2431
      %v2490 = vadd.f32 %v2260, %v2436
      %v2491 = vadd.f32 %v2261, %v2441
      %v2492 = vadd.f32 %v2262, %v2446
      %v2493 = vadd.f32 %v2263, %v2451
      %v2494 = vadd.f32 %v2264, %v2456
      %v2495 = vadd.f32 %v2265, %v2461
      %v2496 = vadd.f32 %v2266, %v2466
      %v2497 = vadd.f32 %v2267, %v2471
      %v2498 = vadd.f32 %v2268, %v2476
      %v2499 = vadd.f32 %v2269, %v2481
      %v2500 = vld [vmem:[#allocation2 + $0x121] sm:$0xff]
      %v2501 = vld [vmem:[#allocation2 + $0x129] sm:$0xff]
      %v2502 = vld [vmem:[#allocation2 + $0x131] sm:$0xff]
      %v2503 = vld [vmem:[#allocation2 + $0x139] sm:$0xff]
      %v2504 = vld [vmem:[#allocation2 + $0x141] sm:$0xff]
      %v2505 = vld [vmem:[#allocation2 + $0x149] sm:$0xff]
      %v2506 = vld [vmem:[#allocation2 + $0x151] sm:$0xff]
      %v2507 = vld [vmem:[#allocation2 + $0x159] sm:$0xff]
      %v2508 = vld [vmem:[#allocation2 + $0x161] sm:$0xff]
      %v2509 = vld [vmem:[#allocation2 + $0x169] sm:$0xff]
      %v2510 = vld [vmem:[#allocation2 + $0x171] sm:$0xff]
      %v2511 = vld [vmem:[#allocation2 + $0x179] sm:$0xff]
      %v2512 = vld [vmem:[#allocation2 + $0x181] sm:$0xff]
      %v2513 = vld [vmem:[#allocation2 + $0x189] sm:$0xff]
      %v2514 = vld [vmem:[#allocation2 + $0x191] sm:$0xff]
      %v2515 = vld [vmem:[#allocation2 + $0x199] sm:$0xff]
      %s2516 = scalar_lea.vmem %s3, 192
      %v2517 = vld [vmem:[%s2516] sm:$0xff]
      %v2518 = vld [vmem:[%s2516 + $0x8] sm:$0xff]
      %v2519 = vld [vmem:[%s2516 + $0x10] sm:$0xff]
      %v2520 = vld [vmem:[%s2516 + $0x18] sm:$0xff]
      %v2522 = vsel %vm1080, %v2500, 0
      %v2525 = vsel %vm1080, %v2501, 0
      %v2528 = vsel %vm1080, %v2502, 0
      %v2531 = vsel %vm1080, %v2503, 0
      %v2534 = vsel %vm1080, %v2504, 0
      %v2537 = vsel %vm1080, %v2505, 0
      %v2540 = vsel %vm1080, %v2506, 0
      %v2543 = vsel %vm1080, %v2507, 0
      %v2546 = vsel %vm1080, %v2508, 0
      %v2549 = vsel %vm1080, %v2509, 0
      %v2552 = vsel %vm1080, %v2510, 0
      %v2555 = vsel %vm1080, %v2511, 0
      %v2558 = vsel %vm1080, %v2512, 0
      %v2561 = vsel %vm1080, %v2513, 0
      %v2564 = vsel %vm1080, %v2514, 0
      %v2567 = vsel %vm1080, %v2515, 0
      %2569 = vmatprep.subr.mxu0 0.0
      %2570 = vmatpush1.msra.mxu0 %v2517
      %2571 = vmatprep.subr.mxu0 0.0
      %2572 = vmatpush1.msra.mxu0 %v2518
      %2573 = vmatprep.subr.mxu0 0.0
      %2574 = vmatpush1.msra.mxu0 %v2519
      %2575 = vmatprep.subr.mxu0 0.0
      %2576 = vmatpush1.msra.mxu0 %v2520
      %2577 = vmatprep.subr.mxu0 0.0
      %2578 = vmatpush1.msra.mxu0 0.0
      %2579 = vmatprep.subr.mxu0 0.0
      %2580 = vmatpush1.msra.mxu0 0.0
      %2581 = vmatprep.subr.mxu0 0.0
      %2582 = vmatpush1.msra.mxu0 0.0
      %2583 = vmatprep.subr.mxu0 0.0
      %2584 = vmatpush1.msra.mxu0 0.0
      %2585 = vmatprep.subr.mxu0 0.0
      %2586 = vmatpush1.msra.mxu0 0.0
      %2587 = vmatprep.subr.mxu0 0.0
      %2588 = vmatpush1.msra.mxu0 0.0
      %2589 = vmatprep.subr.mxu0 0.0
      %2590 = vmatpush1.msra.mxu0 0.0
      %2591 = vmatprep.subr.mxu0 0.0
      %2592 = vmatpush1.msra.mxu0 0.0
      %2593 = vmatprep.subr.mxu0 0.0
      %2594 = vmatpush1.msra.mxu0 0.0
      %2595 = vmatprep.subr.mxu0 0.0
      %2596 = vmatpush1.msra.mxu0 0.0
      %2597 = vmatprep.subr.mxu0 0.0
      %2598 = vmatpush1.msra.mxu0 0.0
      %2599 = vmatprep.subr.mxu0 0.0
      %2600 = vmatpush1.msra.mxu0 0.0
      %2601 = vmatprep.subr.mxu0 0.0
      %2602 = vmatpush1.msra.mxu0 0.0
      %2603 = vmatprep.subr.mxu0 0.0
      %2604 = vmatpush1.msra.mxu0 0.0
      %2605 = vmatprep.subr.mxu0 0.0
      %2606 = vmatpush1.msra.mxu0 0.0
      %2607 = vmatprep.subr.mxu0 0.0
      %2608 = vmatpush1.msra.mxu0 0.0
      %2609 = vmatprep.subr.mxu0 0.0
      %2610 = vmatpush1.msra.mxu0 0.0
      %2611 = vmatprep.subr.mxu0 0.0
      %2612 = vmatpush1.msra.mxu0 0.0
      %2613 = vmatprep.subr.mxu0 0.0
      %2614 = vmatpush1.msra.mxu0 0.0
      %2615 = vmatprep.subr.mxu0 0.0
      %2616 = vmatpush1.msra.mxu0 0.0
      %2617 = vmatprep.subr.mxu0 0.0
      %2618 = vmatpush1.msra.mxu0 0.0
      %2619 = vmatprep.subr.mxu0 0.0
      %2620 = vmatpush1.msra.mxu0 0.0
      %2621 = vmatprep.subr.mxu0 0.0
      %2622 = vmatpush1.msra.mxu0 0.0
      %2623 = vmatprep.subr.mxu0 0.0
      %2624 = vmatpush1.msra.mxu0 0.0
      %2625 = vmatprep.subr.mxu0 0.0
      %2626 = vmatpush1.msra.mxu0 0.0
      %2627 = vmatprep.subr.mxu0 0.0
      %2628 = vmatpush1.msra.mxu0 0.0
      %2629 = vmatprep.subr.mxu0 0.0
      %2630 = vmatpush1.msra.mxu0 0.0
      %2631 = vmatprep.subr.mxu0 0.0
      %2632 = vmatpush1.msra.mxu0 0.0
      %2633 = vmatprep.mubr.f32.mxu0 0.0
      %2634 = vmatmul.mubr.f32.gmra.mrb[0].mxu0 %v2522
      %v2635 = vpop.f32.mrb[0].mxu0
      %v2636 = vadd.f32 0.0, %v2635
      %v2637 = vpop.f32.mrb[0].mxu0
      %2638 = vmatprep.mubr.f32.mxu0 0.0
      %2639 = vmatmul.mubr.f32.gmra.mrb[0].mxu0 %v2525
      %v2640 = vpop.f32.mrb[0].mxu0
      %v2641 = vadd.f32 0.0, %v2640
      %v2642 = vpop.f32.mrb[0].mxu0
      %2643 = vmatprep.mubr.f32.mxu0 0.0
      %2644 = vmatmul.mubr.f32.gmra.mrb[0].mxu0 %v2528
      %v2645 = vpop.f32.mrb[0].mxu0
      %v2646 = vadd.f32 0.0, %v2645
      %v2647 = vpop.f32.mrb[0].mxu0
      %2648 = vmatprep.mubr.f32.mxu0 0.0
      %2649 = vmatmul.mubr.f32.gmra.mrb[0].mxu0 %v2531
      %v2650 = vpop.f32.mrb[0].mxu0
      %v2651 = vadd.f32 0.0, %v2650
      %v2652 = vpop.f32.mrb[0].mxu0
      %2653 = vmatprep.mubr.f32.mxu0 0.0
      %2654 = vmatmul.mubr.f32.gmra.mrb[0].mxu0 %v2534
      %v2655 = vpop.f32.mrb[0].mxu0
      %v2656 = vadd.f32 0.0, %v2655
      %v2657 = vpop.f32.mrb[0].mxu0
      %2658 = vmatprep.mubr.f32.mxu0 0.0
      %2659 = vmatmul.mubr.f32.gmra.mrb[0].mxu0 %v2537
      %v2660 = vpop.f32.mrb[0].mxu0
      %v2661 = vadd.f32 0.0, %v2660
      %v2662 = vpop.f32.mrb[0].mxu0
      %2663 = vmatprep.mubr.f32.mxu0 0.0
      %2664 = vmatmul.mubr.f32.gmra.mrb[0].mxu0 %v2540
      %v2665 = vpop.f32.mrb[0].mxu0
      %v2666 = vadd.f32 0.0, %v2665
      %v2667 = vpop.f32.mrb[0].mxu0
      %2668 = vmatprep.mubr.f32.mxu0 0.0
      %2669 = vmatmul.mubr.f32.gmra.mrb[0].mxu0 %v2543
      %v2670 = vpop.f32.mrb[0].mxu0
      %v2671 = vadd.f32 0.0, %v2670
      %v2672 = vpop.f32.mrb[0].mxu0
      %2673 = vmatprep.mubr.f32.mxu0 0.0
      %2674 = vmatmul.mubr.f32.gmra.mrb[0].mxu0 %v2546
      %v2675 = vpop.f32.mrb[0].mxu0
      %v2676 = vadd.f32 0.0, %v2675
      %v2677 = vpop.f32.mrb[0].mxu0
      %2678 = vmatprep.mubr.f32.mxu0 0.0
      %2679 = vmatmul.mubr.f32.gmra.mrb[0].mxu0 %v2549
      %v2680 = vpop.f32.mrb[0].mxu0
      %v2681 = vadd.f32 0.0, %v2680
      %v2682 = vpop.f32.mrb[0].mxu0
      %2683 = vmatprep.mubr.f32.mxu0 0.0
      %2684 = vmatmul.mubr.f32.gmra.mrb[0].mxu0 %v2552
      %v2685 = vpop.f32.mrb[0].mxu0
      %v2686 = vadd.f32 0.0, %v2685
      %v2687 = vpop.f32.mrb[0].mxu0
      %2688 = vmatprep.mubr.f32.mxu0 0.0
      %2689 = vmatmul.mubr.f32.gmra.mrb[0].mxu0 %v2555
      %v2690 = vpop.f32.mrb[0].mxu0
      %v2691 = vadd.f32 0.0, %v2690
      %v2692 = vpop.f32.mrb[0].mxu0
      %2693 = vmatprep.mubr.f32.mxu0 0.0
      %2694 = vmatmul.mubr.f32.gmra.mrb[0].mxu0 %v2558
      %v2695 = vpop.f32.mrb[0].mxu0
      %v2696 = vadd.f32 0.0, %v2695
      %v2697 = vpop.f32.mrb[0].mxu0
      %2698 = vmatprep.mubr.f32.mxu0 0.0
      %2699 = vmatmul.mubr.f32.gmra.mrb[0].mxu0 %v2561
      %v2700 = vpop.f32.mrb[0].mxu0
      %v2701 = vadd.f32 0.0, %v2700
      %v2702 = vpop.f32.mrb[0].mxu0
      %2703 = vmatprep.mubr.f32.mxu0 0.0
      %2704 = vmatmul.mubr.f32.gmra.mrb[0].mxu0 %v2564
      %v2705 = vpop.f32.mrb[0].mxu0
      %v2706 = vadd.f32 0.0, %v2705
      %v2707 = vpop.f32.mrb[0].mxu0
      %2708 = vmatprep.mubr.f32.mxu0 0.0
      %2709 = vmatmul.mubr.f32.gmra.mrb[0].mxu0 %v2567
      %v2710 = vpop.f32.mrb[0].mxu0
      %v2711 = vadd.f32 0.0, %v2710
      %v2712 = vpop.f32.mrb[0].mxu0
      %2713 = vdwg.mxu0
      %v2714 = vadd.f32 %v2484, %v2636
      %v2715 = vadd.f32 %v2485, %v2641
      %v2716 = vadd.f32 %v2486, %v2646
      %v2717 = vadd.f32 %v2487, %v2651
      %v2718 = vadd.f32 %v2488, %v2656
      %v2719 = vadd.f32 %v2489, %v2661
      %v2720 = vadd.f32 %v2490, %v2666
      %v2721 = vadd.f32 %v2491, %v2671
      %v2722 = vadd.f32 %v2492, %v2676
      %v2723 = vadd.f32 %v2493, %v2681
      %v2724 = vadd.f32 %v2494, %v2686
      %v2725 = vadd.f32 %v2495, %v2691
      %v2726 = vadd.f32 %v2496, %v2696
      %v2727 = vadd.f32 %v2497, %v2701
      %v2728 = vadd.f32 %v2498, %v2706
      %v2729 = vadd.f32 %v2499, %v2711
      %v2730 = vld [vmem:[#allocation2 + $0x1b1] sm:$0xff]
      %v2731 = vld [vmem:[#allocation2 + $0x1b9] sm:$0xff]
      %v2732 = vld [vmem:[#allocation2 + $0x1c1] sm:$0xff]
      %v2733 = vld [vmem:[#allocation2 + $0x1c9] sm:$0xff]
      %v2734 = vld [vmem:[#allocation2 + $0x1d1] sm:$0xff]
      %v2735 = vld [vmem:[#allocation2 + $0x1d9] sm:$0xff]
      %v2736 = vld [vmem:[#allocation2 + $0x1e1] sm:$0xff]
      %v2737 = vld [vmem:[#allocation2 + $0x1e9] sm:$0xff]
      %v2738 = vld [vmem:[#allocation2 + $0x1f1] sm:$0xff]
      %v2739 = vld [vmem:[#allocation2 + $0x1f9] sm:$0xff]
      %v2740 = vld [vmem:[#allocation2 + $0x201] sm:$0xff]
      %v2741 = vld [vmem:[#allocation2 + $0x209] sm:$0xff]
      %v2742 = vld [vmem:[#allocation2 + $0x211] sm:$0xff]
      %v2743 = vld [vmem:[#allocation2 + $0x219] sm:$0xff]
      %v2744 = vld [vmem:[#allocation2 + $0x221] sm:$0xff]
      %v2745 = vld [vmem:[#allocation2 + $0x229] sm:$0xff]
      %s2746 = scalar_lea.vmem %s3, 224
      %v2747 = vld [vmem:[%s2746] sm:$0xff]
      %v2748 = vld [vmem:[%s2746 + $0x8] sm:$0xff]
      %v2749 = vld [vmem:[%s2746 + $0x10] sm:$0xff]
      %v2750 = vld [vmem:[%s2746 + $0x18] sm:$0xff]
      %v2752 = vsel %vm1080, %v2730, 0
      %v2755 = vsel %vm1080, %v2731, 0
      %v2758 = vsel %vm1080, %v2732, 0
      %v2761 = vsel %vm1080, %v2733, 0
      %v2764 = vsel %vm1080, %v2734, 0
      %v2767 = vsel %vm1080, %v2735, 0
      %v2770 = vsel %vm1080, %v2736, 0
      %v2773 = vsel %vm1080, %v2737, 0
      %v2776 = vsel %vm1080, %v2738, 0
      %v2779 = vsel %vm1080, %v2739, 0
      %v2782 = vsel %vm1080, %v2740, 0
      %v2785 = vsel %vm1080, %v2741, 0
      %v2788 = vsel %vm1080, %v2742, 0
      %v2791 = vsel %vm1080, %v2743, 0
      %v2794 = vsel %vm1080, %v2744, 0
      %v2797 = vsel %vm1080, %v2745, 0
      %2799 = vmatprep.subr.mxu0 0.0
      %2800 = vmatpush1.msra.mxu0 %v2747
      %2801 = vmatprep.subr.mxu0 0.0
      %2802 = vmatpush1.msra.mxu0 %v2748
      %2803 = vmatprep.subr.mxu0 0.0
      %2804 = vmatpush1.msra.mxu0 %v2749
      %2805 = vmatprep.subr.mxu0 0.0
      %2806 = vmatpush1.msra.mxu0 %v2750
      %2807 = vmatprep.subr.mxu0 0.0
      %2808 = vmatpush1.msra.mxu0 0.0
      %2809 = vmatprep.subr.mxu0 0.0
      %2810 = vmatpush1.msra.mxu0 0.0
      %2811 = vmatprep.subr.mxu0 0.0
      %2812 = vmatpush1.msra.mxu0 0.0
      %2813 = vmatprep.subr.mxu0 0.0
      %2814 = vmatpush1.msra.mxu0 0.0
      %2815 = vmatprep.subr.mxu0 0.0
      %2816 = vmatpush1.msra.mxu0 0.0
      %2817 = vmatprep.subr.mxu0 0.0
      %2818 = vmatpush1.msra.mxu0 0.0
      %2819 = vmatprep.subr.mxu0 0.0
      %2820 = vmatpush1.msra.mxu0 0.0
      %2821 = vmatprep.subr.mxu0 0.0
      %2822 = vmatpush1.msra.mxu0 0.0
      %2823 = vmatprep.subr.mxu0 0.0
      %2824 = vmatpush1.msra.mxu0 0.0
      %2825 = vmatprep.subr.mxu0 0.0
      %2826 = vmatpush1.msra.mxu0 0.0
      %2827 = vmatprep.subr.mxu0 0.0
      %2828 = vmatpush1.msra.mxu0 0.0
      %2829 = vmatprep.subr.mxu0 0.0
      %2830 = vmatpush1.msra.mxu0 0.0
      %2831 = vmatprep.subr.mxu0 0.0
      %2832 = vmatpush1.msra.mxu0 0.0
      %2833 = vmatprep.subr.mxu0 0.0
      %2834 = vmatpush1.msra.mxu0 0.0
      %2835 = vmatprep.subr.mxu0 0.0
      %2836 = vmatpush1.msra.mxu0 0.0
      %2837 = vmatprep.subr.mxu0 0.0
      %2838 = vmatpush1.msra.mxu0 0.0
      %2839 = vmatprep.subr.mxu0 0.0
      %2840 = vmatpush1.msra.mxu0 0.0
      %2841 = vmatprep.subr.mxu0 0.0
      %2842 = vmatpush1.msra.mxu0 0.0
      %2843 = vmatprep.subr.mxu0 0.0
      %2844 = vmatpush1.msra.mxu0 0.0
      %2845 = vmatprep.subr.mxu0 0.0
      %2846 = vmatpush1.msra.mxu0 0.0
      %2847 = vmatprep.subr.mxu0 0.0
      %2848 = vmatpush1.msra.mxu0 0.0
      %2849 = vmatprep.subr.mxu0 0.0
      %2850 = vmatpush1.msra.mxu0 0.0
      %2851 = vmatprep.subr.mxu0 0.0
      %2852 = vmatpush1.msra.mxu0 0.0
      %2853 = vmatprep.subr.mxu0 0.0
      %2854 = vmatpush1.msra.mxu0 0.0
      %2855 = vmatprep.subr.mxu0 0.0
      %2856 = vmatpush1.msra.mxu0 0.0
      %2857 = vmatprep.subr.mxu0 0.0
      %2858 = vmatpush1.msra.mxu0 0.0
      %2859 = vmatprep.subr.mxu0 0.0
      %2860 = vmatpush1.msra.mxu0 0.0
      %2861 = vmatprep.subr.mxu0 0.0
      %2862 = vmatpush1.msra.mxu0 0.0
      %2863 = vmatprep.mubr.f32.mxu0 0.0
      %2864 = vmatmul.mubr.f32.gmra.mrb[0].mxu0 %v2752
      %v2865 = vpop.f32.mrb[0].mxu0
      %v2866 = vadd.f32 0.0, %v2865
      %v2867 = vpop.f32.mrb[0].mxu0
      %2868 = vmatprep.mubr.f32.mxu0 0.0
      %2869 = vmatmul.mubr.f32.gmra.mrb[0].mxu0 %v2755
      %v2870 = vpop.f32.mrb[0].mxu0
      %v2871 = vadd.f32 0.0, %v2870
      %v2872 = vpop.f32.mrb[0].mxu0
      %2873 = vmatprep.mubr.f32.mxu0 0.0
      %2874 = vmatmul.mubr.f32.gmra.mrb[0].mxu0 %v2758
      %v2875 = vpop.f32.mrb[0].mxu0
      %v2876 = vadd.f32 0.0, %v2875
      %v2877 = vpop.f32.mrb[0].mxu0
      %2878 = vmatprep.mubr.f32.mxu0 0.0
      %2879 = vmatmul.mubr.f32.gmra.mrb[0].mxu0 %v2761
      %v2880 = vpop.f32.mrb[0].mxu0
      %v2881 = vadd.f32 0.0, %v2880
      %v2882 = vpop.f32.mrb[0].mxu0
      %2883 = vmatprep.mubr.f32.mxu0 0.0
      %2884 = vmatmul.mubr.f32.gmra.mrb[0].mxu0 %v2764
      %v2885 = vpop.f32.mrb[0].mxu0
      %v2886 = vadd.f32 0.0, %v2885
      %v2887 = vpop.f32.mrb[0].mxu0
      %2888 = vmatprep.mubr.f32.mxu0 0.0
      %2889 = vmatmul.mubr.f32.gmra.mrb[0].mxu0 %v2767
      %v2890 = vpop.f32.mrb[0].mxu0
      %v2891 = vadd.f32 0.0, %v2890
      %v2892 = vpop.f32.mrb[0].mxu0
      %2893 = vmatprep.mubr.f32.mxu0 0.0
      %2894 = vmatmul.mubr.f32.gmra.mrb[0].mxu0 %v2770
      %v2895 = vpop.f32.mrb[0].mxu0
      %v2896 = vadd.f32 0.0, %v2895
      %v2897 = vpop.f32.mrb[0].mxu0
      %2898 = vmatprep.mubr.f32.mxu0 0.0
      %2899 = vmatmul.mubr.f32.gmra.mrb[0].mxu0 %v2773
      %v2900 = vpop.f32.mrb[0].mxu0
      %v2901 = vadd.f32 0.0, %v2900
      %v2902 = vpop.f32.mrb[0].mxu0
      %2903 = vmatprep.mubr.f32.mxu0 0.0
      %2904 = vmatmul.mubr.f32.gmra.mrb[0].mxu0 %v2776
      %v2905 = vpop.f32.mrb[0].mxu0
      %v2906 = vadd.f32 0.0, %v2905
      %v2907 = vpop.f32.mrb[0].mxu0
      %2908 = vmatprep.mubr.f32.mxu0 0.0
      %2909 = vmatmul.mubr.f32.gmra.mrb[0].mxu0 %v2779
      %v2910 = vpop.f32.mrb[0].mxu0
      %v2911 = vadd.f32 0.0, %v2910
      %v2912 = vpop.f32.mrb[0].mxu0
      %2913 = vmatprep.mubr.f32.mxu0 0.0
      %2914 = vmatmul.mubr.f32.gmra.mrb[0].mxu0 %v2782
      %v2915 = vpop.f32.mrb[0].mxu0
      %v2916 = vadd.f32 0.0, %v2915
      %v2917 = vpop.f32.mrb[0].mxu0
      %2918 = vmatprep.mubr.f32.mxu0 0.0
      %2919 = vmatmul.mubr.f32.gmra.mrb[0].mxu0 %v2785
      %v2920 = vpop.f32.mrb[0].mxu0
      %v2921 = vadd.f32 0.0, %v2920
      %v2922 = vpop.f32.mrb[0].mxu0
      %2923 = vmatprep.mubr.f32.mxu0 0.0
      %2924 = vmatmul.mubr.f32.gmra.mrb[0].mxu0 %v2788
      %v2925 = vpop.f32.mrb[0].mxu0
      %v2926 = vadd.f32 0.0, %v2925
      %v2927 = vpop.f32.mrb[0].mxu0
      %2928 = vmatprep.mubr.f32.mxu0 0.0
      %2929 = vmatmul.mubr.f32.gmra.mrb[0].mxu0 %v2791
      %v2930 = vpop.f32.mrb[0].mxu0
      %v2931 = vadd.f32 0.0, %v2930
      %v2932 = vpop.f32.mrb[0].mxu0
      %2933 = vmatprep.mubr.f32.mxu0 0.0
      %2934 = vmatmul.mubr.f32.gmra.mrb[0].mxu0 %v2794
      %v2935 = vpop.f32.mrb[0].mxu0
      %v2936 = vadd.f32 0.0, %v2935
      %v2937 = vpop.f32.mrb[0].mxu0
      %2938 = vmatprep.mubr.f32.mxu0 0.0
      %2939 = vmatmul.mubr.f32.gmra.mrb[0].mxu0 %v2797
      %v2940 = vpop.f32.mrb[0].mxu0
      %v2941 = vadd.f32 0.0, %v2940
      %v2942 = vpop.f32.mrb[0].mxu0
      %2943 = vdwg.mxu0
      %v2944 = vadd.f32 %v2714, %v2866
      %v2945 = vadd.f32 %v2715, %v2871
      %v2946 = vadd.f32 %v2716, %v2876
      %v2947 = vadd.f32 %v2717, %v2881
      %v2948 = vadd.f32 %v2718, %v2886
      %v2949 = vadd.f32 %v2719, %v2891
      %v2950 = vadd.f32 %v2720, %v2896
      %v2951 = vadd.f32 %v2721, %v2901
      %v2952 = vadd.f32 %v2722, %v2906
      %v2953 = vadd.f32 %v2723, %v2911
      %v2954 = vadd.f32 %v2724, %v2916
      %v2955 = vadd.f32 %v2725, %v2921
      %v2956 = vadd.f32 %v2726, %v2926
      %v2957 = vadd.f32 %v2727, %v2931
      %v2958 = vadd.f32 %v2728, %v2936
      %v2959 = vadd.f32 %v2729, %v2941
      %v2960 = vld [vmem:[#allocation2 + $0xc] sm:$0xff]
      %v2961 = vld [vmem:[#allocation2 + $0x14] sm:$0xff]
      %v2962 = vld [vmem:[#allocation2 + $0x1c] sm:$0xff]
      %v2963 = vld [vmem:[#allocation2 + $0x24] sm:$0xff]
      %v2964 = vld [vmem:[#allocation2 + $0x2c] sm:$0xff]
      %v2965 = vld [vmem:[#allocation2 + $0x34] sm:$0xff]
      %v2966 = vld [vmem:[#allocation2 + $0x3c] sm:$0xff]
      %v2967 = vld [vmem:[#allocation2 + $0x44] sm:$0xff]
      %v2968 = vld [vmem:[#allocation2 + $0x4c] sm:$0xff]
      %v2969 = vld [vmem:[#allocation2 + $0x54] sm:$0xff]
      %v2970 = vld [vmem:[#allocation2 + $0x5c] sm:$0xff]
      %v2971 = vld [vmem:[#allocation2 + $0x64] sm:$0xff]
      %v2972 = vld [vmem:[#allocation2 + $0x6c] sm:$0xff]
      %v2973 = vld [vmem:[#allocation2 + $0x74] sm:$0xff]
      %v2974 = vld [vmem:[#allocation2 + $0x7c] sm:$0xff]
      %v2975 = vld [vmem:[#allocation2 + $0x84] sm:$0xff]
      %s2976 = scalar_lea.vmem %s3, 256
      %v2977 = vld [vmem:[%s2976] sm:$0xff]
      %v2978 = vld [vmem:[%s2976 + $0x8] sm:$0xff]
      %v2979 = vld [vmem:[%s2976 + $0x10] sm:$0xff]
      %v2980 = vld [vmem:[%s2976 + $0x18] sm:$0xff]
      %v2982 = vsel %vm1080, %v2960, 0
      %v2985 = vsel %vm1080, %v2961, 0
      %v2988 = vsel %vm1080, %v2962, 0
      %v2991 = vsel %vm1080, %v2963, 0
      %v2994 = vsel %vm1080, %v2964, 0
      %v2997 = vsel %vm1080, %v2965, 0
      %v3000 = vsel %vm1080, %v2966, 0
      %v3003 = vsel %vm1080, %v2967, 0
      %v3006 = vsel %vm1080, %v2968, 0
      %v3009 = vsel %vm1080, %v2969, 0
      %v3012 = vsel %vm1080, %v2970, 0
      %v3015 = vsel %vm1080, %v2971, 0
      %v3018 = vsel %vm1080, %v2972, 0
      %v3021 = vsel %vm1080, %v2973, 0
      %v3024 = vsel %vm1080, %v2974, 0
      %v3027 = vsel %vm1080, %v2975, 0
      %3029 = vmatprep.subr.mxu0 0.0
      %3030 = vmatpush1.msra.mxu0 %v2977
      %3031 = vmatprep.subr.mxu0 0.0
      %3032 = vmatpush1.msra.mxu0 %v2978
      %3033 = vmatprep.subr.mxu0 0.0
      %3034 = vmatpush1.msra.mxu0 %v2979
      %3035 = vmatprep.subr.mxu0 0.0
      %3036 = vmatpush1.msra.mxu0 %v2980
      %3037 = vmatprep.subr.mxu0 0.0
      %3038 = vmatpush1.msra.mxu0 0.0
      %3039 = vmatprep.subr.mxu0 0.0
      %3040 = vmatpush1.msra.mxu0 0.0
      %3041 = vmatprep.subr.mxu0 0.0
      %3042 = vmatpush1.msra.mxu0 0.0
      %3043 = vmatprep.subr.mxu0 0.0
      %3044 = vmatpush1.msra.mxu0 0.0
      %3045 = vmatprep.subr.mxu0 0.0
      %3046 = vmatpush1.msra.mxu0 0.0
      %3047 = vmatprep.subr.mxu0 0.0
      %3048 = vmatpush1.msra.mxu0 0.0
      %3049 = vmatprep.subr.mxu0 0.0
      %3050 = vmatpush1.msra.mxu0 0.0
      %3051 = vmatprep.subr.mxu0 0.0
      %3052 = vmatpush1.msra.mxu0 0.0
      %3053 = vmatprep.subr.mxu0 0.0
      %3054 = vmatpush1.msra.mxu0 0.0
      %3055 = vmatprep.subr.mxu0 0.0
      %3056 = vmatpush1.msra.mxu0 0.0
      %3057 = vmatprep.subr.mxu0 0.0
      %3058 = vmatpush1.msra.mxu0 0.0
      %3059 = vmatprep.subr.mxu0 0.0
      %3060 = vmatpush1.msra.mxu0 0.0
      %3061 = vmatprep.subr.mxu0 0.0
      %3062 = vmatpush1.msra.mxu0 0.0
      %3063 = vmatprep.subr.mxu0 0.0
      %3064 = vmatpush1.msra.mxu0 0.0
      %3065 = vmatprep.subr.mxu0 0.0
      %3066 = vmatpush1.msra.mxu0 0.0
      %3067 = vmatprep.subr.mxu0 0.0
      %3068 = vmatpush1.msra.mxu0 0.0
      %3069 = vmatprep.subr.mxu0 0.0
      %3070 = vmatpush1.msra.mxu0 0.0
      %3071 = vmatprep.subr.mxu0 0.0
      %3072 = vmatpush1.msra.mxu0 0.0
      %3073 = vmatprep.subr.mxu0 0.0
      %3074 = vmatpush1.msra.mxu0 0.0
      %3075 = vmatprep.subr.mxu0 0.0
      %3076 = vmatpush1.msra.mxu0 0.0
      %3077 = vmatprep.subr.mxu0 0.0
      %3078 = vmatpush1.msra.mxu0 0.0
      %3079 = vmatprep.subr.mxu0 0.0
      %3080 = vmatpush1.msra.mxu0 0.0
      %3081 = vmatprep.subr.mxu0 0.0
      %3082 = vmatpush1.msra.mxu0 0.0
      %3083 = vmatprep.subr.mxu0 0.0
      %3084 = vmatpush1.msra.mxu0 0.0
      %3085 = vmatprep.subr.mxu0 0.0
      %3086 = vmatpush1.msra.mxu0 0.0
      %3087 = vmatprep.subr.mxu0 0.0
      %3088 = vmatpush1.msra.mxu0 0.0
      %3089 = vmatprep.subr.mxu0 0.0
      %3090 = vmatpush1.msra.mxu0 0.0
      %3091 = vmatprep.subr.mxu0 0.0
      %3092 = vmatpush1.msra.mxu0 0.0
      %3093 = vmatprep.mubr.f32.mxu0 0.0
      %3094 = vmatmul.mubr.f32.gmra.mrb[0].mxu0 %v2982
      %v3095 = vpop.f32.mrb[0].mxu0
      %v3096 = vadd.f32 0.0, %v3095
      %v3097 = vpop.f32.mrb[0].mxu0
      %3098 = vmatprep.mubr.f32.mxu0 0.0
      %3099 = vmatmul.mubr.f32.gmra.mrb[0].mxu0 %v2985
      %v3100 = vpop.f32.mrb[0].mxu0
      %v3101 = vadd.f32 0.0, %v3100
      %v3102 = vpop.f32.mrb[0].mxu0
      %3103 = vmatprep.mubr.f32.mxu0 0.0
      %3104 = vmatmul.mubr.f32.gmra.mrb[0].mxu0 %v2988
      %v3105 = vpop.f32.mrb[0].mxu0
      %v3106 = vadd.f32 0.0, %v3105
      %v3107 = vpop.f32.mrb[0].mxu0
      %3108 = vmatprep.mubr.f32.mxu0 0.0
      %3109 = vmatmul.mubr.f32.gmra.mrb[0].mxu0 %v2991
      %v3110 = vpop.f32.mrb[0].mxu0
      %v3111 = vadd.f32 0.0, %v3110
      %v3112 = vpop.f32.mrb[0].mxu0
      %3113 = vmatprep.mubr.f32.mxu0 0.0
      %3114 = vmatmul.mubr.f32.gmra.mrb[0].mxu0 %v2994
      %v3115 = vpop.f32.mrb[0].mxu0
      %v3116 = vadd.f32 0.0, %v3115
      %v3117 = vpop.f32.mrb[0].mxu0
      %3118 = vmatprep.mubr.f32.mxu0 0.0
      %3119 = vmatmul.mubr.f32.gmra.mrb[0].mxu0 %v2997
      %v3120 = vpop.f32.mrb[0].mxu0
      %v3121 = vadd.f32 0.0, %v3120
      %v3122 = vpop.f32.mrb[0].mxu0
      %3123 = vmatprep.mubr.f32.mxu0 0.0
      %3124 = vmatmul.mubr.f32.gmra.mrb[0].mxu0 %v3000
      %v3125 = vpop.f32.mrb[0].mxu0
      %v3126 = vadd.f32 0.0, %v3125
      %v3127 = vpop.f32.mrb[0].mxu0
      %3128 = vmatprep.mubr.f32.mxu0 0.0
      %3129 = vmatmul.mubr.f32.gmra.mrb[0].mxu0 %v3003
      %v3130 = vpop.f32.mrb[0].mxu0
      %v3131 = vadd.f32 0.0, %v3130
      %v3132 = vpop.f32.mrb[0].mxu0
      %3133 = vmatprep.mubr.f32.mxu0 0.0
      %3134 = vmatmul.mubr.f32.gmra.mrb[0].mxu0 %v3006
      %v3135 = vpop.f32.mrb[0].mxu0
      %v3136 = vadd.f32 0.0, %v3135
      %v3137 = vpop.f32.mrb[0].mxu0
      %3138 = vmatprep.mubr.f32.mxu0 0.0
      %3139 = vmatmul.mubr.f32.gmra.mrb[0].mxu0 %v3009
      %v3140 = vpop.f32.mrb[0].mxu0
      %v3141 = vadd.f32 0.0, %v3140
      %v3142 = vpop.f32.mrb[0].mxu0
      %3143 = vmatprep.mubr.f32.mxu0 0.0
      %3144 = vmatmul.mubr.f32.gmra.mrb[0].mxu0 %v3012
      %v3145 = vpop.f32.mrb[0].mxu0
      %v3146 = vadd.f32 0.0, %v3145
      %v3147 = vpop.f32.mrb[0].mxu0
      %3148 = vmatprep.mubr.f32.mxu0 0.0
      %3149 = vmatmul.mubr.f32.gmra.mrb[0].mxu0 %v3015
      %v3150 = vpop.f32.mrb[0].mxu0
      %v3151 = vadd.f32 0.0, %v3150
      %v3152 = vpop.f32.mrb[0].mxu0
      %3153 = vmatprep.mubr.f32.mxu0 0.0
      %3154 = vmatmul.mubr.f32.gmra.mrb[0].mxu0 %v3018
      %v3155 = vpop.f32.mrb[0].mxu0
      %v3156 = vadd.f32 0.0, %v3155
      %v3157 = vpop.f32.mrb[0].mxu0
      %3158 = vmatprep.mubr.f32.mxu0 0.0
      %3159 = vmatmul.mubr.f32.gmra.mrb[0].mxu0 %v3021
      %v3160 = vpop.f32.mrb[0].mxu0
      %v3161 = vadd.f32 0.0, %v3160
      %v3162 = vpop.f32.mrb[0].mxu0
      %3163 = vmatprep.mubr.f32.mxu0 0.0
      %3164 = vmatmul.mubr.f32.gmra.mrb[0].mxu0 %v3024
      %v3165 = vpop.f32.mrb[0].mxu0
      %v3166 = vadd.f32 0.0, %v3165
      %v3167 = vpop.f32.mrb[0].mxu0
      %3168 = vmatprep.mubr.f32.mxu0 0.0
      %3169 = vmatmul.mubr.f32.gmra.mrb[0].mxu0 %v3027
      %v3170 = vpop.f32.mrb[0].mxu0
      %v3171 = vadd.f32 0.0, %v3170
      %v3172 = vpop.f32.mrb[0].mxu0
      %3173 = vdwg.mxu0
      %v3174 = vadd.f32 %v2944, %v3096
      %v3175 = vadd.f32 %v2945, %v3101
      %v3176 = vadd.f32 %v2946, %v3106
      %v3177 = vadd.f32 %v2947, %v3111
      %v3178 = vadd.f32 %v2948, %v3116
      %v3179 = vadd.f32 %v2949, %v3121
      %v3180 = vadd.f32 %v2950, %v3126
      %v3181 = vadd.f32 %v2951, %v3131
      %v3182 = vadd.f32 %v2952, %v3136
      %v3183 = vadd.f32 %v2953, %v3141
      %v3184 = vadd.f32 %v2954, %v3146
      %v3185 = vadd.f32 %v2955, %v3151
      %v3186 = vadd.f32 %v2956, %v3156
      %v3187 = vadd.f32 %v2957, %v3161
      %v3188 = vadd.f32 %v2958, %v3166
      %v3189 = vadd.f32 %v2959, %v3171
      %v3190 = vld [vmem:[#allocation2 + $0x9c] sm:$0xff]
      %v3191 = vld [vmem:[#allocation2 + $0xa4] sm:$0xff]
      %v3192 = vld [vmem:[#allocation2 + $0xac] sm:$0xff]
      %v3193 = vld [vmem:[#allocation2 + $0xb4] sm:$0xff]
      %v3194 = vld [vmem:[#allocation2 + $0xbc] sm:$0xff]
      %v3195 = vld [vmem:[#allocation2 + $0xc4] sm:$0xff]
      %v3196 = vld [vmem:[#allocation2 + $0xcc] sm:$0xff]
      %v3197 = vld [vmem:[#allocation2 + $0xd4] sm:$0xff]
      %v3198 = vld [vmem:[#allocation2 + $0xdc] sm:$0xff]
      %v3199 = vld [vmem:[#allocation2 + $0xe4] sm:$0xff]
      %v3200 = vld [vmem:[#allocation2 + $0xec] sm:$0xff]
      %v3201 = vld [vmem:[#allocation2 + $0xf4] sm:$0xff]
      %v3202 = vld [vmem:[#allocation2 + $0xfc] sm:$0xff]
      %v3203 = vld [vmem:[#allocation2 + $0x104] sm:$0xff]
      %v3204 = vld [vmem:[#allocation2 + $0x10c] sm:$0xff]
      %v3205 = vld [vmem:[#allocation2 + $0x114] sm:$0xff]
      %s3206 = scalar_lea.vmem %s3, 288
      %v3207 = vld [vmem:[%s3206] sm:$0xff]
      %v3208 = vld [vmem:[%s3206 + $0x8] sm:$0xff]
      %v3209 = vld [vmem:[%s3206 + $0x10] sm:$0xff]
      %v3210 = vld [vmem:[%s3206 + $0x18] sm:$0xff]
      %v3212 = vsel %vm1080, %v3190, 0
      %v3215 = vsel %vm1080, %v3191, 0
      %v3218 = vsel %vm1080, %v3192, 0
      %v3221 = vsel %vm1080, %v3193, 0
      %v3224 = vsel %vm1080, %v3194, 0
      %v3227 = vsel %vm1080, %v3195, 0
      %v3230 = vsel %vm1080, %v3196, 0
      %v3233 = vsel %vm1080, %v3197, 0
      %v3236 = vsel %vm1080, %v3198, 0
      %v3239 = vsel %vm1080, %v3199, 0
      %v3242 = vsel %vm1080, %v3200, 0
      %v3245 = vsel %vm1080, %v3201, 0
      %v3248 = vsel %vm1080, %v3202, 0
      %v3251 = vsel %vm1080, %v3203, 0
      %v3254 = vsel %vm1080, %v3204, 0
      %v3257 = vsel %vm1080, %v3205, 0
      %3259 = vmatprep.subr.mxu0 0.0
      %3260 = vmatpush1.msra.mxu0 %v3207
      %3261 = vmatprep.subr.mxu0 0.0
      %3262 = vmatpush1.msra.mxu0 %v3208
      %3263 = vmatprep.subr.mxu0 0.0
      %3264 = vmatpush1.msra.mxu0 %v3209
      %3265 = vmatprep.subr.mxu0 0.0
      %3266 = vmatpush1.msra.mxu0 %v3210
      %3267 = vmatprep.subr.mxu0 0.0
      %3268 = vmatpush1.msra.mxu0 0.0
      %3269 = vmatprep.subr.mxu0 0.0
      %3270 = vmatpush1.msra.mxu0 0.0
      %3271 = vmatprep.subr.mxu0 0.0
      %3272 = vmatpush1.msra.mxu0 0.0
      %3273 = vmatprep.subr.mxu0 0.0
      %3274 = vmatpush1.msra.mxu0 0.0
      %3275 = vmatprep.subr.mxu0 0.0
      %3276 = vmatpush1.msra.mxu0 0.0
      %3277 = vmatprep.subr.mxu0 0.0
      %3278 = vmatpush1.msra.mxu0 0.0
      %3279 = vmatprep.subr.mxu0 0.0
      %3280 = vmatpush1.msra.mxu0 0.0
      %3281 = vmatprep.subr.mxu0 0.0
      %3282 = vmatpush1.msra.mxu0 0.0
      %3283 = vmatprep.subr.mxu0 0.0
      %3284 = vmatpush1.msra.mxu0 0.0
      %3285 = vmatprep.subr.mxu0 0.0
      %3286 = vmatpush1.msra.mxu0 0.0
      %3287 = vmatprep.subr.mxu0 0.0
      %3288 = vmatpush1.msra.mxu0 0.0
      %3289 = vmatprep.subr.mxu0 0.0
      %3290 = vmatpush1.msra.mxu0 0.0
      %3291 = vmatprep.subr.mxu0 0.0
      %3292 = vmatpush1.msra.mxu0 0.0
      %3293 = vmatprep.subr.mxu0 0.0
      %3294 = vmatpush1.msra.mxu0 0.0
      %3295 = vmatprep.subr.mxu0 0.0
      %3296 = vmatpush1.msra.mxu0 0.0
      %3297 = vmatprep.subr.mxu0 0.0
      %3298 = vmatpush1.msra.mxu0 0.0
      %3299 = vmatprep.subr.mxu0 0.0
      %3300 = vmatpush1.msra.mxu0 0.0
      %3301 = vmatprep.subr.mxu0 0.0
      %3302 = vmatpush1.msra.mxu0 0.0
      %3303 = vmatprep.subr.mxu0 0.0
      %3304 = vmatpush1.msra.mxu0 0.0
      %3305 = vmatprep.subr.mxu0 0.0
      %3306 = vmatpush1.msra.mxu0 0.0
      %3307 = vmatprep.subr.mxu0 0.0
      %3308 = vmatpush1.msra.mxu0 0.0
      %3309 = vmatprep.subr.mxu0 0.0
      %3310 = vmatpush1.msra.mxu0 0.0
      %3311 = vmatprep.subr.mxu0 0.0
      %3312 = vmatpush1.msra.mxu0 0.0
      %3313 = vmatprep.subr.mxu0 0.0
      %3314 = vmatpush1.msra.mxu0 0.0
      %3315 = vmatprep.subr.mxu0 0.0
      %3316 = vmatpush1.msra.mxu0 0.0
      %3317 = vmatprep.subr.mxu0 0.0
      %3318 = vmatpush1.msra.mxu0 0.0
      %3319 = vmatprep.subr.mxu0 0.0
      %3320 = vmatpush1.msra.mxu0 0.0
      %3321 = vmatprep.subr.mxu0 0.0
      %3322 = vmatpush1.msra.mxu0 0.0
      %3323 = vmatprep.mubr.f32.mxu0 0.0
      %3324 = vmatmul.mubr.f32.gmra.mrb[0].mxu0 %v3212
      %v3325 = vpop.f32.mrb[0].mxu0
      %v3326 = vadd.f32 0.0, %v3325
      %v3327 = vpop.f32.mrb[0].mxu0
      %3328 = vmatprep.mubr.f32.mxu0 0.0
      %3329 = vmatmul.mubr.f32.gmra.mrb[0].mxu0 %v3215
      %v3330 = vpop.f32.mrb[0].mxu0
      %v3331 = vadd.f32 0.0, %v3330
      %v3332 = vpop.f32.mrb[0].mxu0
      %3333 = vmatprep.mubr.f32.mxu0 0.0
      %3334 = vmatmul.mubr.f32.gmra.mrb[0].mxu0 %v3218
      %v3335 = vpop.f32.mrb[0].mxu0
      %v3336 = vadd.f32 0.0, %v3335
      %v3337 = vpop.f32.mrb[0].mxu0
      %3338 = vmatprep.mubr.f32.mxu0 0.0
      %3339 = vmatmul.mubr.f32.gmra.mrb[0].mxu0 %v3221
      %v3340 = vpop.f32.mrb[0].mxu0
      %v3341 = vadd.f32 0.0, %v3340
      %v3342 = vpop.f32.mrb[0].mxu0
      %3343 = vmatprep.mubr.f32.mxu0 0.0
      %3344 = vmatmul.mubr.f32.gmra.mrb[0].mxu0 %v3224
      %v3345 = vpop.f32.mrb[0].mxu0
      %v3346 = vadd.f32 0.0, %v3345
      %v3347 = vpop.f32.mrb[0].mxu0
      %3348 = vmatprep.mubr.f32.mxu0 0.0
      %3349 = vmatmul.mubr.f32.gmra.mrb[0].mxu0 %v3227
      %v3350 = vpop.f32.mrb[0].mxu0
      %v3351 = vadd.f32 0.0, %v3350
      %v3352 = vpop.f32.mrb[0].mxu0
      %3353 = vmatprep.mubr.f32.mxu0 0.0
      %3354 = vmatmul.mubr.f32.gmra.mrb[0].mxu0 %v3230
      %v3355 = vpop.f32.mrb[0].mxu0
      %v3356 = vadd.f32 0.0, %v3355
      %v3357 = vpop.f32.mrb[0].mxu0
      %3358 = vmatprep.mubr.f32.mxu0 0.0
      %3359 = vmatmul.mubr.f32.gmra.mrb[0].mxu0 %v3233
      %v3360 = vpop.f32.mrb[0].mxu0
      %v3361 = vadd.f32 0.0, %v3360
      %v3362 = vpop.f32.mrb[0].mxu0
      %3363 = vmatprep.mubr.f32.mxu0 0.0
      %3364 = vmatmul.mubr.f32.gmra.mrb[0].mxu0 %v3236
      %v3365 = vpop.f32.mrb[0].mxu0
      %v3366 = vadd.f32 0.0, %v3365
      %v3367 = vpop.f32.mrb[0].mxu0
      %3368 = vmatprep.mubr.f32.mxu0 0.0
      %3369 = vmatmul.mubr.f32.gmra.mrb[0].mxu0 %v3239
      %v3370 = vpop.f32.mrb[0].mxu0
      %v3371 = vadd.f32 0.0, %v3370
      %v3372 = vpop.f32.mrb[0].mxu0
      %3373 = vmatprep.mubr.f32.mxu0 0.0
      %3374 = vmatmul.mubr.f32.gmra.mrb[0].mxu0 %v3242
      %v3375 = vpop.f32.mrb[0].mxu0
      %v3376 = vadd.f32 0.0, %v3375
      %v3377 = vpop.f32.mrb[0].mxu0
      %3378 = vmatprep.mubr.f32.mxu0 0.0
      %3379 = vmatmul.mubr.f32.gmra.mrb[0].mxu0 %v3245
      %v3380 = vpop.f32.mrb[0].mxu0
      %v3381 = vadd.f32 0.0, %v3380
      %v3382 = vpop.f32.mrb[0].mxu0
      %3383 = vmatprep.mubr.f32.mxu0 0.0
      %3384 = vmatmul.mubr.f32.gmra.mrb[0].mxu0 %v3248
      %v3385 = vpop.f32.mrb[0].mxu0
      %v3386 = vadd.f32 0.0, %v3385
      %v3387 = vpop.f32.mrb[0].mxu0
      %3388 = vmatprep.mubr.f32.mxu0 0.0
      %3389 = vmatmul.mubr.f32.gmra.mrb[0].mxu0 %v3251
      %v3390 = vpop.f32.mrb[0].mxu0
      %v3391 = vadd.f32 0.0, %v3390
      %v3392 = vpop.f32.mrb[0].mxu0
      %3393 = vmatprep.mubr.f32.mxu0 0.0
      %3394 = vmatmul.mubr.f32.gmra.mrb[0].mxu0 %v3254
      %v3395 = vpop.f32.mrb[0].mxu0
      %v3396 = vadd.f32 0.0, %v3395
      %v3397 = vpop.f32.mrb[0].mxu0
      %3398 = vmatprep.mubr.f32.mxu0 0.0
      %3399 = vmatmul.mubr.f32.gmra.mrb[0].mxu0 %v3257
      %v3400 = vpop.f32.mrb[0].mxu0
      %v3401 = vadd.f32 0.0, %v3400
      %v3402 = vpop.f32.mrb[0].mxu0
      %3403 = vdwg.mxu0
      %v3404 = vadd.f32 %v3174, %v3326
      %v3405 = vadd.f32 %v3175, %v3331
      %v3406 = vadd.f32 %v3176, %v3336
      %v3407 = vadd.f32 %v3177, %v3341
      %v3408 = vadd.f32 %v3178, %v3346
      %v3409 = vadd.f32 %v3179, %v3351
      %v3410 = vadd.f32 %v3180, %v3356
      %v3411 = vadd.f32 %v3181, %v3361
      %v3412 = vadd.f32 %v3182, %v3366
      %v3413 = vadd.f32 %v3183, %v3371
      %v3414 = vadd.f32 %v3184, %v3376
      %v3415 = vadd.f32 %v3185, %v3381
      %v3416 = vadd.f32 %v3186, %v3386
      %v3417 = vadd.f32 %v3187, %v3391
      %v3418 = vadd.f32 %v3188, %v3396
      %v3419 = vadd.f32 %v3189, %v3401
      %v3420 = vld [vmem:[#allocation2 + $0xd] sm:$0xff]
      %v3421 = vld [vmem:[#allocation2 + $0x15] sm:$0xff]
      %v3422 = vld [vmem:[#allocation2 + $0x1d] sm:$0xff]
      %v3423 = vld [vmem:[#allocation2 + $0x25] sm:$0xff]
      %v3424 = vld [vmem:[#allocation2 + $0x2d] sm:$0xff]
      %v3425 = vld [vmem:[#allocation2 + $0x35] sm:$0xff]
      %v3426 = vld [vmem:[#allocation2 + $0x3d] sm:$0xff]
      %v3427 = vld [vmem:[#allocation2 + $0x45] sm:$0xff]
      %v3428 = vld [vmem:[#allocation2 + $0x4d] sm:$0xff]
      %v3429 = vld [vmem:[#allocation2 + $0x55] sm:$0xff]
      %v3430 = vld [vmem:[#allocation2 + $0x5d] sm:$0xff]
      %v3431 = vld [vmem:[#allocation2 + $0x65] sm:$0xff]
      %v3432 = vld [vmem:[#allocation2 + $0x6d] sm:$0xff]
      %v3433 = vld [vmem:[#allocation2 + $0x75] sm:$0xff]
      %v3434 = vld [vmem:[#allocation2 + $0x7d] sm:$0xff]
      %v3435 = vld [vmem:[#allocation2 + $0x85] sm:$0xff]
      %s3436 = scalar_lea.vmem %s3, 320
      %v3437 = vld [vmem:[%s3436] sm:$0xff]
      %v3438 = vld [vmem:[%s3436 + $0x8] sm:$0xff]
      %v3439 = vld [vmem:[%s3436 + $0x10] sm:$0xff]
      %v3440 = vld [vmem:[%s3436 + $0x18] sm:$0xff]
      %v3442 = vsel %vm1080, %v3420, 0
      %v3445 = vsel %vm1080, %v3421, 0
      %v3448 = vsel %vm1080, %v3422, 0
      %v3451 = vsel %vm1080, %v3423, 0
      %v3454 = vsel %vm1080, %v3424, 0
      %v3457 = vsel %vm1080, %v3425, 0
      %v3460 = vsel %vm1080, %v3426, 0
      %v3463 = vsel %vm1080, %v3427, 0
      %v3466 = vsel %vm1080, %v3428, 0
      %v3469 = vsel %vm1080, %v3429, 0
      %v3472 = vsel %vm1080, %v3430, 0
      %v3475 = vsel %vm1080, %v3431, 0
      %v3478 = vsel %vm1080, %v3432, 0
      %v3481 = vsel %vm1080, %v3433, 0
      %v3484 = vsel %vm1080, %v3434, 0
      %v3487 = vsel %vm1080, %v3435, 0
      %3489 = vmatprep.subr.mxu0 0.0
      %3490 = vmatpush1.msra.mxu0 %v3437
      %3491 = vmatprep.subr.mxu0 0.0
      %3492 = vmatpush1.msra.mxu0 %v3438
      %3493 = vmatprep.subr.mxu0 0.0
      %3494 = vmatpush1.msra.mxu0 %v3439
      %3495 = vmatprep.subr.mxu0 0.0
      %3496 = vmatpush1.msra.mxu0 %v3440
      %3497 = vmatprep.subr.mxu0 0.0
      %3498 = vmatpush1.msra.mxu0 0.0
      %3499 = vmatprep.subr.mxu0 0.0
      %3500 = vmatpush1.msra.mxu0 0.0
      %3501 = vmatprep.subr.mxu0 0.0
      %3502 = vmatpush1.msra.mxu0 0.0
      %3503 = vmatprep.subr.mxu0 0.0
      %3504 = vmatpush1.msra.mxu0 0.0
      %3505 = vmatprep.subr.mxu0 0.0
      %3506 = vmatpush1.msra.mxu0 0.0
      %3507 = vmatprep.subr.mxu0 0.0
      %3508 = vmatpush1.msra.mxu0 0.0
      %3509 = vmatprep.subr.mxu0 0.0
      %3510 = vmatpush1.msra.mxu0 0.0
      %3511 = vmatprep.subr.mxu0 0.0
      %3512 = vmatpush1.msra.mxu0 0.0
      %3513 = vmatprep.subr.mxu0 0.0
      %3514 = vmatpush1.msra.mxu0 0.0
      %3515 = vmatprep.subr.mxu0 0.0
      %3516 = vmatpush1.msra.mxu0 0.0
      %3517 = vmatprep.subr.mxu0 0.0
      %3518 = vmatpush1.msra.mxu0 0.0
      %3519 = vmatprep.subr.mxu0 0.0
      %3520 = vmatpush1.msra.mxu0 0.0
      %3521 = vmatprep.subr.mxu0 0.0
      %3522 = vmatpush1.msra.mxu0 0.0
      %3523 = vmatprep.subr.mxu0 0.0
      %3524 = vmatpush1.msra.mxu0 0.0
      %3525 = vmatprep.subr.mxu0 0.0
      %3526 = vmatpush1.msra.mxu0 0.0
      %3527 = vmatprep.subr.mxu0 0.0
      %3528 = vmatpush1.msra.mxu0 0.0
      %3529 = vmatprep.subr.mxu0 0.0
      %3530 = vmatpush1.msra.mxu0 0.0
      %3531 = vmatprep.subr.mxu0 0.0
      %3532 = vmatpush1.msra.mxu0 0.0
      %3533 = vmatprep.subr.mxu0 0.0
      %3534 = vmatpush1.msra.mxu0 0.0
      %3535 = vmatprep.subr.mxu0 0.0
      %3536 = vmatpush1.msra.mxu0 0.0
      %3537 = vmatprep.subr.mxu0 0.0
      %3538 = vmatpush1.msra.mxu0 0.0
      %3539 = vmatprep.subr.mxu0 0.0
      %3540 = vmatpush1.msra.mxu0 0.0
      %3541 = vmatprep.subr.mxu0 0.0
      %3542 = vmatpush1.msra.mxu0 0.0
      %3543 = vmatprep.subr.mxu0 0.0
      %3544 = vmatpush1.msra.mxu0 0.0
      %3545 = vmatprep.subr.mxu0 0.0
      %3546 = vmatpush1.msra.mxu0 0.0
      %3547 = vmatprep.subr.mxu0 0.0
      %3548 = vmatpush1.msra.mxu0 0.0
      %3549 = vmatprep.subr.mxu0 0.0
      %3550 = vmatpush1.msra.mxu0 0.0
      %3551 = vmatprep.subr.mxu0 0.0
      %3552 = vmatpush1.msra.mxu0 0.0
      %3553 = vmatprep.mubr.f32.mxu0 0.0
      %3554 = vmatmul.mubr.f32.gmra.mrb[0].mxu0 %v3442
      %v3555 = vpop.f32.mrb[0].mxu0
      %v3556 = vadd.f32 0.0, %v3555
      %v3557 = vpop.f32.mrb[0].mxu0
      %3558 = vmatprep.mubr.f32.mxu0 0.0
      %3559 = vmatmul.mubr.f32.gmra.mrb[0].mxu0 %v3445
      %v3560 = vpop.f32.mrb[0].mxu0
      %v3561 = vadd.f32 0.0, %v3560
      %v3562 = vpop.f32.mrb[0].mxu0
      %3563 = vmatprep.mubr.f32.mxu0 0.0
      %3564 = vmatmul.mubr.f32.gmra.mrb[0].mxu0 %v3448
      %v3565 = vpop.f32.mrb[0].mxu0
      %v3566 = vadd.f32 0.0, %v3565
      %v3567 = vpop.f32.mrb[0].mxu0
      %3568 = vmatprep.mubr.f32.mxu0 0.0
      %3569 = vmatmul.mubr.f32.gmra.mrb[0].mxu0 %v3451
      %v3570 = vpop.f32.mrb[0].mxu0
      %v3571 = vadd.f32 0.0, %v3570
      %v3572 = vpop.f32.mrb[0].mxu0
      %3573 = vmatprep.mubr.f32.mxu0 0.0
      %3574 = vmatmul.mubr.f32.gmra.mrb[0].mxu0 %v3454
      %v3575 = vpop.f32.mrb[0].mxu0
      %v3576 = vadd.f32 0.0, %v3575
      %v3577 = vpop.f32.mrb[0].mxu0
      %3578 = vmatprep.mubr.f32.mxu0 0.0
      %3579 = vmatmul.mubr.f32.gmra.mrb[0].mxu0 %v3457
      %v3580 = vpop.f32.mrb[0].mxu0
      %v3581 = vadd.f32 0.0, %v3580
      %v3582 = vpop.f32.mrb[0].mxu0
      %3583 = vmatprep.mubr.f32.mxu0 0.0
      %3584 = vmatmul.mubr.f32.gmra.mrb[0].mxu0 %v3460
      %v3585 = vpop.f32.mrb[0].mxu0
      %v3586 = vadd.f32 0.0, %v3585
      %v3587 = vpop.f32.mrb[0].mxu0
      %3588 = vmatprep.mubr.f32.mxu0 0.0
      %3589 = vmatmul.mubr.f32.gmra.mrb[0].mxu0 %v3463
      %v3590 = vpop.f32.mrb[0].mxu0
      %v3591 = vadd.f32 0.0, %v3590
      %v3592 = vpop.f32.mrb[0].mxu0
      %3593 = vmatprep.mubr.f32.mxu0 0.0
      %3594 = vmatmul.mubr.f32.gmra.mrb[0].mxu0 %v3466
      %v3595 = vpop.f32.mrb[0].mxu0
      %v3596 = vadd.f32 0.0, %v3595
      %v3597 = vpop.f32.mrb[0].mxu0
      %3598 = vmatprep.mubr.f32.mxu0 0.0
      %3599 = vmatmul.mubr.f32.gmra.mrb[0].mxu0 %v3469
      %v3600 = vpop.f32.mrb[0].mxu0
      %v3601 = vadd.f32 0.0, %v3600
      %v3602 = vpop.f32.mrb[0].mxu0
      %3603 = vmatprep.mubr.f32.mxu0 0.0
      %3604 = vmatmul.mubr.f32.gmra.mrb[0].mxu0 %v3472
      %v3605 = vpop.f32.mrb[0].mxu0
      %v3606 = vadd.f32 0.0, %v3605
      %v3607 = vpop.f32.mrb[0].mxu0
      %3608 = vmatprep.mubr.f32.mxu0 0.0
      %3609 = vmatmul.mubr.f32.gmra.mrb[0].mxu0 %v3475
      %v3610 = vpop.f32.mrb[0].mxu0
      %v3611 = vadd.f32 0.0, %v3610
      %v3612 = vpop.f32.mrb[0].mxu0
      %3613 = vmatprep.mubr.f32.mxu0 0.0
      %3614 = vmatmul.mubr.f32.gmra.mrb[0].mxu0 %v3478
      %v3615 = vpop.f32.mrb[0].mxu0
      %v3616 = vadd.f32 0.0, %v3615
      %v3617 = vpop.f32.mrb[0].mxu0
      %3618 = vmatprep.mubr.f32.mxu0 0.0
      %3619 = vmatmul.mubr.f32.gmra.mrb[0].mxu0 %v3481
      %v3620 = vpop.f32.mrb[0].mxu0
      %v3621 = vadd.f32 0.0, %v3620
      %v3622 = vpop.f32.mrb[0].mxu0
      %3623 = vmatprep.mubr.f32.mxu0 0.0
      %3624 = vmatmul.mubr.f32.gmra.mrb[0].mxu0 %v3484
      %v3625 = vpop.f32.mrb[0].mxu0
      %v3626 = vadd.f32 0.0, %v3625
      %v3627 = vpop.f32.mrb[0].mxu0
      %3628 = vmatprep.mubr.f32.mxu0 0.0
      %3629 = vmatmul.mubr.f32.gmra.mrb[0].mxu0 %v3487
      %v3630 = vpop.f32.mrb[0].mxu0
      %v3631 = vadd.f32 0.0, %v3630
      %v3632 = vpop.f32.mrb[0].mxu0
      %3633 = vdwg.mxu0
      %v3634 = vadd.f32 %v3404, %v3556
      %v3635 = vadd.f32 %v3405, %v3561
      %v3636 = vadd.f32 %v3406, %v3566
      %v3637 = vadd.f32 %v3407, %v3571
      %v3638 = vadd.f32 %v3408, %v3576
      %v3639 = vadd.f32 %v3409, %v3581
      %v3640 = vadd.f32 %v3410, %v3586
      %v3641 = vadd.f32 %v3411, %v3591
      %v3642 = vadd.f32 %v3412, %v3596
      %v3643 = vadd.f32 %v3413, %v3601
      %v3644 = vadd.f32 %v3414, %v3606
      %v3645 = vadd.f32 %v3415, %v3611
      %v3646 = vadd.f32 %v3416, %v3616
      %v3647 = vadd.f32 %v3417, %v3621
      %v3648 = vadd.f32 %v3418, %v3626
      %v3649 = vadd.f32 %v3419, %v3631
      %v3650 = vld [vmem:[#allocation2 + $0x9d] sm:$0xff]
      %v3651 = vld [vmem:[#allocation2 + $0xa5] sm:$0xff]
      %v3652 = vld [vmem:[#allocation2 + $0xad] sm:$0xff]
      %v3653 = vld [vmem:[#allocation2 + $0xb5] sm:$0xff]
      %v3654 = vld [vmem:[#allocation2 + $0xbd] sm:$0xff]
      %v3655 = vld [vmem:[#allocation2 + $0xc5] sm:$0xff]
      %v3656 = vld [vmem:[#allocation2 + $0xcd] sm:$0xff]
      %v3657 = vld [vmem:[#allocation2 + $0xd5] sm:$0xff]
      %v3658 = vld [vmem:[#allocation2 + $0xdd] sm:$0xff]
      %v3659 = vld [vmem:[#allocation2 + $0xe5] sm:$0xff]
      %v3660 = vld [vmem:[#allocation2 + $0xed] sm:$0xff]
      %v3661 = vld [vmem:[#allocation2 + $0xf5] sm:$0xff]
      %v3662 = vld [vmem:[#allocation2 + $0xfd] sm:$0xff]
      %v3663 = vld [vmem:[#allocation2 + $0x105] sm:$0xff]
      %v3664 = vld [vmem:[#allocation2 + $0x10d] sm:$0xff]
      %v3665 = vld [vmem:[#allocation2 + $0x115] sm:$0xff]
      %s3666 = scalar_lea.vmem %s3, 352
      %v3667 = vld [vmem:[%s3666] sm:$0xff]
      %v3668 = vld [vmem:[%s3666 + $0x8] sm:$0xff]
      %v3669 = vld [vmem:[%s3666 + $0x10] sm:$0xff]
      %v3670 = vld [vmem:[%s3666 + $0x18] sm:$0xff]
      %v3672 = vsel %vm1080, %v3650, 0
      %v3675 = vsel %vm1080, %v3651, 0
      %v3678 = vsel %vm1080, %v3652, 0
      %v3681 = vsel %vm1080, %v3653, 0
      %v3684 = vsel %vm1080, %v3654, 0
      %v3687 = vsel %vm1080, %v3655, 0
      %v3690 = vsel %vm1080, %v3656, 0
      %v3693 = vsel %vm1080, %v3657, 0
      %v3696 = vsel %vm1080, %v3658, 0
      %v3699 = vsel %vm1080, %v3659, 0
      %v3702 = vsel %vm1080, %v3660, 0
      %v3705 = vsel %vm1080, %v3661, 0
      %v3708 = vsel %vm1080, %v3662, 0
      %v3711 = vsel %vm1080, %v3663, 0
      %v3714 = vsel %vm1080, %v3664, 0
      %v3717 = vsel %vm1080, %v3665, 0
      %3719 = vmatprep.subr.mxu0 0.0
      %3720 = vmatpush1.msra.mxu0 %v3667
      %3721 = vmatprep.subr.mxu0 0.0
      %3722 = vmatpush1.msra.mxu0 %v3668
      %3723 = vmatprep.subr.mxu0 0.0
      %3724 = vmatpush1.msra.mxu0 %v3669
      %3725 = vmatprep.subr.mxu0 0.0
      %3726 = vmatpush1.msra.mxu0 %v3670
      %3727 = vmatprep.subr.mxu0 0.0
      %3728 = vmatpush1.msra.mxu0 0.0
      %3729 = vmatprep.subr.mxu0 0.0
      %3730 = vmatpush1.msra.mxu0 0.0
      %3731 = vmatprep.subr.mxu0 0.0
      %3732 = vmatpush1.msra.mxu0 0.0
      %3733 = vmatprep.subr.mxu0 0.0
      %3734 = vmatpush1.msra.mxu0 0.0
      %3735 = vmatprep.subr.mxu0 0.0
      %3736 = vmatpush1.msra.mxu0 0.0
      %3737 = vmatprep.subr.mxu0 0.0
      %3738 = vmatpush1.msra.mxu0 0.0
      %3739 = vmatprep.subr.mxu0 0.0
      %3740 = vmatpush1.msra.mxu0 0.0
      %3741 = vmatprep.subr.mxu0 0.0
      %3742 = vmatpush1.msra.mxu0 0.0
      %3743 = vmatprep.subr.mxu0 0.0
      %3744 = vmatpush1.msra.mxu0 0.0
      %3745 = vmatprep.subr.mxu0 0.0
      %3746 = vmatpush1.msra.mxu0 0.0
      %3747 = vmatprep.subr.mxu0 0.0
      %3748 = vmatpush1.msra.mxu0 0.0
      %3749 = vmatprep.subr.mxu0 0.0
      %3750 = vmatpush1.msra.mxu0 0.0
      %3751 = vmatprep.subr.mxu0 0.0
      %3752 = vmatpush1.msra.mxu0 0.0
      %3753 = vmatprep.subr.mxu0 0.0
      %3754 = vmatpush1.msra.mxu0 0.0
      %3755 = vmatprep.subr.mxu0 0.0
      %3756 = vmatpush1.msra.mxu0 0.0
      %3757 = vmatprep.subr.mxu0 0.0
      %3758 = vmatpush1.msra.mxu0 0.0
      %3759 = vmatprep.subr.mxu0 0.0
      %3760 = vmatpush1.msra.mxu0 0.0
      %3761 = vmatprep.subr.mxu0 0.0
      %3762 = vmatpush1.msra.mxu0 0.0
      %3763 = vmatprep.subr.mxu0 0.0
      %3764 = vmatpush1.msra.mxu0 0.0
      %3765 = vmatprep.subr.mxu0 0.0
      %3766 = vmatpush1.msra.mxu0 0.0
      %3767 = vmatprep.subr.mxu0 0.0
      %3768 = vmatpush1.msra.mxu0 0.0
      %3769 = vmatprep.subr.mxu0 0.0
      %3770 = vmatpush1.msra.mxu0 0.0
      %3771 = vmatprep.subr.mxu0 0.0
      %3772 = vmatpush1.msra.mxu0 0.0
      %3773 = vmatprep.subr.mxu0 0.0
      %3774 = vmatpush1.msra.mxu0 0.0
      %3775 = vmatprep.subr.mxu0 0.0
      %3776 = vmatpush1.msra.mxu0 0.0
      %3777 = vmatprep.subr.mxu0 0.0
      %3778 = vmatpush1.msra.mxu0 0.0
      %3779 = vmatprep.subr.mxu0 0.0
      %3780 = vmatpush1.msra.mxu0 0.0
      %3781 = vmatprep.subr.mxu0 0.0
      %3782 = vmatpush1.msra.mxu0 0.0
      %3783 = vmatprep.mubr.f32.mxu0 0.0
      %3784 = vmatmul.mubr.f32.gmra.mrb[0].mxu0 %v3672
      %v3785 = vpop.f32.mrb[0].mxu0
      %v3786 = vadd.f32 0.0, %v3785
      %v3787 = vpop.f32.mrb[0].mxu0
      %3788 = vmatprep.mubr.f32.mxu0 0.0
      %3789 = vmatmul.mubr.f32.gmra.mrb[0].mxu0 %v3675
      %v3790 = vpop.f32.mrb[0].mxu0
      %v3791 = vadd.f32 0.0, %v3790
      %v3792 = vpop.f32.mrb[0].mxu0
      %3793 = vmatprep.mubr.f32.mxu0 0.0
      %3794 = vmatmul.mubr.f32.gmra.mrb[0].mxu0 %v3678
      %v3795 = vpop.f32.mrb[0].mxu0
      %v3796 = vadd.f32 0.0, %v3795
      %v3797 = vpop.f32.mrb[0].mxu0
      %3798 = vmatprep.mubr.f32.mxu0 0.0
      %3799 = vmatmul.mubr.f32.gmra.mrb[0].mxu0 %v3681
      %v3800 = vpop.f32.mrb[0].mxu0
      %v3801 = vadd.f32 0.0, %v3800
      %v3802 = vpop.f32.mrb[0].mxu0
      %3803 = vmatprep.mubr.f32.mxu0 0.0
      %3804 = vmatmul.mubr.f32.gmra.mrb[0].mxu0 %v3684
      %v3805 = vpop.f32.mrb[0].mxu0
      %v3806 = vadd.f32 0.0, %v3805
      %v3807 = vpop.f32.mrb[0].mxu0
      %3808 = vmatprep.mubr.f32.mxu0 0.0
      %3809 = vmatmul.mubr.f32.gmra.mrb[0].mxu0 %v3687
      %v3810 = vpop.f32.mrb[0].mxu0
      %v3811 = vadd.f32 0.0, %v3810
      %v3812 = vpop.f32.mrb[0].mxu0
      %3813 = vmatprep.mubr.f32.mxu0 0.0
      %3814 = vmatmul.mubr.f32.gmra.mrb[0].mxu0 %v3690
      %v3815 = vpop.f32.mrb[0].mxu0
      %v3816 = vadd.f32 0.0, %v3815
      %v3817 = vpop.f32.mrb[0].mxu0
      %3818 = vmatprep.mubr.f32.mxu0 0.0
      %3819 = vmatmul.mubr.f32.gmra.mrb[0].mxu0 %v3693
      %v3820 = vpop.f32.mrb[0].mxu0
      %v3821 = vadd.f32 0.0, %v3820
      %v3822 = vpop.f32.mrb[0].mxu0
      %3823 = vmatprep.mubr.f32.mxu0 0.0
      %3824 = vmatmul.mubr.f32.gmra.mrb[0].mxu0 %v3696
      %v3825 = vpop.f32.mrb[0].mxu0
      %v3826 = vadd.f32 0.0, %v3825
      %v3827 = vpop.f32.mrb[0].mxu0
      %3828 = vmatprep.mubr.f32.mxu0 0.0
      %3829 = vmatmul.mubr.f32.gmra.mrb[0].mxu0 %v3699
      %v3830 = vpop.f32.mrb[0].mxu0
      %v3831 = vadd.f32 0.0, %v3830
      %v3832 = vpop.f32.mrb[0].mxu0
      %3833 = vmatprep.mubr.f32.mxu0 0.0
      %3834 = vmatmul.mubr.f32.gmra.mrb[0].mxu0 %v3702
      %v3835 = vpop.f32.mrb[0].mxu0
      %v3836 = vadd.f32 0.0, %v3835
      %v3837 = vpop.f32.mrb[0].mxu0
      %3838 = vmatprep.mubr.f32.mxu0 0.0
      %3839 = vmatmul.mubr.f32.gmra.mrb[0].mxu0 %v3705
      %v3840 = vpop.f32.mrb[0].mxu0
      %v3841 = vadd.f32 0.0, %v3840
      %v3842 = vpop.f32.mrb[0].mxu0
      %3843 = vmatprep.mubr.f32.mxu0 0.0
      %3844 = vmatmul.mubr.f32.gmra.mrb[0].mxu0 %v3708
      %v3845 = vpop.f32.mrb[0].mxu0
      %v3846 = vadd.f32 0.0, %v3845
      %v3847 = vpop.f32.mrb[0].mxu0
      %3848 = vmatprep.mubr.f32.mxu0 0.0
      %3849 = vmatmul.mubr.f32.gmra.mrb[0].mxu0 %v3711
      %v3850 = vpop.f32.mrb[0].mxu0
      %v3851 = vadd.f32 0.0, %v3850
      %v3852 = vpop.f32.mrb[0].mxu0
      %3853 = vmatprep.mubr.f32.mxu0 0.0
      %3854 = vmatmul.mubr.f32.gmra.mrb[0].mxu0 %v3714
      %v3855 = vpop.f32.mrb[0].mxu0
      %v3856 = vadd.f32 0.0, %v3855
      %v3857 = vpop.f32.mrb[0].mxu0
      %3858 = vmatprep.mubr.f32.mxu0 0.0
      %3859 = vmatmul.mubr.f32.gmra.mrb[0].mxu0 %v3717
      %v3860 = vpop.f32.mrb[0].mxu0
      %v3861 = vadd.f32 0.0, %v3860
      %v3862 = vpop.f32.mrb[0].mxu0
      %3863 = vdwg.mxu0
      %v3864 = vadd.f32 %v3634, %v3786
      %v3865 = vadd.f32 %v3635, %v3791
      %v3866 = vadd.f32 %v3636, %v3796
      %v3867 = vadd.f32 %v3637, %v3801
      %v3868 = vadd.f32 %v3638, %v3806
      %v3869 = vadd.f32 %v3639, %v3811
      %v3870 = vadd.f32 %v3640, %v3816
      %v3871 = vadd.f32 %v3641, %v3821
      %v3872 = vadd.f32 %v3642, %v3826
      %v3873 = vadd.f32 %v3643, %v3831
      %v3874 = vadd.f32 %v3644, %v3836
      %v3875 = vadd.f32 %v3645, %v3841
      %v3876 = vadd.f32 %v3646, %v3846
      %v3877 = vadd.f32 %v3647, %v3851
      %v3878 = vadd.f32 %v3648, %v3856
      %v3879 = vadd.f32 %v3649, %v3861
      %v3880 = vld [vmem:[#allocation2 + $0x12c] sm:$0xff]
      %v3881 = vld [vmem:[#allocation2 + $0x134] sm:$0xff]
      %v3882 = vld [vmem:[#allocation2 + $0x13c] sm:$0xff]
      %v3883 = vld [vmem:[#allocation2 + $0x144] sm:$0xff]
      %v3884 = vld [vmem:[#allocation2 + $0x14c] sm:$0xff]
      %v3885 = vld [vmem:[#allocation2 + $0x154] sm:$0xff]
      %v3886 = vld [vmem:[#allocation2 + $0x15c] sm:$0xff]
      %v3887 = vld [vmem:[#allocation2 + $0x164] sm:$0xff]
      %v3888 = vld [vmem:[#allocation2 + $0x16c] sm:$0xff]
      %v3889 = vld [vmem:[#allocation2 + $0x174] sm:$0xff]
      %v3890 = vld [vmem:[#allocation2 + $0x17c] sm:$0xff]
      %v3891 = vld [vmem:[#allocation2 + $0x184] sm:$0xff]
      %v3892 = vld [vmem:[#allocation2 + $0x18c] sm:$0xff]
      %v3893 = vld [vmem:[#allocation2 + $0x194] sm:$0xff]
      %v3894 = vld [vmem:[#allocation2 + $0x19c] sm:$0xff]
      %v3895 = vld [vmem:[#allocation2 + $0x1a4] sm:$0xff]
      %s3896 = scalar_lea.vmem %s3, 384
      %v3897 = vld [vmem:[%s3896] sm:$0xff]
      %v3898 = vld [vmem:[%s3896 + $0x8] sm:$0xff]
      %v3899 = vld [vmem:[%s3896 + $0x10] sm:$0xff]
      %v3900 = vld [vmem:[%s3896 + $0x18] sm:$0xff]
      %v3902 = vsel %vm1080, %v3880, 0
      %v3905 = vsel %vm1080, %v3881, 0
      %v3908 = vsel %vm1080, %v3882, 0
      %v3911 = vsel %vm1080, %v3883, 0
      %v3914 = vsel %vm1080, %v3884, 0
      %v3917 = vsel %vm1080, %v3885, 0
      %v3920 = vsel %vm1080, %v3886, 0
      %v3923 = vsel %vm1080, %v3887, 0
      %v3926 = vsel %vm1080, %v3888, 0
      %v3929 = vsel %vm1080, %v3889, 0
      %v3932 = vsel %vm1080, %v3890, 0
      %v3935 = vsel %vm1080, %v3891, 0
      %v3938 = vsel %vm1080, %v3892, 0
      %v3941 = vsel %vm1080, %v3893, 0
      %v3944 = vsel %vm1080, %v3894, 0
      %v3947 = vsel %vm1080, %v3895, 0
      %3949 = vmatprep.subr.mxu0 0.0
      %3950 = vmatpush1.msra.mxu0 %v3897
      %3951 = vmatprep.subr.mxu0 0.0
      %3952 = vmatpush1.msra.mxu0 %v3898
      %3953 = vmatprep.subr.mxu0 0.0
      %3954 = vmatpush1.msra.mxu0 %v3899
      %3955 = vmatprep.subr.mxu0 0.0
      %3956 = vmatpush1.msra.mxu0 %v3900
      %3957 = vmatprep.subr.mxu0 0.0
      %3958 = vmatpush1.msra.mxu0 0.0
      %3959 = vmatprep.subr.mxu0 0.0
      %3960 = vmatpush1.msra.mxu0 0.0
      %3961 = vmatprep.subr.mxu0 0.0
      %3962 = vmatpush1.msra.mxu0 0.0
      %3963 = vmatprep.subr.mxu0 0.0
      %3964 = vmatpush1.msra.mxu0 0.0
      %3965 = vmatprep.subr.mxu0 0.0
      %3966 = vmatpush1.msra.mxu0 0.0
      %3967 = vmatprep.subr.mxu0 0.0
      %3968 = vmatpush1.msra.mxu0 0.0
      %3969 = vmatprep.subr.mxu0 0.0
      %3970 = vmatpush1.msra.mxu0 0.0
      %3971 = vmatprep.subr.mxu0 0.0
      %3972 = vmatpush1.msra.mxu0 0.0
      %3973 = vmatprep.subr.mxu0 0.0
      %3974 = vmatpush1.msra.mxu0 0.0
      %3975 = vmatprep.subr.mxu0 0.0
      %3976 = vmatpush1.msra.mxu0 0.0
      %3977 = vmatprep.subr.mxu0 0.0
      %3978 = vmatpush1.msra.mxu0 0.0
      %3979 = vmatprep.subr.mxu0 0.0
      %3980 = vmatpush1.msra.mxu0 0.0
      %3981 = vmatprep.subr.mxu0 0.0
      %3982 = vmatpush1.msra.mxu0 0.0
      %3983 = vmatprep.subr.mxu0 0.0
      %3984 = vmatpush1.msra.mxu0 0.0
      %3985 = vmatprep.subr.mxu0 0.0
      %3986 = vmatpush1.msra.mxu0 0.0
      %3987 = vmatprep.subr.mxu0 0.0
      %3988 = vmatpush1.msra.mxu0 0.0
      %3989 = vmatprep.subr.mxu0 0.0
      %3990 = vmatpush1.msra.mxu0 0.0
      %3991 = vmatprep.subr.mxu0 0.0
      %3992 = vmatpush1.msra.mxu0 0.0
      %3993 = vmatprep.subr.mxu0 0.0
      %3994 = vmatpush1.msra.mxu0 0.0
      %3995 = vmatprep.subr.mxu0 0.0
      %3996 = vmatpush1.msra.mxu0 0.0
      %3997 = vmatprep.subr.mxu0 0.0
      %3998 = vmatpush1.msra.mxu0 0.0
      %3999 = vmatprep.subr.mxu0 0.0
      %4000 = vmatpush1.msra.mxu0 0.0
      %4001 = vmatprep.subr.mxu0 0.0
      %4002 = vmatpush1.msra.mxu0 0.0
      %4003 = vmatprep.subr.mxu0 0.0
      %4004 = vmatpush1.msra.mxu0 0.0
      %4005 = vmatprep.subr.mxu0 0.0
      %4006 = vmatpush1.msra.mxu0 0.0
      %4007 = vmatprep.subr.mxu0 0.0
      %4008 = vmatpush1.msra.mxu0 0.0
      %4009 = vmatprep.subr.mxu0 0.0
      %4010 = vmatpush1.msra.mxu0 0.0
      %4011 = vmatprep.subr.mxu0 0.0
      %4012 = vmatpush1.msra.mxu0 0.0
      %4013 = vmatprep.mubr.f32.mxu0 0.0
      %4014 = vmatmul.mubr.f32.gmra.mrb[0].mxu0 %v3902
      %v4015 = vpop.f32.mrb[0].mxu0
      %v4016 = vadd.f32 0.0, %v4015
      %v4017 = vpop.f32.mrb[0].mxu0
      %4018 = vmatprep.mubr.f32.mxu0 0.0
      %4019 = vmatmul.mubr.f32.gmra.mrb[0].mxu0 %v3905
      %v4020 = vpop.f32.mrb[0].mxu0
      %v4021 = vadd.f32 0.0, %v4020
      %v4022 = vpop.f32.mrb[0].mxu0
      %4023 = vmatprep.mubr.f32.mxu0 0.0
      %4024 = vmatmul.mubr.f32.gmra.mrb[0].mxu0 %v3908
      %v4025 = vpop.f32.mrb[0].mxu0
      %v4026 = vadd.f32 0.0, %v4025
      %v4027 = vpop.f32.mrb[0].mxu0
      %4028 = vmatprep.mubr.f32.mxu0 0.0
      %4029 = vmatmul.mubr.f32.gmra.mrb[0].mxu0 %v3911
      %v4030 = vpop.f32.mrb[0].mxu0
      %v4031 = vadd.f32 0.0, %v4030
      %v4032 = vpop.f32.mrb[0].mxu0
      %4033 = vmatprep.mubr.f32.mxu0 0.0
      %4034 = vmatmul.mubr.f32.gmra.mrb[0].mxu0 %v3914
      %v4035 = vpop.f32.mrb[0].mxu0
      %v4036 = vadd.f32 0.0, %v4035
      %v4037 = vpop.f32.mrb[0].mxu0
      %4038 = vmatprep.mubr.f32.mxu0 0.0
      %4039 = vmatmul.mubr.f32.gmra.mrb[0].mxu0 %v3917
      %v4040 = vpop.f32.mrb[0].mxu0
      %v4041 = vadd.f32 0.0, %v4040
      %v4042 = vpop.f32.mrb[0].mxu0
      %4043 = vmatprep.mubr.f32.mxu0 0.0
      %4044 = vmatmul.mubr.f32.gmra.mrb[0].mxu0 %v3920
      %v4045 = vpop.f32.mrb[0].mxu0
      %v4046 = vadd.f32 0.0, %v4045
      %v4047 = vpop.f32.mrb[0].mxu0
      %4048 = vmatprep.mubr.f32.mxu0 0.0
      %4049 = vmatmul.mubr.f32.gmra.mrb[0].mxu0 %v3923
      %v4050 = vpop.f32.mrb[0].mxu0
      %v4051 = vadd.f32 0.0, %v4050
      %v4052 = vpop.f32.mrb[0].mxu0
      %4053 = vmatprep.mubr.f32.mxu0 0.0
      %4054 = vmatmul.mubr.f32.gmra.mrb[0].mxu0 %v3926
      %v4055 = vpop.f32.mrb[0].mxu0
      %v4056 = vadd.f32 0.0, %v4055
      %v4057 = vpop.f32.mrb[0].mxu0
      %4058 = vmatprep.mubr.f32.mxu0 0.0
      %4059 = vmatmul.mubr.f32.gmra.mrb[0].mxu0 %v3929
      %v4060 = vpop.f32.mrb[0].mxu0
      %v4061 = vadd.f32 0.0, %v4060
      %v4062 = vpop.f32.mrb[0].mxu0
      %4063 = vmatprep.mubr.f32.mxu0 0.0
      %4064 = vmatmul.mubr.f32.gmra.mrb[0].mxu0 %v3932
      %v4065 = vpop.f32.mrb[0].mxu0
      %v4066 = vadd.f32 0.0, %v4065
      %v4067 = vpop.f32.mrb[0].mxu0
      %4068 = vmatprep.mubr.f32.mxu0 0.0
      %4069 = vmatmul.mubr.f32.gmra.mrb[0].mxu0 %v3935
      %v4070 = vpop.f32.mrb[0].mxu0
      %v4071 = vadd.f32 0.0, %v4070
      %v4072 = vpop.f32.mrb[0].mxu0
      %4073 = vmatprep.mubr.f32.mxu0 0.0
      %4074 = vmatmul.mubr.f32.gmra.mrb[0].mxu0 %v3938
      %v4075 = vpop.f32.mrb[0].mxu0
      %v4076 = vadd.f32 0.0, %v4075
      %v4077 = vpop.f32.mrb[0].mxu0
      %4078 = vmatprep.mubr.f32.mxu0 0.0
      %4079 = vmatmul.mubr.f32.gmra.mrb[0].mxu0 %v3941
      %v4080 = vpop.f32.mrb[0].mxu0
      %v4081 = vadd.f32 0.0, %v4080
      %v4082 = vpop.f32.mrb[0].mxu0
      %4083 = vmatprep.mubr.f32.mxu0 0.0
      %4084 = vmatmul.mubr.f32.gmra.mrb[0].mxu0 %v3944
      %v4085 = vpop.f32.mrb[0].mxu0
      %v4086 = vadd.f32 0.0, %v4085
      %v4087 = vpop.f32.mrb[0].mxu0
      %4088 = vmatprep.mubr.f32.mxu0 0.0
      %4089 = vmatmul.mubr.f32.gmra.mrb[0].mxu0 %v3947
      %v4090 = vpop.f32.mrb[0].mxu0
      %v4091 = vadd.f32 0.0, %v4090
      %v4092 = vpop.f32.mrb[0].mxu0
      %4093 = vdwg.mxu0
      %v4094 = vadd.f32 %v3864, %v4016
      %v4095 = vadd.f32 %v3865, %v4021
      %v4096 = vadd.f32 %v3866, %v4026
      %v4097 = vadd.f32 %v3867, %v4031
      %v4098 = vadd.f32 %v3868, %v4036
      %v4099 = vadd.f32 %v3869, %v4041
      %v4100 = vadd.f32 %v3870, %v4046
      %v4101 = vadd.f32 %v3871, %v4051
      %v4102 = vadd.f32 %v3872, %v4056
      %v4103 = vadd.f32 %v3873, %v4061
      %v4104 = vadd.f32 %v3874, %v4066
      %v4105 = vadd.f32 %v3875, %v4071
      %v4106 = vadd.f32 %v3876, %v4076
      %v4107 = vadd.f32 %v3877, %v4081
      %v4108 = vadd.f32 %v3878, %v4086
      %v4109 = vadd.f32 %v3879, %v4091
      %v4110 = vld [vmem:[#allocation2 + $0x1bc] sm:$0xff]
      %v4111 = vld [vmem:[#allocation2 + $0x1c4] sm:$0xff]
      %v4112 = vld [vmem:[#allocation2 + $0x1cc] sm:$0xff]
      %v4113 = vld [vmem:[#allocation2 + $0x1d4] sm:$0xff]
      %v4114 = vld [vmem:[#allocation2 + $0x1dc] sm:$0xff]
      %v4115 = vld [vmem:[#allocation2 + $0x1e4] sm:$0xff]
      %v4116 = vld [vmem:[#allocation2 + $0x1ec] sm:$0xff]
      %v4117 = vld [vmem:[#allocation2 + $0x1f4] sm:$0xff]
      %v4118 = vld [vmem:[#allocation2 + $0x1fc] sm:$0xff]
      %v4119 = vld [vmem:[#allocation2 + $0x204] sm:$0xff]
      %v4120 = vld [vmem:[#allocation2 + $0x20c] sm:$0xff]
      %v4121 = vld [vmem:[#allocation2 + $0x214] sm:$0xff]
      %v4122 = vld [vmem:[#allocation2 + $0x21c] sm:$0xff]
      %v4123 = vld [vmem:[#allocation2 + $0x224] sm:$0xff]
      %v4124 = vld [vmem:[#allocation2 + $0x22c] sm:$0xff]
      %v4125 = vld [vmem:[#allocation2 + $0x234] sm:$0xff]
      %s4126 = scalar_lea.vmem %s3, 416
      %v4127 = vld [vmem:[%s4126] sm:$0xff]
      %v4128 = vld [vmem:[%s4126 + $0x8] sm:$0xff]
      %v4129 = vld [vmem:[%s4126 + $0x10] sm:$0xff]
      %v4130 = vld [vmem:[%s4126 + $0x18] sm:$0xff]
      %v4132 = vsel %vm1080, %v4110, 0
      %v4135 = vsel %vm1080, %v4111, 0
      %v4138 = vsel %vm1080, %v4112, 0
      %v4141 = vsel %vm1080, %v4113, 0
      %v4144 = vsel %vm1080, %v4114, 0
      %v4147 = vsel %vm1080, %v4115, 0
      %v4150 = vsel %vm1080, %v4116, 0
      %v4153 = vsel %vm1080, %v4117, 0
      %v4156 = vsel %vm1080, %v4118, 0
      %v4159 = vsel %vm1080, %v4119, 0
      %v4162 = vsel %vm1080, %v4120, 0
      %v4165 = vsel %vm1080, %v4121, 0
      %v4168 = vsel %vm1080, %v4122, 0
      %v4171 = vsel %vm1080, %v4123, 0
      %v4174 = vsel %vm1080, %v4124, 0
      %v4177 = vsel %vm1080, %v4125, 0
      %4179 = vmatprep.subr.mxu0 0.0
      %4180 = vmatpush1.msra.mxu0 %v4127
      %4181 = vmatprep.subr.mxu0 0.0
      %4182 = vmatpush1.msra.mxu0 %v4128
      %4183 = vmatprep.subr.mxu0 0.0
      %4184 = vmatpush1.msra.mxu0 %v4129
      %4185 = vmatprep.subr.mxu0 0.0
      %4186 = vmatpush1.msra.mxu0 %v4130
      %4187 = vmatprep.subr.mxu0 0.0
      %4188 = vmatpush1.msra.mxu0 0.0
      %4189 = vmatprep.subr.mxu0 0.0
      %4190 = vmatpush1.msra.mxu0 0.0
      %4191 = vmatprep.subr.mxu0 0.0
      %4192 = vmatpush1.msra.mxu0 0.0
      %4193 = vmatprep.subr.mxu0 0.0
      %4194 = vmatpush1.msra.mxu0 0.0
      %4195 = vmatprep.subr.mxu0 0.0
      %4196 = vmatpush1.msra.mxu0 0.0
      %4197 = vmatprep.subr.mxu0 0.0
      %4198 = vmatpush1.msra.mxu0 0.0
      %4199 = vmatprep.subr.mxu0 0.0
      %4200 = vmatpush1.msra.mxu0 0.0
      %4201 = vmatprep.subr.mxu0 0.0
      %4202 = vmatpush1.msra.mxu0 0.0
      %4203 = vmatprep.subr.mxu0 0.0
      %4204 = vmatpush1.msra.mxu0 0.0
      %4205 = vmatprep.subr.mxu0 0.0
      %4206 = vmatpush1.msra.mxu0 0.0
      %4207 = vmatprep.subr.mxu0 0.0
      %4208 = vmatpush1.msra.mxu0 0.0
      %4209 = vmatprep.subr.mxu0 0.0
      %4210 = vmatpush1.msra.mxu0 0.0
      %4211 = vmatprep.subr.mxu0 0.0
      %4212 = vmatpush1.msra.mxu0 0.0
      %4213 = vmatprep.subr.mxu0 0.0
      %4214 = vmatpush1.msra.mxu0 0.0
      %4215 = vmatprep.subr.mxu0 0.0
      %4216 = vmatpush1.msra.mxu0 0.0
      %4217 = vmatprep.subr.mxu0 0.0
      %4218 = vmatpush1.msra.mxu0 0.0
      %4219 = vmatprep.subr.mxu0 0.0
      %4220 = vmatpush1.msra.mxu0 0.0
      %4221 = vmatprep.subr.mxu0 0.0
      %4222 = vmatpush1.msra.mxu0 0.0
      %4223 = vmatprep.subr.mxu0 0.0
      %4224 = vmatpush1.msra.mxu0 0.0
      %4225 = vmatprep.subr.mxu0 0.0
      %4226 = vmatpush1.msra.mxu0 0.0
      %4227 = vmatprep.subr.mxu0 0.0
      %4228 = vmatpush1.msra.mxu0 0.0
      %4229 = vmatprep.subr.mxu0 0.0
      %4230 = vmatpush1.msra.mxu0 0.0
      %4231 = vmatprep.subr.mxu0 0.0
      %4232 = vmatpush1.msra.mxu0 0.0
      %4233 = vmatprep.subr.mxu0 0.0
      %4234 = vmatpush1.msra.mxu0 0.0
      %4235 = vmatprep.subr.mxu0 0.0
      %4236 = vmatpush1.msra.mxu0 0.0
      %4237 = vmatprep.subr.mxu0 0.0
      %4238 = vmatpush1.msra.mxu0 0.0
      %4239 = vmatprep.subr.mxu0 0.0
      %4240 = vmatpush1.msra.mxu0 0.0
      %4241 = vmatprep.subr.mxu0 0.0
      %4242 = vmatpush1.msra.mxu0 0.0
      %4243 = vmatprep.mubr.f32.mxu0 0.0
      %4244 = vmatmul.mubr.f32.gmra.mrb[0].mxu0 %v4132
      %v4245 = vpop.f32.mrb[0].mxu0
      %v4246 = vadd.f32 0.0, %v4245
      %v4247 = vpop.f32.mrb[0].mxu0
      %4248 = vmatprep.mubr.f32.mxu0 0.0
      %4249 = vmatmul.mubr.f32.gmra.mrb[0].mxu0 %v4135
      %v4250 = vpop.f32.mrb[0].mxu0
      %v4251 = vadd.f32 0.0, %v4250
      %v4252 = vpop.f32.mrb[0].mxu0
      %4253 = vmatprep.mubr.f32.mxu0 0.0
      %4254 = vmatmul.mubr.f32.gmra.mrb[0].mxu0 %v4138
      %v4255 = vpop.f32.mrb[0].mxu0
      %v4256 = vadd.f32 0.0, %v4255
      %v4257 = vpop.f32.mrb[0].mxu0
      %4258 = vmatprep.mubr.f32.mxu0 0.0
      %4259 = vmatmul.mubr.f32.gmra.mrb[0].mxu0 %v4141
      %v4260 = vpop.f32.mrb[0].mxu0
      %v4261 = vadd.f32 0.0, %v4260
      %v4262 = vpop.f32.mrb[0].mxu0
      %4263 = vmatprep.mubr.f32.mxu0 0.0
      %4264 = vmatmul.mubr.f32.gmra.mrb[0].mxu0 %v4144
      %v4265 = vpop.f32.mrb[0].mxu0
      %v4266 = vadd.f32 0.0, %v4265
      %v4267 = vpop.f32.mrb[0].mxu0
      %4268 = vmatprep.mubr.f32.mxu0 0.0
      %4269 = vmatmul.mubr.f32.gmra.mrb[0].mxu0 %v4147
      %v4270 = vpop.f32.mrb[0].mxu0
      %v4271 = vadd.f32 0.0, %v4270
      %v4272 = vpop.f32.mrb[0].mxu0
      %4273 = vmatprep.mubr.f32.mxu0 0.0
      %4274 = vmatmul.mubr.f32.gmra.mrb[0].mxu0 %v4150
      %v4275 = vpop.f32.mrb[0].mxu0
      %v4276 = vadd.f32 0.0, %v4275
      %v4277 = vpop.f32.mrb[0].mxu0
      %4278 = vmatprep.mubr.f32.mxu0 0.0
      %4279 = vmatmul.mubr.f32.gmra.mrb[0].mxu0 %v4153
      %v4280 = vpop.f32.mrb[0].mxu0
      %v4281 = vadd.f32 0.0, %v4280
      %v4282 = vpop.f32.mrb[0].mxu0
      %4283 = vmatprep.mubr.f32.mxu0 0.0
      %4284 = vmatmul.mubr.f32.gmra.mrb[0].mxu0 %v4156
      %v4285 = vpop.f32.mrb[0].mxu0
      %v4286 = vadd.f32 0.0, %v4285
      %v4287 = vpop.f32.mrb[0].mxu0
      %4288 = vmatprep.mubr.f32.mxu0 0.0
      %4289 = vmatmul.mubr.f32.gmra.mrb[0].mxu0 %v4159
      %v4290 = vpop.f32.mrb[0].mxu0
      %v4291 = vadd.f32 0.0, %v4290
      %v4292 = vpop.f32.mrb[0].mxu0
      %4293 = vmatprep.mubr.f32.mxu0 0.0
      %4294 = vmatmul.mubr.f32.gmra.mrb[0].mxu0 %v4162
      %v4295 = vpop.f32.mrb[0].mxu0
      %v4296 = vadd.f32 0.0, %v4295
      %v4297 = vpop.f32.mrb[0].mxu0
      %4298 = vmatprep.mubr.f32.mxu0 0.0
      %4299 = vmatmul.mubr.f32.gmra.mrb[0].mxu0 %v4165
      %v4300 = vpop.f32.mrb[0].mxu0
      %v4301 = vadd.f32 0.0, %v4300
      %v4302 = vpop.f32.mrb[0].mxu0
      %4303 = vmatprep.mubr.f32.mxu0 0.0
      %4304 = vmatmul.mubr.f32.gmra.mrb[0].mxu0 %v4168
      %v4305 = vpop.f32.mrb[0].mxu0
      %v4306 = vadd.f32 0.0, %v4305
      %v4307 = vpop.f32.mrb[0].mxu0
      %4308 = vmatprep.mubr.f32.mxu0 0.0
      %4309 = vmatmul.mubr.f32.gmra.mrb[0].mxu0 %v4171
      %v4310 = vpop.f32.mrb[0].mxu0
      %v4311 = vadd.f32 0.0, %v4310
      %v4312 = vpop.f32.mrb[0].mxu0
      %4313 = vmatprep.mubr.f32.mxu0 0.0
      %4314 = vmatmul.mubr.f32.gmra.mrb[0].mxu0 %v4174
      %v4315 = vpop.f32.mrb[0].mxu0
      %v4316 = vadd.f32 0.0, %v4315
      %v4317 = vpop.f32.mrb[0].mxu0
      %4318 = vmatprep.mubr.f32.mxu0 0.0
      %4319 = vmatmul.mubr.f32.gmra.mrb[0].mxu0 %v4177
      %v4320 = vpop.f32.mrb[0].mxu0
      %v4321 = vadd.f32 0.0, %v4320
      %v4322 = vpop.f32.mrb[0].mxu0
      %4323 = vdwg.mxu0
      %v4324 = vadd.f32 %v4094, %v4246
      %v4325 = vadd.f32 %v4095, %v4251
      %v4326 = vadd.f32 %v4096, %v4256
      %v4327 = vadd.f32 %v4097, %v4261
      %v4328 = vadd.f32 %v4098, %v4266
      %v4329 = vadd.f32 %v4099, %v4271
      %v4330 = vadd.f32 %v4100, %v4276
      %v4331 = vadd.f32 %v4101, %v4281
      %v4332 = vadd.f32 %v4102, %v4286
      %v4333 = vadd.f32 %v4103, %v4291
      %v4334 = vadd.f32 %v4104, %v4296
      %v4335 = vadd.f32 %v4105, %v4301
      %v4336 = vadd.f32 %v4106, %v4306
      %v4337 = vadd.f32 %v4107, %v4311
      %v4338 = vadd.f32 %v4108, %v4316
      %v4339 = vadd.f32 %v4109, %v4321
      %v4340 = vld [vmem:[#allocation2 + $0x12d] sm:$0xff]
      %v4341 = vld [vmem:[#allocation2 + $0x135] sm:$0xff]
      %v4342 = vld [vmem:[#allocation2 + $0x13d] sm:$0xff]
      %v4343 = vld [vmem:[#allocation2 + $0x145] sm:$0xff]
      %v4344 = vld [vmem:[#allocation2 + $0x14d] sm:$0xff]
      %v4345 = vld [vmem:[#allocation2 + $0x155] sm:$0xff]
      %v4346 = vld [vmem:[#allocation2 + $0x15d] sm:$0xff]
      %v4347 = vld [vmem:[#allocation2 + $0x165] sm:$0xff]
      %v4348 = vld [vmem:[#allocation2 + $0x16d] sm:$0xff]
      %v4349 = vld [vmem:[#allocation2 + $0x175] sm:$0xff]
      %v4350 = vld [vmem:[#allocation2 + $0x17d] sm:$0xff]
      %v4351 = vld [vmem:[#allocation2 + $0x185] sm:$0xff]
      %v4352 = vld [vmem:[#allocation2 + $0x18d] sm:$0xff]
      %v4353 = vld [vmem:[#allocation2 + $0x195] sm:$0xff]
      %v4354 = vld [vmem:[#allocation2 + $0x19d] sm:$0xff]
      %v4355 = vld [vmem:[#allocation2 + $0x1a5] sm:$0xff]
      %s4356 = scalar_lea.vmem %s3, 448
      %v4357 = vld [vmem:[%s4356] sm:$0xff]
      %v4358 = vld [vmem:[%s4356 + $0x8] sm:$0xff]
      %v4359 = vld [vmem:[%s4356 + $0x10] sm:$0xff]
      %v4360 = vld [vmem:[%s4356 + $0x18] sm:$0xff]
      %v4362 = vsel %vm1080, %v4340, 0
      %v4365 = vsel %vm1080, %v4341, 0
      %v4368 = vsel %vm1080, %v4342, 0
      %v4371 = vsel %vm1080, %v4343, 0
      %v4374 = vsel %vm1080, %v4344, 0
      %v4377 = vsel %vm1080, %v4345, 0
      %v4380 = vsel %vm1080, %v4346, 0
      %v4383 = vsel %vm1080, %v4347, 0
      %v4386 = vsel %vm1080, %v4348, 0
      %v4389 = vsel %vm1080, %v4349, 0
      %v4392 = vsel %vm1080, %v4350, 0
      %v4395 = vsel %vm1080, %v4351, 0
      %v4398 = vsel %vm1080, %v4352, 0
      %v4401 = vsel %vm1080, %v4353, 0
      %v4404 = vsel %vm1080, %v4354, 0
      %v4407 = vsel %vm1080, %v4355, 0
      %4409 = vmatprep.subr.mxu0 0.0
      %4410 = vmatpush1.msra.mxu0 %v4357
      %4411 = vmatprep.subr.mxu0 0.0
      %4412 = vmatpush1.msra.mxu0 %v4358
      %4413 = vmatprep.subr.mxu0 0.0
      %4414 = vmatpush1.msra.mxu0 %v4359
      %4415 = vmatprep.subr.mxu0 0.0
      %4416 = vmatpush1.msra.mxu0 %v4360
      %4417 = vmatprep.subr.mxu0 0.0
      %4418 = vmatpush1.msra.mxu0 0.0
      %4419 = vmatprep.subr.mxu0 0.0
      %4420 = vmatpush1.msra.mxu0 0.0
      %4421 = vmatprep.subr.mxu0 0.0
      %4422 = vmatpush1.msra.mxu0 0.0
      %4423 = vmatprep.subr.mxu0 0.0
      %4424 = vmatpush1.msra.mxu0 0.0
      %4425 = vmatprep.subr.mxu0 0.0
      %4426 = vmatpush1.msra.mxu0 0.0
      %4427 = vmatprep.subr.mxu0 0.0
      %4428 = vmatpush1.msra.mxu0 0.0
      %4429 = vmatprep.subr.mxu0 0.0
      %4430 = vmatpush1.msra.mxu0 0.0
      %4431 = vmatprep.subr.mxu0 0.0
      %4432 = vmatpush1.msra.mxu0 0.0
      %4433 = vmatprep.subr.mxu0 0.0
      %4434 = vmatpush1.msra.mxu0 0.0
      %4435 = vmatprep.subr.mxu0 0.0
      %4436 = vmatpush1.msra.mxu0 0.0
      %4437 = vmatprep.subr.mxu0 0.0
      %4438 = vmatpush1.msra.mxu0 0.0
      %4439 = vmatprep.subr.mxu0 0.0
      %4440 = vmatpush1.msra.mxu0 0.0
      %4441 = vmatprep.subr.mxu0 0.0
      %4442 = vmatpush1.msra.mxu0 0.0
      %4443 = vmatprep.subr.mxu0 0.0
      %4444 = vmatpush1.msra.mxu0 0.0
      %4445 = vmatprep.subr.mxu0 0.0
      %4446 = vmatpush1.msra.mxu0 0.0
      %4447 = vmatprep.subr.mxu0 0.0
      %4448 = vmatpush1.msra.mxu0 0.0
      %4449 = vmatprep.subr.mxu0 0.0
      %4450 = vmatpush1.msra.mxu0 0.0
      %4451 = vmatprep.subr.mxu0 0.0
      %4452 = vmatpush1.msra.mxu0 0.0
      %4453 = vmatprep.subr.mxu0 0.0
      %4454 = vmatpush1.msra.mxu0 0.0
      %4455 = vmatprep.subr.mxu0 0.0
      %4456 = vmatpush1.msra.mxu0 0.0
      %4457 = vmatprep.subr.mxu0 0.0
      %4458 = vmatpush1.msra.mxu0 0.0
      %4459 = vmatprep.subr.mxu0 0.0
      %4460 = vmatpush1.msra.mxu0 0.0
      %4461 = vmatprep.subr.mxu0 0.0
      %4462 = vmatpush1.msra.mxu0 0.0
      %4463 = vmatprep.subr.mxu0 0.0
      %4464 = vmatpush1.msra.mxu0 0.0
      %4465 = vmatprep.subr.mxu0 0.0
      %4466 = vmatpush1.msra.mxu0 0.0
      %4467 = vmatprep.subr.mxu0 0.0
      %4468 = vmatpush1.msra.mxu0 0.0
      %4469 = vmatprep.subr.mxu0 0.0
      %4470 = vmatpush1.msra.mxu0 0.0
      %4471 = vmatprep.subr.mxu0 0.0
      %4472 = vmatpush1.msra.mxu0 0.0
      %4473 = vmatprep.mubr.f32.mxu0 0.0
      %4474 = vmatmul.mubr.f32.gmra.mrb[0].mxu0 %v4362
      %v4475 = vpop.f32.mrb[0].mxu0
      %v4476 = vadd.f32 0.0, %v4475
      %v4477 = vpop.f32.mrb[0].mxu0
      %4478 = vmatprep.mubr.f32.mxu0 0.0
      %4479 = vmatmul.mubr.f32.gmra.mrb[0].mxu0 %v4365
      %v4480 = vpop.f32.mrb[0].mxu0
      %v4481 = vadd.f32 0.0, %v4480
      %v4482 = vpop.f32.mrb[0].mxu0
      %4483 = vmatprep.mubr.f32.mxu0 0.0
      %4484 = vmatmul.mubr.f32.gmra.mrb[0].mxu0 %v4368
      %v4485 = vpop.f32.mrb[0].mxu0
      %v4486 = vadd.f32 0.0, %v4485
      %v4487 = vpop.f32.mrb[0].mxu0
      %4488 = vmatprep.mubr.f32.mxu0 0.0
      %4489 = vmatmul.mubr.f32.gmra.mrb[0].mxu0 %v4371
      %v4490 = vpop.f32.mrb[0].mxu0
      %v4491 = vadd.f32 0.0, %v4490
      %v4492 = vpop.f32.mrb[0].mxu0
      %4493 = vmatprep.mubr.f32.mxu0 0.0
      %4494 = vmatmul.mubr.f32.gmra.mrb[0].mxu0 %v4374
      %v4495 = vpop.f32.mrb[0].mxu0
      %v4496 = vadd.f32 0.0, %v4495
      %v4497 = vpop.f32.mrb[0].mxu0
      %4498 = vmatprep.mubr.f32.mxu0 0.0
      %4499 = vmatmul.mubr.f32.gmra.mrb[0].mxu0 %v4377
      %v4500 = vpop.f32.mrb[0].mxu0
      %v4501 = vadd.f32 0.0, %v4500
      %v4502 = vpop.f32.mrb[0].mxu0
      %4503 = vmatprep.mubr.f32.mxu0 0.0
      %4504 = vmatmul.mubr.f32.gmra.mrb[0].mxu0 %v4380
      %v4505 = vpop.f32.mrb[0].mxu0
      %v4506 = vadd.f32 0.0, %v4505
      %v4507 = vpop.f32.mrb[0].mxu0
      %4508 = vmatprep.mubr.f32.mxu0 0.0
      %4509 = vmatmul.mubr.f32.gmra.mrb[0].mxu0 %v4383
      %v4510 = vpop.f32.mrb[0].mxu0
      %v4511 = vadd.f32 0.0, %v4510
      %v4512 = vpop.f32.mrb[0].mxu0
      %4513 = vmatprep.mubr.f32.mxu0 0.0
      %4514 = vmatmul.mubr.f32.gmra.mrb[0].mxu0 %v4386
      %v4515 = vpop.f32.mrb[0].mxu0
      %v4516 = vadd.f32 0.0, %v4515
      %v4517 = vpop.f32.mrb[0].mxu0
      %4518 = vmatprep.mubr.f32.mxu0 0.0
      %4519 = vmatmul.mubr.f32.gmra.mrb[0].mxu0 %v4389
      %v4520 = vpop.f32.mrb[0].mxu0
      %v4521 = vadd.f32 0.0, %v4520
      %v4522 = vpop.f32.mrb[0].mxu0
      %4523 = vmatprep.mubr.f32.mxu0 0.0
      %4524 = vmatmul.mubr.f32.gmra.mrb[0].mxu0 %v4392
      %v4525 = vpop.f32.mrb[0].mxu0
      %v4526 = vadd.f32 0.0, %v4525
      %v4527 = vpop.f32.mrb[0].mxu0
      %4528 = vmatprep.mubr.f32.mxu0 0.0
      %4529 = vmatmul.mubr.f32.gmra.mrb[0].mxu0 %v4395
      %v4530 = vpop.f32.mrb[0].mxu0
      %v4531 = vadd.f32 0.0, %v4530
      %v4532 = vpop.f32.mrb[0].mxu0
      %4533 = vmatprep.mubr.f32.mxu0 0.0
      %4534 = vmatmul.mubr.f32.gmra.mrb[0].mxu0 %v4398
      %v4535 = vpop.f32.mrb[0].mxu0
      %v4536 = vadd.f32 0.0, %v4535
      %v4537 = vpop.f32.mrb[0].mxu0
      %4538 = vmatprep.mubr.f32.mxu0 0.0
      %4539 = vmatmul.mubr.f32.gmra.mrb[0].mxu0 %v4401
      %v4540 = vpop.f32.mrb[0].mxu0
      %v4541 = vadd.f32 0.0, %v4540
      %v4542 = vpop.f32.mrb[0].mxu0
      %4543 = vmatprep.mubr.f32.mxu0 0.0
      %4544 = vmatmul.mubr.f32.gmra.mrb[0].mxu0 %v4404
      %v4545 = vpop.f32.mrb[0].mxu0
      %v4546 = vadd.f32 0.0, %v4545
      %v4547 = vpop.f32.mrb[0].mxu0
      %4548 = vmatprep.mubr.f32.mxu0 0.0
      %4549 = vmatmul.mubr.f32.gmra.mrb[0].mxu0 %v4407
      %v4550 = vpop.f32.mrb[0].mxu0
      %v4551 = vadd.f32 0.0, %v4550
      %v4552 = vpop.f32.mrb[0].mxu0
      %4553 = vdwg.mxu0
      %v4554 = vadd.f32 %v4324, %v4476
      %v4555 = vadd.f32 %v4325, %v4481
      %v4556 = vadd.f32 %v4326, %v4486
      %v4557 = vadd.f32 %v4327, %v4491
      %v4558 = vadd.f32 %v4328, %v4496
      %v4559 = vadd.f32 %v4329, %v4501
      %v4560 = vadd.f32 %v4330, %v4506
      %v4561 = vadd.f32 %v4331, %v4511
      %v4562 = vadd.f32 %v4332, %v4516
      %v4563 = vadd.f32 %v4333, %v4521
      %v4564 = vadd.f32 %v4334, %v4526
      %v4565 = vadd.f32 %v4335, %v4531
      %v4566 = vadd.f32 %v4336, %v4536
      %v4567 = vadd.f32 %v4337, %v4541
      %v4568 = vadd.f32 %v4338, %v4546
      %v4569 = vadd.f32 %v4339, %v4551
      %v4570 = vld [vmem:[#allocation2 + $0x1bd] sm:$0xff]
      %v4571 = vld [vmem:[#allocation2 + $0x1c5] sm:$0xff]
      %v4572 = vld [vmem:[#allocation2 + $0x1cd] sm:$0xff]
      %v4573 = vld [vmem:[#allocation2 + $0x1d5] sm:$0xff]
      %v4574 = vld [vmem:[#allocation2 + $0x1dd] sm:$0xff]
      %v4575 = vld [vmem:[#allocation2 + $0x1e5] sm:$0xff]
      %v4576 = vld [vmem:[#allocation2 + $0x1ed] sm:$0xff]
      %v4577 = vld [vmem:[#allocation2 + $0x1f5] sm:$0xff]
      %v4578 = vld [vmem:[#allocation2 + $0x1fd] sm:$0xff]
      %v4579 = vld [vmem:[#allocation2 + $0x205] sm:$0xff]
      %v4580 = vld [vmem:[#allocation2 + $0x20d] sm:$0xff]
      %v4581 = vld [vmem:[#allocation2 + $0x215] sm:$0xff]
      %v4582 = vld [vmem:[#allocation2 + $0x21d] sm:$0xff]
      %v4583 = vld [vmem:[#allocation2 + $0x225] sm:$0xff]
      %v4584 = vld [vmem:[#allocation2 + $0x22d] sm:$0xff]
      %v4585 = vld [vmem:[#allocation2 + $0x235] sm:$0xff]
      %s4586 = scalar_lea.vmem %s3, 480
      %v4587 = vld [vmem:[%s4586] sm:$0xff]
      %v4588 = vld [vmem:[%s4586 + $0x8] sm:$0xff]
      %v4589 = vld [vmem:[%s4586 + $0x10] sm:$0xff]
      %v4590 = vld [vmem:[%s4586 + $0x18] sm:$0xff]
      %v4592 = vsel %vm1080, %v4570, 0
      %v4595 = vsel %vm1080, %v4571, 0
      %v4598 = vsel %vm1080, %v4572, 0
      %v4601 = vsel %vm1080, %v4573, 0
      %v4604 = vsel %vm1080, %v4574, 0
      %v4607 = vsel %vm1080, %v4575, 0
      %v4610 = vsel %vm1080, %v4576, 0
      %v4613 = vsel %vm1080, %v4577, 0
      %v4616 = vsel %vm1080, %v4578, 0
      %v4619 = vsel %vm1080, %v4579, 0
      %v4622 = vsel %vm1080, %v4580, 0
      %v4625 = vsel %vm1080, %v4581, 0
      %v4628 = vsel %vm1080, %v4582, 0
      %v4631 = vsel %vm1080, %v4583, 0
      %v4634 = vsel %vm1080, %v4584, 0
      %v4637 = vsel %vm1080, %v4585, 0
      %4639 = vmatprep.subr.mxu0 0.0
      %4640 = vmatpush1.msra.mxu0 %v4587
      %4641 = vmatprep.subr.mxu0 0.0
      %4642 = vmatpush1.msra.mxu0 %v4588
      %4643 = vmatprep.subr.mxu0 0.0
      %4644 = vmatpush1.msra.mxu0 %v4589
      %4645 = vmatprep.subr.mxu0 0.0
      %4646 = vmatpush1.msra.mxu0 %v4590
      %4647 = vmatprep.subr.mxu0 0.0
      %4648 = vmatpush1.msra.mxu0 0.0
      %4649 = vmatprep.subr.mxu0 0.0
      %4650 = vmatpush1.msra.mxu0 0.0
      %4651 = vmatprep.subr.mxu0 0.0
      %4652 = vmatpush1.msra.mxu0 0.0
      %4653 = vmatprep.subr.mxu0 0.0
      %4654 = vmatpush1.msra.mxu0 0.0
      %4655 = vmatprep.subr.mxu0 0.0
      %4656 = vmatpush1.msra.mxu0 0.0
      %4657 = vmatprep.subr.mxu0 0.0
      %4658 = vmatpush1.msra.mxu0 0.0
      %4659 = vmatprep.subr.mxu0 0.0
      %4660 = vmatpush1.msra.mxu0 0.0
      %4661 = vmatprep.subr.mxu0 0.0
      %4662 = vmatpush1.msra.mxu0 0.0
      %4663 = vmatprep.subr.mxu0 0.0
      %4664 = vmatpush1.msra.mxu0 0.0
      %4665 = vmatprep.subr.mxu0 0.0
      %4666 = vmatpush1.msra.mxu0 0.0
      %4667 = vmatprep.subr.mxu0 0.0
      %4668 = vmatpush1.msra.mxu0 0.0
      %4669 = vmatprep.subr.mxu0 0.0
      %4670 = vmatpush1.msra.mxu0 0.0
      %4671 = vmatprep.subr.mxu0 0.0
      %4672 = vmatpush1.msra.mxu0 0.0
      %4673 = vmatprep.subr.mxu0 0.0
      %4674 = vmatpush1.msra.mxu0 0.0
      %4675 = vmatprep.subr.mxu0 0.0
      %4676 = vmatpush1.msra.mxu0 0.0
      %4677 = vmatprep.subr.mxu0 0.0
      %4678 = vmatpush1.msra.mxu0 0.0
      %4679 = vmatprep.subr.mxu0 0.0
      %4680 = vmatpush1.msra.mxu0 0.0
      %4681 = vmatprep.subr.mxu0 0.0
      %4682 = vmatpush1.msra.mxu0 0.0
      %4683 = vmatprep.subr.mxu0 0.0
      %4684 = vmatpush1.msra.mxu0 0.0
      %4685 = vmatprep.subr.mxu0 0.0
      %4686 = vmatpush1.msra.mxu0 0.0
      %4687 = vmatprep.subr.mxu0 0.0
      %4688 = vmatpush1.msra.mxu0 0.0
      %4689 = vmatprep.subr.mxu0 0.0
      %4690 = vmatpush1.msra.mxu0 0.0
      %4691 = vmatprep.subr.mxu0 0.0
      %4692 = vmatpush1.msra.mxu0 0.0
      %4693 = vmatprep.subr.mxu0 0.0
      %4694 = vmatpush1.msra.mxu0 0.0
      %4695 = vmatprep.subr.mxu0 0.0
      %4696 = vmatpush1.msra.mxu0 0.0
      %4697 = vmatprep.subr.mxu0 0.0
      %4698 = vmatpush1.msra.mxu0 0.0
      %4699 = vmatprep.subr.mxu0 0.0
      %4700 = vmatpush1.msra.mxu0 0.0
      %4701 = vmatprep.subr.mxu0 0.0
      %4702 = vmatpush1.msra.mxu0 0.0
      %4703 = vmatprep.mubr.f32.mxu0 0.0
      %4704 = vmatmul.mubr.f32.gmra.mrb[0].mxu0 %v4592
      %v4705 = vpop.f32.mrb[0].mxu0
      %v4706 = vadd.f32 0.0, %v4705
      %v4707 = vpop.f32.mrb[0].mxu0
      %4708 = vmatprep.mubr.f32.mxu0 0.0
      %4709 = vmatmul.mubr.f32.gmra.mrb[0].mxu0 %v4595
      %v4710 = vpop.f32.mrb[0].mxu0
      %v4711 = vadd.f32 0.0, %v4710
      %v4712 = vpop.f32.mrb[0].mxu0
      %4713 = vmatprep.mubr.f32.mxu0 0.0
      %4714 = vmatmul.mubr.f32.gmra.mrb[0].mxu0 %v4598
      %v4715 = vpop.f32.mrb[0].mxu0
      %v4716 = vadd.f32 0.0, %v4715
      %v4717 = vpop.f32.mrb[0].mxu0
      %4718 = vmatprep.mubr.f32.mxu0 0.0
      %4719 = vmatmul.mubr.f32.gmra.mrb[0].mxu0 %v4601
      %v4720 = vpop.f32.mrb[0].mxu0
      %v4721 = vadd.f32 0.0, %v4720
      %v4722 = vpop.f32.mrb[0].mxu0
      %4723 = vmatprep.mubr.f32.mxu0 0.0
      %4724 = vmatmul.mubr.f32.gmra.mrb[0].mxu0 %v4604
      %v4725 = vpop.f32.mrb[0].mxu0
      %v4726 = vadd.f32 0.0, %v4725
      %v4727 = vpop.f32.mrb[0].mxu0
      %4728 = vmatprep.mubr.f32.mxu0 0.0
      %4729 = vmatmul.mubr.f32.gmra.mrb[0].mxu0 %v4607
      %v4730 = vpop.f32.mrb[0].mxu0
      %v4731 = vadd.f32 0.0, %v4730
      %v4732 = vpop.f32.mrb[0].mxu0
      %4733 = vmatprep.mubr.f32.mxu0 0.0
      %4734 = vmatmul.mubr.f32.gmra.mrb[0].mxu0 %v4610
      %v4735 = vpop.f32.mrb[0].mxu0
      %v4736 = vadd.f32 0.0, %v4735
      %v4737 = vpop.f32.mrb[0].mxu0
      %4738 = vmatprep.mubr.f32.mxu0 0.0
      %4739 = vmatmul.mubr.f32.gmra.mrb[0].mxu0 %v4613
      %v4740 = vpop.f32.mrb[0].mxu0
      %v4741 = vadd.f32 0.0, %v4740
      %v4742 = vpop.f32.mrb[0].mxu0
      %4743 = vmatprep.mubr.f32.mxu0 0.0
      %4744 = vmatmul.mubr.f32.gmra.mrb[0].mxu0 %v4616
      %v4745 = vpop.f32.mrb[0].mxu0
      %v4746 = vadd.f32 0.0, %v4745
      %v4747 = vpop.f32.mrb[0].mxu0
      %4748 = vmatprep.mubr.f32.mxu0 0.0
      %4749 = vmatmul.mubr.f32.gmra.mrb[0].mxu0 %v4619
      %v4750 = vpop.f32.mrb[0].mxu0
      %v4751 = vadd.f32 0.0, %v4750
      %v4752 = vpop.f32.mrb[0].mxu0
      %4753 = vmatprep.mubr.f32.mxu0 0.0
      %4754 = vmatmul.mubr.f32.gmra.mrb[0].mxu0 %v4622
      %v4755 = vpop.f32.mrb[0].mxu0
      %v4756 = vadd.f32 0.0, %v4755
      %v4757 = vpop.f32.mrb[0].mxu0
      %4758 = vmatprep.mubr.f32.mxu0 0.0
      %4759 = vmatmul.mubr.f32.gmra.mrb[0].mxu0 %v4625
      %v4760 = vpop.f32.mrb[0].mxu0
      %v4761 = vadd.f32 0.0, %v4760
      %v4762 = vpop.f32.mrb[0].mxu0
      %4763 = vmatprep.mubr.f32.mxu0 0.0
      %4764 = vmatmul.mubr.f32.gmra.mrb[0].mxu0 %v4628
      %v4765 = vpop.f32.mrb[0].mxu0
      %v4766 = vadd.f32 0.0, %v4765
      %v4767 = vpop.f32.mrb[0].mxu0
      %4768 = vmatprep.mubr.f32.mxu0 0.0
      %4769 = vmatmul.mubr.f32.gmra.mrb[0].mxu0 %v4631
      %v4770 = vpop.f32.mrb[0].mxu0
      %v4771 = vadd.f32 0.0, %v4770
      %v4772 = vpop.f32.mrb[0].mxu0
      %4773 = vmatprep.mubr.f32.mxu0 0.0
      %4774 = vmatmul.mubr.f32.gmra.mrb[0].mxu0 %v4634
      %v4775 = vpop.f32.mrb[0].mxu0
      %v4776 = vadd.f32 0.0, %v4775
      %v4777 = vpop.f32.mrb[0].mxu0
      %4778 = vmatprep.mubr.f32.mxu0 0.0
      %4779 = vmatmul.mubr.f32.gmra.mrb[0].mxu0 %v4637
      %v4780 = vpop.f32.mrb[0].mxu0
      %v4781 = vadd.f32 0.0, %v4780
      %v4782 = vpop.f32.mrb[0].mxu0
      %4783 = vdwg.mxu0
      %v4784 = vadd.f32 %v4554, %v4706
      %v4785 = vadd.f32 %v4555, %v4711
      %v4786 = vadd.f32 %v4556, %v4716
      %v4787 = vadd.f32 %v4557, %v4721
      %v4788 = vadd.f32 %v4558, %v4726
      %v4789 = vadd.f32 %v4559, %v4731
      %v4790 = vadd.f32 %v4560, %v4736
      %v4791 = vadd.f32 %v4561, %v4741
      %v4792 = vadd.f32 %v4562, %v4746
      %v4793 = vadd.f32 %v4563, %v4751
      %v4794 = vadd.f32 %v4564, %v4756
      %v4795 = vadd.f32 %v4565, %v4761
      %v4796 = vadd.f32 %v4566, %v4766
      %v4797 = vadd.f32 %v4567, %v4771
      %v4798 = vadd.f32 %v4568, %v4776
      %v4799 = vadd.f32 %v4569, %v4781
      %v4800 = vld [vmem:[%s4] sm:$0x1]
      %v4802 = vlaneseq
      %v4803 = vshrl.u32 %v4802, 7
      %v4804 = vsub.s32 0, %v4803
      %v4805 = vrot.slane %v4800, %v4804
      %v4807 = vadd.f32 %v4784, %v4805
      %v4808 = vadd.f32 %v4785, %v4805
      %v4809 = vadd.f32 %v4786, %v4805
      %v4810 = vadd.f32 %v4787, %v4805
      %v4811 = vadd.f32 %v4788, %v4805
      %v4812 = vadd.f32 %v4789, %v4805
      %v4813 = vadd.f32 %v4790, %v4805
      %v4814 = vadd.f32 %v4791, %v4805
      %v4815 = vadd.f32 %v4792, %v4805
      %v4816 = vadd.f32 %v4793, %v4805
      %v4817 = vadd.f32 %v4794, %v4805
      %v4818 = vadd.f32 %v4795, %v4805
      %v4819 = vadd.f32 %v4796, %v4805
      %v4820 = vadd.f32 %v4797, %v4805
      %v4821 = vadd.f32 %v4798, %v4805
      %v4822 = vadd.f32 %v4799, %v4805
      %v4823 = vmax.f32 %v4807, 0.0
      %v4824 = vmax.f32 %v4808, 0.0
      %v4825 = vmax.f32 %v4809, 0.0
      %v4826 = vmax.f32 %v4810, 0.0
      %v4827 = vmax.f32 %v4811, 0.0
      %v4828 = vmax.f32 %v4812, 0.0
      %v4829 = vmax.f32 %v4813, 0.0
      %v4830 = vmax.f32 %v4814, 0.0
      %v4831 = vmax.f32 %v4815, 0.0
      %v4832 = vmax.f32 %v4816, 0.0
      %v4833 = vmax.f32 %v4817, 0.0
      %v4834 = vmax.f32 %v4818, 0.0
      %v4835 = vmax.f32 %v4819, 0.0
      %v4836 = vmax.f32 %v4820, 0.0
      %v4837 = vmax.f32 %v4821, 0.0
      %v4838 = vmax.f32 %v4822, 0.0
      %4839 = vst.msk [vmem:[#allocation3] sm:$0xff] %vm366, %v4823
      %4840 = vst.msk [vmem:[#allocation3 + $0x8] sm:$0xff] %vm366, %v4824
      %4841 = vst.msk [vmem:[#allocation3 + $0x10] sm:$0xff] %vm366, %v4825
      %4842 = vst.msk [vmem:[#allocation3 + $0x18] sm:$0xff] %vm366, %v4826
      %4843 = vst.msk [vmem:[#allocation3 + $0x20] sm:$0xff] %vm366, %v4827
      %4844 = vst.msk [vmem:[#allocation3 + $0x28] sm:$0xff] %vm366, %v4828
      %4845 = vst.msk [vmem:[#allocation3 + $0x30] sm:$0xff] %vm366, %v4829
      %4846 = vst.msk [vmem:[#allocation3 + $0x38] sm:$0xff] %vm366, %v4830
      %4847 = vst.msk [vmem:[#allocation3 + $0x40] sm:$0xff] %vm366, %v4831
      %4848 = vst.msk [vmem:[#allocation3 + $0x48] sm:$0xff] %vm366, %v4832
      %4849 = vst.msk [vmem:[#allocation3 + $0x50] sm:$0xff] %vm366, %v4833
      %4850 = vst.msk [vmem:[#allocation3 + $0x58] sm:$0xff] %vm366, %v4834
      %4851 = vst.msk [vmem:[#allocation3 + $0x60] sm:$0xff] %vm366, %v4835
      %4852 = vst.msk [vmem:[#allocation3 + $0x68] sm:$0xff] %vm366, %v4836
      %4853 = vst.msk [vmem:[#allocation3 + $0x70] sm:$0xff] %vm366, %v4837
      %4854 = vst.msk [vmem:[#allocation3 + $0x78] sm:$0xff] %vm366, %v4838
      %v4855 = vld [vmem:[#allocation3] sm:$0xff]
      %v4856 = vld [vmem:[#allocation3 + $0x8] sm:$0xff]
      %v4857 = vld [vmem:[#allocation3 + $0x10] sm:$0xff]
      %v4858 = vld [vmem:[#allocation3 + $0x18] sm:$0xff]
      %v4859 = vld [vmem:[#allocation3 + $0x20] sm:$0xff]
      %v4860 = vld [vmem:[#allocation3 + $0x28] sm:$0xff]
      %v4861 = vld [vmem:[#allocation3 + $0x30] sm:$0xff]
      %v4862 = vld [vmem:[#allocation3 + $0x38] sm:$0xff]
      %v4863 = vld [vmem:[#allocation3 + $0x40] sm:$0xff]
      %v4864 = vld [vmem:[#allocation3 + $0x48] sm:$0xff]
      %v4865 = vld [vmem:[#allocation3 + $0x50] sm:$0xff]
      %v4866 = vld [vmem:[#allocation3 + $0x58] sm:$0xff]
      %v4867 = vld [vmem:[%s5] sm:$0xff]
      %v4868 = vld [vmem:[%s5 + $0x8] sm:$0xff]
      %v4869 = vld [vmem:[%s5 + $0x10] sm:$0xff]
      %v4870 = vld [vmem:[%s5 + $0x18] sm:$0xff]
      %v4871 = vld [vmem:[%s5 + $0x20] sm:$0xff]
      %v4872 = vld [vmem:[%s5 + $0x28] sm:$0xff]
      %v4873 = vld [vmem:[%s5 + $0x30] sm:$0xff]
      %v4874 = vld [vmem:[%s5 + $0x38] sm:$0xff]
      %v4875 = vld [vmem:[#allocation3 + $0x1] sm:$0xff]
      %v4876 = vld [vmem:[#allocation3 + $0x9] sm:$0xff]
      %v4877 = vld [vmem:[#allocation3 + $0x11] sm:$0xff]
      %v4878 = vld [vmem:[#allocation3 + $0x19] sm:$0xff]
      %v4879 = vld [vmem:[#allocation3 + $0x21] sm:$0xff]
      %v4880 = vld [vmem:[#allocation3 + $0x29] sm:$0xff]
      %v4881 = vld [vmem:[#allocation3 + $0x31] sm:$0xff]
      %v4882 = vld [vmem:[#allocation3 + $0x39] sm:$0xff]
      %v4883 = vld [vmem:[#allocation3 + $0x41] sm:$0xff]
      %v4884 = vld [vmem:[#allocation3 + $0x49] sm:$0xff]
      %v4885 = vld [vmem:[#allocation3 + $0x51] sm:$0xff]
      %v4886 = vld [vmem:[#allocation3 + $0x59] sm:$0xff]
      %s4887 = scalar_lea.vmem %s5, 64
      %v4888 = vld [vmem:[%s4887] sm:$0xff]
      %v4889 = vld [vmem:[%s4887 + $0x8] sm:$0xff]
      %v4890 = vld [vmem:[%s4887 + $0x10] sm:$0xff]
      %v4891 = vld [vmem:[%s4887 + $0x18] sm:$0xff]
      %v4892 = vld [vmem:[%s4887 + $0x20] sm:$0xff]
      %v4893 = vld [vmem:[%s4887 + $0x28] sm:$0xff]
      %v4894 = vld [vmem:[%s4887 + $0x30] sm:$0xff]
      %v4895 = vld [vmem:[%s4887 + $0x38] sm:$0xff]
      %v4897 = vsel %vm366, %v4875, 0
      %v4900 = vsel %vm366, %v4876, 0
      %v4903 = vsel %vm366, %v4877, 0
      %v4906 = vsel %vm366, %v4878, 0
      %v4909 = vsel %vm366, %v4879, 0
      %v4912 = vsel %vm366, %v4880, 0
      %v4915 = vsel %vm366, %v4881, 0
      %v4918 = vsel %vm366, %v4882, 0
      %v4921 = vsel %vm366, %v4883, 0
      %v4924 = vsel %vm366, %v4884, 0
      %v4927 = vsel %vm366, %v4885, 0
      %v4930 = vsel %vm366, %v4886, 0
      %4932 = vmatprep.subr.mxu0 0.0
      %4933 = vmatpush1.msra.mxu0 %v4888
      %4934 = vmatprep.subr.mxu0 0.0
      %4935 = vmatpush1.msra.mxu0 %v4889
      %4936 = vmatprep.subr.mxu0 0.0
      %4937 = vmatpush1.msra.mxu0 %v4890
      %4938 = vmatprep.subr.mxu0 0.0
      %4939 = vmatpush1.msra.mxu0 %v4891
      %4940 = vmatprep.subr.mxu0 0.0
      %4941 = vmatpush1.msra.mxu0 %v4892
      %4942 = vmatprep.subr.mxu0 0.0
      %4943 = vmatpush1.msra.mxu0 %v4893
      %4944 = vmatprep.subr.mxu0 0.0
      %4945 = vmatpush1.msra.mxu0 %v4894
      %4946 = vmatprep.subr.mxu0 0.0
      %4947 = vmatpush1.msra.mxu0 %v4895
      %4948 = vmatprep.subr.mxu0 0.0
      %4949 = vmatpush1.msra.mxu0 0.0
      %4950 = vmatprep.subr.mxu0 0.0
      %4951 = vmatpush1.msra.mxu0 0.0
      %4952 = vmatprep.subr.mxu0 0.0
      %4953 = vmatpush1.msra.mxu0 0.0
      %4954 = vmatprep.subr.mxu0 0.0
      %4955 = vmatpush1.msra.mxu0 0.0
      %4956 = vmatprep.subr.mxu0 0.0
      %4957 = vmatpush1.msra.mxu0 0.0
      %4958 = vmatprep.subr.mxu0 0.0
      %4959 = vmatpush1.msra.mxu0 0.0
      %4960 = vmatprep.subr.mxu0 0.0
      %4961 = vmatpush1.msra.mxu0 0.0
      %4962 = vmatprep.subr.mxu0 0.0
      %4963 = vmatpush1.msra.mxu0 0.0
      %4964 = vmatprep.subr.mxu0 0.0
      %4965 = vmatpush1.msra.mxu0 0.0
      %4966 = vmatprep.subr.mxu0 0.0
      %4967 = vmatpush1.msra.mxu0 0.0
      %4968 = vmatprep.subr.mxu0 0.0
      %4969 = vmatpush1.msra.mxu0 0.0
      %4970 = vmatprep.subr.mxu0 0.0
      %4971 = vmatpush1.msra.mxu0 0.0
      %4972 = vmatprep.subr.mxu0 0.0
      %4973 = vmatpush1.msra.mxu0 0.0
      %4974 = vmatprep.subr.mxu0 0.0
      %4975 = vmatpush1.msra.mxu0 0.0
      %4976 = vmatprep.subr.mxu0 0.0
      %4977 = vmatpush1.msra.mxu0 0.0
      %4978 = vmatprep.subr.mxu0 0.0
      %4979 = vmatpush1.msra.mxu0 0.0
      %4980 = vmatprep.subr.mxu0 0.0
      %4981 = vmatpush1.msra.mxu0 0.0
      %4982 = vmatprep.subr.mxu0 0.0
      %4983 = vmatpush1.msra.mxu0 0.0
      %4984 = vmatprep.subr.mxu0 0.0
      %4985 = vmatpush1.msra.mxu0 0.0
      %4986 = vmatprep.subr.mxu0 0.0
      %4987 = vmatpush1.msra.mxu0 0.0
      %4988 = vmatprep.subr.mxu0 0.0
      %4989 = vmatpush1.msra.mxu0 0.0
      %4990 = vmatprep.subr.mxu0 0.0
      %4991 = vmatpush1.msra.mxu0 0.0
      %4992 = vmatprep.subr.mxu0 0.0
      %4993 = vmatpush1.msra.mxu0 0.0
      %4994 = vmatprep.subr.mxu0 0.0
      %4995 = vmatpush1.msra.mxu0 0.0
      %4996 = vmatprep.mubr.f32.mxu0 0.0
      %4997 = vmatmul.mubr.f32.gmra.mrb[0].mxu0 %v4897
      %v4998 = vpop.f32.mrb[0].mxu0
      %v4999 = vadd.f32 0.0, %v4998
      %v5000 = vpop.f32.mrb[0].mxu0
      %5001 = vmatprep.mubr.f32.mxu0 0.0
      %5002 = vmatmul.mubr.f32.gmra.mrb[0].mxu0 %v4900
      %v5003 = vpop.f32.mrb[0].mxu0
      %v5004 = vadd.f32 0.0, %v5003
      %v5005 = vpop.f32.mrb[0].mxu0
      %5006 = vmatprep.mubr.f32.mxu0 0.0
      %5007 = vmatmul.mubr.f32.gmra.mrb[0].mxu0 %v4903
      %v5008 = vpop.f32.mrb[0].mxu0
      %v5009 = vadd.f32 0.0, %v5008
      %v5010 = vpop.f32.mrb[0].mxu0
      %5011 = vmatprep.mubr.f32.mxu0 0.0
      %5012 = vmatmul.mubr.f32.gmra.mrb[0].mxu0 %v4906
      %v5013 = vpop.f32.mrb[0].mxu0
      %v5014 = vadd.f32 0.0, %v5013
      %v5015 = vpop.f32.mrb[0].mxu0
      %5016 = vmatprep.mubr.f32.mxu0 0.0
      %5017 = vmatmul.mubr.f32.gmra.mrb[0].mxu0 %v4909
      %v5018 = vpop.f32.mrb[0].mxu0
      %v5019 = vadd.f32 0.0, %v5018
      %v5020 = vpop.f32.mrb[0].mxu0
      %5021 = vmatprep.mubr.f32.mxu0 0.0
      %5022 = vmatmul.mubr.f32.gmra.mrb[0].mxu0 %v4912
      %v5023 = vpop.f32.mrb[0].mxu0
      %v5024 = vadd.f32 0.0, %v5023
      %v5025 = vpop.f32.mrb[0].mxu0
      %5026 = vmatprep.mubr.f32.mxu0 0.0
      %5027 = vmatmul.mubr.f32.gmra.mrb[0].mxu0 %v4915
      %v5028 = vpop.f32.mrb[0].mxu0
      %v5029 = vadd.f32 0.0, %v5028
      %v5030 = vpop.f32.mrb[0].mxu0
      %5031 = vmatprep.mubr.f32.mxu0 0.0
      %5032 = vmatmul.mubr.f32.gmra.mrb[0].mxu0 %v4918
      %v5033 = vpop.f32.mrb[0].mxu0
      %v5034 = vadd.f32 0.0, %v5033
      %v5035 = vpop.f32.mrb[0].mxu0
      %5036 = vmatprep.mubr.f32.mxu0 0.0
      %5037 = vmatmul.mubr.f32.gmra.mrb[0].mxu0 %v4921
      %v5038 = vpop.f32.mrb[0].mxu0
      %v5039 = vadd.f32 0.0, %v5038
      %v5040 = vpop.f32.mrb[0].mxu0
      %5041 = vmatprep.mubr.f32.mxu0 0.0
      %5042 = vmatmul.mubr.f32.gmra.mrb[0].mxu0 %v4924
      %v5043 = vpop.f32.mrb[0].mxu0
      %v5044 = vadd.f32 0.0, %v5043
      %v5045 = vpop.f32.mrb[0].mxu0
      %5046 = vmatprep.mubr.f32.mxu0 0.0
      %5047 = vmatmul.mubr.f32.gmra.mrb[0].mxu0 %v4927
      %v5048 = vpop.f32.mrb[0].mxu0
      %v5049 = vadd.f32 0.0, %v5048
      %v5050 = vpop.f32.mrb[0].mxu0
      %5051 = vmatprep.mubr.f32.mxu0 0.0
      %5052 = vmatmul.mubr.f32.gmra.mrb[0].mxu0 %v4930
      %v5053 = vpop.f32.mrb[0].mxu0
      %v5054 = vadd.f32 0.0, %v5053
      %v5055 = vpop.f32.mrb[0].mxu0
      %5056 = vdwg.mxu0
      %v5058 = vsel %vm366, %v4855, 0
      %v5061 = vsel %vm366, %v4856, 0
      %v5064 = vsel %vm366, %v4857, 0
      %v5067 = vsel %vm366, %v4858, 0
      %v5070 = vsel %vm366, %v4859, 0
      %v5073 = vsel %vm366, %v4860, 0
      %v5076 = vsel %vm366, %v4861, 0
      %v5079 = vsel %vm366, %v4862, 0
      %v5082 = vsel %vm366, %v4863, 0
      %v5085 = vsel %vm366, %v4864, 0
      %v5088 = vsel %vm366, %v4865, 0
      %v5091 = vsel %vm366, %v4866, 0
      %5093 = vmatprep.subr.mxu0 0.0
      %5094 = vmatpush1.msra.mxu0 %v4867
      %5095 = vmatprep.subr.mxu0 0.0
      %5096 = vmatpush1.msra.mxu0 %v4868
      %5097 = vmatprep.subr.mxu0 0.0
      %5098 = vmatpush1.msra.mxu0 %v4869
      %5099 = vmatprep.subr.mxu0 0.0
      %5100 = vmatpush1.msra.mxu0 %v4870
      %5101 = vmatprep.subr.mxu0 0.0
      %5102 = vmatpush1.msra.mxu0 %v4871
      %5103 = vmatprep.subr.mxu0 0.0
      %5104 = vmatpush1.msra.mxu0 %v4872
      %5105 = vmatprep.subr.mxu0 0.0
      %5106 = vmatpush1.msra.mxu0 %v4873
      %5107 = vmatprep.subr.mxu0 0.0
      %5108 = vmatpush1.msra.mxu0 %v4874
      %5109 = vmatprep.subr.mxu0 0.0
      %5110 = vmatpush1.msra.mxu0 0.0
      %5111 = vmatprep.subr.mxu0 0.0
      %5112 = vmatpush1.msra.mxu0 0.0
      %5113 = vmatprep.subr.mxu0 0.0
      %5114 = vmatpush1.msra.mxu0 0.0
      %5115 = vmatprep.subr.mxu0 0.0
      %5116 = vmatpush1.msra.mxu0 0.0
      %5117 = vmatprep.subr.mxu0 0.0
      %5118 = vmatpush1.msra.mxu0 0.0
      %5119 = vmatprep.subr.mxu0 0.0
      %5120 = vmatpush1.msra.mxu0 0.0
      %5121 = vmatprep.subr.mxu0 0.0
      %5122 = vmatpush1.msra.mxu0 0.0
      %5123 = vmatprep.subr.mxu0 0.0
      %5124 = vmatpush1.msra.mxu0 0.0
      %5125 = vmatprep.subr.mxu0 0.0
      %5126 = vmatpush1.msra.mxu0 0.0
      %5127 = vmatprep.subr.mxu0 0.0
      %5128 = vmatpush1.msra.mxu0 0.0
      %5129 = vmatprep.subr.mxu0 0.0
      %5130 = vmatpush1.msra.mxu0 0.0
      %5131 = vmatprep.subr.mxu0 0.0
      %5132 = vmatpush1.msra.mxu0 0.0
      %5133 = vmatprep.subr.mxu0 0.0
      %5134 = vmatpush1.msra.mxu0 0.0
      %5135 = vmatprep.subr.mxu0 0.0
      %5136 = vmatpush1.msra.mxu0 0.0
      %5137 = vmatprep.subr.mxu0 0.0
      %5138 = vmatpush1.msra.mxu0 0.0
      %5139 = vmatprep.subr.mxu0 0.0
      %5140 = vmatpush1.msra.mxu0 0.0
      %5141 = vmatprep.subr.mxu0 0.0
      %5142 = vmatpush1.msra.mxu0 0.0
      %5143 = vmatprep.subr.mxu0 0.0
      %5144 = vmatpush1.msra.mxu0 0.0
      %5145 = vmatprep.subr.mxu0 0.0
      %5146 = vmatpush1.msra.mxu0 0.0
      %5147 = vmatprep.subr.mxu0 0.0
      %5148 = vmatpush1.msra.mxu0 0.0
      %5149 = vmatprep.subr.mxu0 0.0
      %5150 = vmatpush1.msra.mxu0 0.0
      %5151 = vmatprep.subr.mxu0 0.0
      %5152 = vmatpush1.msra.mxu0 0.0
      %5153 = vmatprep.subr.mxu0 0.0
      %5154 = vmatpush1.msra.mxu0 0.0
      %5155 = vmatprep.subr.mxu0 0.0
      %5156 = vmatpush1.msra.mxu0 0.0
      %5157 = vmatprep.mubr.f32.mxu0 0.0
      %5158 = vmatmul.mubr.f32.gmra.mrb[0].mxu0 %v5058
      %v5159 = vpop.f32.mrb[0].mxu0
      %v5160 = vadd.f32 %v4999, %v5159
      %v5161 = vpop.f32.mrb[0].mxu0
      %5162 = vmatprep.mubr.f32.mxu0 0.0
      %5163 = vmatmul.mubr.f32.gmra.mrb[0].mxu0 %v5061
      %v5164 = vpop.f32.mrb[0].mxu0
      %v5165 = vadd.f32 %v5004, %v5164
      %v5166 = vpop.f32.mrb[0].mxu0
      %5167 = vmatprep.mubr.f32.mxu0 0.0
      %5168 = vmatmul.mubr.f32.gmra.mrb[0].mxu0 %v5064
      %v5169 = vpop.f32.mrb[0].mxu0
      %v5170 = vadd.f32 %v5009, %v5169
      %v5171 = vpop.f32.mrb[0].mxu0
      %5172 = vmatprep.mubr.f32.mxu0 0.0
      %5173 = vmatmul.mubr.f32.gmra.mrb[0].mxu0 %v5067
      %v5174 = vpop.f32.mrb[0].mxu0
      %v5175 = vadd.f32 %v5014, %v5174
      %v5176 = vpop.f32.mrb[0].mxu0
      %5177 = vmatprep.mubr.f32.mxu0 0.0
      %5178 = vmatmul.mubr.f32.gmra.mrb[0].mxu0 %v5070
      %v5179 = vpop.f32.mrb[0].mxu0
      %v5180 = vadd.f32 %v5019, %v5179
      %v5181 = vpop.f32.mrb[0].mxu0
      %5182 = vmatprep.mubr.f32.mxu0 0.0
      %5183 = vmatmul.mubr.f32.gmra.mrb[0].mxu0 %v5073
      %v5184 = vpop.f32.mrb[0].mxu0
      %v5185 = vadd.f32 %v5024, %v5184
      %v5186 = vpop.f32.mrb[0].mxu0
      %5187 = vmatprep.mubr.f32.mxu0 0.0
      %5188 = vmatmul.mubr.f32.gmra.mrb[0].mxu0 %v5076
      %v5189 = vpop.f32.mrb[0].mxu0
      %v5190 = vadd.f32 %v5029, %v5189
      %v5191 = vpop.f32.mrb[0].mxu0
      %5192 = vmatprep.mubr.f32.mxu0 0.0
      %5193 = vmatmul.mubr.f32.gmra.mrb[0].mxu0 %v5079
      %v5194 = vpop.f32.mrb[0].mxu0
      %v5195 = vadd.f32 %v5034, %v5194
      %v5196 = vpop.f32.mrb[0].mxu0
      %5197 = vmatprep.mubr.f32.mxu0 0.0
      %5198 = vmatmul.mubr.f32.gmra.mrb[0].mxu0 %v5082
      %v5199 = vpop.f32.mrb[0].mxu0
      %v5200 = vadd.f32 %v5039, %v5199
      %v5201 = vpop.f32.mrb[0].mxu0
      %5202 = vmatprep.mubr.f32.mxu0 0.0
      %5203 = vmatmul.mubr.f32.gmra.mrb[0].mxu0 %v5085
      %v5204 = vpop.f32.mrb[0].mxu0
      %v5205 = vadd.f32 %v5044, %v5204
      %v5206 = vpop.f32.mrb[0].mxu0
      %5207 = vmatprep.mubr.f32.mxu0 0.0
      %5208 = vmatmul.mubr.f32.gmra.mrb[0].mxu0 %v5088
      %v5209 = vpop.f32.mrb[0].mxu0
      %v5210 = vadd.f32 %v5049, %v5209
      %v5211 = vpop.f32.mrb[0].mxu0
      %5212 = vmatprep.mubr.f32.mxu0 0.0
      %5213 = vmatmul.mubr.f32.gmra.mrb[0].mxu0 %v5091
      %v5214 = vpop.f32.mrb[0].mxu0
      %v5215 = vadd.f32 %v5054, %v5214
      %v5216 = vpop.f32.mrb[0].mxu0
      %5217 = vdwg.mxu0
      %v5218 = vld [vmem:[#allocation3 + $0x2] sm:$0xff]
      %v5219 = vld [vmem:[#allocation3 + $0xa] sm:$0xff]
      %v5220 = vld [vmem:[#allocation3 + $0x12] sm:$0xff]
      %v5221 = vld [vmem:[#allocation3 + $0x1a] sm:$0xff]
      %v5222 = vld [vmem:[#allocation3 + $0x22] sm:$0xff]
      %v5223 = vld [vmem:[#allocation3 + $0x2a] sm:$0xff]
      %v5224 = vld [vmem:[#allocation3 + $0x32] sm:$0xff]
      %v5225 = vld [vmem:[#allocation3 + $0x3a] sm:$0xff]
      %v5226 = vld [vmem:[#allocation3 + $0x42] sm:$0xff]
      %v5227 = vld [vmem:[#allocation3 + $0x4a] sm:$0xff]
      %v5228 = vld [vmem:[#allocation3 + $0x52] sm:$0xff]
      %v5229 = vld [vmem:[#allocation3 + $0x5a] sm:$0xff]
      %s5230 = scalar_lea.vmem %s5, 128
      %v5231 = vld [vmem:[%s5230] sm:$0xff]
      %v5232 = vld [vmem:[%s5230 + $0x8] sm:$0xff]
      %v5233 = vld [vmem:[%s5230 + $0x10] sm:$0xff]
      %v5234 = vld [vmem:[%s5230 + $0x18] sm:$0xff]
      %v5235 = vld [vmem:[%s5230 + $0x20] sm:$0xff]
      %v5236 = vld [vmem:[%s5230 + $0x28] sm:$0xff]
      %v5237 = vld [vmem:[%s5230 + $0x30] sm:$0xff]
      %v5238 = vld [vmem:[%s5230 + $0x38] sm:$0xff]
      %v5240 = vsel %vm366, %v5218, 0
      %v5243 = vsel %vm366, %v5219, 0
      %v5246 = vsel %vm366, %v5220, 0
      %v5249 = vsel %vm366, %v5221, 0
      %v5252 = vsel %vm366, %v5222, 0
      %v5255 = vsel %vm366, %v5223, 0
      %v5258 = vsel %vm366, %v5224, 0
      %v5261 = vsel %vm366, %v5225, 0
      %v5264 = vsel %vm366, %v5226, 0
      %v5267 = vsel %vm366, %v5227, 0
      %v5270 = vsel %vm366, %v5228, 0
      %v5273 = vsel %vm366, %v5229, 0
      %5275 = vmatprep.subr.mxu0 0.0
      %5276 = vmatpush1.msra.mxu0 %v5231
      %5277 = vmatprep.subr.mxu0 0.0
      %5278 = vmatpush1.msra.mxu0 %v5232
      %5279 = vmatprep.subr.mxu0 0.0
      %5280 = vmatpush1.msra.mxu0 %v5233
      %5281 = vmatprep.subr.mxu0 0.0
      %5282 = vmatpush1.msra.mxu0 %v5234
      %5283 = vmatprep.subr.mxu0 0.0
      %5284 = vmatpush1.msra.mxu0 %v5235
      %5285 = vmatprep.subr.mxu0 0.0
      %5286 = vmatpush1.msra.mxu0 %v5236
      %5287 = vmatprep.subr.mxu0 0.0
      %5288 = vmatpush1.msra.mxu0 %v5237
      %5289 = vmatprep.subr.mxu0 0.0
      %5290 = vmatpush1.msra.mxu0 %v5238
      %5291 = vmatprep.subr.mxu0 0.0
      %5292 = vmatpush1.msra.mxu0 0.0
      %5293 = vmatprep.subr.mxu0 0.0
      %5294 = vmatpush1.msra.mxu0 0.0
      %5295 = vmatprep.subr.mxu0 0.0
      %5296 = vmatpush1.msra.mxu0 0.0
      %5297 = vmatprep.subr.mxu0 0.0
      %5298 = vmatpush1.msra.mxu0 0.0
      %5299 = vmatprep.subr.mxu0 0.0
      %5300 = vmatpush1.msra.mxu0 0.0
      %5301 = vmatprep.subr.mxu0 0.0
      %5302 = vmatpush1.msra.mxu0 0.0
      %5303 = vmatprep.subr.mxu0 0.0
      %5304 = vmatpush1.msra.mxu0 0.0
      %5305 = vmatprep.subr.mxu0 0.0
      %5306 = vmatpush1.msra.mxu0 0.0
      %5307 = vmatprep.subr.mxu0 0.0
      %5308 = vmatpush1.msra.mxu0 0.0
      %5309 = vmatprep.subr.mxu0 0.0
      %5310 = vmatpush1.msra.mxu0 0.0
      %5311 = vmatprep.subr.mxu0 0.0
      %5312 = vmatpush1.msra.mxu0 0.0
      %5313 = vmatprep.subr.mxu0 0.0
      %5314 = vmatpush1.msra.mxu0 0.0
      %5315 = vmatprep.subr.mxu0 0.0
      %5316 = vmatpush1.msra.mxu0 0.0
      %5317 = vmatprep.subr.mxu0 0.0
      %5318 = vmatpush1.msra.mxu0 0.0
      %5319 = vmatprep.subr.mxu0 0.0
      %5320 = vmatpush1.msra.mxu0 0.0
      %5321 = vmatprep.subr.mxu0 0.0
      %5322 = vmatpush1.msra.mxu0 0.0
      %5323 = vmatprep.subr.mxu0 0.0
      %5324 = vmatpush1.msra.mxu0 0.0
      %5325 = vmatprep.subr.mxu0 0.0
      %5326 = vmatpush1.msra.mxu0 0.0
      %5327 = vmatprep.subr.mxu0 0.0
      %5328 = vmatpush1.msra.mxu0 0.0
      %5329 = vmatprep.subr.mxu0 0.0
      %5330 = vmatpush1.msra.mxu0 0.0
      %5331 = vmatprep.subr.mxu0 0.0
      %5332 = vmatpush1.msra.mxu0 0.0
      %5333 = vmatprep.subr.mxu0 0.0
      %5334 = vmatpush1.msra.mxu0 0.0
      %5335 = vmatprep.subr.mxu0 0.0
      %5336 = vmatpush1.msra.mxu0 0.0
      %5337 = vmatprep.subr.mxu0 0.0
      %5338 = vmatpush1.msra.mxu0 0.0
      %5339 = vmatprep.mubr.f32.mxu0 0.0
      %5340 = vmatmul.mubr.f32.gmra.mrb[0].mxu0 %v5240
      %v5341 = vpop.f32.mrb[0].mxu0
      %v5342 = vadd.f32 0.0, %v5341
      %v5343 = vpop.f32.mrb[0].mxu0
      %5344 = vmatprep.mubr.f32.mxu0 0.0
      %5345 = vmatmul.mubr.f32.gmra.mrb[0].mxu0 %v5243
      %v5346 = vpop.f32.mrb[0].mxu0
      %v5347 = vadd.f32 0.0, %v5346
      %v5348 = vpop.f32.mrb[0].mxu0
      %5349 = vmatprep.mubr.f32.mxu0 0.0
      %5350 = vmatmul.mubr.f32.gmra.mrb[0].mxu0 %v5246
      %v5351 = vpop.f32.mrb[0].mxu0
      %v5352 = vadd.f32 0.0, %v5351
      %v5353 = vpop.f32.mrb[0].mxu0
      %5354 = vmatprep.mubr.f32.mxu0 0.0
      %5355 = vmatmul.mubr.f32.gmra.mrb[0].mxu0 %v5249
      %v5356 = vpop.f32.mrb[0].mxu0
      %v5357 = vadd.f32 0.0, %v5356
      %v5358 = vpop.f32.mrb[0].mxu0
      %5359 = vmatprep.mubr.f32.mxu0 0.0
      %5360 = vmatmul.mubr.f32.gmra.mrb[0].mxu0 %v5252
      %v5361 = vpop.f32.mrb[0].mxu0
      %v5362 = vadd.f32 0.0, %v5361
      %v5363 = vpop.f32.mrb[0].mxu0
      %5364 = vmatprep.mubr.f32.mxu0 0.0
      %5365 = vmatmul.mubr.f32.gmra.mrb[0].mxu0 %v5255
      %v5366 = vpop.f32.mrb[0].mxu0
      %v5367 = vadd.f32 0.0, %v5366
      %v5368 = vpop.f32.mrb[0].mxu0
      %5369 = vmatprep.mubr.f32.mxu0 0.0
      %5370 = vmatmul.mubr.f32.gmra.mrb[0].mxu0 %v5258
      %v5371 = vpop.f32.mrb[0].mxu0
      %v5372 = vadd.f32 0.0, %v5371
      %v5373 = vpop.f32.mrb[0].mxu0
      %5374 = vmatprep.mubr.f32.mxu0 0.0
      %5375 = vmatmul.mubr.f32.gmra.mrb[0].mxu0 %v5261
      %v5376 = vpop.f32.mrb[0].mxu0
      %v5377 = vadd.f32 0.0, %v5376
      %v5378 = vpop.f32.mrb[0].mxu0
      %5379 = vmatprep.mubr.f32.mxu0 0.0
      %5380 = vmatmul.mubr.f32.gmra.mrb[0].mxu0 %v5264
      %v5381 = vpop.f32.mrb[0].mxu0
      %v5382 = vadd.f32 0.0, %v5381
      %v5383 = vpop.f32.mrb[0].mxu0
      %5384 = vmatprep.mubr.f32.mxu0 0.0
      %5385 = vmatmul.mubr.f32.gmra.mrb[0].mxu0 %v5267
      %v5386 = vpop.f32.mrb[0].mxu0
      %v5387 = vadd.f32 0.0, %v5386
      %v5388 = vpop.f32.mrb[0].mxu0
      %5389 = vmatprep.mubr.f32.mxu0 0.0
      %5390 = vmatmul.mubr.f32.gmra.mrb[0].mxu0 %v5270
      %v5391 = vpop.f32.mrb[0].mxu0
      %v5392 = vadd.f32 0.0, %v5391
      %v5393 = vpop.f32.mrb[0].mxu0
      %5394 = vmatprep.mubr.f32.mxu0 0.0
      %5395 = vmatmul.mubr.f32.gmra.mrb[0].mxu0 %v5273
      %v5396 = vpop.f32.mrb[0].mxu0
      %v5397 = vadd.f32 0.0, %v5396
      %v5398 = vpop.f32.mrb[0].mxu0
      %5399 = vdwg.mxu0
      %v5400 = vadd.f32 %v5160, %v5342
      %v5401 = vadd.f32 %v5165, %v5347
      %v5402 = vadd.f32 %v5170, %v5352
      %v5403 = vadd.f32 %v5175, %v5357
      %v5404 = vadd.f32 %v5180, %v5362
      %v5405 = vadd.f32 %v5185, %v5367
      %v5406 = vadd.f32 %v5190, %v5372
      %v5407 = vadd.f32 %v5195, %v5377
      %v5408 = vadd.f32 %v5200, %v5382
      %v5409 = vadd.f32 %v5205, %v5387
      %v5410 = vadd.f32 %v5210, %v5392
      %v5411 = vadd.f32 %v5215, %v5397
      %v5412 = vld [vmem:[#allocation3 + $0xc] sm:$0xff]
      %v5413 = vld [vmem:[#allocation3 + $0x14] sm:$0xff]
      %v5414 = vld [vmem:[#allocation3 + $0x1c] sm:$0xff]
      %v5415 = vld [vmem:[#allocation3 + $0x24] sm:$0xff]
      %v5416 = vld [vmem:[#allocation3 + $0x2c] sm:$0xff]
      %v5417 = vld [vmem:[#allocation3 + $0x34] sm:$0xff]
      %v5418 = vld [vmem:[#allocation3 + $0x3c] sm:$0xff]
      %v5419 = vld [vmem:[#allocation3 + $0x44] sm:$0xff]
      %v5420 = vld [vmem:[#allocation3 + $0x4c] sm:$0xff]
      %v5421 = vld [vmem:[#allocation3 + $0x54] sm:$0xff]
      %v5422 = vld [vmem:[#allocation3 + $0x5c] sm:$0xff]
      %v5423 = vld [vmem:[#allocation3 + $0x64] sm:$0xff]
      %s5424 = scalar_lea.vmem %s5, 192
      %v5425 = vld [vmem:[%s5424] sm:$0xff]
      %v5426 = vld [vmem:[%s5424 + $0x8] sm:$0xff]
      %v5427 = vld [vmem:[%s5424 + $0x10] sm:$0xff]
      %v5428 = vld [vmem:[%s5424 + $0x18] sm:$0xff]
      %v5429 = vld [vmem:[%s5424 + $0x20] sm:$0xff]
      %v5430 = vld [vmem:[%s5424 + $0x28] sm:$0xff]
      %v5431 = vld [vmem:[%s5424 + $0x30] sm:$0xff]
      %v5432 = vld [vmem:[%s5424 + $0x38] sm:$0xff]
      %v5434 = vsel %vm366, %v5412, 0
      %v5437 = vsel %vm366, %v5413, 0
      %v5440 = vsel %vm366, %v5414, 0
      %v5443 = vsel %vm366, %v5415, 0
      %v5446 = vsel %vm366, %v5416, 0
      %v5449 = vsel %vm366, %v5417, 0
      %v5452 = vsel %vm366, %v5418, 0
      %v5455 = vsel %vm366, %v5419, 0
      %v5458 = vsel %vm366, %v5420, 0
      %v5461 = vsel %vm366, %v5421, 0
      %v5464 = vsel %vm366, %v5422, 0
      %v5467 = vsel %vm366, %v5423, 0
      %5469 = vmatprep.subr.mxu0 0.0
      %5470 = vmatpush1.msra.mxu0 %v5425
      %5471 = vmatprep.subr.mxu0 0.0
      %5472 = vmatpush1.msra.mxu0 %v5426
      %5473 = vmatprep.subr.mxu0 0.0
      %5474 = vmatpush1.msra.mxu0 %v5427
      %5475 = vmatprep.subr.mxu0 0.0
      %5476 = vmatpush1.msra.mxu0 %v5428
      %5477 = vmatprep.subr.mxu0 0.0
      %5478 = vmatpush1.msra.mxu0 %v5429
      %5479 = vmatprep.subr.mxu0 0.0
      %5480 = vmatpush1.msra.mxu0 %v5430
      %5481 = vmatprep.subr.mxu0 0.0
      %5482 = vmatpush1.msra.mxu0 %v5431
      %5483 = vmatprep.subr.mxu0 0.0
      %5484 = vmatpush1.msra.mxu0 %v5432
      %5485 = vmatprep.subr.mxu0 0.0
      %5486 = vmatpush1.msra.mxu0 0.0
      %5487 = vmatprep.subr.mxu0 0.0
      %5488 = vmatpush1.msra.mxu0 0.0
      %5489 = vmatprep.subr.mxu0 0.0
      %5490 = vmatpush1.msra.mxu0 0.0
      %5491 = vmatprep.subr.mxu0 0.0
      %5492 = vmatpush1.msra.mxu0 0.0
      %5493 = vmatprep.subr.mxu0 0.0
      %5494 = vmatpush1.msra.mxu0 0.0
      %5495 = vmatprep.subr.mxu0 0.0
      %5496 = vmatpush1.msra.mxu0 0.0
      %5497 = vmatprep.subr.mxu0 0.0
      %5498 = vmatpush1.msra.mxu0 0.0
      %5499 = vmatprep.subr.mxu0 0.0
      %5500 = vmatpush1.msra.mxu0 0.0
      %5501 = vmatprep.subr.mxu0 0.0
      %5502 = vmatpush1.msra.mxu0 0.0
      %5503 = vmatprep.subr.mxu0 0.0
      %5504 = vmatpush1.msra.mxu0 0.0
      %5505 = vmatprep.subr.mxu0 0.0
      %5506 = vmatpush1.msra.mxu0 0.0
      %5507 = vmatprep.subr.mxu0 0.0
      %5508 = vmatpush1.msra.mxu0 0.0
      %5509 = vmatprep.subr.mxu0 0.0
      %5510 = vmatpush1.msra.mxu0 0.0
      %5511 = vmatprep.subr.mxu0 0.0
      %5512 = vmatpush1.msra.mxu0 0.0
      %5513 = vmatprep.subr.mxu0 0.0
      %5514 = vmatpush1.msra.mxu0 0.0
      %5515 = vmatprep.subr.mxu0 0.0
      %5516 = vmatpush1.msra.mxu0 0.0
      %5517 = vmatprep.subr.mxu0 0.0
      %5518 = vmatpush1.msra.mxu0 0.0
      %5519 = vmatprep.subr.mxu0 0.0
      %5520 = vmatpush1.msra.mxu0 0.0
      %5521 = vmatprep.subr.mxu0 0.0
      %5522 = vmatpush1.msra.mxu0 0.0
      %5523 = vmatprep.subr.mxu0 0.0
      %5524 = vmatpush1.msra.mxu0 0.0
      %5525 = vmatprep.subr.mxu0 0.0
      %5526 = vmatpush1.msra.mxu0 0.0
      %5527 = vmatprep.subr.mxu0 0.0
      %5528 = vmatpush1.msra.mxu0 0.0
      %5529 = vmatprep.subr.mxu0 0.0
      %5530 = vmatpush1.msra.mxu0 0.0
      %5531 = vmatprep.subr.mxu0 0.0
      %5532 = vmatpush1.msra.mxu0 0.0
      %5533 = vmatprep.mubr.f32.mxu0 0.0
      %5534 = vmatmul.mubr.f32.gmra.mrb[0].mxu0 %v5434
      %v5535 = vpop.f32.mrb[0].mxu0
      %v5536 = vadd.f32 0.0, %v5535
      %v5537 = vpop.f32.mrb[0].mxu0
      %5538 = vmatprep.mubr.f32.mxu0 0.0
      %5539 = vmatmul.mubr.f32.gmra.mrb[0].mxu0 %v5437
      %v5540 = vpop.f32.mrb[0].mxu0
      %v5541 = vadd.f32 0.0, %v5540
      %v5542 = vpop.f32.mrb[0].mxu0
      %5543 = vmatprep.mubr.f32.mxu0 0.0
      %5544 = vmatmul.mubr.f32.gmra.mrb[0].mxu0 %v5440
      %v5545 = vpop.f32.mrb[0].mxu0
      %v5546 = vadd.f32 0.0, %v5545
      %v5547 = vpop.f32.mrb[0].mxu0
      %5548 = vmatprep.mubr.f32.mxu0 0.0
      %5549 = vmatmul.mubr.f32.gmra.mrb[0].mxu0 %v5443
      %v5550 = vpop.f32.mrb[0].mxu0
      %v5551 = vadd.f32 0.0, %v5550
      %v5552 = vpop.f32.mrb[0].mxu0
      %5553 = vmatprep.mubr.f32.mxu0 0.0
      %5554 = vmatmul.mubr.f32.gmra.mrb[0].mxu0 %v5446
      %v5555 = vpop.f32.mrb[0].mxu0
      %v5556 = vadd.f32 0.0, %v5555
      %v5557 = vpop.f32.mrb[0].mxu0
      %5558 = vmatprep.mubr.f32.mxu0 0.0
      %5559 = vmatmul.mubr.f32.gmra.mrb[0].mxu0 %v5449
      %v5560 = vpop.f32.mrb[0].mxu0
      %v5561 = vadd.f32 0.0, %v5560
      %v5562 = vpop.f32.mrb[0].mxu0
      %5563 = vmatprep.mubr.f32.mxu0 0.0
      %5564 = vmatmul.mubr.f32.gmra.mrb[0].mxu0 %v5452
      %v5565 = vpop.f32.mrb[0].mxu0
      %v5566 = vadd.f32 0.0, %v5565
      %v5567 = vpop.f32.mrb[0].mxu0
      %5568 = vmatprep.mubr.f32.mxu0 0.0
      %5569 = vmatmul.mubr.f32.gmra.mrb[0].mxu0 %v5455
      %v5570 = vpop.f32.mrb[0].mxu0
      %v5571 = vadd.f32 0.0, %v5570
      %v5572 = vpop.f32.mrb[0].mxu0
      %5573 = vmatprep.mubr.f32.mxu0 0.0
      %5574 = vmatmul.mubr.f32.gmra.mrb[0].mxu0 %v5458
      %v5575 = vpop.f32.mrb[0].mxu0
      %v5576 = vadd.f32 0.0, %v5575
      %v5577 = vpop.f32.mrb[0].mxu0
      %5578 = vmatprep.mubr.f32.mxu0 0.0
      %5579 = vmatmul.mubr.f32.gmra.mrb[0].mxu0 %v5461
      %v5580 = vpop.f32.mrb[0].mxu0
      %v5581 = vadd.f32 0.0, %v5580
      %v5582 = vpop.f32.mrb[0].mxu0
      %5583 = vmatprep.mubr.f32.mxu0 0.0
      %5584 = vmatmul.mubr.f32.gmra.mrb[0].mxu0 %v5464
      %v5585 = vpop.f32.mrb[0].mxu0
      %v5586 = vadd.f32 0.0, %v5585
      %v5587 = vpop.f32.mrb[0].mxu0
      %5588 = vmatprep.mubr.f32.mxu0 0.0
      %5589 = vmatmul.mubr.f32.gmra.mrb[0].mxu0 %v5467
      %v5590 = vpop.f32.mrb[0].mxu0
      %v5591 = vadd.f32 0.0, %v5590
      %v5592 = vpop.f32.mrb[0].mxu0
      %5593 = vdwg.mxu0
      %v5594 = vadd.f32 %v5400, %v5536
      %v5595 = vadd.f32 %v5401, %v5541
      %v5596 = vadd.f32 %v5402, %v5546
      %v5597 = vadd.f32 %v5403, %v5551
      %v5598 = vadd.f32 %v5404, %v5556
      %v5599 = vadd.f32 %v5405, %v5561
      %v5600 = vadd.f32 %v5406, %v5566
      %v5601 = vadd.f32 %v5407, %v5571
      %v5602 = vadd.f32 %v5408, %v5576
      %v5603 = vadd.f32 %v5409, %v5581
      %v5604 = vadd.f32 %v5410, %v5586
      %v5605 = vadd.f32 %v5411, %v5591
      %v5606 = vld [vmem:[#allocation3 + $0xd] sm:$0xff]
      %v5607 = vld [vmem:[#allocation3 + $0x15] sm:$0xff]
      %v5608 = vld [vmem:[#allocation3 + $0x1d] sm:$0xff]
      %v5609 = vld [vmem:[#allocation3 + $0x25] sm:$0xff]
      %v5610 = vld [vmem:[#allocation3 + $0x2d] sm:$0xff]
      %v5611 = vld [vmem:[#allocation3 + $0x35] sm:$0xff]
      %v5612 = vld [vmem:[#allocation3 + $0x3d] sm:$0xff]
      %v5613 = vld [vmem:[#allocation3 + $0x45] sm:$0xff]
      %v5614 = vld [vmem:[#allocation3 + $0x4d] sm:$0xff]
      %v5615 = vld [vmem:[#allocation3 + $0x55] sm:$0xff]
      %v5616 = vld [vmem:[#allocation3 + $0x5d] sm:$0xff]
      %v5617 = vld [vmem:[#allocation3 + $0x65] sm:$0xff]
      %s5618 = scalar_lea.vmem %s5, 256
      %v5619 = vld [vmem:[%s5618] sm:$0xff]
      %v5620 = vld [vmem:[%s5618 + $0x8] sm:$0xff]
      %v5621 = vld [vmem:[%s5618 + $0x10] sm:$0xff]
      %v5622 = vld [vmem:[%s5618 + $0x18] sm:$0xff]
      %v5623 = vld [vmem:[%s5618 + $0x20] sm:$0xff]
      %v5624 = vld [vmem:[%s5618 + $0x28] sm:$0xff]
      %v5625 = vld [vmem:[%s5618 + $0x30] sm:$0xff]
      %v5626 = vld [vmem:[%s5618 + $0x38] sm:$0xff]
      %v5628 = vsel %vm366, %v5606, 0
      %v5631 = vsel %vm366, %v5607, 0
      %v5634 = vsel %vm366, %v5608, 0
      %v5637 = vsel %vm366, %v5609, 0
      %v5640 = vsel %vm366, %v5610, 0
      %v5643 = vsel %vm366, %v5611, 0
      %v5646 = vsel %vm366, %v5612, 0
      %v5649 = vsel %vm366, %v5613, 0
      %v5652 = vsel %vm366, %v5614, 0
      %v5655 = vsel %vm366, %v5615, 0
      %v5658 = vsel %vm366, %v5616, 0
      %v5661 = vsel %vm366, %v5617, 0
      %5663 = vmatprep.subr.mxu0 0.0
      %5664 = vmatpush1.msra.mxu0 %v5619
      %5665 = vmatprep.subr.mxu0 0.0
      %5666 = vmatpush1.msra.mxu0 %v5620
      %5667 = vmatprep.subr.mxu0 0.0
      %5668 = vmatpush1.msra.mxu0 %v5621
      %5669 = vmatprep.subr.mxu0 0.0
      %5670 = vmatpush1.msra.mxu0 %v5622
      %5671 = vmatprep.subr.mxu0 0.0
      %5672 = vmatpush1.msra.mxu0 %v5623
      %5673 = vmatprep.subr.mxu0 0.0
      %5674 = vmatpush1.msra.mxu0 %v5624
      %5675 = vmatprep.subr.mxu0 0.0
      %5676 = vmatpush1.msra.mxu0 %v5625
      %5677 = vmatprep.subr.mxu0 0.0
      %5678 = vmatpush1.msra.mxu0 %v5626
      %5679 = vmatprep.subr.mxu0 0.0
      %5680 = vmatpush1.msra.mxu0 0.0
      %5681 = vmatprep.subr.mxu0 0.0
      %5682 = vmatpush1.msra.mxu0 0.0
      %5683 = vmatprep.subr.mxu0 0.0
      %5684 = vmatpush1.msra.mxu0 0.0
      %5685 = vmatprep.subr.mxu0 0.0
      %5686 = vmatpush1.msra.mxu0 0.0
      %5687 = vmatprep.subr.mxu0 0.0
      %5688 = vmatpush1.msra.mxu0 0.0
      %5689 = vmatprep.subr.mxu0 0.0
      %5690 = vmatpush1.msra.mxu0 0.0
      %5691 = vmatprep.subr.mxu0 0.0
      %5692 = vmatpush1.msra.mxu0 0.0
      %5693 = vmatprep.subr.mxu0 0.0
      %5694 = vmatpush1.msra.mxu0 0.0
      %5695 = vmatprep.subr.mxu0 0.0
      %5696 = vmatpush1.msra.mxu0 0.0
      %5697 = vmatprep.subr.mxu0 0.0
      %5698 = vmatpush1.msra.mxu0 0.0
      %5699 = vmatprep.subr.mxu0 0.0
      %5700 = vmatpush1.msra.mxu0 0.0
      %5701 = vmatprep.subr.mxu0 0.0
      %5702 = vmatpush1.msra.mxu0 0.0
      %5703 = vmatprep.subr.mxu0 0.0
      %5704 = vmatpush1.msra.mxu0 0.0
      %5705 = vmatprep.subr.mxu0 0.0
      %5706 = vmatpush1.msra.mxu0 0.0
      %5707 = vmatprep.subr.mxu0 0.0
      %5708 = vmatpush1.msra.mxu0 0.0
      %5709 = vmatprep.subr.mxu0 0.0
      %5710 = vmatpush1.msra.mxu0 0.0
      %5711 = vmatprep.subr.mxu0 0.0
      %5712 = vmatpush1.msra.mxu0 0.0
      %5713 = vmatprep.subr.mxu0 0.0
      %5714 = vmatpush1.msra.mxu0 0.0
      %5715 = vmatprep.subr.mxu0 0.0
      %5716 = vmatpush1.msra.mxu0 0.0
      %5717 = vmatprep.subr.mxu0 0.0
      %5718 = vmatpush1.msra.mxu0 0.0
      %5719 = vmatprep.subr.mxu0 0.0
      %5720 = vmatpush1.msra.mxu0 0.0
      %5721 = vmatprep.subr.mxu0 0.0
      %5722 = vmatpush1.msra.mxu0 0.0
      %5723 = vmatprep.subr.mxu0 0.0
      %5724 = vmatpush1.msra.mxu0 0.0
      %5725 = vmatprep.subr.mxu0 0.0
      %5726 = vmatpush1.msra.mxu0 0.0
      %5727 = vmatprep.mubr.f32.mxu0 0.0
      %5728 = vmatmul.mubr.f32.gmra.mrb[0].mxu0 %v5628
      %v5729 = vpop.f32.mrb[0].mxu0
      %v5730 = vadd.f32 0.0, %v5729
      %v5731 = vpop.f32.mrb[0].mxu0
      %5732 = vmatprep.mubr.f32.mxu0 0.0
      %5733 = vmatmul.mubr.f32.gmra.mrb[0].mxu0 %v5631
      %v5734 = vpop.f32.mrb[0].mxu0
      %v5735 = vadd.f32 0.0, %v5734
      %v5736 = vpop.f32.mrb[0].mxu0
      %5737 = vmatprep.mubr.f32.mxu0 0.0
      %5738 = vmatmul.mubr.f32.gmra.mrb[0].mxu0 %v5634
      %v5739 = vpop.f32.mrb[0].mxu0
      %v5740 = vadd.f32 0.0, %v5739
      %v5741 = vpop.f32.mrb[0].mxu0
      %5742 = vmatprep.mubr.f32.mxu0 0.0
      %5743 = vmatmul.mubr.f32.gmra.mrb[0].mxu0 %v5637
      %v5744 = vpop.f32.mrb[0].mxu0
      %v5745 = vadd.f32 0.0, %v5744
      %v5746 = vpop.f32.mrb[0].mxu0
      %5747 = vmatprep.mubr.f32.mxu0 0.0
      %5748 = vmatmul.mubr.f32.gmra.mrb[0].mxu0 %v5640
      %v5749 = vpop.f32.mrb[0].mxu0
      %v5750 = vadd.f32 0.0, %v5749
      %v5751 = vpop.f32.mrb[0].mxu0
      %5752 = vmatprep.mubr.f32.mxu0 0.0
      %5753 = vmatmul.mubr.f32.gmra.mrb[0].mxu0 %v5643
      %v5754 = vpop.f32.mrb[0].mxu0
      %v5755 = vadd.f32 0.0, %v5754
      %v5756 = vpop.f32.mrb[0].mxu0
      %5757 = vmatprep.mubr.f32.mxu0 0.0
      %5758 = vmatmul.mubr.f32.gmra.mrb[0].mxu0 %v5646
      %v5759 = vpop.f32.mrb[0].mxu0
      %v5760 = vadd.f32 0.0, %v5759
      %v5761 = vpop.f32.mrb[0].mxu0
      %5762 = vmatprep.mubr.f32.mxu0 0.0
      %5763 = vmatmul.mubr.f32.gmra.mrb[0].mxu0 %v5649
      %v5764 = vpop.f32.mrb[0].mxu0
      %v5765 = vadd.f32 0.0, %v5764
      %v5766 = vpop.f32.mrb[0].mxu0
      %5767 = vmatprep.mubr.f32.mxu0 0.0
      %5768 = vmatmul.mubr.f32.gmra.mrb[0].mxu0 %v5652
      %v5769 = vpop.f32.mrb[0].mxu0
      %v5770 = vadd.f32 0.0, %v5769
      %v5771 = vpop.f32.mrb[0].mxu0
      %5772 = vmatprep.mubr.f32.mxu0 0.0
      %5773 = vmatmul.mubr.f32.gmra.mrb[0].mxu0 %v5655
      %v5774 = vpop.f32.mrb[0].mxu0
      %v5775 = vadd.f32 0.0, %v5774
      %v5776 = vpop.f32.mrb[0].mxu0
      %5777 = vmatprep.mubr.f32.mxu0 0.0
      %5778 = vmatmul.mubr.f32.gmra.mrb[0].mxu0 %v5658
      %v5779 = vpop.f32.mrb[0].mxu0
      %v5780 = vadd.f32 0.0, %v5779
      %v5781 = vpop.f32.mrb[0].mxu0
      %5782 = vmatprep.mubr.f32.mxu0 0.0
      %5783 = vmatmul.mubr.f32.gmra.mrb[0].mxu0 %v5661
      %v5784 = vpop.f32.mrb[0].mxu0
      %v5785 = vadd.f32 0.0, %v5784
      %v5786 = vpop.f32.mrb[0].mxu0
      %5787 = vdwg.mxu0
      %v5788 = vadd.f32 %v5594, %v5730
      %v5789 = vadd.f32 %v5595, %v5735
      %v5790 = vadd.f32 %v5596, %v5740
      %v5791 = vadd.f32 %v5597, %v5745
      %v5792 = vadd.f32 %v5598, %v5750
      %v5793 = vadd.f32 %v5599, %v5755
      %v5794 = vadd.f32 %v5600, %v5760
      %v5795 = vadd.f32 %v5601, %v5765
      %v5796 = vadd.f32 %v5602, %v5770
      %v5797 = vadd.f32 %v5603, %v5775
      %v5798 = vadd.f32 %v5604, %v5780
      %v5799 = vadd.f32 %v5605, %v5785
      %v5800 = vld [vmem:[#allocation3 + $0xe] sm:$0xff]
      %v5801 = vld [vmem:[#allocation3 + $0x16] sm:$0xff]
      %v5802 = vld [vmem:[#allocation3 + $0x1e] sm:$0xff]
      %v5803 = vld [vmem:[#allocation3 + $0x26] sm:$0xff]
      %v5804 = vld [vmem:[#allocation3 + $0x2e] sm:$0xff]
      %v5805 = vld [vmem:[#allocation3 + $0x36] sm:$0xff]
      %v5806 = vld [vmem:[#allocation3 + $0x3e] sm:$0xff]
      %v5807 = vld [vmem:[#allocation3 + $0x46] sm:$0xff]
      %v5808 = vld [vmem:[#allocation3 + $0x4e] sm:$0xff]
      %v5809 = vld [vmem:[#allocation3 + $0x56] sm:$0xff]
      %v5810 = vld [vmem:[#allocation3 + $0x5e] sm:$0xff]
      %v5811 = vld [vmem:[#allocation3 + $0x66] sm:$0xff]
      %s5812 = scalar_lea.vmem %s5, 320
      %v5813 = vld [vmem:[%s5812] sm:$0xff]
      %v5814 = vld [vmem:[%s5812 + $0x8] sm:$0xff]
      %v5815 = vld [vmem:[%s5812 + $0x10] sm:$0xff]
      %v5816 = vld [vmem:[%s5812 + $0x18] sm:$0xff]
      %v5817 = vld [vmem:[%s5812 + $0x20] sm:$0xff]
      %v5818 = vld [vmem:[%s5812 + $0x28] sm:$0xff]
      %v5819 = vld [vmem:[%s5812 + $0x30] sm:$0xff]
      %v5820 = vld [vmem:[%s5812 + $0x38] sm:$0xff]
      %v5822 = vsel %vm366, %v5800, 0
      %v5825 = vsel %vm366, %v5801, 0
      %v5828 = vsel %vm366, %v5802, 0
      %v5831 = vsel %vm366, %v5803, 0
      %v5834 = vsel %vm366, %v5804, 0
      %v5837 = vsel %vm366, %v5805, 0
      %v5840 = vsel %vm366, %v5806, 0
      %v5843 = vsel %vm366, %v5807, 0
      %v5846 = vsel %vm366, %v5808, 0
      %v5849 = vsel %vm366, %v5809, 0
      %v5852 = vsel %vm366, %v5810, 0
      %v5855 = vsel %vm366, %v5811, 0
      %5857 = vmatprep.subr.mxu0 0.0
      %5858 = vmatpush1.msra.mxu0 %v5813
      %5859 = vmatprep.subr.mxu0 0.0
      %5860 = vmatpush1.msra.mxu0 %v5814
      %5861 = vmatprep.subr.mxu0 0.0
      %5862 = vmatpush1.msra.mxu0 %v5815
      %5863 = vmatprep.subr.mxu0 0.0
      %5864 = vmatpush1.msra.mxu0 %v5816
      %5865 = vmatprep.subr.mxu0 0.0
      %5866 = vmatpush1.msra.mxu0 %v5817
      %5867 = vmatprep.subr.mxu0 0.0
      %5868 = vmatpush1.msra.mxu0 %v5818
      %5869 = vmatprep.subr.mxu0 0.0
      %5870 = vmatpush1.msra.mxu0 %v5819
      %5871 = vmatprep.subr.mxu0 0.0
      %5872 = vmatpush1.msra.mxu0 %v5820
      %5873 = vmatprep.subr.mxu0 0.0
      %5874 = vmatpush1.msra.mxu0 0.0
      %5875 = vmatprep.subr.mxu0 0.0
      %5876 = vmatpush1.msra.mxu0 0.0
      %5877 = vmatprep.subr.mxu0 0.0
      %5878 = vmatpush1.msra.mxu0 0.0
      %5879 = vmatprep.subr.mxu0 0.0
      %5880 = vmatpush1.msra.mxu0 0.0
      %5881 = vmatprep.subr.mxu0 0.0
      %5882 = vmatpush1.msra.mxu0 0.0
      %5883 = vmatprep.subr.mxu0 0.0
      %5884 = vmatpush1.msra.mxu0 0.0
      %5885 = vmatprep.subr.mxu0 0.0
      %5886 = vmatpush1.msra.mxu0 0.0
      %5887 = vmatprep.subr.mxu0 0.0
      %5888 = vmatpush1.msra.mxu0 0.0
      %5889 = vmatprep.subr.mxu0 0.0
      %5890 = vmatpush1.msra.mxu0 0.0
      %5891 = vmatprep.subr.mxu0 0.0
      %5892 = vmatpush1.msra.mxu0 0.0
      %5893 = vmatprep.subr.mxu0 0.0
      %5894 = vmatpush1.msra.mxu0 0.0
      %5895 = vmatprep.subr.mxu0 0.0
      %5896 = vmatpush1.msra.mxu0 0.0
      %5897 = vmatprep.subr.mxu0 0.0
      %5898 = vmatpush1.msra.mxu0 0.0
      %5899 = vmatprep.subr.mxu0 0.0
      %5900 = vmatpush1.msra.mxu0 0.0
      %5901 = vmatprep.subr.mxu0 0.0
      %5902 = vmatpush1.msra.mxu0 0.0
      %5903 = vmatprep.subr.mxu0 0.0
      %5904 = vmatpush1.msra.mxu0 0.0
      %5905 = vmatprep.subr.mxu0 0.0
      %5906 = vmatpush1.msra.mxu0 0.0
      %5907 = vmatprep.subr.mxu0 0.0
      %5908 = vmatpush1.msra.mxu0 0.0
      %5909 = vmatprep.subr.mxu0 0.0
      %5910 = vmatpush1.msra.mxu0 0.0
      %5911 = vmatprep.subr.mxu0 0.0
      %5912 = vmatpush1.msra.mxu0 0.0
      %5913 = vmatprep.subr.mxu0 0.0
      %5914 = vmatpush1.msra.mxu0 0.0
      %5915 = vmatprep.subr.mxu0 0.0
      %5916 = vmatpush1.msra.mxu0 0.0
      %5917 = vmatprep.subr.mxu0 0.0
      %5918 = vmatpush1.msra.mxu0 0.0
      %5919 = vmatprep.subr.mxu0 0.0
      %5920 = vmatpush1.msra.mxu0 0.0
      %5921 = vmatprep.mubr.f32.mxu0 0.0
      %5922 = vmatmul.mubr.f32.gmra.mrb[0].mxu0 %v5822
      %v5923 = vpop.f32.mrb[0].mxu0
      %v5924 = vadd.f32 0.0, %v5923
      %v5925 = vpop.f32.mrb[0].mxu0
      %5926 = vmatprep.mubr.f32.mxu0 0.0
      %5927 = vmatmul.mubr.f32.gmra.mrb[0].mxu0 %v5825
      %v5928 = vpop.f32.mrb[0].mxu0
      %v5929 = vadd.f32 0.0, %v5928
      %v5930 = vpop.f32.mrb[0].mxu0
      %5931 = vmatprep.mubr.f32.mxu0 0.0
      %5932 = vmatmul.mubr.f32.gmra.mrb[0].mxu0 %v5828
      %v5933 = vpop.f32.mrb[0].mxu0
      %v5934 = vadd.f32 0.0, %v5933
      %v5935 = vpop.f32.mrb[0].mxu0
      %5936 = vmatprep.mubr.f32.mxu0 0.0
      %5937 = vmatmul.mubr.f32.gmra.mrb[0].mxu0 %v5831
      %v5938 = vpop.f32.mrb[0].mxu0
      %v5939 = vadd.f32 0.0, %v5938
      %v5940 = vpop.f32.mrb[0].mxu0
      %5941 = vmatprep.mubr.f32.mxu0 0.0
      %5942 = vmatmul.mubr.f32.gmra.mrb[0].mxu0 %v5834
      %v5943 = vpop.f32.mrb[0].mxu0
      %v5944 = vadd.f32 0.0, %v5943
      %v5945 = vpop.f32.mrb[0].mxu0
      %5946 = vmatprep.mubr.f32.mxu0 0.0
      %5947 = vmatmul.mubr.f32.gmra.mrb[0].mxu0 %v5837
      %v5948 = vpop.f32.mrb[0].mxu0
      %v5949 = vadd.f32 0.0, %v5948
      %v5950 = vpop.f32.mrb[0].mxu0
      %5951 = vmatprep.mubr.f32.mxu0 0.0
      %5952 = vmatmul.mubr.f32.gmra.mrb[0].mxu0 %v5840
      %v5953 = vpop.f32.mrb[0].mxu0
      %v5954 = vadd.f32 0.0, %v5953
      %v5955 = vpop.f32.mrb[0].mxu0
      %5956 = vmatprep.mubr.f32.mxu0 0.0
      %5957 = vmatmul.mubr.f32.gmra.mrb[0].mxu0 %v5843
      %v5958 = vpop.f32.mrb[0].mxu0
      %v5959 = vadd.f32 0.0, %v5958
      %v5960 = vpop.f32.mrb[0].mxu0
      %5961 = vmatprep.mubr.f32.mxu0 0.0
      %5962 = vmatmul.mubr.f32.gmra.mrb[0].mxu0 %v5846
      %v5963 = vpop.f32.mrb[0].mxu0
      %v5964 = vadd.f32 0.0, %v5963
      %v5965 = vpop.f32.mrb[0].mxu0
      %5966 = vmatprep.mubr.f32.mxu0 0.0
      %5967 = vmatmul.mubr.f32.gmra.mrb[0].mxu0 %v5849
      %v5968 = vpop.f32.mrb[0].mxu0
      %v5969 = vadd.f32 0.0, %v5968
      %v5970 = vpop.f32.mrb[0].mxu0
      %5971 = vmatprep.mubr.f32.mxu0 0.0
      %5972 = vmatmul.mubr.f32.gmra.mrb[0].mxu0 %v5852
      %v5973 = vpop.f32.mrb[0].mxu0
      %v5974 = vadd.f32 0.0, %v5973
      %v5975 = vpop.f32.mrb[0].mxu0
      %5976 = vmatprep.mubr.f32.mxu0 0.0
      %5977 = vmatmul.mubr.f32.gmra.mrb[0].mxu0 %v5855
      %v5978 = vpop.f32.mrb[0].mxu0
      %v5979 = vadd.f32 0.0, %v5978
      %v5980 = vpop.f32.mrb[0].mxu0
      %5981 = vdwg.mxu0
      %v5982 = vadd.f32 %v5788, %v5924
      %v5983 = vadd.f32 %v5789, %v5929
      %v5984 = vadd.f32 %v5790, %v5934
      %v5985 = vadd.f32 %v5791, %v5939
      %v5986 = vadd.f32 %v5792, %v5944
      %v5987 = vadd.f32 %v5793, %v5949
      %v5988 = vadd.f32 %v5794, %v5954
      %v5989 = vadd.f32 %v5795, %v5959
      %v5990 = vadd.f32 %v5796, %v5964
      %v5991 = vadd.f32 %v5797, %v5969
      %v5992 = vadd.f32 %v5798, %v5974
      %v5993 = vadd.f32 %v5799, %v5979
      %v5994 = vld [vmem:[#allocation3 + $0x18] sm:$0xff]
      %v5995 = vld [vmem:[#allocation3 + $0x20] sm:$0xff]
      %v5996 = vld [vmem:[#allocation3 + $0x28] sm:$0xff]
      %v5997 = vld [vmem:[#allocation3 + $0x30] sm:$0xff]
      %v5998 = vld [vmem:[#allocation3 + $0x38] sm:$0xff]
      %v5999 = vld [vmem:[#allocation3 + $0x40] sm:$0xff]
      %v6000 = vld [vmem:[#allocation3 + $0x48] sm:$0xff]
      %v6001 = vld [vmem:[#allocation3 + $0x50] sm:$0xff]
      %v6002 = vld [vmem:[#allocation3 + $0x58] sm:$0xff]
      %v6003 = vld [vmem:[#allocation3 + $0x60] sm:$0xff]
      %v6004 = vld [vmem:[#allocation3 + $0x68] sm:$0xff]
      %v6005 = vld [vmem:[#allocation3 + $0x70] sm:$0xff]
      %s6006 = scalar_lea.vmem %s5, 384
      %v6007 = vld [vmem:[%s6006] sm:$0xff]
      %v6008 = vld [vmem:[%s6006 + $0x8] sm:$0xff]
      %v6009 = vld [vmem:[%s6006 + $0x10] sm:$0xff]
      %v6010 = vld [vmem:[%s6006 + $0x18] sm:$0xff]
      %v6011 = vld [vmem:[%s6006 + $0x20] sm:$0xff]
      %v6012 = vld [vmem:[%s6006 + $0x28] sm:$0xff]
      %v6013 = vld [vmem:[%s6006 + $0x30] sm:$0xff]
      %v6014 = vld [vmem:[%s6006 + $0x38] sm:$0xff]
      %v6016 = vsel %vm366, %v5994, 0
      %v6019 = vsel %vm366, %v5995, 0
      %v6022 = vsel %vm366, %v5996, 0
      %v6025 = vsel %vm366, %v5997, 0
      %v6028 = vsel %vm366, %v5998, 0
      %v6031 = vsel %vm366, %v5999, 0
      %v6034 = vsel %vm366, %v6000, 0
      %v6037 = vsel %vm366, %v6001, 0
      %v6040 = vsel %vm366, %v6002, 0
      %v6043 = vsel %vm366, %v6003, 0
      %v6046 = vsel %vm366, %v6004, 0
      %v6049 = vsel %vm366, %v6005, 0
      %6051 = vmatprep.subr.mxu0 0.0
      %6052 = vmatpush1.msra.mxu0 %v6007
      %6053 = vmatprep.subr.mxu0 0.0
      %6054 = vmatpush1.msra.mxu0 %v6008
      %6055 = vmatprep.subr.mxu0 0.0
      %6056 = vmatpush1.msra.mxu0 %v6009
      %6057 = vmatprep.subr.mxu0 0.0
      %6058 = vmatpush1.msra.mxu0 %v6010
      %6059 = vmatprep.subr.mxu0 0.0
      %6060 = vmatpush1.msra.mxu0 %v6011
      %6061 = vmatprep.subr.mxu0 0.0
      %6062 = vmatpush1.msra.mxu0 %v6012
      %6063 = vmatprep.subr.mxu0 0.0
      %6064 = vmatpush1.msra.mxu0 %v6013
      %6065 = vmatprep.subr.mxu0 0.0
      %6066 = vmatpush1.msra.mxu0 %v6014
      %6067 = vmatprep.subr.mxu0 0.0
      %6068 = vmatpush1.msra.mxu0 0.0
      %6069 = vmatprep.subr.mxu0 0.0
      %6070 = vmatpush1.msra.mxu0 0.0
      %6071 = vmatprep.subr.mxu0 0.0
      %6072 = vmatpush1.msra.mxu0 0.0
      %6073 = vmatprep.subr.mxu0 0.0
      %6074 = vmatpush1.msra.mxu0 0.0
      %6075 = vmatprep.subr.mxu0 0.0
      %6076 = vmatpush1.msra.mxu0 0.0
      %6077 = vmatprep.subr.mxu0 0.0
      %6078 = vmatpush1.msra.mxu0 0.0
      %6079 = vmatprep.subr.mxu0 0.0
      %6080 = vmatpush1.msra.mxu0 0.0
      %6081 = vmatprep.subr.mxu0 0.0
      %6082 = vmatpush1.msra.mxu0 0.0
      %6083 = vmatprep.subr.mxu0 0.0
      %6084 = vmatpush1.msra.mxu0 0.0
      %6085 = vmatprep.subr.mxu0 0.0
      %6086 = vmatpush1.msra.mxu0 0.0
      %6087 = vmatprep.subr.mxu0 0.0
      %6088 = vmatpush1.msra.mxu0 0.0
      %6089 = vmatprep.subr.mxu0 0.0
      %6090 = vmatpush1.msra.mxu0 0.0
      %6091 = vmatprep.subr.mxu0 0.0
      %6092 = vmatpush1.msra.mxu0 0.0
      %6093 = vmatprep.subr.mxu0 0.0
      %6094 = vmatpush1.msra.mxu0 0.0
      %6095 = vmatprep.subr.mxu0 0.0
      %6096 = vmatpush1.msra.mxu0 0.0
      %6097 = vmatprep.subr.mxu0 0.0
      %6098 = vmatpush1.msra.mxu0 0.0
      %6099 = vmatprep.subr.mxu0 0.0
      %6100 = vmatpush1.msra.mxu0 0.0
      %6101 = vmatprep.subr.mxu0 0.0
      %6102 = vmatpush1.msra.mxu0 0.0
      %6103 = vmatprep.subr.mxu0 0.0
      %6104 = vmatpush1.msra.mxu0 0.0
      %6105 = vmatprep.subr.mxu0 0.0
      %6106 = vmatpush1.msra.mxu0 0.0
      %6107 = vmatprep.subr.mxu0 0.0
      %6108 = vmatpush1.msra.mxu0 0.0
      %6109 = vmatprep.subr.mxu0 0.0
      %6110 = vmatpush1.msra.mxu0 0.0
      %6111 = vmatprep.subr.mxu0 0.0
      %6112 = vmatpush1.msra.mxu0 0.0
      %6113 = vmatprep.subr.mxu0 0.0
      %6114 = vmatpush1.msra.mxu0 0.0
      %6115 = vmatprep.mubr.f32.mxu0 0.0
      %6116 = vmatmul.mubr.f32.gmra.mrb[0].mxu0 %v6016
      %v6117 = vpop.f32.mrb[0].mxu0
      %v6118 = vadd.f32 0.0, %v6117
      %v6119 = vpop.f32.mrb[0].mxu0
      %6120 = vmatprep.mubr.f32.mxu0 0.0
      %6121 = vmatmul.mubr.f32.gmra.mrb[0].mxu0 %v6019
      %v6122 = vpop.f32.mrb[0].mxu0
      %v6123 = vadd.f32 0.0, %v6122
      %v6124 = vpop.f32.mrb[0].mxu0
      %6125 = vmatprep.mubr.f32.mxu0 0.0
      %6126 = vmatmul.mubr.f32.gmra.mrb[0].mxu0 %v6022
      %v6127 = vpop.f32.mrb[0].mxu0
      %v6128 = vadd.f32 0.0, %v6127
      %v6129 = vpop.f32.mrb[0].mxu0
      %6130 = vmatprep.mubr.f32.mxu0 0.0
      %6131 = vmatmul.mubr.f32.gmra.mrb[0].mxu0 %v6025
      %v6132 = vpop.f32.mrb[0].mxu0
      %v6133 = vadd.f32 0.0, %v6132
      %v6134 = vpop.f32.mrb[0].mxu0
      %6135 = vmatprep.mubr.f32.mxu0 0.0
      %6136 = vmatmul.mubr.f32.gmra.mrb[0].mxu0 %v6028
      %v6137 = vpop.f32.mrb[0].mxu0
      %v6138 = vadd.f32 0.0, %v6137
      %v6139 = vpop.f32.mrb[0].mxu0
      %6140 = vmatprep.mubr.f32.mxu0 0.0
      %6141 = vmatmul.mubr.f32.gmra.mrb[0].mxu0 %v6031
      %v6142 = vpop.f32.mrb[0].mxu0
      %v6143 = vadd.f32 0.0, %v6142
      %v6144 = vpop.f32.mrb[0].mxu0
      %6145 = vmatprep.mubr.f32.mxu0 0.0
      %6146 = vmatmul.mubr.f32.gmra.mrb[0].mxu0 %v6034
      %v6147 = vpop.f32.mrb[0].mxu0
      %v6148 = vadd.f32 0.0, %v6147
      %v6149 = vpop.f32.mrb[0].mxu0
      %6150 = vmatprep.mubr.f32.mxu0 0.0
      %6151 = vmatmul.mubr.f32.gmra.mrb[0].mxu0 %v6037
      %v6152 = vpop.f32.mrb[0].mxu0
      %v6153 = vadd.f32 0.0, %v6152
      %v6154 = vpop.f32.mrb[0].mxu0
      %6155 = vmatprep.mubr.f32.mxu0 0.0
      %6156 = vmatmul.mubr.f32.gmra.mrb[0].mxu0 %v6040
      %v6157 = vpop.f32.mrb[0].mxu0
      %v6158 = vadd.f32 0.0, %v6157
      %v6159 = vpop.f32.mrb[0].mxu0
      %6160 = vmatprep.mubr.f32.mxu0 0.0
      %6161 = vmatmul.mubr.f32.gmra.mrb[0].mxu0 %v6043
      %v6162 = vpop.f32.mrb[0].mxu0
      %v6163 = vadd.f32 0.0, %v6162
      %v6164 = vpop.f32.mrb[0].mxu0
      %6165 = vmatprep.mubr.f32.mxu0 0.0
      %6166 = vmatmul.mubr.f32.gmra.mrb[0].mxu0 %v6046
      %v6167 = vpop.f32.mrb[0].mxu0
      %v6168 = vadd.f32 0.0, %v6167
      %v6169 = vpop.f32.mrb[0].mxu0
      %6170 = vmatprep.mubr.f32.mxu0 0.0
      %6171 = vmatmul.mubr.f32.gmra.mrb[0].mxu0 %v6049
      %v6172 = vpop.f32.mrb[0].mxu0
      %v6173 = vadd.f32 0.0, %v6172
      %v6174 = vpop.f32.mrb[0].mxu0
      %6175 = vdwg.mxu0
      %v6176 = vadd.f32 %v5982, %v6118
      %v6177 = vadd.f32 %v5983, %v6123
      %v6178 = vadd.f32 %v5984, %v6128
      %v6179 = vadd.f32 %v5985, %v6133
      %v6180 = vadd.f32 %v5986, %v6138
      %v6181 = vadd.f32 %v5987, %v6143
      %v6182 = vadd.f32 %v5988, %v6148
      %v6183 = vadd.f32 %v5989, %v6153
      %v6184 = vadd.f32 %v5990, %v6158
      %v6185 = vadd.f32 %v5991, %v6163
      %v6186 = vadd.f32 %v5992, %v6168
      %v6187 = vadd.f32 %v5993, %v6173
      %v6188 = vld [vmem:[#allocation3 + $0x19] sm:$0xff]
      %v6189 = vld [vmem:[#allocation3 + $0x21] sm:$0xff]
      %v6190 = vld [vmem:[#allocation3 + $0x29] sm:$0xff]
      %v6191 = vld [vmem:[#allocation3 + $0x31] sm:$0xff]
      %v6192 = vld [vmem:[#allocation3 + $0x39] sm:$0xff]
      %v6193 = vld [vmem:[#allocation3 + $0x41] sm:$0xff]
      %v6194 = vld [vmem:[#allocation3 + $0x49] sm:$0xff]
      %v6195 = vld [vmem:[#allocation3 + $0x51] sm:$0xff]
      %v6196 = vld [vmem:[#allocation3 + $0x59] sm:$0xff]
      %v6197 = vld [vmem:[#allocation3 + $0x61] sm:$0xff]
      %v6198 = vld [vmem:[#allocation3 + $0x69] sm:$0xff]
      %v6199 = vld [vmem:[#allocation3 + $0x71] sm:$0xff]
      %s6200 = scalar_lea.vmem %s5, 448
      %v6201 = vld [vmem:[%s6200] sm:$0xff]
      %v6202 = vld [vmem:[%s6200 + $0x8] sm:$0xff]
      %v6203 = vld [vmem:[%s6200 + $0x10] sm:$0xff]
      %v6204 = vld [vmem:[%s6200 + $0x18] sm:$0xff]
      %v6205 = vld [vmem:[%s6200 + $0x20] sm:$0xff]
      %v6206 = vld [vmem:[%s6200 + $0x28] sm:$0xff]
      %v6207 = vld [vmem:[%s6200 + $0x30] sm:$0xff]
      %v6208 = vld [vmem:[%s6200 + $0x38] sm:$0xff]
      %v6210 = vsel %vm366, %v6188, 0
      %v6213 = vsel %vm366, %v6189, 0
      %v6216 = vsel %vm366, %v6190, 0
      %v6219 = vsel %vm366, %v6191, 0
      %v6222 = vsel %vm366, %v6192, 0
      %v6225 = vsel %vm366, %v6193, 0
      %v6228 = vsel %vm366, %v6194, 0
      %v6231 = vsel %vm366, %v6195, 0
      %v6234 = vsel %vm366, %v6196, 0
      %v6237 = vsel %vm366, %v6197, 0
      %v6240 = vsel %vm366, %v6198, 0
      %v6243 = vsel %vm366, %v6199, 0
      %6245 = vmatprep.subr.mxu0 0.0
      %6246 = vmatpush1.msra.mxu0 %v6201
      %6247 = vmatprep.subr.mxu0 0.0
      %6248 = vmatpush1.msra.mxu0 %v6202
      %6249 = vmatprep.subr.mxu0 0.0
      %6250 = vmatpush1.msra.mxu0 %v6203
      %6251 = vmatprep.subr.mxu0 0.0
      %6252 = vmatpush1.msra.mxu0 %v6204
      %6253 = vmatprep.subr.mxu0 0.0
      %6254 = vmatpush1.msra.mxu0 %v6205
      %6255 = vmatprep.subr.mxu0 0.0
      %6256 = vmatpush1.msra.mxu0 %v6206
      %6257 = vmatprep.subr.mxu0 0.0
      %6258 = vmatpush1.msra.mxu0 %v6207
      %6259 = vmatprep.subr.mxu0 0.0
      %6260 = vmatpush1.msra.mxu0 %v6208
      %6261 = vmatprep.subr.mxu0 0.0
      %6262 = vmatpush1.msra.mxu0 0.0
      %6263 = vmatprep.subr.mxu0 0.0
      %6264 = vmatpush1.msra.mxu0 0.0
      %6265 = vmatprep.subr.mxu0 0.0
      %6266 = vmatpush1.msra.mxu0 0.0
      %6267 = vmatprep.subr.mxu0 0.0
      %6268 = vmatpush1.msra.mxu0 0.0
      %6269 = vmatprep.subr.mxu0 0.0
      %6270 = vmatpush1.msra.mxu0 0.0
      %6271 = vmatprep.subr.mxu0 0.0
      %6272 = vmatpush1.msra.mxu0 0.0
      %6273 = vmatprep.subr.mxu0 0.0
      %6274 = vmatpush1.msra.mxu0 0.0
      %6275 = vmatprep.subr.mxu0 0.0
      %6276 = vmatpush1.msra.mxu0 0.0
      %6277 = vmatprep.subr.mxu0 0.0
      %6278 = vmatpush1.msra.mxu0 0.0
      %6279 = vmatprep.subr.mxu0 0.0
      %6280 = vmatpush1.msra.mxu0 0.0
      %6281 = vmatprep.subr.mxu0 0.0
      %6282 = vmatpush1.msra.mxu0 0.0
      %6283 = vmatprep.subr.mxu0 0.0
      %6284 = vmatpush1.msra.mxu0 0.0
      %6285 = vmatprep.subr.mxu0 0.0
      %6286 = vmatpush1.msra.mxu0 0.0
      %6287 = vmatprep.subr.mxu0 0.0
      %6288 = vmatpush1.msra.mxu0 0.0
      %6289 = vmatprep.subr.mxu0 0.0
      %6290 = vmatpush1.msra.mxu0 0.0
      %6291 = vmatprep.subr.mxu0 0.0
      %6292 = vmatpush1.msra.mxu0 0.0
      %6293 = vmatprep.subr.mxu0 0.0
      %6294 = vmatpush1.msra.mxu0 0.0
      %6295 = vmatprep.subr.mxu0 0.0
      %6296 = vmatpush1.msra.mxu0 0.0
      %6297 = vmatprep.subr.mxu0 0.0
      %6298 = vmatpush1.msra.mxu0 0.0
      %6299 = vmatprep.subr.mxu0 0.0
      %6300 = vmatpush1.msra.mxu0 0.0
      %6301 = vmatprep.subr.mxu0 0.0
      %6302 = vmatpush1.msra.mxu0 0.0
      %6303 = vmatprep.subr.mxu0 0.0
      %6304 = vmatpush1.msra.mxu0 0.0
      %6305 = vmatprep.subr.mxu0 0.0
      %6306 = vmatpush1.msra.mxu0 0.0
      %6307 = vmatprep.subr.mxu0 0.0
      %6308 = vmatpush1.msra.mxu0 0.0
      %6309 = vmatprep.mubr.f32.mxu0 0.0
      %6310 = vmatmul.mubr.f32.gmra.mrb[0].mxu0 %v6210
      %v6311 = vpop.f32.mrb[0].mxu0
      %v6312 = vadd.f32 0.0, %v6311
      %v6313 = vpop.f32.mrb[0].mxu0
      %6314 = vmatprep.mubr.f32.mxu0 0.0
      %6315 = vmatmul.mubr.f32.gmra.mrb[0].mxu0 %v6213
      %v6316 = vpop.f32.mrb[0].mxu0
      %v6317 = vadd.f32 0.0, %v6316
      %v6318 = vpop.f32.mrb[0].mxu0
      %6319 = vmatprep.mubr.f32.mxu0 0.0
      %6320 = vmatmul.mubr.f32.gmra.mrb[0].mxu0 %v6216
      %v6321 = vpop.f32.mrb[0].mxu0
      %v6322 = vadd.f32 0.0, %v6321
      %v6323 = vpop.f32.mrb[0].mxu0
      %6324 = vmatprep.mubr.f32.mxu0 0.0
      %6325 = vmatmul.mubr.f32.gmra.mrb[0].mxu0 %v6219
      %v6326 = vpop.f32.mrb[0].mxu0
      %v6327 = vadd.f32 0.0, %v6326
      %v6328 = vpop.f32.mrb[0].mxu0
      %6329 = vmatprep.mubr.f32.mxu0 0.0
      %6330 = vmatmul.mubr.f32.gmra.mrb[0].mxu0 %v6222
      %v6331 = vpop.f32.mrb[0].mxu0
      %v6332 = vadd.f32 0.0, %v6331
      %v6333 = vpop.f32.mrb[0].mxu0
      %6334 = vmatprep.mubr.f32.mxu0 0.0
      %6335 = vmatmul.mubr.f32.gmra.mrb[0].mxu0 %v6225
      %v6336 = vpop.f32.mrb[0].mxu0
      %v6337 = vadd.f32 0.0, %v6336
      %v6338 = vpop.f32.mrb[0].mxu0
      %6339 = vmatprep.mubr.f32.mxu0 0.0
      %6340 = vmatmul.mubr.f32.gmra.mrb[0].mxu0 %v6228
      %v6341 = vpop.f32.mrb[0].mxu0
      %v6342 = vadd.f32 0.0, %v6341
      %v6343 = vpop.f32.mrb[0].mxu0
      %6344 = vmatprep.mubr.f32.mxu0 0.0
      %6345 = vmatmul.mubr.f32.gmra.mrb[0].mxu0 %v6231
      %v6346 = vpop.f32.mrb[0].mxu0
      %v6347 = vadd.f32 0.0, %v6346
      %v6348 = vpop.f32.mrb[0].mxu0
      %6349 = vmatprep.mubr.f32.mxu0 0.0
      %6350 = vmatmul.mubr.f32.gmra.mrb[0].mxu0 %v6234
      %v6351 = vpop.f32.mrb[0].mxu0
      %v6352 = vadd.f32 0.0, %v6351
      %v6353 = vpop.f32.mrb[0].mxu0
      %6354 = vmatprep.mubr.f32.mxu0 0.0
      %6355 = vmatmul.mubr.f32.gmra.mrb[0].mxu0 %v6237
      %v6356 = vpop.f32.mrb[0].mxu0
      %v6357 = vadd.f32 0.0, %v6356
      %v6358 = vpop.f32.mrb[0].mxu0
      %6359 = vmatprep.mubr.f32.mxu0 0.0
      %6360 = vmatmul.mubr.f32.gmra.mrb[0].mxu0 %v6240
      %v6361 = vpop.f32.mrb[0].mxu0
      %v6362 = vadd.f32 0.0, %v6361
      %v6363 = vpop.f32.mrb[0].mxu0
      %6364 = vmatprep.mubr.f32.mxu0 0.0
      %6365 = vmatmul.mubr.f32.gmra.mrb[0].mxu0 %v6243
      %v6366 = vpop.f32.mrb[0].mxu0
      %v6367 = vadd.f32 0.0, %v6366
      %v6368 = vpop.f32.mrb[0].mxu0
      %6369 = vdwg.mxu0
      %v6370 = vadd.f32 %v6176, %v6312
      %v6371 = vadd.f32 %v6177, %v6317
      %v6372 = vadd.f32 %v6178, %v6322
      %v6373 = vadd.f32 %v6179, %v6327
      %v6374 = vadd.f32 %v6180, %v6332
      %v6375 = vadd.f32 %v6181, %v6337
      %v6376 = vadd.f32 %v6182, %v6342
      %v6377 = vadd.f32 %v6183, %v6347
      %v6378 = vadd.f32 %v6184, %v6352
      %v6379 = vadd.f32 %v6185, %v6357
      %v6380 = vadd.f32 %v6186, %v6362
      %v6381 = vadd.f32 %v6187, %v6367
      %v6382 = vld [vmem:[#allocation3 + $0x1a] sm:$0xff]
      %v6383 = vld [vmem:[#allocation3 + $0x22] sm:$0xff]
      %v6384 = vld [vmem:[#allocation3 + $0x2a] sm:$0xff]
      %v6385 = vld [vmem:[#allocation3 + $0x32] sm:$0xff]
      %v6386 = vld [vmem:[#allocation3 + $0x3a] sm:$0xff]
      %v6387 = vld [vmem:[#allocation3 + $0x42] sm:$0xff]
      %v6388 = vld [vmem:[#allocation3 + $0x4a] sm:$0xff]
      %v6389 = vld [vmem:[#allocation3 + $0x52] sm:$0xff]
      %v6390 = vld [vmem:[#allocation3 + $0x5a] sm:$0xff]
      %v6391 = vld [vmem:[#allocation3 + $0x62] sm:$0xff]
      %v6392 = vld [vmem:[#allocation3 + $0x6a] sm:$0xff]
      %v6393 = vld [vmem:[#allocation3 + $0x72] sm:$0xff]
      %s6394 = scalar_lea.vmem %s5, 512
      %v6395 = vld [vmem:[%s6394] sm:$0xff]
      %v6396 = vld [vmem:[%s6394 + $0x8] sm:$0xff]
      %v6397 = vld [vmem:[%s6394 + $0x10] sm:$0xff]
      %v6398 = vld [vmem:[%s6394 + $0x18] sm:$0xff]
      %v6399 = vld [vmem:[%s6394 + $0x20] sm:$0xff]
      %v6400 = vld [vmem:[%s6394 + $0x28] sm:$0xff]
      %v6401 = vld [vmem:[%s6394 + $0x30] sm:$0xff]
      %v6402 = vld [vmem:[%s6394 + $0x38] sm:$0xff]
      %v6404 = vsel %vm366, %v6382, 0
      %v6407 = vsel %vm366, %v6383, 0
      %v6410 = vsel %vm366, %v6384, 0
      %v6413 = vsel %vm366, %v6385, 0
      %v6416 = vsel %vm366, %v6386, 0
      %v6419 = vsel %vm366, %v6387, 0
      %v6422 = vsel %vm366, %v6388, 0
      %v6425 = vsel %vm366, %v6389, 0
      %v6428 = vsel %vm366, %v6390, 0
      %v6431 = vsel %vm366, %v6391, 0
      %v6434 = vsel %vm366, %v6392, 0
      %v6437 = vsel %vm366, %v6393, 0
      %6439 = vmatprep.subr.mxu0 0.0
      %6440 = vmatpush1.msra.mxu0 %v6395
      %6441 = vmatprep.subr.mxu0 0.0
      %6442 = vmatpush1.msra.mxu0 %v6396
      %6443 = vmatprep.subr.mxu0 0.0
      %6444 = vmatpush1.msra.mxu0 %v6397
      %6445 = vmatprep.subr.mxu0 0.0
      %6446 = vmatpush1.msra.mxu0 %v6398
      %6447 = vmatprep.subr.mxu0 0.0
      %6448 = vmatpush1.msra.mxu0 %v6399
      %6449 = vmatprep.subr.mxu0 0.0
      %6450 = vmatpush1.msra.mxu0 %v6400
      %6451 = vmatprep.subr.mxu0 0.0
      %6452 = vmatpush1.msra.mxu0 %v6401
      %6453 = vmatprep.subr.mxu0 0.0
      %6454 = vmatpush1.msra.mxu0 %v6402
      %6455 = vmatprep.subr.mxu0 0.0
      %6456 = vmatpush1.msra.mxu0 0.0
      %6457 = vmatprep.subr.mxu0 0.0
      %6458 = vmatpush1.msra.mxu0 0.0
      %6459 = vmatprep.subr.mxu0 0.0
      %6460 = vmatpush1.msra.mxu0 0.0
      %6461 = vmatprep.subr.mxu0 0.0
      %6462 = vmatpush1.msra.mxu0 0.0
      %6463 = vmatprep.subr.mxu0 0.0
      %6464 = vmatpush1.msra.mxu0 0.0
      %6465 = vmatprep.subr.mxu0 0.0
      %6466 = vmatpush1.msra.mxu0 0.0
      %6467 = vmatprep.subr.mxu0 0.0
      %6468 = vmatpush1.msra.mxu0 0.0
      %6469 = vmatprep.subr.mxu0 0.0
      %6470 = vmatpush1.msra.mxu0 0.0
      %6471 = vmatprep.subr.mxu0 0.0
      %6472 = vmatpush1.msra.mxu0 0.0
      %6473 = vmatprep.subr.mxu0 0.0
      %6474 = vmatpush1.msra.mxu0 0.0
      %6475 = vmatprep.subr.mxu0 0.0
      %6476 = vmatpush1.msra.mxu0 0.0
      %6477 = vmatprep.subr.mxu0 0.0
      %6478 = vmatpush1.msra.mxu0 0.0
      %6479 = vmatprep.subr.mxu0 0.0
      %6480 = vmatpush1.msra.mxu0 0.0
      %6481 = vmatprep.subr.mxu0 0.0
      %6482 = vmatpush1.msra.mxu0 0.0
      %6483 = vmatprep.subr.mxu0 0.0
      %6484 = vmatpush1.msra.mxu0 0.0
      %6485 = vmatprep.subr.mxu0 0.0
      %6486 = vmatpush1.msra.mxu0 0.0
      %6487 = vmatprep.subr.mxu0 0.0
      %6488 = vmatpush1.msra.mxu0 0.0
      %6489 = vmatprep.subr.mxu0 0.0
      %6490 = vmatpush1.msra.mxu0 0.0
      %6491 = vmatprep.subr.mxu0 0.0
      %6492 = vmatpush1.msra.mxu0 0.0
      %6493 = vmatprep.subr.mxu0 0.0
      %6494 = vmatpush1.msra.mxu0 0.0
      %6495 = vmatprep.subr.mxu0 0.0
      %6496 = vmatpush1.msra.mxu0 0.0
      %6497 = vmatprep.subr.mxu0 0.0
      %6498 = vmatpush1.msra.mxu0 0.0
      %6499 = vmatprep.subr.mxu0 0.0
      %6500 = vmatpush1.msra.mxu0 0.0
      %6501 = vmatprep.subr.mxu0 0.0
      %6502 = vmatpush1.msra.mxu0 0.0
      %6503 = vmatprep.mubr.f32.mxu0 0.0
      %6504 = vmatmul.mubr.f32.gmra.mrb[0].mxu0 %v6404
      %v6505 = vpop.f32.mrb[0].mxu0
      %v6506 = vadd.f32 0.0, %v6505
      %v6507 = vpop.f32.mrb[0].mxu0
      %6508 = vmatprep.mubr.f32.mxu0 0.0
      %6509 = vmatmul.mubr.f32.gmra.mrb[0].mxu0 %v6407
      %v6510 = vpop.f32.mrb[0].mxu0
      %v6511 = vadd.f32 0.0, %v6510
      %v6512 = vpop.f32.mrb[0].mxu0
      %6513 = vmatprep.mubr.f32.mxu0 0.0
      %6514 = vmatmul.mubr.f32.gmra.mrb[0].mxu0 %v6410
      %v6515 = vpop.f32.mrb[0].mxu0
      %v6516 = vadd.f32 0.0, %v6515
      %v6517 = vpop.f32.mrb[0].mxu0
      %6518 = vmatprep.mubr.f32.mxu0 0.0
      %6519 = vmatmul.mubr.f32.gmra.mrb[0].mxu0 %v6413
      %v6520 = vpop.f32.mrb[0].mxu0
      %v6521 = vadd.f32 0.0, %v6520
      %v6522 = vpop.f32.mrb[0].mxu0
      %6523 = vmatprep.mubr.f32.mxu0 0.0
      %6524 = vmatmul.mubr.f32.gmra.mrb[0].mxu0 %v6416
      %v6525 = vpop.f32.mrb[0].mxu0
      %v6526 = vadd.f32 0.0, %v6525
      %v6527 = vpop.f32.mrb[0].mxu0
      %6528 = vmatprep.mubr.f32.mxu0 0.0
      %6529 = vmatmul.mubr.f32.gmra.mrb[0].mxu0 %v6419
      %v6530 = vpop.f32.mrb[0].mxu0
      %v6531 = vadd.f32 0.0, %v6530
      %v6532 = vpop.f32.mrb[0].mxu0
      %6533 = vmatprep.mubr.f32.mxu0 0.0
      %6534 = vmatmul.mubr.f32.gmra.mrb[0].mxu0 %v6422
      %v6535 = vpop.f32.mrb[0].mxu0
      %v6536 = vadd.f32 0.0, %v6535
      %v6537 = vpop.f32.mrb[0].mxu0
      %6538 = vmatprep.mubr.f32.mxu0 0.0
      %6539 = vmatmul.mubr.f32.gmra.mrb[0].mxu0 %v6425
      %v6540 = vpop.f32.mrb[0].mxu0
      %v6541 = vadd.f32 0.0, %v6540
      %v6542 = vpop.f32.mrb[0].mxu0
      %6543 = vmatprep.mubr.f32.mxu0 0.0
      %6544 = vmatmul.mubr.f32.gmra.mrb[0].mxu0 %v6428
      %v6545 = vpop.f32.mrb[0].mxu0
      %v6546 = vadd.f32 0.0, %v6545
      %v6547 = vpop.f32.mrb[0].mxu0
      %6548 = vmatprep.mubr.f32.mxu0 0.0
      %6549 = vmatmul.mubr.f32.gmra.mrb[0].mxu0 %v6431
      %v6550 = vpop.f32.mrb[0].mxu0
      %v6551 = vadd.f32 0.0, %v6550
      %v6552 = vpop.f32.mrb[0].mxu0
      %6553 = vmatprep.mubr.f32.mxu0 0.0
      %6554 = vmatmul.mubr.f32.gmra.mrb[0].mxu0 %v6434
      %v6555 = vpop.f32.mrb[0].mxu0
      %v6556 = vadd.f32 0.0, %v6555
      %v6557 = vpop.f32.mrb[0].mxu0
      %6558 = vmatprep.mubr.f32.mxu0 0.0
      %6559 = vmatmul.mubr.f32.gmra.mrb[0].mxu0 %v6437
      %v6560 = vpop.f32.mrb[0].mxu0
      %v6561 = vadd.f32 0.0, %v6560
      %v6562 = vpop.f32.mrb[0].mxu0
      %6563 = vdwg.mxu0
      %v6564 = vadd.f32 %v6370, %v6506
      %v6565 = vadd.f32 %v6371, %v6511
      %v6566 = vadd.f32 %v6372, %v6516
      %v6567 = vadd.f32 %v6373, %v6521
      %v6568 = vadd.f32 %v6374, %v6526
      %v6569 = vadd.f32 %v6375, %v6531
      %v6570 = vadd.f32 %v6376, %v6536
      %v6571 = vadd.f32 %v6377, %v6541
      %v6572 = vadd.f32 %v6378, %v6546
      %v6573 = vadd.f32 %v6379, %v6551
      %v6574 = vadd.f32 %v6380, %v6556
      %v6575 = vadd.f32 %v6381, %v6561
      %v6576 = vld [vmem:[%s6] sm:$0x1]
      %v6578 = vlaneseq
      %v6579 = vshrl.u32 %v6578, 7
      %v6580 = vsub.s32 0, %v6579
      %v6581 = vrot.slane %v6576, %v6580
      %v6583 = vadd.f32 %v6564, %v6581
      %v6584 = vadd.f32 %v6565, %v6581
      %v6585 = vadd.f32 %v6566, %v6581
      %v6586 = vadd.f32 %v6567, %v6581
      %v6587 = vadd.f32 %v6568, %v6581
      %v6588 = vadd.f32 %v6569, %v6581
      %v6589 = vadd.f32 %v6570, %v6581
      %v6590 = vadd.f32 %v6571, %v6581
      %v6591 = vadd.f32 %v6572, %v6581
      %v6592 = vadd.f32 %v6573, %v6581
      %v6593 = vadd.f32 %v6574, %v6581
      %v6594 = vadd.f32 %v6575, %v6581
      %v6595 = vmax.f32 %v6583, 0.0
      %v6596 = vmax.f32 %v6584, 0.0
      %v6597 = vmax.f32 %v6585, 0.0
      %v6598 = vmax.f32 %v6586, 0.0
      %v6599 = vmax.f32 %v6587, 0.0
      %v6600 = vmax.f32 %v6588, 0.0
      %v6601 = vmax.f32 %v6589, 0.0
      %v6602 = vmax.f32 %v6590, 0.0
      %v6603 = vmax.f32 %v6591, 0.0
      %v6604 = vmax.f32 %v6592, 0.0
      %v6605 = vmax.f32 %v6593, 0.0
      %v6606 = vmax.f32 %v6594, 0.0
      %6607 = vst.msk [vmem:[%s278] sm:$0xff] %vm366, %v6595
      %6608 = vst.msk [vmem:[%s278 + $0x8] sm:$0xff] %vm366, %v6596
      %6609 = vst.msk [vmem:[%s278 + $0x10] sm:$0xff] %vm366, %v6597
      %6610 = vst.msk [vmem:[%s278 + $0x18] sm:$0xff] %vm366, %v6598
      %6611 = vst.msk [vmem:[%s278 + $0x20] sm:$0xff] %vm366, %v6599
      %6612 = vst.msk [vmem:[%s278 + $0x28] sm:$0xff] %vm366, %v6600
      %6613 = vst.msk [vmem:[%s278 + $0x30] sm:$0xff] %vm366, %v6601
      %6614 = vst.msk [vmem:[%s278 + $0x38] sm:$0xff] %vm366, %v6602
      %6615 = vst.msk [vmem:[%s278 + $0x40] sm:$0xff] %vm366, %v6603
      %6616 = vst.msk [vmem:[%s278 + $0x48] sm:$0xff] %vm366, %v6604
      %6617 = vst.msk [vmem:[%s278 + $0x50] sm:$0xff] %vm366, %v6605
      %6618 = vst.msk [vmem:[%s278 + $0x58] sm:$0xff] %vm366, %v6606
      %p6619 = scmp.lt.s32.totalorder %s18, 1
      %s6620 = scalar_select %p6619, %s18, 1
      %s6621 = smul.addr %s6620, 12
      %s6622 = smul.addr %s6621, 8
      %s6623 = scalar_lea.vmem %s7, %s6622
      // Predicated region
      $region49: #{network_forward.1} parent=47 // pred_check
        %p6624 = pneg %p188
      $region50: #{network_forward.1} parent=47 // pred_check_branch
        %6626 = sbr.rel (%p6624) target = $region52
      $region51: #{network_forward.1} parent=47 // pred_region
        _
      $region52: #{network_forward.1} parent=47 // pred_fallthru
        _
    $region48: #{network_forward.1} parent=5 // pred_fallthru
      _
    %p6627 = scmp.le.s32.totalorder 2, %s13
    // Predicated region
    $region53: #{network_forward.1} parent=5 // pred_check
      %p6628 = pneg %p6627
    $region54: #{network_forward.1} parent=5 // pred_check_branch
      %6630 = sbr.rel (%p6628) target = $region56
    $region55: #{network_forward.1} parent=5 // pred_region
      %s6631 = ssub.s32 %s13, 2
      // Predicated region
      $region57: #{network_forward.1} parent=55 // pred_check
        %p6632 = pneg %p194
      $region58: #{network_forward.1} parent=55 // pred_check_branch
        %6634 = sbr.rel (%p6632) target = $region60
      $region59: #{network_forward.1} parent=55 // pred_region
        %p6635 = scmp.lt.s32.totalorder %s19, 1
        %s6636 = scalar_select %p6635, %s19, 1
        %s6637 = smul.addr %s6636, 12
        %s6638 = smul.addr %s6637, 8
        %s6639 = scalar_lea.vmem %s7, %s6638
      $region60: #{network_forward.1} parent=55 // pred_fallthru
        _
    $region56: #{network_forward.1} parent=5 // pred_fallthru
      _
  $region6: #{network_forward.1} parent=0 // loop_footer
    %s17 = sadd.s32 1, %s13
  $region7: #{network_forward.1} parent=0 // loop_footer_branch
    %12 = sbr.rel target = $region3
  $region8: #{network_forward.1} parent=0 // loop_exit
    _

</llo_original>
